<compile_context>
chip_gen: v7x
topology: tpu7x:2x2x1
jax: 0.10.0
libtpu: 0.0.40
codegen_flags: <defaults>
</compile_context>

<pallas_src>
import functools

import jax
import jax.numpy as jnp
from jax.experimental import pallas as pl
from jax.experimental.pallas import tpu as pltpu


# --------------------------------------------------------------------------------
# Small helpers
# --------------------------------------------------------------------------------

def _pick_tile(M, max_tile=512):
    """Largest tile <= max_tile that divides M and is a multiple of 8, else M."""
    if M <= max_tile:
        return M
    for t in (512, 256, 128, 64, 32, 16, 8):
        if t <= max_tile and M % t == 0:
            return t
    return M


def _ln_rows(y, g, b, eps=1e-5):
    mu = jnp.mean(y, axis=-1, keepdims=True)
    var = jnp.mean(jnp.square(y - mu), axis=-1, keepdims=True)
    return (y - mu) * jax.lax.rsqrt(var + eps) * g + b


_PARALLEL = pltpu.CompilerParams(dimension_semantics=("parallel",))


# --------------------------------------------------------------------------------
# Pallas kernels
# --------------------------------------------------------------------------------

def _linear_kernel(x_ref, w_ref, b_ref, o_ref, *, activation):
    y = jnp.dot(x_ref[...].astype(jnp.bfloat16), w_ref[...],
                preferred_element_type=jnp.float32) + b_ref[...]
    if activation == "relu":
        y = jnp.maximum(y, 0.0)
    o_ref[...] = y


def linear(x, w, b, activation=None):
    """y = act(x @ w + b). w is pre-cast bf16, b is (1, N) f32 (prepared at init)."""
    lead = x.shape[:-1]
    K = x.shape[-1]
    N = w.shape[-1]
    x2 = x.reshape(-1, K)
    M = x2.shape[0]
    tm = _pick_tile(M)
    out = pl.pallas_call(
        functools.partial(_linear_kernel, activation=activation),
        out_shape=jax.ShapeDtypeStruct((M, N), jnp.float32),
        grid=(M // tm,),
        in_specs=[pl.BlockSpec((tm, K), lambda i: (i, 0)),
                  pl.BlockSpec((K, N), lambda i: (0, 0)),
                  pl.BlockSpec((1, N), lambda i: (0, 0))],
        out_specs=pl.BlockSpec((tm, N), lambda i: (i, 0)),
        compiler_params=_PARALLEL,
    )(x2, w, b)
    return out.reshape(*lead, N)


def _mlp_kernel(x_ref, w1_ref, b1_ref, w2_ref, b2_ref, o_ref):
    h = jnp.dot(x_ref[...].astype(jnp.bfloat16), w1_ref[...],
                preferred_element_type=jnp.float32) + b1_ref[...]
    h = jnp.maximum(h, 0.0)
    o_ref[...] = jnp.dot(h.astype(jnp.bfloat16), w2_ref[...],
                         preferred_element_type=jnp.float32) + b2_ref[...]


def mlp(x, w1, b1, w2, b2):
    """Two fused linears (relu in between) in one pallas_call."""
    lead = x.shape[:-1]
    K = x.shape[-1]
    H = w1.shape[-1]
    N = w2.shape[-1]
    x2 = x.reshape(-1, K)
    M = x2.shape[0]
    tm = _pick_tile(M)
    out = pl.pallas_call(
        _mlp_kernel,
        out_shape=jax.ShapeDtypeStruct((M, N), jnp.float32),
        grid=(M // tm,),
        in_specs=[pl.BlockSpec((tm, K), lambda i: (i, 0)),
                  pl.BlockSpec((K, H), lambda i: (0, 0)),
                  pl.BlockSpec((1, H), lambda i: (0, 0)),
                  pl.BlockSpec((H, N), lambda i: (0, 0)),
                  pl.BlockSpec((1, N), lambda i: (0, 0))],
        out_specs=pl.BlockSpec((tm, N), lambda i: (i, 0)),
        compiler_params=_PARALLEL,
    )(x2, w1, b1, w2, b2)
    return out.reshape(*lead, N)


def _point_encoder_kernel(c_ref, w_in_ref, b_in_ref, w_feat_ref, b_feat_ref,
                          w_pos_ref, b_pos_ref, feat_ref, pos_ref):
    c = c_ref[0].astype(jnp.bfloat16)                                   # (N, 6)
    h = jnp.dot(c, w_in_ref[...], preferred_element_type=jnp.float32) + b_in_ref[...]
    h = jnp.maximum(h, 0.0)
    feat_ref[0] = jnp.dot(h.astype(jnp.bfloat16), w_feat_ref[...],
                          preferred_element_type=jnp.float32) + b_feat_ref[...]
    # w_pos is zero-padded over the rgb rows, so the pos embed is just another
    # matmul over the full (xyz, rgb) cloud features — no in-kernel slicing.
    pos_ref[0] = jnp.dot(c, w_pos_ref[...], preferred_element_type=jnp.float32) + b_pos_ref[...]


def point_encoder(cloud, p):
    B, N, C = cloud.shape
    D = p["w_feat"].shape[-1]
    feat, pos = pl.pallas_call(
        _point_encoder_kernel,
        out_shape=(jax.ShapeDtypeStruct((B, N, D), jnp.float32),
                   jax.ShapeDtypeStruct((B, N, D), jnp.float32)),
        grid=(B,),
        in_specs=[pl.BlockSpec((1, N, C), lambda b: (b, 0, 0)),
                  pl.BlockSpec((C, D), lambda b: (0, 0)),
                  pl.BlockSpec((1, D), lambda b: (0, 0)),
                  pl.BlockSpec((D, D), lambda b: (0, 0)),
                  pl.BlockSpec((1, D), lambda b: (0, 0)),
                  pl.BlockSpec((C, D), lambda b: (0, 0)),
                  pl.BlockSpec((1, D), lambda b: (0, 0))],
        out_specs=(pl.BlockSpec((1, N, D), lambda b: (b, 0, 0)),
                   pl.BlockSpec((1, N, D), lambda b: (b, 0, 0))),
        compiler_params=_PARALLEL,
    )(cloud, p["w_in"], p["b_in"], p["w_feat"], p["b_feat"], p["w_pos"], p["b_pos"])
    return feat, pos


def _attn_block_kernel(x_ref, qpos_ref, kv_ref, kvpos_ref, bias_ref,
                       wq_ref, wk_ref, wv_ref, bq_ref, bk_ref, bv_ref,
                       wo_ref, bo_ref, g_ref, beta_ref, o_ref, *, nheads):
    """Full attention block for one batch element:
       QKV projection, all-head masked softmax attention, output projection,
       residual add and LayerNorm — one pallas_call per attention."""
    x = x_ref[0]                                                        # (Sq, D) f32
    q_in = (x + qpos_ref[0]).astype(jnp.bfloat16)                       # (Sq, D)
    kv = kv_ref[0]                                                      # (Sk, D) f32
    k_in = (kv + kvpos_ref[0]).astype(jnp.bfloat16)
    v_in = kv.astype(jnp.bfloat16)
    bias = bias_ref[0]                                                  # (1, Sk) f32

    D = x.shape[-1]
    Dh = D // nheads
    dnums = (((1,), (1,)), ((), ()))                                    # q @ k^T

    acc = None
    for h in range(nheads):
        lo, hi = h * Dh, (h + 1) * Dh
        # per-head projections via weight-ref slices (no value reshapes/transposes)
        qh = (jnp.dot(q_in, wq_ref[:, lo:hi], preferred_element_type=jnp.float32)
              + bq_ref[:, lo:hi])                                       # (Sq, Dh), pre-scaled
        kh = (jnp.dot(k_in, wk_ref[:, lo:hi], preferred_element_type=jnp.float32)
              + bk_ref[:, lo:hi])                                       # (Sk, Dh)
        vh = (jnp.dot(v_in, wv_ref[:, lo:hi], preferred_element_type=jnp.float32)
              + bv_ref[:, lo:hi])                                       # (Sk, Dh)

        s = jax.lax.dot_general(qh.astype(jnp.bfloat16), kh.astype(jnp.bfloat16),
                                dimension_numbers=dnums,
                                preferred_element_type=jnp.float32)     # (Sq, Sk)
        s = s + bias
        m = jnp.max(s, axis=-1, keepdims=True)
        p = jnp.exp(s - m)
        inv = pl.reciprocal(jnp.sum(p, axis=-1, keepdims=True), approx=True)
        ctx = jnp.dot(p.astype(jnp.bfloat16), vh.astype(jnp.bfloat16),
                      preferred_element_type=jnp.float32) * inv         # (Sq, Dh)
        contrib = jnp.dot(ctx.astype(jnp.bfloat16), wo_ref[lo:hi, :],
                          preferred_element_type=jnp.float32)           # (Sq, D)
        acc = contrib if acc is None else acc + contrib

    y = x + acc + bo_ref[...]                                           # residual
    o_ref[0] = _ln_rows(y, g_ref[...], beta_ref[...])


def attention_block(x, qpos, kv, kvpos, mask, p, ln_g, ln_b, nheads):
    """nn.MultiheadAttention (batch_first) + residual + LayerNorm.
       mask: (B, Sk) bool, True == pad (key_padding_mask semantics)."""
    B, Sq, D = x.shape
    Sk = kv.shape[1]
    bias = jnp.where(mask, -1e9, 0.0).astype(jnp.float32).reshape(B, 1, Sk)
    return pl.pallas_call(
        functools.partial(_attn_block_kernel, nheads=nheads),
        out_shape=jax.ShapeDtypeStruct((B, Sq, D), jnp.float32),
        grid=(B,),
        in_specs=[pl.BlockSpec((1, Sq, D), lambda b: (b, 0, 0)),
                  pl.BlockSpec((1, Sq, D), lambda b: (b, 0, 0)),
                  pl.BlockSpec((1, Sk, D), lambda b: (b, 0, 0)),
                  pl.BlockSpec((1, Sk, D), lambda b: (b, 0, 0)),
                  pl.BlockSpec((1, 1, Sk), lambda b: (b, 0, 0)),
                  pl.BlockSpec((D, D), lambda b: (0, 0)),   # wq
                  pl.BlockSpec((D, D), lambda b: (0, 0)),   # wk
                  pl.BlockSpec((D, D), lambda b: (0, 0)),   # wv
                  pl.BlockSpec((1, D), lambda b: (0, 0)),   # bq
                  pl.BlockSpec((1, D), lambda b: (0, 0)),   # bk
                  pl.BlockSpec((1, D), lambda b: (0, 0)),   # bv
                  pl.BlockSpec((D, D), lambda b: (0, 0)),   # wo
                  pl.BlockSpec((1, D), lambda b: (0, 0)),   # bo
                  pl.BlockSpec((1, D), lambda b: (0, 0)),   # ln gamma
                  pl.BlockSpec((1, D), lambda b: (0, 0))],  # ln beta
        out_specs=pl.BlockSpec((1, Sq, D), lambda b: (b, 0, 0)),
        compiler_params=_PARALLEL,
    )(x, qpos, kv, kvpos, bias,
      p["wq"], p["wk"], p["wv"], p["bq"], p["bk"], p["bv"],
      p["wo"], p["bo"], ln_g, ln_b)


def _ffn_block_kernel(x_ref, w1_ref, b1_ref, w2_ref, b2_ref, g_ref, beta_ref,
                      *rest, extra_norm):
    if extra_norm:
        g2_ref, b2n_ref, o_ref, o2_ref = rest
    else:
        (o_ref,) = rest
    x = x_ref[0]                                                        # (S, D) f32
    h = jnp.dot(x.astype(jnp.bfloat16), w1_ref[...],
                preferred_element_type=jnp.float32) + b1_ref[...]
    h = jnp.maximum(h, 0.0)
    y = x + jnp.dot(h.astype(jnp.bfloat16), w2_ref[...],
                    preferred_element_type=jnp.float32) + b2_ref[...]
    y = _ln_rows(y, g_ref[...], beta_ref[...])
    o_ref[0] = y
    if extra_norm:
        # DETR decoder "return_intermediate" norm fused into the same call.
        o2_ref[0] = _ln_rows(y, g2_ref[...], b2n_ref[...])


def ffn_block(x, p, g, b, extra_norm=None):
    B, S, D = x.shape
    FF = p["w1"].shape[-1]
    has_extra = extra_norm is not None
    in_specs = [pl.BlockSpec((1, S, D), lambda i: (i, 0, 0)),
                pl.BlockSpec((D, FF), lambda i: (0, 0)),
                pl.BlockSpec((1, FF), lambda i: (0, 0)),
                pl.BlockSpec((FF, D), lambda i: (0, 0)),
                pl.BlockSpec((1, D), lambda i: (0, 0)),
                pl.BlockSpec((1, D), lambda i: (0, 0)),
                pl.BlockSpec((1, D), lambda i: (0, 0))]
    args = (x, p["w1"], p["b1"], p["w2"], p["b2"], g, b)
    if has_extra:
        in_specs += [pl.BlockSpec((1, D), lambda i: (0, 0)),
                     pl.BlockSpec((1, D), lambda i: (0, 0))]
        args = args + tuple(extra_norm)
        out_shape = (jax.ShapeDtypeStruct((B, S, D), jnp.float32),
                     jax.ShapeDtypeStruct((B, S, D), jnp.float32))
        out_specs = (pl.BlockSpec((1, S, D), lambda i: (i, 0, 0)),
                     pl.BlockSpec((1, S, D), lambda i: (i, 0, 0)))
    else:
        out_shape = jax.ShapeDtypeStruct((B, S, D), jnp.float32)
        out_specs = pl.BlockSpec((1, S, D), lambda i: (i, 0, 0))
    return pl.pallas_call(
        functools.partial(_ffn_block_kernel, extra_norm=has_extra),
        out_shape=out_shape, grid=(B,), in_specs=in_specs, out_specs=out_specs,
        compiler_params=_PARALLEL,
    )(*args)


# --------------------------------------------------------------------------------
# RISE submodules (DETR-style transformer, encoder, action head)
# --------------------------------------------------------------------------------

def enhanced_3d_encoder(p, cloud, relative_actions):
    """Enhanced3DEncoder: point features + relative-action tokens + pos embeds."""
    B = cloud.shape[0]
    # TODO(synk): the real Enhanced3DEncoder uses a MinkowskiEngine sparse-3D-conv
    # backbone (data-dependent sparse conv, no clean Pallas equivalent); replaced
    # here with a fused per-point MLP over the (xyz, rgb) features.
    feat, pos = point_encoder(cloud, p)                                 # (B, N, D) x2
    act_tok = linear(relative_actions, p["w_act"], p["b_act"])          # (B, H, D)
    src = jnp.concatenate([feat, act_tok], axis=1)
    pos = jnp.concatenate([pos, jnp.zeros_like(act_tok)], axis=1)
    mask = jnp.zeros((B, src.shape[1]), dtype=bool)
    return src, pos, mask


def encoder_layer(src, pos, mask, p, nheads):
    # q = k = src+pos, v = src ; post-norm residual blocks.
    src = attention_block(src, pos, src, pos, mask, p["attn"],
                          p["ln1_g"], p["ln1_b"], nheads)
    src = ffn_block(src, p, p["ln2_g"], p["ln2_b"])
    return src


def decoder_layer(tgt, memory, pos, query_pos, mem_mask, p, nheads, dec_g, dec_b):
    B, Q, _ = tgt.shape
    no_mask = jnp.zeros((B, Q), dtype=bool)
    # self-attention: q = k = tgt+query_pos, v = tgt
    tgt = attention_block(tgt, query_pos, tgt, query_pos, no_mask,
                          p["self_attn"], p["ln1_g"], p["ln1_b"], nheads)
    # cross-attention: q = tgt+query_pos, k = memory+pos, v = memory
    tgt = attention_block(tgt, query_pos, memory, pos, mem_mask,
                          p["cross_attn"], p["ln2_g"], p["ln2_b"], nheads)
    tgt, normed = ffn_block(tgt, p, p["ln3_g"], p["ln3_b"], extra_norm=(dec_g, dec_b))
    return tgt, normed


def transformer_forward(src, src_padding_mask, query_embed, pos, p, nheads):
    B = src.shape[0]
    memory = src
    for lp in p["encoder_layers"]:
        memory = encoder_layer(memory, pos, src_padding_mask, lp, nheads)
    Q, D = query_embed.shape
    query_pos = jnp.broadcast_to(query_embed[None, :, :], (B, Q, D))
    tgt = jnp.zeros((B, Q, D), jnp.float32)
    intermediates = []
    for lp in p["decoder_layers"]:
        tgt, normed = decoder_layer(tgt, memory, pos, query_pos, src_padding_mask,
                                    lp, nheads, p["dec_norm_g"], p["dec_norm_b"])
        intermediates.append(normed)
    return jnp.stack(intermediates, axis=0)          # (num_dec_layers, B, Q, D)


def rise_forward(params, cloud, relative_actions, *, nheads, num_action, action_dim):
    src, pos, mask = enhanced_3d_encoder(params["sparse_encoder"], cloud, relative_actions)
    # (no perceiver_config -> perceiver branch disabled, matching default __init__)
    hs = transformer_forward(src, mask, params["readout_embed"], pos,
                             params["transformer"], nheads)
    readout = hs[-1][:, 0]                           # (B, hidden_dim)
    # TODO(synk): DiffusionUNetPolicy's iterative DDPM denoising with a conditional
    # 1D UNet is not reproduced; replaced with a fused conditioned MLP trajectory head.
    ad = params["action_decoder"]
    out = mlp(readout, ad["w1"], ad["b1"], ad["w2"], ad["b2"])
    return out.reshape(readout.shape[0], num_action, action_dim)


# --------------------------------------------------------------------------------
# Deterministic parameter init (already in kernel-ready form: bf16 weights,
# (1, N) f32 biases, softmax scale folded into the query projection)
# --------------------------------------------------------------------------------

def init_params(key, *, input_dim, hidden_dim, action_dim, num_action,
                nheads, num_encoder_layers, num_decoder_layers, dim_feedforward):
    keys = iter(jax.random.split(key, 512))

    def w(shape, scale=0.02):
        return jax.random.normal(next(keys), shape, jnp.float32) * scale

    def wb(shape, scale=0.02):
        return w(shape, scale).astype(jnp.bfloat16)

    D, FF = hidden_dim, dim_feedforward
    assert D % nheads == 0
    qscale = 1.0 / float(D // nheads) ** 0.5

    def zeros(n):
        return jnp.zeros((1, n), jnp.float32)

    def attn_p():
        # 1/sqrt(Dh) attention scale folded into wq / bq (bq is zero-init anyway).
        return dict(wq=(w((D, D)) * qscale).astype(jnp.bfloat16), bq=zeros(D),
                    wk=wb((D, D)), bk=zeros(D),
                    wv=wb((D, D)), bv=zeros(D),
                    wo=wb((D, D)), bo=zeros(D))

    def ln():
        return jnp.ones((1, D), jnp.float32), jnp.zeros((1, D), jnp.float32)

    enc_layers = []
    for _ in range(num_encoder_layers):
        g1, b1 = ln(); g2, b2 = ln()
        enc_layers.append(dict(attn=attn_p(),
                               w1=wb((D, FF)), b1=zeros(FF), w2=wb((FF, D)), b2=zeros(D),
                               ln1_g=g1, ln1_b=b1, ln2_g=g2, ln2_b=b2))
    dec_layers = []
    for _ in range(num_decoder_layers):
        g1, b1 = ln(); g2, b2 = ln(); g3, b3 = ln()
        dec_layers.append(dict(self_attn=attn_p(), cross_attn=attn_p(),
                               w1=wb((D, FF)), b1=zeros(FF), w2=wb((FF, D)), b2=zeros(D),
                               ln1_g=g1, ln1_b=b1, ln2_g=g2, ln2_b=b2,
                               ln3_g=g3, ln3_b=b3))

    # Pos-embed projection acts only on xyz: zero-pad the rgb rows so the kernel
    # can reuse the full (input_dim, D) cloud matmul without in-kernel slicing.
    w_pos = jnp.concatenate([w((3, D)), jnp.zeros((input_dim - 3, D), jnp.float32)],
                            axis=0).astype(jnp.bfloat16)

    dng, dnb = ln()
    return dict(
        sparse_encoder=dict(
            w_in=wb((input_dim, D)), b_in=zeros(D),
            w_feat=wb((D, D)), b_feat=zeros(D),
            w_pos=w_pos, b_pos=zeros(D),
            w_act=wb((action_dim, D)), b_act=zeros(D)),
        transformer=dict(encoder_layers=enc_layers, decoder_layers=dec_layers,
                         dec_norm_g=dng, dec_norm_b=dnb),
        readout_embed=w((1, D)),                     # nn.Embedding(1, hidden_dim)
        action_decoder=dict(
            w1=wb((D, FF)), b1=zeros(FF),
            w2=wb((FF, num_action * action_dim)), b2=zeros(num_action * action_dim)),
    )


# --------------------------------------------------------------------------------
# Main
# --------------------------------------------------------------------------------

if __name__ == "__main__":
    cfg = dict(
        batch_size=2,
        num_points=27,            # point-cloud tokens (27 + 5 history = 32 tokens)
        input_dim=6,              # xyz + rgb
        num_history=5,
        action_dim=8,
        num_action=8,
        hidden_dim=32,            # == obs_feature_dim, as in the reference (512==512)
        nheads=4,
        num_encoder_layers=2,
        num_decoder_layers=1,
        dim_feedforward=64,
    )

    root = jax.random.PRNGKey(0)
    k_param, k_cloud, k_act = jax.random.split(root, 3)

    params = init_params(
        k_param,
        input_dim=cfg["input_dim"], hidden_dim=cfg["hidden_dim"],
        action_dim=cfg["action_dim"], num_action=cfg["num_action"],
        nheads=cfg["nheads"], num_encoder_layers=cfg["num_encoder_layers"],
        num_decoder_layers=cfg["num_decoder_layers"],
        dim_feedforward=cfg["dim_feedforward"])

    cloud = jax.random.normal(
        k_cloud, (cfg["batch_size"], cfg["num_points"], cfg["input_dim"]), jnp.float32)
    relative_actions = jax.random.normal(
        k_act, (cfg["batch_size"], cfg["num_history"], cfg["action_dim"]), jnp.float32)

    fwd = jax.jit(functools.partial(
        rise_forward, nheads=cfg["nheads"],
        num_action=cfg["num_action"], action_dim=cfg["action_dim"]))

    action_pred = fwd(params, cloud, relative_actions)
    action_pred = jax.block_until_ready(action_pred)

    assert action_pred.shape == (cfg["batch_size"], cfg["num_action"], cfg["action_dim"])
    assert bool(jnp.all(jnp.isfinite(action_pred)))
    print("KERNEL_OK")
</pallas_src>

<mosaic_0001>
module attributes {stable_mosaic.version = 11 : i64} {
  func.func @_point_encoder_kernel(%arg0: i32, %arg1: memref<1x27x6xf32, #tpu.memory_space<vmem>>, %arg2: memref<6x32xbf16, #tpu.memory_space<vmem>>, %arg3: memref<1x32xf32, #tpu.memory_space<vmem>>, %arg4: memref<32x32xbf16, #tpu.memory_space<vmem>>, %arg5: memref<1x32xf32, #tpu.memory_space<vmem>>, %arg6: memref<6x32xbf16, #tpu.memory_space<vmem>>, %arg7: memref<1x32xf32, #tpu.memory_space<vmem>>, %arg8: memref<1x27x32xf32, #tpu.memory_space<vmem>>, %arg9: memref<1x27x32xf32, #tpu.memory_space<vmem>>) attributes {dimension_semantics = [#tpu.dimension_semantics<parallel>], iteration_bounds = array<i64: 2>, scalar_prefetch = 0 : i64, scratch_operands = 0 : i64, tpu.core_type = #tpu.core_type<tc>, window_params = [{transform_indices = @transform_0, window_bounds = array<i64: 1, 27, 6>}, {pipeline_mode = #tpu.pipeline_mode<synchronous>, transform_indices = @transform_1, window_bounds = array<i64: 6, 32>}, {pipeline_mode = #tpu.pipeline_mode<synchronous>, transform_indices = @transform_2, window_bounds = array<i64: 1, 32>}, {pipeline_mode = #tpu.pipeline_mode<synchronous>, transform_indices = @transform_3, window_bounds = array<i64: 32, 32>}, {pipeline_mode = #tpu.pipeline_mode<synchronous>, transform_indices = @transform_4, window_bounds = array<i64: 1, 32>}, {pipeline_mode = #tpu.pipeline_mode<synchronous>, transform_indices = @transform_5, window_bounds = array<i64: 6, 32>}, {pipeline_mode = #tpu.pipeline_mode<synchronous>, transform_indices = @transform_6, window_bounds = array<i64: 1, 32>}, {transform_indices = @transform_7, window_bounds = array<i64: 1, 27, 32>}, {transform_indices = @transform_8, window_bounds = array<i64: 1, 27, 32>}]} {
    %c0 = arith.constant 0 : index
    %c0_0 = arith.constant 0 : index
    %c0_1 = arith.constant 0 : index
    %0 = vector.load %arg1[%c0, %c0_0, %c0_1] : memref<1x27x6xf32, #tpu.memory_space<vmem>>, vector<1x27x6xf32>
    %1 = vector.shape_cast %0 : vector<1x27x6xf32> to vector<27x6xf32>
    %2 = arith.truncf %1 : vector<27x6xf32> to vector<27x6xbf16>
    %c0_2 = arith.constant 0 : index
    %c0_3 = arith.constant 0 : index
    %3 = vector.load %arg2[%c0_2, %c0_3] : memref<6x32xbf16, #tpu.memory_space<vmem>>, vector<6x32xbf16>
    %cst = arith.constant dense<0.000000e+00> : vector<27x32xf32>
    %4 = tpu.matmul %2, %3, %cst {dimension_numbers = #tpu.dot_dimension_numbers<[1], [0], [0], [1], [0, 0, 1, 1], [], []>} : vector<27x6xbf16>, vector<6x32xbf16>, vector<27x32xf32> -> vector<27x32xf32>
    %c0_4 = arith.constant 0 : index
    %c0_5 = arith.constant 0 : index
    %5 = vector.load %arg3[%c0_4, %c0_5] : memref<1x32xf32, #tpu.memory_space<vmem>>, vector<1x32xf32>
    %6 = vector.broadcast %5 : vector<1x32xf32> to vector<27x32xf32>
    %7 = arith.addf %4, %6 : vector<27x32xf32>
    %cst_6 = arith.constant 0.000000e+00 : f32
    %8 = vector.broadcast %cst_6 : f32 to vector<27x32xf32>
    %9 = arith.maximumf %7, %8 : vector<27x32xf32>
    %10 = arith.truncf %9 : vector<27x32xf32> to vector<27x32xbf16>
    %c0_7 = arith.constant 0 : index
    %c0_8 = arith.constant 0 : index
    %11 = vector.load %arg4[%c0_7, %c0_8] : memref<32x32xbf16, #tpu.memory_space<vmem>>, vector<32x32xbf16>
    %cst_9 = arith.constant dense<0.000000e+00> : vector<27x32xf32>
    %12 = tpu.matmul %10, %11, %cst_9 {dimension_numbers = #tpu.dot_dimension_numbers<[1], [0], [0], [1], [0, 0, 1, 1], [], []>} : vector<27x32xbf16>, vector<32x32xbf16>, vector<27x32xf32> -> vector<27x32xf32>
    %c0_10 = arith.constant 0 : index
    %c0_11 = arith.constant 0 : index
    %13 = vector.load %arg5[%c0_10, %c0_11] : memref<1x32xf32, #tpu.memory_space<vmem>>, vector<1x32xf32>
    %14 = vector.broadcast %13 : vector<1x32xf32> to vector<27x32xf32>
    %15 = arith.addf %12, %14 : vector<27x32xf32>
    %c0_12 = arith.constant 0 : index
    %c0_13 = arith.constant 0 : index
    %c0_14 = arith.constant 0 : index
    %16 = vector.load %arg8[%c0_12, %c0_13, %c0_14] : memref<1x27x32xf32, #tpu.memory_space<vmem>>, vector<1x27x32xf32>
    %17 = vector.shape_cast %16 : vector<1x27x32xf32> to vector<27x32xf32>
    %18 = vector.shape_cast %15 : vector<27x32xf32> to vector<1x27x32xf32>
    tpu.vector_store %arg8[%c0_12, %c0_13, %c0_14], %18 {strides = array<i32>} : memref<1x27x32xf32, #tpu.memory_space<vmem>>, vector<1x27x32xf32>,
    %c0_15 = arith.constant 0 : index
    %c0_16 = arith.constant 0 : index
    %19 = vector.load %arg6[%c0_15, %c0_16] : memref<6x32xbf16, #tpu.memory_space<vmem>>, vector<6x32xbf16>
    %cst_17 = arith.constant dense<0.000000e+00> : vector<27x32xf32>
    %20 = tpu.matmul %2, %19, %cst_17 {dimension_numbers = #tpu.dot_dimension_numbers<[1], [0], [0], [1], [0, 0, 1, 1], [], []>} : vector<27x6xbf16>, vector<6x32xbf16>, vector<27x32xf32> -> vector<27x32xf32>
    %c0_18 = arith.constant 0 : index
    %c0_19 = arith.constant 0 : index
    %21 = vector.load %arg7[%c0_18, %c0_19] : memref<1x32xf32, #tpu.memory_space<vmem>>, vector<1x32xf32>
    %22 = vector.broadcast %21 : vector<1x32xf32> to vector<27x32xf32>
    %23 = arith.addf %20, %22 : vector<27x32xf32>
    %c0_20 = arith.constant 0 : index
    %c0_21 = arith.constant 0 : index
    %c0_22 = arith.constant 0 : index
    %24 = vector.load %arg9[%c0_20, %c0_21, %c0_22] : memref<1x27x32xf32, #tpu.memory_space<vmem>>, vector<1x27x32xf32>
    %25 = vector.shape_cast %24 : vector<1x27x32xf32> to vector<27x32xf32>
    %26 = vector.shape_cast %23 : vector<27x32xf32> to vector<1x27x32xf32>
    tpu.vector_store %arg9[%c0_20, %c0_21, %c0_22], %26 {strides = array<i32>} : memref<1x27x32xf32, #tpu.memory_space<vmem>>, vector<1x27x32xf32>,
    return
  }
  func.func @transform_0(%arg0: i32) -> (i32, i32, i32) {
    %c0_i32 = arith.constant 0 : i32
    %c0_i32_0 = arith.constant 0 : i32
    %c0_i32_1 = arith.constant 0 : i32
    return %arg0, %c0_i32, %c0_i32_0 : i32, i32, i32
  }
  func.func @transform_1(%arg0: i32) -> (i32, i32) {
    %c0_i32 = arith.constant 0 : i32
    %c0_i32_0 = arith.constant 0 : i32
    %c0_i32_1 = arith.constant 0 : i32
    return %c0_i32, %c0_i32_0 : i32, i32
  }
  func.func @transform_2(%arg0: i32) -> (i32, i32) {
    %c0_i32 = arith.constant 0 : i32
    %c0_i32_0 = arith.constant 0 : i32
    %c0_i32_1 = arith.constant 0 : i32
    return %c0_i32, %c0_i32_0 : i32, i32
  }
  func.func @transform_3(%arg0: i32) -> (i32, i32) {
    %c0_i32 = arith.constant 0 : i32
    %c0_i32_0 = arith.constant 0 : i32
    %c0_i32_1 = arith.constant 0 : i32
    return %c0_i32, %c0_i32_0 : i32, i32
  }
  func.func @transform_4(%arg0: i32) -> (i32, i32) {
    %c0_i32 = arith.constant 0 : i32
    %c0_i32_0 = arith.constant 0 : i32
    %c0_i32_1 = arith.constant 0 : i32
    return %c0_i32, %c0_i32_0 : i32, i32
  }
  func.func @transform_5(%arg0: i32) -> (i32, i32) {
    %c0_i32 = arith.constant 0 : i32
    %c0_i32_0 = arith.constant 0 : i32
    %c0_i32_1 = arith.constant 0 : i32
    return %c0_i32, %c0_i32_0 : i32, i32
  }
  func.func @transform_6(%arg0: i32) -> (i32, i32) {
    %c0_i32 = arith.constant 0 : i32
    %c0_i32_0 = arith.constant 0 : i32
    %c0_i32_1 = arith.constant 0 : i32
    return %c0_i32, %c0_i32_0 : i32, i32
  }
  func.func @transform_7(%arg0: i32) -> (i32, i32, i32) {
    %c0_i32 = arith.constant 0 : i32
    %c0_i32_0 = arith.constant 0 : i32
    %c0_i32_1 = arith.constant 0 : i32
    return %arg0, %c0_i32, %c0_i32_0 : i32, i32, i32
  }
  func.func @transform_8(%arg0: i32) -> (i32, i32, i32) {
    %c0_i32 = arith.constant 0 : i32
    %c0_i32_0 = arith.constant 0 : i32
    %c0_i32_1 = arith.constant 0 : i32
    return %arg0, %c0_i32, %c0_i32_0 : i32, i32, i32
  }
}

module attributes {stable_mosaic.version = 11 : i64} {
  func.func @_linear_kernel(%arg0: i32, %arg1: memref<10x8xf32, #tpu.memory_space<vmem>>, %arg2: memref<8x32xbf16, #tpu.memory_space<vmem>>, %arg3: memref<1x32xf32, #tpu.memory_space<vmem>>, %arg4: memref<10x32xf32, #tpu.memory_space<vmem>>) attributes {dimension_semantics = [#tpu.dimension_semantics<parallel>], iteration_bounds = array<i64: 1>, scalar_prefetch = 0 : i64, scratch_operands = 0 : i64, tpu.core_type = #tpu.core_type<tc>, window_params = [{transform_indices = @transform_0, window_bounds = array<i64: 10, 8>}, {pipeline_mode = #tpu.pipeline_mode<synchronous>, transform_indices = @transform_1, window_bounds = array<i64: 8, 32>}, {pipeline_mode = #tpu.pipeline_mode<synchronous>, transform_indices = @transform_2, window_bounds = array<i64: 1, 32>}, {transform_indices = @transform_3, window_bounds = array<i64: 10, 32>}]} {
    %c0 = arith.constant 0 : index
    %c0_0 = arith.constant 0 : index
    %0 = vector.load %arg1[%c0, %c0_0] : memref<10x8xf32, #tpu.memory_space<vmem>>, vector<10x8xf32>
    %1 = arith.truncf %0 : vector<10x8xf32> to vector<10x8xbf16>
    %c0_1 = arith.constant 0 : index
    %c0_2 = arith.constant 0 : index
    %2 = vector.load %arg2[%c0_1, %c0_2] : memref<8x32xbf16, #tpu.memory_space<vmem>>, vector<8x32xbf16>
    %cst = arith.constant dense<0.000000e+00> : vector<10x32xf32>
    %3 = tpu.matmul %1, %2, %cst {dimension_numbers = #tpu.dot_dimension_numbers<[1], [0], [0], [1], [0, 0, 1, 1], [], []>} : vector<10x8xbf16>, vector<8x32xbf16>, vector<10x32xf32> -> vector<10x32xf32>
    %c0_3 = arith.constant 0 : index
    %c0_4 = arith.constant 0 : index
    %4 = vector.load %arg3[%c0_3, %c0_4] : memref<1x32xf32, #tpu.memory_space<vmem>>, vector<1x32xf32>
    %5 = vector.broadcast %4 : vector<1x32xf32> to vector<10x32xf32>
    %6 = arith.addf %3, %5 : vector<10x32xf32>
    %c0_5 = arith.constant 0 : index
    %c0_6 = arith.constant 0 : index
    %7 = vector.load %arg4[%c0_5, %c0_6] : memref<10x32xf32, #tpu.memory_space<vmem>>, vector<10x32xf32>
    tpu.vector_store %arg4[%c0_5, %c0_6], %6 {strides = array<i32>} : memref<10x32xf32, #tpu.memory_space<vmem>>, vector<10x32xf32>,
    return
  }
  func.func @transform_0(%arg0: i32) -> (i32, i32) {
    %c0_i32 = arith.constant 0 : i32
    %c0_i32_0 = arith.constant 0 : i32
    return %arg0, %c0_i32 : i32, i32
  }
  func.func @transform_1(%arg0: i32) -> (i32, i32) {
    %c0_i32 = arith.constant 0 : i32
    %c0_i32_0 = arith.constant 0 : i32
    %c0_i32_1 = arith.constant 0 : i32
    return %c0_i32, %c0_i32_0 : i32, i32
  }
  func.func @transform_2(%arg0: i32) -> (i32, i32) {
    %c0_i32 = arith.constant 0 : i32
    %c0_i32_0 = arith.constant 0 : i32
    %c0_i32_1 = arith.constant 0 : i32
    return %c0_i32, %c0_i32_0 : i32, i32
  }
  func.func @transform_3(%arg0: i32) -> (i32, i32) {
    %c0_i32 = arith.constant 0 : i32
    %c0_i32_0 = arith.constant 0 : i32
    return %arg0, %c0_i32 : i32, i32
  }
}

module attributes {stable_mosaic.version = 11 : i64} {
  func.func @_attn_block_kernel(%arg0: i32, %arg1: memref<1x32x32xf32, #tpu.memory_space<vmem>>, %arg2: memref<1x32x32xf32, #tpu.memory_space<vmem>>, %arg3: memref<1x32x32xf32, #tpu.memory_space<vmem>>, %arg4: memref<1x32x32xf32, #tpu.memory_space<vmem>>, %arg5: memref<1x1x32xf32, #tpu.memory_space<vmem>>, %arg6: memref<32x32xbf16, #tpu.memory_space<vmem>>, %arg7: memref<32x32xbf16, #tpu.memory_space<vmem>>, %arg8: memref<32x32xbf16, #tpu.memory_space<vmem>>, %arg9: memref<1x32xf32, #tpu.memory_space<vmem>>, %arg10: memref<1x32xf32, #tpu.memory_space<vmem>>, %arg11: memref<1x32xf32, #tpu.memory_space<vmem>>, %arg12: memref<32x32xbf16, #tpu.memory_space<vmem>>, %arg13: memref<1x32xf32, #tpu.memory_space<vmem>>, %arg14: memref<1x32xf32, #tpu.memory_space<vmem>>, %arg15: memref<1x32xf32, #tpu.memory_space<vmem>>, %arg16: memref<1x32x32xf32, #tpu.memory_space<vmem>>) attributes {dimension_semantics = [#tpu.dimension_semantics<parallel>], iteration_bounds = array<i64: 2>, scalar_prefetch = 0 : i64, scratch_operands = 0 : i64, tpu.core_type = #tpu.core_type<tc>, window_params = [{transform_indices = @transform_0, window_bounds = array<i64: 1, 32, 32>}, {transform_indices = @transform_1, window_bounds = array<i64: 1, 32, 32>}, {transform_indices = @transform_2, window_bounds = array<i64: 1, 32, 32>}, {transform_indices = @transform_3, window_bounds = array<i64: 1, 32, 32>}, {transform_indices = @transform_4, window_bounds = array<i64: 1, 1, 32>}, {pipeline_mode = #tpu.pipeline_mode<synchronous>, transform_indices = @transform_5, window_bounds = array<i64: 32, 32>}, {pipeline_mode = #tpu.pipeline_mode<synchronous>, transform_indices = @transform_6, window_bounds = array<i64: 32, 32>}, {pipeline_mode = #tpu.pipeline_mode<synchronous>, transform_indices = @transform_7, window_bounds = array<i64: 32, 32>}, {pipeline_mode = #tpu.pipeline_mode<synchronous>, transform_indices = @transform_8, window_bounds = array<i64: 1, 32>}, {pipeline_mode = #tpu.pipeline_mode<synchronous>, transform_indices = @transform_9, window_bounds = array<i64: 1, 32>}, {pipeline_mode = #tpu.pipeline_mode<synchronous>, transform_indices = @transform_10, window_bounds = array<i64: 1, 32>}, {pipeline_mode = #tpu.pipeline_mode<synchronous>, transform_indices = @transform_11, window_bounds = array<i64: 32, 32>}, {pipeline_mode = #tpu.pipeline_mode<synchronous>, transform_indices = @transform_12, window_bounds = array<i64: 1, 32>}, {pipeline_mode = #tpu.pipeline_mode<synchronous>, transform_indices = @transform_13, window_bounds = array<i64: 1, 32>}, {pipeline_mode = #tpu.pipeline_mode<synchronous>, transform_indices = @transform_14, window_bounds = array<i64: 1, 32>}, {transform_indices = @transform_15, window_bounds = array<i64: 1, 32, 32>}]} {
    %c0 = arith.constant 0 : index
    %c0_0 = arith.constant 0 : index
    %c0_1 = arith.constant 0 : index
    %0 = vector.load %arg1[%c0, %c0_0, %c0_1] : memref<1x32x32xf32, #tpu.memory_space<vmem>>, vector<1x32x32xf32>
    %1 = vector.shape_cast %0 : vector<1x32x32xf32> to vector<32x32xf32>
    %c0_2 = arith.constant 0 : index
    %c0_3 = arith.constant 0 : index
    %c0_4 = arith.constant 0 : index
    %2 = vector.load %arg2[%c0_2, %c0_3, %c0_4] : memref<1x32x32xf32, #tpu.memory_space<vmem>>, vector<1x32x32xf32>
    %3 = vector.shape_cast %2 : vector<1x32x32xf32> to vector<32x32xf32>
    %4 = arith.addf %1, %3 : vector<32x32xf32>
    %5 = arith.truncf %4 : vector<32x32xf32> to vector<32x32xbf16>
    %c0_5 = arith.constant 0 : index
    %c0_6 = arith.constant 0 : index
    %c0_7 = arith.constant 0 : index
    %6 = vector.load %arg3[%c0_5, %c0_6, %c0_7] : memref<1x32x32xf32, #tpu.memory_space<vmem>>, vector<1x32x32xf32>
    %7 = vector.shape_cast %6 : vector<1x32x32xf32> to vector<32x32xf32>
    %c0_8 = arith.constant 0 : index
    %c0_9 = arith.constant 0 : index
    %c0_10 = arith.constant 0 : index
    %8 = vector.load %arg4[%c0_8, %c0_9, %c0_10] : memref<1x32x32xf32, #tpu.memory_space<vmem>>, vector<1x32x32xf32>
    %9 = vector.shape_cast %8 : vector<1x32x32xf32> to vector<32x32xf32>
    %10 = arith.addf %7, %9 : vector<32x32xf32>
    %11 = arith.truncf %10 : vector<32x32xf32> to vector<32x32xbf16>
    %12 = arith.truncf %7 : vector<32x32xf32> to vector<32x32xbf16>
    %c0_11 = arith.constant 0 : index
    %c0_12 = arith.constant 0 : index
    %c0_13 = arith.constant 0 : index
    %13 = vector.load %arg5[%c0_11, %c0_12, %c0_13] : memref<1x1x32xf32, #tpu.memory_space<vmem>>, vector<1x1x32xf32>
    %14 = vector.shape_cast %13 : vector<1x1x32xf32> to vector<1x32xf32>
    %c0_14 = arith.constant 0 : index
    %c0_15 = arith.constant 0 : index
    %15 = vector.load %arg6[%c0_14, %c0_15] : memref<32x32xbf16, #tpu.memory_space<vmem>>, vector<32x8xbf16>
    %cst = arith.constant dense<0.000000e+00> : vector<32x8xf32>
    %16 = tpu.matmul %5, %15, %cst {dimension_numbers = #tpu.dot_dimension_numbers<[1], [0], [0], [1], [0, 0, 1, 1], [], []>} : vector<32x32xbf16>, vector<32x8xbf16>, vector<32x8xf32> -> vector<32x8xf32>
    %c0_16 = arith.constant 0 : index
    %c0_17 = arith.constant 0 : index
    %17 = vector.load %arg9[%c0_16, %c0_17] : memref<1x32xf32, #tpu.memory_space<vmem>>, vector<1x8xf32>
    %18 = vector.broadcast %17 : vector<1x8xf32> to vector<32x8xf32>
    %19 = arith.addf %16, %18 : vector<32x8xf32>
    %c0_18 = arith.constant 0 : index
    %c0_19 = arith.constant 0 : index
    %20 = vector.load %arg7[%c0_18, %c0_19] : memref<32x32xbf16, #tpu.memory_space<vmem>>, vector<32x8xbf16>
    %cst_20 = arith.constant dense<0.000000e+00> : vector<32x8xf32>
    %21 = tpu.matmul %11, %20, %cst_20 {dimension_numbers = #tpu.dot_dimension_numbers<[1], [0], [0], [1], [0, 0, 1, 1], [], []>} : vector<32x32xbf16>, vector<32x8xbf16>, vector<32x8xf32> -> vector<32x8xf32>
    %c0_21 = arith.constant 0 : index
    %c0_22 = arith.constant 0 : index
    %22 = vector.load %arg10[%c0_21, %c0_22] : memref<1x32xf32, #tpu.memory_space<vmem>>, vector<1x8xf32>
    %23 = vector.broadcast %22 : vector<1x8xf32> to vector<32x8xf32>
    %24 = arith.addf %21, %23 : vector<32x8xf32>
    %c0_23 = arith.constant 0 : index
    %c0_24 = arith.constant 0 : index
    %25 = vector.load %arg8[%c0_23, %c0_24] : memref<32x32xbf16, #tpu.memory_space<vmem>>, vector<32x8xbf16>
    %cst_25 = arith.constant dense<0.000000e+00> : vector<32x8xf32>
    %26 = tpu.matmul %12, %25, %cst_25 {dimension_numbers = #tpu.dot_dimension_numbers<[1], [0], [0], [1], [0, 0, 1, 1], [], []>} : vector<32x32xbf16>, vector<32x8xbf16>, vector<32x8xf32> -> vector<32x8xf32>
    %c0_26 = arith.constant 0 : index
    %c0_27 = arith.constant 0 : index
    %27 = vector.load %arg11[%c0_26, %c0_27] : memref<1x32xf32, #tpu.memory_space<vmem>>, vector<1x8xf32>
    %28 = vector.broadcast %27 : vector<1x8xf32> to vector<32x8xf32>
    %29 = arith.addf %26, %28 : vector<32x8xf32>
    %30 = arith.truncf %19 : vector<32x8xf32> to vector<32x8xbf16>
    %31 = arith.truncf %24 : vector<32x8xf32> to vector<32x8xbf16>
    %cst_28 = arith.constant dense<0.000000e+00> : vector<32x32xf32>
    %32 = tpu.matmul %30, %31, %cst_28 {dimension_numbers = #tpu.dot_dimension_numbers<[1], [1], [0], [0], [0, 0, 1, 0], [], []>} : vector<32x8xbf16>, vector<32x8xbf16>, vector<32x32xf32> -> vector<32x32xf32>
    %33 = vector.broadcast %14 : vector<1x32xf32> to vector<32x32xf32>
    %34 = arith.addf %32, %33 : vector<32x32xf32>
    %cst_29 = arith.constant dense<0xFF800000> : vector<32xf32>
    %35 = vector.multi_reduction <maximumf>, %34, %cst_29 [1] : vector<32x32xf32> to vector<32xf32>
    %36 = vector.shape_cast %35 : vector<32xf32> to vector<32x1xf32>
    %37 = vector.broadcast %36 : vector<32x1xf32> to vector<32x32xf32>
    %38 = arith.subf %34, %37 : vector<32x32xf32>
    %39 = math.exp %38 : vector<32x32xf32>
    %cst_30 = arith.constant dense<0.000000e+00> : vector<32xf32>
    %40 = vector.multi_reduction <add>, %39, %cst_30 [1] : vector<32x32xf32> to vector<32xf32>
    %41 = vector.shape_cast %40 : vector<32xf32> to vector<32x1xf32>
    %42 = tpu.reciprocal %41 {approx = true} : vector<32x1xf32> -> vector<32x1xf32>
    %43 = arith.truncf %39 : vector<32x32xf32> to vector<32x32xbf16>
    %44 = arith.truncf %29 : vector<32x8xf32> to vector<32x8xbf16>
    %cst_31 = arith.constant dense<0.000000e+00> : vector<32x8xf32>
    %45 = tpu.matmul %43, %44, %cst_31 {dimension_numbers = #tpu.dot_dimension_numbers<[1], [0], [0], [1], [0, 0, 1, 1], [], []>} : vector<32x32xbf16>, vector<32x8xbf16>, vector<32x8xf32> -> vector<32x8xf32>
    %46 = vector.broadcast %42 : vector<32x1xf32> to vector<32x8xf32>
    %47 = arith.mulf %45, %46 : vector<32x8xf32>
    %48 = arith.truncf %47 : vector<32x8xf32> to vector<32x8xbf16>
    %c0_32 = arith.constant 0 : index
    %c0_33 = arith.constant 0 : index
    %49 = vector.load %arg12[%c0_32, %c0_33] : memref<32x32xbf16, #tpu.memory_space<vmem>>, vector<8x32xbf16>
    %cst_34 = arith.constant dense<0.000000e+00> : vector<32x32xf32>
    %50 = tpu.matmul %48, %49, %cst_34 {dimension_numbers = #tpu.dot_dimension_numbers<[1], [0], [0], [1], [0, 0, 1, 1], [], []>} : vector<32x8xbf16>, vector<8x32xbf16>, vector<32x32xf32> -> vector<32x32xf32>
    %c0_35 = arith.constant 0 : index
    %c8 = arith.constant 8 : index
    %51 = vector.load %arg6[%c0_35, %c8] : memref<32x32xbf16, #tpu.memory_space<vmem>>, vector<32x8xbf16>
    %cst_36 = arith.constant dense<0.000000e+00> : vector<32x8xf32>
    %52 = tpu.matmul %5, %51, %cst_36 {dimension_numbers = #tpu.dot_dimension_numbers<[1], [0], [0], [1], [0, 0, 1, 1], [], []>} : vector<32x32xbf16>, vector<32x8xbf16>, vector<32x8xf32> -> vector<32x8xf32>
    %c0_37 = arith.constant 0 : index
    %c8_38 = arith.constant 8 : index
    %53 = vector.load %arg9[%c0_37, %c8_38] : memref<1x32xf32, #tpu.memory_space<vmem>>, vector<1x8xf32>
    %54 = vector.broadcast %53 : vector<1x8xf32> to vector<32x8xf32>
    %55 = arith.addf %52, %54 : vector<32x8xf32>
    %c0_39 = arith.constant 0 : index
    %c8_40 = arith.constant 8 : index
    %56 = vector.load %arg7[%c0_39, %c8_40] : memref<32x32xbf16, #tpu.memory_space<vmem>>, vector<32x8xbf16>
    %cst_41 = arith.constant dense<0.000000e+00> : vector<32x8xf32>
    %57 = tpu.matmul %11, %56, %cst_41 {dimension_numbers = #tpu.dot_dimension_numbers<[1], [0], [0], [1], [0, 0, 1, 1], [], []>} : vector<32x32xbf16>, vector<32x8xbf16>, vector<32x8xf32> -> vector<32x8xf32>
    %c0_42 = arith.constant 0 : index
    %c8_43 = arith.constant 8 : index
    %58 = vector.load %arg10[%c0_42, %c8_43] : memref<1x32xf32, #tpu.memory_space<vmem>>, vector<1x8xf32>
    %59 = vector.broadcast %58 : vector<1x8xf32> to vector<32x8xf32>
    %60 = arith.addf %57, %59 : vector<32x8xf32>
    %c0_44 = arith.constant 0 : index
    %c8_45 = arith.constant 8 : index
    %61 = vector.load %arg8[%c0_44, %c8_45] : memref<32x32xbf16, #tpu.memory_space<vmem>>, vector<32x8xbf16>
    %cst_46 = arith.constant dense<0.000000e+00> : vector<32x8xf32>
    %62 = tpu.matmul %12, %61, %cst_46 {dimension_numbers = #tpu.dot_dimension_numbers<[1], [0], [0], [1], [0, 0, 1, 1], [], []>} : vector<32x32xbf16>, vector<32x8xbf16>, vector<32x8xf32> -> vector<32x8xf32>
    %c0_47 = arith.constant 0 : index
    %c8_48 = arith.constant 8 : index
    %63 = vector.load %arg11[%c0_47, %c8_48] : memref<1x32xf32, #tpu.memory_space<vmem>>, vector<1x8xf32>
    %64 = vector.broadcast %63 : vector<1x8xf32> to vector<32x8xf32>
    %65 = arith.addf %62, %64 : vector<32x8xf32>
    %66 = arith.truncf %55 : vector<32x8xf32> to vector<32x8xbf16>
    %67 = arith.truncf %60 : vector<32x8xf32> to vector<32x8xbf16>
    %cst_49 = arith.constant dense<0.000000e+00> : vector<32x32xf32>
    %68 = tpu.matmul %66, %67, %cst_49 {dimension_numbers = #tpu.dot_dimension_numbers<[1], [1], [0], [0], [0, 0, 1, 0], [], []>} : vector<32x8xbf16>, vector<32x8xbf16>, vector<32x32xf32> -> vector<32x32xf32>
    %69 = vector.broadcast %14 : vector<1x32xf32> to vector<32x32xf32>
    %70 = arith.addf %68, %69 : vector<32x32xf32>
    %cst_50 = arith.constant dense<0xFF800000> : vector<32xf32>
    %71 = vector.multi_reduction <maximumf>, %70, %cst_50 [1] : vector<32x32xf32> to vector<32xf32>
    %72 = vector.shape_cast %71 : vector<32xf32> to vector<32x1xf32>
    %73 = vector.broadcast %72 : vector<32x1xf32> to vector<32x32xf32>
    %74 = arith.subf %70, %73 : vector<32x32xf32>
    %75 = math.exp %74 : vector<32x32xf32>
    %cst_51 = arith.constant dense<0.000000e+00> : vector<32xf32>
    %76 = vector.multi_reduction <add>, %75, %cst_51 [1] : vector<32x32xf32> to vector<32xf32>
    %77 = vector.shape_cast %76 : vector<32xf32> to vector<32x1xf32>
    %78 = tpu.reciprocal %77 {approx = true} : vector<32x1xf32> -> vector<32x1xf32>
    %79 = arith.truncf %75 : vector<32x32xf32> to vector<32x32xbf16>
    %80 = arith.truncf %65 : vector<32x8xf32> to vector<32x8xbf16>
    %cst_52 = arith.constant dense<0.000000e+00> : vector<32x8xf32>
    %81 = tpu.matmul %79, %80, %cst_52 {dimension_numbers = #tpu.dot_dimension_numbers<[1], [0], [0], [1], [0, 0, 1, 1], [], []>} : vector<32x32xbf16>, vector<32x8xbf16>, vector<32x8xf32> -> vector<32x8xf32>
    %82 = vector.broadcast %78 : vector<32x1xf32> to vector<32x8xf32>
    %83 = arith.mulf %81, %82 : vector<32x8xf32>
    %84 = arith.truncf %83 : vector<32x8xf32> to vector<32x8xbf16>
    %c8_53 = arith.constant 8 : index
    %c0_54 = arith.constant 0 : index
    %85 = vector.load %arg12[%c8_53, %c0_54] : memref<32x32xbf16, #tpu.memory_space<vmem>>, vector<8x32xbf16>
    %cst_55 = arith.constant dense<0.000000e+00> : vector<32x32xf32>
    %86 = tpu.matmul %84, %85, %cst_55 {dimension_numbers = #tpu.dot_dimension_numbers<[1], [0], [0], [1], [0, 0, 1, 1], [], []>} : vector<32x8xbf16>, vector<8x32xbf16>, vector<32x32xf32> -> vector<32x32xf32>
    %87 = arith.addf %50, %86 : vector<32x32xf32>
    %c0_56 = arith.constant 0 : index
    %c16 = arith.constant 16 : index
    %88 = vector.load %arg6[%c0_56, %c16] : memref<32x32xbf16, #tpu.memory_space<vmem>>, vector<32x8xbf16>
    %cst_57 = arith.constant dense<0.000000e+00> : vector<32x8xf32>
    %89 = tpu.matmul %5, %88, %cst_57 {dimension_numbers = #tpu.dot_dimension_numbers<[1], [0], [0], [1], [0, 0, 1, 1], [], []>} : vector<32x32xbf16>, vector<32x8xbf16>, vector<32x8xf32> -> vector<32x8xf32>
    %c0_58 = arith.constant 0 : index
    %c16_59 = arith.constant 16 : index
    %90 = vector.load %arg9[%c0_58, %c16_59] : memref<1x32xf32, #tpu.memory_space<vmem>>, vector<1x8xf32>
    %91 = vector.broadcast %90 : vector<1x8xf32> to vector<32x8xf32>
    %92 = arith.addf %89, %91 : vector<32x8xf32>
    %c0_60 = arith.constant 0 : index
    %c16_61 = arith.constant 16 : index
    %93 = vector.load %arg7[%c0_60, %c16_61] : memref<32x32xbf16, #tpu.memory_space<vmem>>, vector<32x8xbf16>
    %cst_62 = arith.constant dense<0.000000e+00> : vector<32x8xf32>
    %94 = tpu.matmul %11, %93, %cst_62 {dimension_numbers = #tpu.dot_dimension_numbers<[1], [0], [0], [1], [0, 0, 1, 1], [], []>} : vector<32x32xbf16>, vector<32x8xbf16>, vector<32x8xf32> -> vector<32x8xf32>
    %c0_63 = arith.constant 0 : index
    %c16_64 = arith.constant 16 : index
    %95 = vector.load %arg10[%c0_63, %c16_64] : memref<1x32xf32, #tpu.memory_space<vmem>>, vector<1x8xf32>
    %96 = vector.broadcast %95 : vector<1x8xf32> to vector<32x8xf32>
    %97 = arith.addf %94, %96 : vector<32x8xf32>
    %c0_65 = arith.constant 0 : index
    %c16_66 = arith.constant 16 : index
    %98 = vector.load %arg8[%c0_65, %c16_66] : memref<32x32xbf16, #tpu.memory_space<vmem>>, vector<32x8xbf16>
    %cst_67 = arith.constant dense<0.000000e+00> : vector<32x8xf32>
    %99 = tpu.matmul %12, %98, %cst_67 {dimension_numbers = #tpu.dot_dimension_numbers<[1], [0], [0], [1], [0, 0, 1, 1], [], []>} : vector<32x32xbf16>, vector<32x8xbf16>, vector<32x8xf32> -> vector<32x8xf32>
    %c0_68 = arith.constant 0 : index
    %c16_69 = arith.constant 16 : index
    %100 = vector.load %arg11[%c0_68, %c16_69] : memref<1x32xf32, #tpu.memory_space<vmem>>, vector<1x8xf32>
    %101 = vector.broadcast %100 : vector<1x8xf32> to vector<32x8xf32>
    %102 = arith.addf %99, %101 : vector<32x8xf32>
    %103 = arith.truncf %92 : vector<32x8xf32> to vector<32x8xbf16>
    %104 = arith.truncf %97 : vector<32x8xf32> to vector<32x8xbf16>
    %cst_70 = arith.constant dense<0.000000e+00> : vector<32x32xf32>
    %105 = tpu.matmul %103, %104, %cst_70 {dimension_numbers = #tpu.dot_dimension_numbers<[1], [1], [0], [0], [0, 0, 1, 0], [], []>} : vector<32x8xbf16>, vector<32x8xbf16>, vector<32x32xf32> -> vector<32x32xf32>
    %106 = vector.broadcast %14 : vector<1x32xf32> to vector<32x32xf32>
    %107 = arith.addf %105, %106 : vector<32x32xf32>
    %cst_71 = arith.constant dense<0xFF800000> : vector<32xf32>
    %108 = vector.multi_reduction <maximumf>, %107, %cst_71 [1] : vector<32x32xf32> to vector<32xf32>
    %109 = vector.shape_cast %108 : vector<32xf32> to vector<32x1xf32>
    %110 = vector.broadcast %109 : vector<32x1xf32> to vector<32x32xf32>
    %111 = arith.subf %107, %110 : vector<32x32xf32>
    %112 = math.exp %111 : vector<32x32xf32>
    %cst_72 = arith.constant dense<0.000000e+00> : vector<32xf32>
    %113 = vector.multi_reduction <add>, %112, %cst_72 [1] : vector<32x32xf32> to vector<32xf32>
    %114 = vector.shape_cast %113 : vector<32xf32> to vector<32x1xf32>
    %115 = tpu.reciprocal %114 {approx = true} : vector<32x1xf32> -> vector<32x1xf32>
    %116 = arith.truncf %112 : vector<32x32xf32> to vector<32x32xbf16>
    %117 = arith.truncf %102 : vector<32x8xf32> to vector<32x8xbf16>
    %cst_73 = arith.constant dense<0.000000e+00> : vector<32x8xf32>
    %118 = tpu.matmul %116, %117, %cst_73 {dimension_numbers = #tpu.dot_dimension_numbers<[1], [0], [0], [1], [0, 0, 1, 1], [], []>} : vector<32x32xbf16>, vector<32x8xbf16>, vector<32x8xf32> -> vector<32x8xf32>
    %119 = vector.broadcast %115 : vector<32x1xf32> to vector<32x8xf32>
    %120 = arith.mulf %118, %119 : vector<32x8xf32>
    %121 = arith.truncf %120 : vector<32x8xf32> to vector<32x8xbf16>
    %c16_74 = arith.constant 16 : index
    %c0_75 = arith.constant 0 : index
    %122 = vector.load %arg12[%c16_74, %c0_75] : memref<32x32xbf16, #tpu.memory_space<vmem>>, vector<8x32xbf16>
    %cst_76 = arith.constant dense<0.000000e+00> : vector<32x32xf32>
    %123 = tpu.matmul %121, %122, %cst_76 {dimension_numbers = #tpu.dot_dimension_numbers<[1], [0], [0], [1], [0, 0, 1, 1], [], []>} : vector<32x8xbf16>, vector<8x32xbf16>, vector<32x32xf32> -> vector<32x32xf32>
    %124 = arith.addf %87, %123 : vector<32x32xf32>
    %c0_77 = arith.constant 0 : index
    %c24 = arith.constant 24 : index
    %125 = vector.load %arg6[%c0_77, %c24] : memref<32x32xbf16, #tpu.memory_space<vmem>>, vector<32x8xbf16>
    %cst_78 = arith.constant dense<0.000000e+00> : vector<32x8xf32>
    %126 = tpu.matmul %5, %125, %cst_78 {dimension_numbers = #tpu.dot_dimension_numbers<[1], [0], [0], [1], [0, 0, 1, 1], [], []>} : vector<32x32xbf16>, vector<32x8xbf16>, vector<32x8xf32> -> vector<32x8xf32>
    %c0_79 = arith.constant 0 : index
    %c24_80 = arith.constant 24 : index
    %127 = vector.load %arg9[%c0_79, %c24_80] : memref<1x32xf32, #tpu.memory_space<vmem>>, vector<1x8xf32>
    %128 = vector.broadcast %127 : vector<1x8xf32> to vector<32x8xf32>
    %129 = arith.addf %126, %128 : vector<32x8xf32>
    %c0_81 = arith.constant 0 : index
    %c24_82 = arith.constant 24 : index
    %130 = vector.load %arg7[%c0_81, %c24_82] : memref<32x32xbf16, #tpu.memory_space<vmem>>, vector<32x8xbf16>
    %cst_83 = arith.constant dense<0.000000e+00> : vector<32x8xf32>
    %131 = tpu.matmul %11, %130, %cst_83 {dimension_numbers = #tpu.dot_dimension_numbers<[1], [0], [0], [1], [0, 0, 1, 1], [], []>} : vector<32x32xbf16>, vector<32x8xbf16>, vector<32x8xf32> -> vector<32x8xf32>
    %c0_84 = arith.constant 0 : index
    %c24_85 = arith.constant 24 : index
    %132 = vector.load %arg10[%c0_84, %c24_85] : memref<1x32xf32, #tpu.memory_space<vmem>>, vector<1x8xf32>
    %133 = vector.broadcast %132 : vector<1x8xf32> to vector<32x8xf32>
    %134 = arith.addf %131, %133 : vector<32x8xf32>
    %c0_86 = arith.constant 0 : index
    %c24_87 = arith.constant 24 : index
    %135 = vector.load %arg8[%c0_86, %c24_87] : memref<32x32xbf16, #tpu.memory_space<vmem>>, vector<32x8xbf16>
    %cst_88 = arith.constant dense<0.000000e+00> : vector<32x8xf32>
    %136 = tpu.matmul %12, %135, %cst_88 {dimension_numbers = #tpu.dot_dimension_numbers<[1], [0], [0], [1], [0, 0, 1, 1], [], []>} : vector<32x32xbf16>, vector<32x8xbf16>, vector<32x8xf32> -> vector<32x8xf32>
    %c0_89 = arith.constant 0 : index
    %c24_90 = arith.constant 24 : index
    %137 = vector.load %arg11[%c0_89, %c24_90] : memref<1x32xf32, #tpu.memory_space<vmem>>, vector<1x8xf32>
    %138 = vector.broadcast %137 : vector<1x8xf32> to vector<32x8xf32>
    %139 = arith.addf %136, %138 : vector<32x8xf32>
    %140 = arith.truncf %129 : vector<32x8xf32> to vector<32x8xbf16>
    %141 = arith.truncf %134 : vector<32x8xf32> to vector<32x8xbf16>
    %cst_91 = arith.constant dense<0.000000e+00> : vector<32x32xf32>
    %142 = tpu.matmul %140, %141, %cst_91 {dimension_numbers = #tpu.dot_dimension_numbers<[1], [1], [0], [0], [0, 0, 1, 0], [], []>} : vector<32x8xbf16>, vector<32x8xbf16>, vector<32x32xf32> -> vector<32x32xf32>
    %143 = vector.broadcast %14 : vector<1x32xf32> to vector<32x32xf32>
    %144 = arith.addf %142, %143 : vector<32x32xf32>
    %cst_92 = arith.constant dense<0xFF800000> : vector<32xf32>
    %145 = vector.multi_reduction <maximumf>, %144, %cst_92 [1] : vector<32x32xf32> to vector<32xf32>
    %146 = vector.shape_cast %145 : vector<32xf32> to vector<32x1xf32>
    %147 = vector.broadcast %146 : vector<32x1xf32> to vector<32x32xf32>
    %148 = arith.subf %144, %147 : vector<32x32xf32>
    %149 = math.exp %148 : vector<32x32xf32>
    %cst_93 = arith.constant dense<0.000000e+00> : vector<32xf32>
    %150 = vector.multi_reduction <add>, %149, %cst_93 [1] : vector<32x32xf32> to vector<32xf32>
    %151 = vector.shape_cast %150 : vector<32xf32> to vector<32x1xf32>
    %152 = tpu.reciprocal %151 {approx = true} : vector<32x1xf32> -> vector<32x1xf32>
    %153 = arith.truncf %149 : vector<32x32xf32> to vector<32x32xbf16>
    %154 = arith.truncf %139 : vector<32x8xf32> to vector<32x8xbf16>
    %cst_94 = arith.constant dense<0.000000e+00> : vector<32x8xf32>
    %155 = tpu.matmul %153, %154, %cst_94 {dimension_numbers = #tpu.dot_dimension_numbers<[1], [0], [0], [1], [0, 0, 1, 1], [], []>} : vector<32x32xbf16>, vector<32x8xbf16>, vector<32x8xf32> -> vector<32x8xf32>
    %156 = vector.broadcast %152 : vector<32x1xf32> to vector<32x8xf32>
    %157 = arith.mulf %155, %156 : vector<32x8xf32>
    %158 = arith.truncf %157 : vector<32x8xf32> to vector<32x8xbf16>
    %c24_95 = arith.constant 24 : index
    %c0_96 = arith.constant 0 : index
    %159 = vector.load %arg12[%c24_95, %c0_96] : memref<32x32xbf16, #tpu.memory_space<vmem>>, vector<8x32xbf16>
    %cst_97 = arith.constant dense<0.000000e+00> : vector<32x32xf32>
    %160 = tpu.matmul %158, %159, %cst_97 {dimension_numbers = #tpu.dot_dimension_numbers<[1], [0], [0], [1], [0, 0, 1, 1], [], []>} : vector<32x8xbf16>, vector<8x32xbf16>, vector<32x32xf32> -> vector<32x32xf32>
    %161 = arith.addf %124, %160 : vector<32x32xf32>
    %162 = arith.addf %1, %161 : vector<32x32xf32>
    %c0_98 = arith.constant 0 : index
    %c0_99 = arith.constant 0 : index
    %163 = vector.load %arg13[%c0_98, %c0_99] : memref<1x32xf32, #tpu.memory_space<vmem>>, vector<1x32xf32>
    %164 = vector.broadcast %163 : vector<1x32xf32> to vector<32x32xf32>
    %165 = arith.addf %162, %164 : vector<32x32xf32>
    %c0_100 = arith.constant 0 : index
    %c0_101 = arith.constant 0 : index
    %166 = vector.load %arg14[%c0_100, %c0_101] : memref<1x32xf32, #tpu.memory_space<vmem>>, vector<1x32xf32>
    %c0_102 = arith.constant 0 : index
    %c0_103 = arith.constant 0 : index
    %167 = vector.load %arg15[%c0_102, %c0_103] : memref<1x32xf32, #tpu.memory_space<vmem>>, vector<1x32xf32>
    %cst_104 = arith.constant dense<0.000000e+00> : vector<32xf32>
    %168 = vector.multi_reduction <add>, %165, %cst_104 [1] : vector<32x32xf32> to vector<32xf32>
    %169 = vector.shape_cast %168 : vector<32xf32> to vector<32x1xf32>
    %cst_105 = arith.constant 3.200000e+01 : f32
    %170 = vector.broadcast %cst_105 : f32 to vector<32x1xf32>
    %171 = arith.divf %169, %170 : vector<32x1xf32>
    %172 = vector.broadcast %171 : vector<32x1xf32> to vector<32x32xf32>
    %173 = arith.subf %165, %172 : vector<32x32xf32>
    %174 = arith.mulf %173, %173 : vector<32x32xf32>
    %cst_106 = arith.constant dense<0.000000e+00> : vector<32xf32>
    %175 = vector.multi_reduction <add>, %174, %cst_106 [1] : vector<32x32xf32> to vector<32xf32>
    %176 = vector.shape_cast %175 : vector<32xf32> to vector<32x1xf32>
    %cst_107 = arith.constant 3.200000e+01 : f32
    %177 = vector.broadcast %cst_107 : f32 to vector<32x1xf32>
    %178 = arith.divf %176, %177 : vector<32x1xf32>
    %179 = vector.broadcast %171 : vector<32x1xf32> to vector<32x32xf32>
    %180 = arith.subf %165, %179 : vector<32x32xf32>
    %cst_108 = arith.constant 9.99999974E-6 : f32
    %181 = vector.broadcast %cst_108 : f32 to vector<32x1xf32>
    %182 = arith.addf %178, %181 : vector<32x1xf32>
    %183 = math.rsqrt %182 : vector<32x1xf32>
    %184 = vector.broadcast %183 : vector<32x1xf32> to vector<32x32xf32>
    %185 = arith.mulf %180, %184 : vector<32x32xf32>
    %186 = vector.broadcast %166 : vector<1x32xf32> to vector<32x32xf32>
    %187 = arith.mulf %185, %186 : vector<32x32xf32>
    %188 = vector.broadcast %167 : vector<1x32xf32> to vector<32x32xf32>
    %189 = arith.addf %187, %188 : vector<32x32xf32>
    %c0_109 = arith.constant 0 : index
    %c0_110 = arith.constant 0 : index
    %c0_111 = arith.constant 0 : index
    %190 = vector.load %arg16[%c0_109, %c0_110, %c0_111] : memref<1x32x32xf32, #tpu.memory_space<vmem>>, vector<1x32x32xf32>
    %191 = vector.shape_cast %190 : vector<1x32x32xf32> to vector<32x32xf32>
    %192 = vector.shape_cast %189 : vector<32x32xf32> to vector<1x32x32xf32>
    tpu.vector_store %arg16[%c0_109, %c0_110, %c0_111], %192 {strides = array<i32>} : memref<1x32x32xf32, #tpu.memory_space<vmem>>, vector<1x32x32xf32>,
    return
  }
  func.func @transform_0(%arg0: i32) -> (i32, i32, i32) {
    %c0_i32 = arith.constant 0 : i32
    %c0_i32_0 = arith.constant 0 : i32
    %c0_i32_1 = arith.constant 0 : i32
    return %arg0, %c0_i32, %c0_i32_0 : i32, i32, i32
  }
  func.func @transform_1(%arg0: i32) -> (i32, i32, i32) {
    %c0_i32 = arith.constant 0 : i32
    %c0_i32_0 = arith.constant 0 : i32
    %c0_i32_1 = arith.constant 0 : i32
    return %arg0, %c0_i32, %c0_i32_0 : i32, i32, i32
  }
  func.func @transform_2(%arg0: i32) -> (i32, i32, i32) {
    %c0_i32 = arith.constant 0 : i32
    %c0_i32_0 = arith.constant 0 : i32
    %c0_i32_1 = arith.constant 0 : i32
    return %arg0, %c0_i32, %c0_i32_0 : i32, i32, i32
  }
  func.func @transform_3(%arg0: i32) -> (i32, i32, i32) {
    %c0_i32 = arith.constant 0 : i32
    %c0_i32_0 = arith.constant 0 : i32
    %c0_i32_1 = arith.constant 0 : i32
    return %arg0, %c0_i32, %c0_i32_0 : i32, i32, i32
  }
  func.func @transform_4(%arg0: i32) -> (i32, i32, i32) {
    %c0_i32 = arith.constant 0 : i32
    %c0_i32_0 = arith.constant 0 : i32
    %c0_i32_1 = arith.constant 0 : i32
    return %arg0, %c0_i32, %c0_i32_0 : i32, i32, i32
  }
  func.func @transform_5(%arg0: i32) -> (i32, i32) {
    %c0_i32 = arith.constant 0 : i32
    %c0_i32_0 = arith.constant 0 : i32
    %c0_i32_1 = arith.constant 0 : i32
    return %c0_i32, %c0_i32_0 : i32, i32
  }
  func.func @transform_6(%arg0: i32) -> (i32, i32) {
    %c0_i32 = arith.constant 0 : i32
    %c0_i32_0 = arith.constant 0 : i32
    %c0_i32_1 = arith.constant 0 : i32
    return %c0_i32, %c0_i32_0 : i32, i32
  }
  func.func @transform_7(%arg0: i32) -> (i32, i32) {
    %c0_i32 = arith.constant 0 : i32
    %c0_i32_0 = arith.constant 0 : i32
    %c0_i32_1 = arith.constant 0 : i32
    return %c0_i32, %c0_i32_0 : i32, i32
  }
  func.func @transform_8(%arg0: i32) -> (i32, i32) {
    %c0_i32 = arith.constant 0 : i32
    %c0_i32_0 = arith.constant 0 : i32
    %c0_i32_1 = arith.constant 0 : i32
    return %c0_i32, %c0_i32_0 : i32, i32
  }
  func.func @transform_9(%arg0: i32) -> (i32, i32) {
    %c0_i32 = arith.constant 0 : i32
    %c0_i32_0 = arith.constant 0 : i32
    %c0_i32_1 = arith.constant 0 : i32
    return %c0_i32, %c0_i32_0 : i32, i32
  }
  func.func @transform_10(%arg0: i32) -> (i32, i32) {
    %c0_i32 = arith.constant 0 : i32
    %c0_i32_0 = arith.constant 0 : i32
    %c0_i32_1 = arith.constant 0 : i32
    return %c0_i32, %c0_i32_0 : i32, i32
  }
  func.func @transform_11(%arg0: i32) -> (i32, i32) {
    %c0_i32 = arith.constant 0 : i32
    %c0_i32_0 = arith.constant 0 : i32
    %c0_i32_1 = arith.constant 0 : i32
    return %c0_i32, %c0_i32_0 : i32, i32
  }
  func.func @transform_12(%arg0: i32) -> (i32, i32) {
    %c0_i32 = arith.constant 0 : i32
    %c0_i32_0 = arith.constant 0 : i32
    %c0_i32_1 = arith.constant 0 : i32
    return %c0_i32, %c0_i32_0 : i32, i32
  }
  func.func @transform_13(%arg0: i32) -> (i32, i32) {
    %c0_i32 = arith.constant 0 : i32
    %c0_i32_0 = arith.constant 0 : i32
    %c0_i32_1 = arith.constant 0 : i32
    return %c0_i32, %c0_i32_0 : i32, i32
  }
  func.func @transform_14(%arg0: i32) -> (i32, i32) {
    %c0_i32 = arith.constant 0 : i32
    %c0_i32_0 = arith.constant 0 : i32
    %c0_i32_1 = arith.constant 0 : i32
    return %c0_i32, %c0_i32_0 : i32, i32
  }
  func.func @transform_15(%arg0: i32) -> (i32, i32, i32) {
    %c0_i32 = arith.constant 0 : i32
    %c0_i32_0 = arith.constant 0 : i32
    %c0_i32_1 = arith.constant 0 : i32
    return %arg0, %c0_i32, %c0_i32_0 : i32, i32, i32
  }
}

module attributes {stable_mosaic.version = 11 : i64} {
  func.func @_ffn_block_kernel(%arg0: i32, %arg1: memref<1x32x32xf32, #tpu.memory_space<vmem>>, %arg2: memref<32x64xbf16, #tpu.memory_space<vmem>>, %arg3: memref<1x64xf32, #tpu.memory_space<vmem>>, %arg4: memref<64x32xbf16, #tpu.memory_space<vmem>>, %arg5: memref<1x32xf32, #tpu.memory_space<vmem>>, %arg6: memref<1x32xf32, #tpu.memory_space<vmem>>, %arg7: memref<1x32xf32, #tpu.memory_space<vmem>>, %arg8: memref<1x32x32xf32, #tpu.memory_space<vmem>>) attributes {dimension_semantics = [#tpu.dimension_semantics<parallel>], iteration_bounds = array<i64: 2>, scalar_prefetch = 0 : i64, scratch_operands = 0 : i64, tpu.core_type = #tpu.core_type<tc>, window_params = [{transform_indices = @transform_0, window_bounds = array<i64: 1, 32, 32>}, {pipeline_mode = #tpu.pipeline_mode<synchronous>, transform_indices = @transform_1, window_bounds = array<i64: 32, 64>}, {pipeline_mode = #tpu.pipeline_mode<synchronous>, transform_indices = @transform_2, window_bounds = array<i64: 1, 64>}, {pipeline_mode = #tpu.pipeline_mode<synchronous>, transform_indices = @transform_3, window_bounds = array<i64: 64, 32>}, {pipeline_mode = #tpu.pipeline_mode<synchronous>, transform_indices = @transform_4, window_bounds = array<i64: 1, 32>}, {pipeline_mode = #tpu.pipeline_mode<synchronous>, transform_indices = @transform_5, window_bounds = array<i64: 1, 32>}, {pipeline_mode = #tpu.pipeline_mode<synchronous>, transform_indices = @transform_6, window_bounds = array<i64: 1, 32>}, {transform_indices = @transform_7, window_bounds = array<i64: 1, 32, 32>}]} {
    %c0 = arith.constant 0 : index
    %c0_0 = arith.constant 0 : index
    %c0_1 = arith.constant 0 : index
    %0 = vector.load %arg1[%c0, %c0_0, %c0_1] : memref<1x32x32xf32, #tpu.memory_space<vmem>>, vector<1x32x32xf32>
    %1 = vector.shape_cast %0 : vector<1x32x32xf32> to vector<32x32xf32>
    %2 = arith.truncf %1 : vector<32x32xf32> to vector<32x32xbf16>
    %c0_2 = arith.constant 0 : index
    %c0_3 = arith.constant 0 : index
    %3 = vector.load %arg2[%c0_2, %c0_3] : memref<32x64xbf16, #tpu.memory_space<vmem>>, vector<32x64xbf16>
    %cst = arith.constant dense<0.000000e+00> : vector<32x64xf32>
    %4 = tpu.matmul %2, %3, %cst {dimension_numbers = #tpu.dot_dimension_numbers<[1], [0], [0], [1], [0, 0, 1, 1], [], []>} : vector<32x32xbf16>, vector<32x64xbf16>, vector<32x64xf32> -> vector<32x64xf32>
    %c0_4 = arith.constant 0 : index
    %c0_5 = arith.constant 0 : index
    %5 = vector.load %arg3[%c0_4, %c0_5] : memref<1x64xf32, #tpu.memory_space<vmem>>, vector<1x64xf32>
    %6 = vector.broadcast %5 : vector<1x64xf32> to vector<32x64xf32>
    %7 = arith.addf %4, %6 : vector<32x64xf32>
    %cst_6 = arith.constant 0.000000e+00 : f32
    %8 = vector.broadcast %cst_6 : f32 to vector<32x64xf32>
    %9 = arith.maximumf %7, %8 : vector<32x64xf32>
    %10 = arith.truncf %9 : vector<32x64xf32> to vector<32x64xbf16>
    %c0_7 = arith.constant 0 : index
    %c0_8 = arith.constant 0 : index
    %11 = vector.load %arg4[%c0_7, %c0_8] : memref<64x32xbf16, #tpu.memory_space<vmem>>, vector<64x32xbf16>
    %cst_9 = arith.constant dense<0.000000e+00> : vector<32x32xf32>
    %12 = tpu.matmul %10, %11, %cst_9 {dimension_numbers = #tpu.dot_dimension_numbers<[1], [0], [0], [1], [0, 0, 1, 1], [], []>} : vector<32x64xbf16>, vector<64x32xbf16>, vector<32x32xf32> -> vector<32x32xf32>
    %13 = arith.addf %1, %12 : vector<32x32xf32>
    %c0_10 = arith.constant 0 : index
    %c0_11 = arith.constant 0 : index
    %14 = vector.load %arg5[%c0_10, %c0_11] : memref<1x32xf32, #tpu.memory_space<vmem>>, vector<1x32xf32>
    %15 = vector.broadcast %14 : vector<1x32xf32> to vector<32x32xf32>
    %16 = arith.addf %13, %15 : vector<32x32xf32>
    %c0_12 = arith.constant 0 : index
    %c0_13 = arith.constant 0 : index
    %17 = vector.load %arg6[%c0_12, %c0_13] : memref<1x32xf32, #tpu.memory_space<vmem>>, vector<1x32xf32>
    %c0_14 = arith.constant 0 : index
    %c0_15 = arith.constant 0 : index
    %18 = vector.load %arg7[%c0_14, %c0_15] : memref<1x32xf32, #tpu.memory_space<vmem>>, vector<1x32xf32>
    %cst_16 = arith.constant dense<0.000000e+00> : vector<32xf32>
    %19 = vector.multi_reduction <add>, %16, %cst_16 [1] : vector<32x32xf32> to vector<32xf32>
    %20 = vector.shape_cast %19 : vector<32xf32> to vector<32x1xf32>
    %cst_17 = arith.constant 3.200000e+01 : f32
    %21 = vector.broadcast %cst_17 : f32 to vector<32x1xf32>
    %22 = arith.divf %20, %21 : vector<32x1xf32>
    %23 = vector.broadcast %22 : vector<32x1xf32> to vector<32x32xf32>
    %24 = arith.subf %16, %23 : vector<32x32xf32>
    %25 = arith.mulf %24, %24 : vector<32x32xf32>
    %cst_18 = arith.constant dense<0.000000e+00> : vector<32xf32>
    %26 = vector.multi_reduction <add>, %25, %cst_18 [1] : vector<32x32xf32> to vector<32xf32>
    %27 = vector.shape_cast %26 : vector<32xf32> to vector<32x1xf32>
    %cst_19 = arith.constant 3.200000e+01 : f32
    %28 = vector.broadcast %cst_19 : f32 to vector<32x1xf32>
    %29 = arith.divf %27, %28 : vector<32x1xf32>
    %30 = vector.broadcast %22 : vector<32x1xf32> to vector<32x32xf32>
    %31 = arith.subf %16, %30 : vector<32x32xf32>
    %cst_20 = arith.constant 9.99999974E-6 : f32
    %32 = vector.broadcast %cst_20 : f32 to vector<32x1xf32>
    %33 = arith.addf %29, %32 : vector<32x1xf32>
    %34 = math.rsqrt %33 : vector<32x1xf32>
    %35 = vector.broadcast %34 : vector<32x1xf32> to vector<32x32xf32>
    %36 = arith.mulf %31, %35 : vector<32x32xf32>
    %37 = vector.broadcast %17 : vector<1x32xf32> to vector<32x32xf32>
    %38 = arith.mulf %36, %37 : vector<32x32xf32>
    %39 = vector.broadcast %18 : vector<1x32xf32> to vector<32x32xf32>
    %40 = arith.addf %38, %39 : vector<32x32xf32>
    %c0_21 = arith.constant 0 : index
    %c0_22 = arith.constant 0 : index
    %c0_23 = arith.constant 0 : index
    %41 = vector.load %arg8[%c0_21, %c0_22, %c0_23] : memref<1x32x32xf32, #tpu.memory_space<vmem>>, vector<1x32x32xf32>
    %42 = vector.shape_cast %41 : vector<1x32x32xf32> to vector<32x32xf32>
    %43 = vector.shape_cast %40 : vector<32x32xf32> to vector<1x32x32xf32>
    tpu.vector_store %arg8[%c0_21, %c0_22, %c0_23], %43 {strides = array<i32>} : memref<1x32x32xf32, #tpu.memory_space<vmem>>, vector<1x32x32xf32>,
    return
  }
  func.func @transform_0(%arg0: i32) -> (i32, i32, i32) {
    %c0_i32 = arith.constant 0 : i32
    %c0_i32_0 = arith.constant 0 : i32
    %c0_i32_1 = arith.constant 0 : i32
    return %arg0, %c0_i32, %c0_i32_0 : i32, i32, i32
  }
  func.func @transform_1(%arg0: i32) -> (i32, i32) {
    %c0_i32 = arith.constant 0 : i32
    %c0_i32_0 = arith.constant 0 : i32
    %c0_i32_1 = arith.constant 0 : i32
    return %c0_i32, %c0_i32_0 : i32, i32
  }
  func.func @transform_2(%arg0: i32) -> (i32, i32) {
    %c0_i32 = arith.constant 0 : i32
    %c0_i32_0 = arith.constant 0 : i32
    %c0_i32_1 = arith.constant 0 : i32
    return %c0_i32, %c0_i32_0 : i32, i32
  }
  func.func @transform_3(%arg0: i32) -> (i32, i32) {
    %c0_i32 = arith.constant 0 : i32
    %c0_i32_0 = arith.constant 0 : i32
    %c0_i32_1 = arith.constant 0 : i32
    return %c0_i32, %c0_i32_0 : i32, i32
  }
  func.func @transform_4(%arg0: i32) -> (i32, i32) {
    %c0_i32 = arith.constant 0 : i32
    %c0_i32_0 = arith.constant 0 : i32
    %c0_i32_1 = arith.constant 0 : i32
    return %c0_i32, %c0_i32_0 : i32, i32
  }
  func.func @transform_5(%arg0: i32) -> (i32, i32) {
    %c0_i32 = arith.constant 0 : i32
    %c0_i32_0 = arith.constant 0 : i32
    %c0_i32_1 = arith.constant 0 : i32
    return %c0_i32, %c0_i32_0 : i32, i32
  }
  func.func @transform_6(%arg0: i32) -> (i32, i32) {
    %c0_i32 = arith.constant 0 : i32
    %c0_i32_0 = arith.constant 0 : i32
    %c0_i32_1 = arith.constant 0 : i32
    return %c0_i32, %c0_i32_0 : i32, i32
  }
  func.func @transform_7(%arg0: i32) -> (i32, i32, i32) {
    %c0_i32 = arith.constant 0 : i32
    %c0_i32_0 = arith.constant 0 : i32
    %c0_i32_1 = arith.constant 0 : i32
    return %arg0, %c0_i32, %c0_i32_0 : i32, i32, i32
  }
}

module attributes {stable_mosaic.version = 11 : i64} {
  func.func @_attn_block_kernel(%arg0: i32, %arg1: memref<1x1x32xf32, #tpu.memory_space<vmem>>, %arg2: memref<1x1x32xf32, #tpu.memory_space<vmem>>, %arg3: memref<1x1x32xf32, #tpu.memory_space<vmem>>, %arg4: memref<1x1x32xf32, #tpu.memory_space<vmem>>, %arg5: memref<1x1x1xf32, #tpu.memory_space<vmem>>, %arg6: memref<32x32xbf16, #tpu.memory_space<vmem>>, %arg7: memref<32x32xbf16, #tpu.memory_space<vmem>>, %arg8: memref<32x32xbf16, #tpu.memory_space<vmem>>, %arg9: memref<1x32xf32, #tpu.memory_space<vmem>>, %arg10: memref<1x32xf32, #tpu.memory_space<vmem>>, %arg11: memref<1x32xf32, #tpu.memory_space<vmem>>, %arg12: memref<32x32xbf16, #tpu.memory_space<vmem>>, %arg13: memref<1x32xf32, #tpu.memory_space<vmem>>, %arg14: memref<1x32xf32, #tpu.memory_space<vmem>>, %arg15: memref<1x32xf32, #tpu.memory_space<vmem>>, %arg16: memref<1x1x32xf32, #tpu.memory_space<vmem>>) attributes {dimension_semantics = [#tpu.dimension_semantics<parallel>], iteration_bounds = array<i64: 2>, scalar_prefetch = 0 : i64, scratch_operands = 0 : i64, tpu.core_type = #tpu.core_type<tc>, window_params = [{transform_indices = @transform_0, window_bounds = array<i64: 1, 1, 32>}, {transform_indices = @transform_1, window_bounds = array<i64: 1, 1, 32>}, {transform_indices = @transform_2, window_bounds = array<i64: 1, 1, 32>}, {transform_indices = @transform_3, window_bounds = array<i64: 1, 1, 32>}, {transform_indices = @transform_4, window_bounds = array<i64: 1, 1, 1>}, {pipeline_mode = #tpu.pipeline_mode<synchronous>, transform_indices = @transform_5, window_bounds = array<i64: 32, 32>}, {pipeline_mode = #tpu.pipeline_mode<synchronous>, transform_indices = @transform_6, window_bounds = array<i64: 32, 32>}, {pipeline_mode = #tpu.pipeline_mode<synchronous>, transform_indices = @transform_7, window_bounds = array<i64: 32, 32>}, {pipeline_mode = #tpu.pipeline_mode<synchronous>, transform_indices = @transform_8, window_bounds = array<i64: 1, 32>}, {pipeline_mode = #tpu.pipeline_mode<synchronous>, transform_indices = @transform_9, window_bounds = array<i64: 1, 32>}, {pipeline_mode = #tpu.pipeline_mode<synchronous>, transform_indices = @transform_10, window_bounds = array<i64: 1, 32>}, {pipeline_mode = #tpu.pipeline_mode<synchronous>, transform_indices = @transform_11, window_bounds = array<i64: 32, 32>}, {pipeline_mode = #tpu.pipeline_mode<synchronous>, transform_indices = @transform_12, window_bounds = array<i64: 1, 32>}, {pipeline_mode = #tpu.pipeline_mode<synchronous>, transform_indices = @transform_13, window_bounds = array<i64: 1, 32>}, {pipeline_mode = #tpu.pipeline_mode<synchronous>, transform_indices = @transform_14, window_bounds = array<i64: 1, 32>}, {transform_indices = @transform_15, window_bounds = array<i64: 1, 1, 32>}]} {
    %c0 = arith.constant 0 : index
    %c0_0 = arith.constant 0 : index
    %c0_1 = arith.constant 0 : index
    %0 = vector.load %arg1[%c0, %c0_0, %c0_1] : memref<1x1x32xf32, #tpu.memory_space<vmem>>, vector<1x1x32xf32>
    %1 = vector.shape_cast %0 : vector<1x1x32xf32> to vector<1x32xf32>
    %c0_2 = arith.constant 0 : index
    %c0_3 = arith.constant 0 : index
    %c0_4 = arith.constant 0 : index
    %2 = vector.load %arg2[%c0_2, %c0_3, %c0_4] : memref<1x1x32xf32, #tpu.memory_space<vmem>>, vector<1x1x32xf32>
    %3 = vector.shape_cast %2 : vector<1x1x32xf32> to vector<1x32xf32>
    %4 = arith.addf %1, %3 : vector<1x32xf32>
    %5 = arith.truncf %4 : vector<1x32xf32> to vector<1x32xbf16>
    %c0_5 = arith.constant 0 : index
    %c0_6 = arith.constant 0 : index
    %c0_7 = arith.constant 0 : index
    %6 = vector.load %arg3[%c0_5, %c0_6, %c0_7] : memref<1x1x32xf32, #tpu.memory_space<vmem>>, vector<1x1x32xf32>
    %7 = vector.shape_cast %6 : vector<1x1x32xf32> to vector<1x32xf32>
    %c0_8 = arith.constant 0 : index
    %c0_9 = arith.constant 0 : index
    %c0_10 = arith.constant 0 : index
    %8 = vector.load %arg4[%c0_8, %c0_9, %c0_10] : memref<1x1x32xf32, #tpu.memory_space<vmem>>, vector<1x1x32xf32>
    %9 = vector.shape_cast %8 : vector<1x1x32xf32> to vector<1x32xf32>
    %10 = arith.addf %7, %9 : vector<1x32xf32>
    %11 = arith.truncf %10 : vector<1x32xf32> to vector<1x32xbf16>
    %12 = arith.truncf %7 : vector<1x32xf32> to vector<1x32xbf16>
    %c0_11 = arith.constant 0 : index
    %c0_12 = arith.constant 0 : index
    %c0_13 = arith.constant 0 : index
    %13 = vector.load %arg5[%c0_11, %c0_12, %c0_13] : memref<1x1x1xf32, #tpu.memory_space<vmem>>, vector<1x1x1xf32>
    %14 = vector.shape_cast %13 : vector<1x1x1xf32> to vector<1x1xf32>
    %c0_14 = arith.constant 0 : index
    %c0_15 = arith.constant 0 : index
    %15 = vector.load %arg6[%c0_14, %c0_15] : memref<32x32xbf16, #tpu.memory_space<vmem>>, vector<32x8xbf16>
    %cst = arith.constant dense<0.000000e+00> : vector<1x8xf32>
    %16 = tpu.matmul %5, %15, %cst {dimension_numbers = #tpu.dot_dimension_numbers<[1], [0], [0], [1], [0, 0, 1, 1], [], []>} : vector<1x32xbf16>, vector<32x8xbf16>, vector<1x8xf32> -> vector<1x8xf32>
    %c0_16 = arith.constant 0 : index
    %c0_17 = arith.constant 0 : index
    %17 = vector.load %arg9[%c0_16, %c0_17] : memref<1x32xf32, #tpu.memory_space<vmem>>, vector<1x8xf32>
    %18 = arith.addf %16, %17 : vector<1x8xf32>
    %c0_18 = arith.constant 0 : index
    %c0_19 = arith.constant 0 : index
    %19 = vector.load %arg7[%c0_18, %c0_19] : memref<32x32xbf16, #tpu.memory_space<vmem>>, vector<32x8xbf16>
    %cst_20 = arith.constant dense<0.000000e+00> : vector<1x8xf32>
    %20 = tpu.matmul %11, %19, %cst_20 {dimension_numbers = #tpu.dot_dimension_numbers<[1], [0], [0], [1], [0, 0, 1, 1], [], []>} : vector<1x32xbf16>, vector<32x8xbf16>, vector<1x8xf32> -> vector<1x8xf32>
    %c0_21 = arith.constant 0 : index
    %c0_22 = arith.constant 0 : index
    %21 = vector.load %arg10[%c0_21, %c0_22] : memref<1x32xf32, #tpu.memory_space<vmem>>, vector<1x8xf32>
    %22 = arith.addf %20, %21 : vector<1x8xf32>
    %c0_23 = arith.constant 0 : index
    %c0_24 = arith.constant 0 : index
    %23 = vector.load %arg8[%c0_23, %c0_24] : memref<32x32xbf16, #tpu.memory_space<vmem>>, vector<32x8xbf16>
    %cst_25 = arith.constant dense<0.000000e+00> : vector<1x8xf32>
    %24 = tpu.matmul %12, %23, %cst_25 {dimension_numbers = #tpu.dot_dimension_numbers<[1], [0], [0], [1], [0, 0, 1, 1], [], []>} : vector<1x32xbf16>, vector<32x8xbf16>, vector<1x8xf32> -> vector<1x8xf32>
    %c0_26 = arith.constant 0 : index
    %c0_27 = arith.constant 0 : index
    %25 = vector.load %arg11[%c0_26, %c0_27] : memref<1x32xf32, #tpu.memory_space<vmem>>, vector<1x8xf32>
    %26 = arith.addf %24, %25 : vector<1x8xf32>
    %27 = arith.truncf %18 : vector<1x8xf32> to vector<1x8xbf16>
    %28 = arith.truncf %22 : vector<1x8xf32> to vector<1x8xbf16>
    %29 = arith.extf %27 : vector<1x8xbf16> to vector<1x8xf32>
    %30 = arith.extf %28 : vector<1x8xbf16> to vector<1x8xf32>
    %cst_28 = arith.constant dense<0.000000e+00> : vector<1xf32>
    %31 = arith.mulf %29, %30 : vector<1x8xf32>
    %32 = vector.multi_reduction <add>, %31, %cst_28 [1] : vector<1x8xf32> to vector<1xf32>
    %33 = vector.shape_cast %32 : vector<1xf32> to vector<1x1xf32>
    %34 = arith.addf %33, %14 : vector<1x1xf32>
    %cst_29 = arith.constant dense<0xFF800000> : vector<1xf32>
    %35 = vector.multi_reduction <maximumf>, %34, %cst_29 [1] : vector<1x1xf32> to vector<1xf32>
    %36 = vector.shape_cast %35 : vector<1xf32> to vector<1x1xf32>
    %37 = arith.subf %34, %36 : vector<1x1xf32>
    %38 = math.exp %37 : vector<1x1xf32>
    %cst_30 = arith.constant dense<0.000000e+00> : vector<1xf32>
    %39 = vector.multi_reduction <add>, %38, %cst_30 [1] : vector<1x1xf32> to vector<1xf32>
    %40 = vector.shape_cast %39 : vector<1xf32> to vector<1x1xf32>
    %41 = tpu.reciprocal %40 {approx = true} : vector<1x1xf32> -> vector<1x1xf32>
    %42 = arith.truncf %38 : vector<1x1xf32> to vector<1x1xbf16>
    %43 = arith.truncf %26 : vector<1x8xf32> to vector<1x8xbf16>
    %cst_31 = arith.constant dense<0.000000e+00> : vector<1x8xf32>
    %44 = tpu.matmul %42, %43, %cst_31 {dimension_numbers = #tpu.dot_dimension_numbers<[1], [0], [0], [1], [0, 0, 1, 1], [], []>} : vector<1x1xbf16>, vector<1x8xbf16>, vector<1x8xf32> -> vector<1x8xf32>
    %45 = vector.broadcast %41 : vector<1x1xf32> to vector<1x8xf32>
    %46 = arith.mulf %44, %45 : vector<1x8xf32>
    %47 = arith.truncf %46 : vector<1x8xf32> to vector<1x8xbf16>
    %c0_32 = arith.constant 0 : index
    %c0_33 = arith.constant 0 : index
    %48 = vector.load %arg12[%c0_32, %c0_33] : memref<32x32xbf16, #tpu.memory_space<vmem>>, vector<8x32xbf16>
    %cst_34 = arith.constant dense<0.000000e+00> : vector<1x32xf32>
    %49 = tpu.matmul %47, %48, %cst_34 {dimension_numbers = #tpu.dot_dimension_numbers<[1], [0], [0], [1], [0, 0, 1, 1], [], []>} : vector<1x8xbf16>, vector<8x32xbf16>, vector<1x32xf32> -> vector<1x32xf32>
    %c0_35 = arith.constant 0 : index
    %c8 = arith.constant 8 : index
    %50 = vector.load %arg6[%c0_35, %c8] : memref<32x32xbf16, #tpu.memory_space<vmem>>, vector<32x8xbf16>
    %cst_36 = arith.constant dense<0.000000e+00> : vector<1x8xf32>
    %51 = tpu.matmul %5, %50, %cst_36 {dimension_numbers = #tpu.dot_dimension_numbers<[1], [0], [0], [1], [0, 0, 1, 1], [], []>} : vector<1x32xbf16>, vector<32x8xbf16>, vector<1x8xf32> -> vector<1x8xf32>
    %c0_37 = arith.constant 0 : index
    %c8_38 = arith.constant 8 : index
    %52 = vector.load %arg9[%c0_37, %c8_38] : memref<1x32xf32, #tpu.memory_space<vmem>>, vector<1x8xf32>
    %53 = arith.addf %51, %52 : vector<1x8xf32>
    %c0_39 = arith.constant 0 : index
    %c8_40 = arith.constant 8 : index
    %54 = vector.load %arg7[%c0_39, %c8_40] : memref<32x32xbf16, #tpu.memory_space<vmem>>, vector<32x8xbf16>
    %cst_41 = arith.constant dense<0.000000e+00> : vector<1x8xf32>
    %55 = tpu.matmul %11, %54, %cst_41 {dimension_numbers = #tpu.dot_dimension_numbers<[1], [0], [0], [1], [0, 0, 1, 1], [], []>} : vector<1x32xbf16>, vector<32x8xbf16>, vector<1x8xf32> -> vector<1x8xf32>
    %c0_42 = arith.constant 0 : index
    %c8_43 = arith.constant 8 : index
    %56 = vector.load %arg10[%c0_42, %c8_43] : memref<1x32xf32, #tpu.memory_space<vmem>>, vector<1x8xf32>
    %57 = arith.addf %55, %56 : vector<1x8xf32>
    %c0_44 = arith.constant 0 : index
    %c8_45 = arith.constant 8 : index
    %58 = vector.load %arg8[%c0_44, %c8_45] : memref<32x32xbf16, #tpu.memory_space<vmem>>, vector<32x8xbf16>
    %cst_46 = arith.constant dense<0.000000e+00> : vector<1x8xf32>
    %59 = tpu.matmul %12, %58, %cst_46 {dimension_numbers = #tpu.dot_dimension_numbers<[1], [0], [0], [1], [0, 0, 1, 1], [], []>} : vector<1x32xbf16>, vector<32x8xbf16>, vector<1x8xf32> -> vector<1x8xf32>
    %c0_47 = arith.constant 0 : index
    %c8_48 = arith.constant 8 : index
    %60 = vector.load %arg11[%c0_47, %c8_48] : memref<1x32xf32, #tpu.memory_space<vmem>>, vector<1x8xf32>
    %61 = arith.addf %59, %60 : vector<1x8xf32>
    %62 = arith.truncf %53 : vector<1x8xf32> to vector<1x8xbf16>
    %63 = arith.truncf %57 : vector<1x8xf32> to vector<1x8xbf16>
    %64 = arith.extf %62 : vector<1x8xbf16> to vector<1x8xf32>
    %65 = arith.extf %63 : vector<1x8xbf16> to vector<1x8xf32>
    %cst_49 = arith.constant dense<0.000000e+00> : vector<1xf32>
    %66 = arith.mulf %64, %65 : vector<1x8xf32>
    %67 = vector.multi_reduction <add>, %66, %cst_49 [1] : vector<1x8xf32> to vector<1xf32>
    %68 = vector.shape_cast %67 : vector<1xf32> to vector<1x1xf32>
    %69 = arith.addf %68, %14 : vector<1x1xf32>
    %cst_50 = arith.constant dense<0xFF800000> : vector<1xf32>
    %70 = vector.multi_reduction <maximumf>, %69, %cst_50 [1] : vector<1x1xf32> to vector<1xf32>
    %71 = vector.shape_cast %70 : vector<1xf32> to vector<1x1xf32>
    %72 = arith.subf %69, %71 : vector<1x1xf32>
    %73 = math.exp %72 : vector<1x1xf32>
    %cst_51 = arith.constant dense<0.000000e+00> : vector<1xf32>
    %74 = vector.multi_reduction <add>, %73, %cst_51 [1] : vector<1x1xf32> to vector<1xf32>
    %75 = vector.shape_cast %74 : vector<1xf32> to vector<1x1xf32>
    %76 = tpu.reciprocal %75 {approx = true} : vector<1x1xf32> -> vector<1x1xf32>
    %77 = arith.truncf %73 : vector<1x1xf32> to vector<1x1xbf16>
    %78 = arith.truncf %61 : vector<1x8xf32> to vector<1x8xbf16>
    %cst_52 = arith.constant dense<0.000000e+00> : vector<1x8xf32>
    %79 = tpu.matmul %77, %78, %cst_52 {dimension_numbers = #tpu.dot_dimension_numbers<[1], [0], [0], [1], [0, 0, 1, 1], [], []>} : vector<1x1xbf16>, vector<1x8xbf16>, vector<1x8xf32> -> vector<1x8xf32>
    %80 = vector.broadcast %76 : vector<1x1xf32> to vector<1x8xf32>
    %81 = arith.mulf %79, %80 : vector<1x8xf32>
    %82 = arith.truncf %81 : vector<1x8xf32> to vector<1x8xbf16>
    %c8_53 = arith.constant 8 : index
    %c0_54 = arith.constant 0 : index
    %83 = vector.load %arg12[%c8_53, %c0_54] : memref<32x32xbf16, #tpu.memory_space<vmem>>, vector<8x32xbf16>
    %cst_55 = arith.constant dense<0.000000e+00> : vector<1x32xf32>
    %84 = tpu.matmul %82, %83, %cst_55 {dimension_numbers = #tpu.dot_dimension_numbers<[1], [0], [0], [1], [0, 0, 1, 1], [], []>} : vector<1x8xbf16>, vector<8x32xbf16>, vector<1x32xf32> -> vector<1x32xf32>
    %85 = arith.addf %49, %84 : vector<1x32xf32>
    %c0_56 = arith.constant 0 : index
    %c16 = arith.constant 16 : index
    %86 = vector.load %arg6[%c0_56, %c16] : memref<32x32xbf16, #tpu.memory_space<vmem>>, vector<32x8xbf16>
    %cst_57 = arith.constant dense<0.000000e+00> : vector<1x8xf32>
    %87 = tpu.matmul %5, %86, %cst_57 {dimension_numbers = #tpu.dot_dimension_numbers<[1], [0], [0], [1], [0, 0, 1, 1], [], []>} : vector<1x32xbf16>, vector<32x8xbf16>, vector<1x8xf32> -> vector<1x8xf32>
    %c0_58 = arith.constant 0 : index
    %c16_59 = arith.constant 16 : index
    %88 = vector.load %arg9[%c0_58, %c16_59] : memref<1x32xf32, #tpu.memory_space<vmem>>, vector<1x8xf32>
    %89 = arith.addf %87, %88 : vector<1x8xf32>
    %c0_60 = arith.constant 0 : index
    %c16_61 = arith.constant 16 : index
    %90 = vector.load %arg7[%c0_60, %c16_61] : memref<32x32xbf16, #tpu.memory_space<vmem>>, vector<32x8xbf16>
    %cst_62 = arith.constant dense<0.000000e+00> : vector<1x8xf32>
    %91 = tpu.matmul %11, %90, %cst_62 {dimension_numbers = #tpu.dot_dimension_numbers<[1], [0], [0], [1], [0, 0, 1, 1], [], []>} : vector<1x32xbf16>, vector<32x8xbf16>, vector<1x8xf32> -> vector<1x8xf32>
    %c0_63 = arith.constant 0 : index
    %c16_64 = arith.constant 16 : index
    %92 = vector.load %arg10[%c0_63, %c16_64] : memref<1x32xf32, #tpu.memory_space<vmem>>, vector<1x8xf32>
    %93 = arith.addf %91, %92 : vector<1x8xf32>
    %c0_65 = arith.constant 0 : index
    %c16_66 = arith.constant 16 : index
    %94 = vector.load %arg8[%c0_65, %c16_66] : memref<32x32xbf16, #tpu.memory_space<vmem>>, vector<32x8xbf16>
    %cst_67 = arith.constant dense<0.000000e+00> : vector<1x8xf32>
    %95 = tpu.matmul %12, %94, %cst_67 {dimension_numbers = #tpu.dot_dimension_numbers<[1], [0], [0], [1], [0, 0, 1, 1], [], []>} : vector<1x32xbf16>, vector<32x8xbf16>, vector<1x8xf32> -> vector<1x8xf32>
    %c0_68 = arith.constant 0 : index
    %c16_69 = arith.constant 16 : index
    %96 = vector.load %arg11[%c0_68, %c16_69] : memref<1x32xf32, #tpu.memory_space<vmem>>, vector<1x8xf32>
    %97 = arith.addf %95, %96 : vector<1x8xf32>
    %98 = arith.truncf %89 : vector<1x8xf32> to vector<1x8xbf16>
    %99 = arith.truncf %93 : vector<1x8xf32> to vector<1x8xbf16>
    %100 = arith.extf %98 : vector<1x8xbf16> to vector<1x8xf32>
    %101 = arith.extf %99 : vector<1x8xbf16> to vector<1x8xf32>
    %cst_70 = arith.constant dense<0.000000e+00> : vector<1xf32>
    %102 = arith.mulf %100, %101 : vector<1x8xf32>
    %103 = vector.multi_reduction <add>, %102, %cst_70 [1] : vector<1x8xf32> to vector<1xf32>
    %104 = vector.shape_cast %103 : vector<1xf32> to vector<1x1xf32>
    %105 = arith.addf %104, %14 : vector<1x1xf32>
    %cst_71 = arith.constant dense<0xFF800000> : vector<1xf32>
    %106 = vector.multi_reduction <maximumf>, %105, %cst_71 [1] : vector<1x1xf32> to vector<1xf32>
    %107 = vector.shape_cast %106 : vector<1xf32> to vector<1x1xf32>
    %108 = arith.subf %105, %107 : vector<1x1xf32>
    %109 = math.exp %108 : vector<1x1xf32>
    %cst_72 = arith.constant dense<0.000000e+00> : vector<1xf32>
    %110 = vector.multi_reduction <add>, %109, %cst_72 [1] : vector<1x1xf32> to vector<1xf32>
    %111 = vector.shape_cast %110 : vector<1xf32> to vector<1x1xf32>
    %112 = tpu.reciprocal %111 {approx = true} : vector<1x1xf32> -> vector<1x1xf32>
    %113 = arith.truncf %109 : vector<1x1xf32> to vector<1x1xbf16>
    %114 = arith.truncf %97 : vector<1x8xf32> to vector<1x8xbf16>
    %cst_73 = arith.constant dense<0.000000e+00> : vector<1x8xf32>
    %115 = tpu.matmul %113, %114, %cst_73 {dimension_numbers = #tpu.dot_dimension_numbers<[1], [0], [0], [1], [0, 0, 1, 1], [], []>} : vector<1x1xbf16>, vector<1x8xbf16>, vector<1x8xf32> -> vector<1x8xf32>
    %116 = vector.broadcast %112 : vector<1x1xf32> to vector<1x8xf32>
    %117 = arith.mulf %115, %116 : vector<1x8xf32>
    %118 = arith.truncf %117 : vector<1x8xf32> to vector<1x8xbf16>
    %c16_74 = arith.constant 16 : index
    %c0_75 = arith.constant 0 : index
    %119 = vector.load %arg12[%c16_74, %c0_75] : memref<32x32xbf16, #tpu.memory_space<vmem>>, vector<8x32xbf16>
    %cst_76 = arith.constant dense<0.000000e+00> : vector<1x32xf32>
    %120 = tpu.matmul %118, %119, %cst_76 {dimension_numbers = #tpu.dot_dimension_numbers<[1], [0], [0], [1], [0, 0, 1, 1], [], []>} : vector<1x8xbf16>, vector<8x32xbf16>, vector<1x32xf32> -> vector<1x32xf32>
    %121 = arith.addf %85, %120 : vector<1x32xf32>
    %c0_77 = arith.constant 0 : index
    %c24 = arith.constant 24 : index
    %122 = vector.load %arg6[%c0_77, %c24] : memref<32x32xbf16, #tpu.memory_space<vmem>>, vector<32x8xbf16>
    %cst_78 = arith.constant dense<0.000000e+00> : vector<1x8xf32>
    %123 = tpu.matmul %5, %122, %cst_78 {dimension_numbers = #tpu.dot_dimension_numbers<[1], [0], [0], [1], [0, 0, 1, 1], [], []>} : vector<1x32xbf16>, vector<32x8xbf16>, vector<1x8xf32> -> vector<1x8xf32>
    %c0_79 = arith.constant 0 : index
    %c24_80 = arith.constant 24 : index
    %124 = vector.load %arg9[%c0_79, %c24_80] : memref<1x32xf32, #tpu.memory_space<vmem>>, vector<1x8xf32>
    %125 = arith.addf %123, %124 : vector<1x8xf32>
    %c0_81 = arith.constant 0 : index
    %c24_82 = arith.constant 24 : index
    %126 = vector.load %arg7[%c0_81, %c24_82] : memref<32x32xbf16, #tpu.memory_space<vmem>>, vector<32x8xbf16>
    %cst_83 = arith.constant dense<0.000000e+00> : vector<1x8xf32>
    %127 = tpu.matmul %11, %126, %cst_83 {dimension_numbers = #tpu.dot_dimension_numbers<[1], [0], [0], [1], [0, 0, 1, 1], [], []>} : vector<1x32xbf16>, vector<32x8xbf16>, vector<1x8xf32> -> vector<1x8xf32>
    %c0_84 = arith.constant 0 : index
    %c24_85 = arith.constant 24 : index
    %128 = vector.load %arg10[%c0_84, %c24_85] : memref<1x32xf32, #tpu.memory_space<vmem>>, vector<1x8xf32>
    %129 = arith.addf %127, %128 : vector<1x8xf32>
    %c0_86 = arith.constant 0 : index
    %c24_87 = arith.constant 24 : index
    %130 = vector.load %arg8[%c0_86, %c24_87] : memref<32x32xbf16, #tpu.memory_space<vmem>>, vector<32x8xbf16>
    %cst_88 = arith.constant dense<0.000000e+00> : vector<1x8xf32>
    %131 = tpu.matmul %12, %130, %cst_88 {dimension_numbers = #tpu.dot_dimension_numbers<[1], [0], [0], [1], [0, 0, 1, 1], [], []>} : vector<1x32xbf16>, vector<32x8xbf16>, vector<1x8xf32> -> vector<1x8xf32>
    %c0_89 = arith.constant 0 : index
    %c24_90 = arith.constant 24 : index
    %132 = vector.load %arg11[%c0_89, %c24_90] : memref<1x32xf32, #tpu.memory_space<vmem>>, vector<1x8xf32>
    %133 = arith.addf %131, %132 : vector<1x8xf32>
    %134 = arith.truncf %125 : vector<1x8xf32> to vector<1x8xbf16>
    %135 = arith.truncf %129 : vector<1x8xf32> to vector<1x8xbf16>
    %136 = arith.extf %134 : vector<1x8xbf16> to vector<1x8xf32>
    %137 = arith.extf %135 : vector<1x8xbf16> to vector<1x8xf32>
    %cst_91 = arith.constant dense<0.000000e+00> : vector<1xf32>
    %138 = arith.mulf %136, %137 : vector<1x8xf32>
    %139 = vector.multi_reduction <add>, %138, %cst_91 [1] : vector<1x8xf32> to vector<1xf32>
    %140 = vector.shape_cast %139 : vector<1xf32> to vector<1x1xf32>
    %141 = arith.addf %140, %14 : vector<1x1xf32>
    %cst_92 = arith.constant dense<0xFF800000> : vector<1xf32>
    %142 = vector.multi_reduction <maximumf>, %141, %cst_92 [1] : vector<1x1xf32> to vector<1xf32>
    %143 = vector.shape_cast %142 : vector<1xf32> to vector<1x1xf32>
    %144 = arith.subf %141, %143 : vector<1x1xf32>
    %145 = math.exp %144 : vector<1x1xf32>
    %cst_93 = arith.constant dense<0.000000e+00> : vector<1xf32>
    %146 = vector.multi_reduction <add>, %145, %cst_93 [1] : vector<1x1xf32> to vector<1xf32>
    %147 = vector.shape_cast %146 : vector<1xf32> to vector<1x1xf32>
    %148 = tpu.reciprocal %147 {approx = true} : vector<1x1xf32> -> vector<1x1xf32>
    %149 = arith.truncf %145 : vector<1x1xf32> to vector<1x1xbf16>
    %150 = arith.truncf %133 : vector<1x8xf32> to vector<1x8xbf16>
    %cst_94 = arith.constant dense<0.000000e+00> : vector<1x8xf32>
    %151 = tpu.matmul %149, %150, %cst_94 {dimension_numbers = #tpu.dot_dimension_numbers<[1], [0], [0], [1], [0, 0, 1, 1], [], []>} : vector<1x1xbf16>, vector<1x8xbf16>, vector<1x8xf32> -> vector<1x8xf32>
    %152 = vector.broadcast %148 : vector<1x1xf32> to vector<1x8xf32>
    %153 = arith.mulf %151, %152 : vector<1x8xf32>
    %154 = arith.truncf %153 : vector<1x8xf32> to vector<1x8xbf16>
    %c24_95 = arith.constant 24 : index
    %c0_96 = arith.constant 0 : index
    %155 = vector.load %arg12[%c24_95, %c0_96] : memref<32x32xbf16, #tpu.memory_space<vmem>>, vector<8x32xbf16>
    %cst_97 = arith.constant dense<0.000000e+00> : vector<1x32xf32>
    %156 = tpu.matmul %154, %155, %cst_97 {dimension_numbers = #tpu.dot_dimension_numbers<[1], [0], [0], [1], [0, 0, 1, 1], [], []>} : vector<1x8xbf16>, vector<8x32xbf16>, vector<1x32xf32> -> vector<1x32xf32>
    %157 = arith.addf %121, %156 : vector<1x32xf32>
    %158 = arith.addf %1, %157 : vector<1x32xf32>
    %c0_98 = arith.constant 0 : index
    %c0_99 = arith.constant 0 : index
    %159 = vector.load %arg13[%c0_98, %c0_99] : memref<1x32xf32, #tpu.memory_space<vmem>>, vector<1x32xf32>
    %160 = arith.addf %158, %159 : vector<1x32xf32>
    %c0_100 = arith.constant 0 : index
    %c0_101 = arith.constant 0 : index
    %161 = vector.load %arg14[%c0_100, %c0_101] : memref<1x32xf32, #tpu.memory_space<vmem>>, vector<1x32xf32>
    %c0_102 = arith.constant 0 : index
    %c0_103 = arith.constant 0 : index
    %162 = vector.load %arg15[%c0_102, %c0_103] : memref<1x32xf32, #tpu.memory_space<vmem>>, vector<1x32xf32>
    %cst_104 = arith.constant dense<0.000000e+00> : vector<1xf32>
    %163 = vector.multi_reduction <add>, %160, %cst_104 [1] : vector<1x32xf32> to vector<1xf32>
    %164 = vector.shape_cast %163 : vector<1xf32> to vector<1x1xf32>
    %cst_105 = arith.constant 3.200000e+01 : f32
    %165 = vector.broadcast %cst_105 : f32 to vector<1x1xf32>
    %166 = arith.divf %164, %165 : vector<1x1xf32>
    %167 = vector.broadcast %166 : vector<1x1xf32> to vector<1x32xf32>
    %168 = arith.subf %160, %167 : vector<1x32xf32>
    %169 = arith.mulf %168, %168 : vector<1x32xf32>
    %cst_106 = arith.constant dense<0.000000e+00> : vector<1xf32>
    %170 = vector.multi_reduction <add>, %169, %cst_106 [1] : vector<1x32xf32> to vector<1xf32>
    %171 = vector.shape_cast %170 : vector<1xf32> to vector<1x1xf32>
    %cst_107 = arith.constant 3.200000e+01 : f32
    %172 = vector.broadcast %cst_107 : f32 to vector<1x1xf32>
    %173 = arith.divf %171, %172 : vector<1x1xf32>
    %174 = vector.broadcast %166 : vector<1x1xf32> to vector<1x32xf32>
    %175 = arith.subf %160, %174 : vector<1x32xf32>
    %cst_108 = arith.constant 9.99999974E-6 : f32
    %176 = vector.broadcast %cst_108 : f32 to vector<1x1xf32>
    %177 = arith.addf %173, %176 : vector<1x1xf32>
    %178 = math.rsqrt %177 : vector<1x1xf32>
    %179 = vector.broadcast %178 : vector<1x1xf32> to vector<1x32xf32>
    %180 = arith.mulf %175, %179 : vector<1x32xf32>
    %181 = arith.mulf %180, %161 : vector<1x32xf32>
    %182 = arith.addf %181, %162 : vector<1x32xf32>
    %c0_109 = arith.constant 0 : index
    %c0_110 = arith.constant 0 : index
    %c0_111 = arith.constant 0 : index
    %183 = vector.load %arg16[%c0_109, %c0_110, %c0_111] : memref<1x1x32xf32, #tpu.memory_space<vmem>>, vector<1x1x32xf32>
    %184 = vector.shape_cast %183 : vector<1x1x32xf32> to vector<1x32xf32>
    %185 = vector.shape_cast %182 : vector<1x32xf32> to vector<1x1x32xf32>
    tpu.vector_store %arg16[%c0_109, %c0_110, %c0_111], %185 {strides = array<i32>} : memref<1x1x32xf32, #tpu.memory_space<vmem>>, vector<1x1x32xf32>,
    return
  }
  func.func @transform_0(%arg0: i32) -> (i32, i32, i32) {
    %c0_i32 = arith.constant 0 : i32
    %c0_i32_0 = arith.constant 0 : i32
    %c0_i32_1 = arith.constant 0 : i32
    return %arg0, %c0_i32, %c0_i32_0 : i32, i32, i32
  }
  func.func @transform_1(%arg0: i32) -> (i32, i32, i32) {
    %c0_i32 = arith.constant 0 : i32
    %c0_i32_0 = arith.constant 0 : i32
    %c0_i32_1 = arith.constant 0 : i32
    return %arg0, %c0_i32, %c0_i32_0 : i32, i32, i32
  }
  func.func @transform_2(%arg0: i32) -> (i32, i32, i32) {
    %c0_i32 = arith.constant 0 : i32
    %c0_i32_0 = arith.constant 0 : i32
    %c0_i32_1 = arith.constant 0 : i32
    return %arg0, %c0_i32, %c0_i32_0 : i32, i32, i32
  }
  func.func @transform_3(%arg0: i32) -> (i32, i32, i32) {
    %c0_i32 = arith.constant 0 : i32
    %c0_i32_0 = arith.constant 0 : i32
    %c0_i32_1 = arith.constant 0 : i32
    return %arg0, %c0_i32, %c0_i32_0 : i32, i32, i32
  }
  func.func @transform_4(%arg0: i32) -> (i32, i32, i32) {
    %c0_i32 = arith.constant 0 : i32
    %c0_i32_0 = arith.constant 0 : i32
    %c0_i32_1 = arith.constant 0 : i32
    return %arg0, %c0_i32, %c0_i32_0 : i32, i32, i32
  }
  func.func @transform_5(%arg0: i32) -> (i32, i32) {
    %c0_i32 = arith.constant 0 : i32
    %c0_i32_0 = arith.constant 0 : i32
    %c0_i32_1 = arith.constant 0 : i32
    return %c0_i32, %c0_i32_0 : i32, i32
  }
  func.func @transform_6(%arg0: i32) -> (i32, i32) {
    %c0_i32 = arith.constant 0 : i32
    %c0_i32_0 = arith.constant 0 : i32
    %c0_i32_1 = arith.constant 0 : i32
    return %c0_i32, %c0_i32_0 : i32, i32
  }
  func.func @transform_7(%arg0: i32) -> (i32, i32) {
    %c0_i32 = arith.constant 0 : i32
    %c0_i32_0 = arith.constant 0 : i32
    %c0_i32_1 = arith.constant 0 : i32
    return %c0_i32, %c0_i32_0 : i32, i32
  }
  func.func @transform_8(%arg0: i32) -> (i32, i32) {
    %c0_i32 = arith.constant 0 : i32
    %c0_i32_0 = arith.constant 0 : i32
    %c0_i32_1 = arith.constant 0 : i32
    return %c0_i32, %c0_i32_0 : i32, i32
  }
  func.func @transform_9(%arg0: i32) -> (i32, i32) {
    %c0_i32 = arith.constant 0 : i32
    %c0_i32_0 = arith.constant 0 : i32
    %c0_i32_1 = arith.constant 0 : i32
    return %c0_i32, %c0_i32_0 : i32, i32
  }
  func.func @transform_10(%arg0: i32) -> (i32, i32) {
    %c0_i32 = arith.constant 0 : i32
    %c0_i32_0 = arith.constant 0 : i32
    %c0_i32_1 = arith.constant 0 : i32
    return %c0_i32, %c0_i32_0 : i32, i32
  }
  func.func @transform_11(%arg0: i32) -> (i32, i32) {
    %c0_i32 = arith.constant 0 : i32
    %c0_i32_0 = arith.constant 0 : i32
    %c0_i32_1 = arith.constant 0 : i32
    return %c0_i32, %c0_i32_0 : i32, i32
  }
  func.func @transform_12(%arg0: i32) -> (i32, i32) {
    %c0_i32 = arith.constant 0 : i32
    %c0_i32_0 = arith.constant 0 : i32
    %c0_i32_1 = arith.constant 0 : i32
    return %c0_i32, %c0_i32_0 : i32, i32
  }
  func.func @transform_13(%arg0: i32) -> (i32, i32) {
    %c0_i32 = arith.constant 0 : i32
    %c0_i32_0 = arith.constant 0 : i32
    %c0_i32_1 = arith.constant 0 : i32
    return %c0_i32, %c0_i32_0 : i32, i32
  }
  func.func @transform_14(%arg0: i32) -> (i32, i32) {
    %c0_i32 = arith.constant 0 : i32
    %c0_i32_0 = arith.constant 0 : i32
    %c0_i32_1 = arith.constant 0 : i32
    return %c0_i32, %c0_i32_0 : i32, i32
  }
  func.func @transform_15(%arg0: i32) -> (i32, i32, i32) {
    %c0_i32 = arith.constant 0 : i32
    %c0_i32_0 = arith.constant 0 : i32
    %c0_i32_1 = arith.constant 0 : i32
    return %arg0, %c0_i32, %c0_i32_0 : i32, i32, i32
  }
}

module attributes {stable_mosaic.version = 11 : i64} {
  func.func @_attn_block_kernel(%arg0: i32, %arg1: memref<1x1x32xf32, #tpu.memory_space<vmem>>, %arg2: memref<1x1x32xf32, #tpu.memory_space<vmem>>, %arg3: memref<1x32x32xf32, #tpu.memory_space<vmem>>, %arg4: memref<1x32x32xf32, #tpu.memory_space<vmem>>, %arg5: memref<1x1x32xf32, #tpu.memory_space<vmem>>, %arg6: memref<32x32xbf16, #tpu.memory_space<vmem>>, %arg7: memref<32x32xbf16, #tpu.memory_space<vmem>>, %arg8: memref<32x32xbf16, #tpu.memory_space<vmem>>, %arg9: memref<1x32xf32, #tpu.memory_space<vmem>>, %arg10: memref<1x32xf32, #tpu.memory_space<vmem>>, %arg11: memref<1x32xf32, #tpu.memory_space<vmem>>, %arg12: memref<32x32xbf16, #tpu.memory_space<vmem>>, %arg13: memref<1x32xf32, #tpu.memory_space<vmem>>, %arg14: memref<1x32xf32, #tpu.memory_space<vmem>>, %arg15: memref<1x32xf32, #tpu.memory_space<vmem>>, %arg16: memref<1x1x32xf32, #tpu.memory_space<vmem>>) attributes {dimension_semantics = [#tpu.dimension_semantics<parallel>], iteration_bounds = array<i64: 2>, scalar_prefetch = 0 : i64, scratch_operands = 0 : i64, tpu.core_type = #tpu.core_type<tc>, window_params = [{transform_indices = @transform_0, window_bounds = array<i64: 1, 1, 32>}, {transform_indices = @transform_1, window_bounds = array<i64: 1, 1, 32>}, {transform_indices = @transform_2, window_bounds = array<i64: 1, 32, 32>}, {transform_indices = @transform_3, window_bounds = array<i64: 1, 32, 32>}, {transform_indices = @transform_4, window_bounds = array<i64: 1, 1, 32>}, {pipeline_mode = #tpu.pipeline_mode<synchronous>, transform_indices = @transform_5, window_bounds = array<i64: 32, 32>}, {pipeline_mode = #tpu.pipeline_mode<synchronous>, transform_indices = @transform_6, window_bounds = array<i64: 32, 32>}, {pipeline_mode = #tpu.pipeline_mode<synchronous>, transform_indices = @transform_7, window_bounds = array<i64: 32, 32>}, {pipeline_mode = #tpu.pipeline_mode<synchronous>, transform_indices = @transform_8, window_bounds = array<i64: 1, 32>}, {pipeline_mode = #tpu.pipeline_mode<synchronous>, transform_indices = @transform_9, window_bounds = array<i64: 1, 32>}, {pipeline_mode = #tpu.pipeline_mode<synchronous>, transform_indices = @transform_10, window_bounds = array<i64: 1, 32>}, {pipeline_mode = #tpu.pipeline_mode<synchronous>, transform_indices = @transform_11, window_bounds = array<i64: 32, 32>}, {pipeline_mode = #tpu.pipeline_mode<synchronous>, transform_indices = @transform_12, window_bounds = array<i64: 1, 32>}, {pipeline_mode = #tpu.pipeline_mode<synchronous>, transform_indices = @transform_13, window_bounds = array<i64: 1, 32>}, {pipeline_mode = #tpu.pipeline_mode<synchronous>, transform_indices = @transform_14, window_bounds = array<i64: 1, 32>}, {transform_indices = @transform_15, window_bounds = array<i64: 1, 1, 32>}]} {
    %c0 = arith.constant 0 : index
    %c0_0 = arith.constant 0 : index
    %c0_1 = arith.constant 0 : index
    %0 = vector.load %arg1[%c0, %c0_0, %c0_1] : memref<1x1x32xf32, #tpu.memory_space<vmem>>, vector<1x1x32xf32>
    %1 = vector.shape_cast %0 : vector<1x1x32xf32> to vector<1x32xf32>
    %c0_2 = arith.constant 0 : index
    %c0_3 = arith.constant 0 : index
    %c0_4 = arith.constant 0 : index
    %2 = vector.load %arg2[%c0_2, %c0_3, %c0_4] : memref<1x1x32xf32, #tpu.memory_space<vmem>>, vector<1x1x32xf32>
    %3 = vector.shape_cast %2 : vector<1x1x32xf32> to vector<1x32xf32>
    %4 = arith.addf %1, %3 : vector<1x32xf32>
    %5 = arith.truncf %4 : vector<1x32xf32> to vector<1x32xbf16>
    %c0_5 = arith.constant 0 : index
    %c0_6 = arith.constant 0 : index
    %c0_7 = arith.constant 0 : index
    %6 = vector.load %arg3[%c0_5, %c0_6, %c0_7] : memref<1x32x32xf32, #tpu.memory_space<vmem>>, vector<1x32x32xf32>
    %7 = vector.shape_cast %6 : vector<1x32x32xf32> to vector<32x32xf32>
    %c0_8 = arith.constant 0 : index
    %c0_9 = arith.constant 0 : index
    %c0_10 = arith.constant 0 : index
    %8 = vector.load %arg4[%c0_8, %c0_9, %c0_10] : memref<1x32x32xf32, #tpu.memory_space<vmem>>, vector<1x32x32xf32>
    %9 = vector.shape_cast %8 : vector<1x32x32xf32> to vector<32x32xf32>
    %10 = arith.addf %7, %9 : vector<32x32xf32>
    %11 = arith.truncf %10 : vector<32x32xf32> to vector<32x32xbf16>
    %12 = arith.truncf %7 : vector<32x32xf32> to vector<32x32xbf16>
    %c0_11 = arith.constant 0 : index
    %c0_12 = arith.constant 0 : index
    %c0_13 = arith.constant 0 : index
    %13 = vector.load %arg5[%c0_11, %c0_12, %c0_13] : memref<1x1x32xf32, #tpu.memory_space<vmem>>, vector<1x1x32xf32>
    %14 = vector.shape_cast %13 : vector<1x1x32xf32> to vector<1x32xf32>
    %c0_14 = arith.constant 0 : index
    %c0_15 = arith.constant 0 : index
    %15 = vector.load %arg6[%c0_14, %c0_15] : memref<32x32xbf16, #tpu.memory_space<vmem>>, vector<32x8xbf16>
    %cst = arith.constant dense<0.000000e+00> : vector<1x8xf32>
    %16 = tpu.matmul %5, %15, %cst {dimension_numbers = #tpu.dot_dimension_numbers<[1], [0], [0], [1], [0, 0, 1, 1], [], []>} : vector<1x32xbf16>, vector<32x8xbf16>, vector<1x8xf32> -> vector<1x8xf32>
    %c0_16 = arith.constant 0 : index
    %c0_17 = arith.constant 0 : index
    %17 = vector.load %arg9[%c0_16, %c0_17] : memref<1x32xf32, #tpu.memory_space<vmem>>, vector<1x8xf32>
    %18 = arith.addf %16, %17 : vector<1x8xf32>
    %c0_18 = arith.constant 0 : index
    %c0_19 = arith.constant 0 : index
    %19 = vector.load %arg7[%c0_18, %c0_19] : memref<32x32xbf16, #tpu.memory_space<vmem>>, vector<32x8xbf16>
    %cst_20 = arith.constant dense<0.000000e+00> : vector<32x8xf32>
    %20 = tpu.matmul %11, %19, %cst_20 {dimension_numbers = #tpu.dot_dimension_numbers<[1], [0], [0], [1], [0, 0, 1, 1], [], []>} : vector<32x32xbf16>, vector<32x8xbf16>, vector<32x8xf32> -> vector<32x8xf32>
    %c0_21 = arith.constant 0 : index
    %c0_22 = arith.constant 0 : index
    %21 = vector.load %arg10[%c0_21, %c0_22] : memref<1x32xf32, #tpu.memory_space<vmem>>, vector<1x8xf32>
    %22 = vector.broadcast %21 : vector<1x8xf32> to vector<32x8xf32>
    %23 = arith.addf %20, %22 : vector<32x8xf32>
    %c0_23 = arith.constant 0 : index
    %c0_24 = arith.constant 0 : index
    %24 = vector.load %arg8[%c0_23, %c0_24] : memref<32x32xbf16, #tpu.memory_space<vmem>>, vector<32x8xbf16>
    %cst_25 = arith.constant dense<0.000000e+00> : vector<32x8xf32>
    %25 = tpu.matmul %12, %24, %cst_25 {dimension_numbers = #tpu.dot_dimension_numbers<[1], [0], [0], [1], [0, 0, 1, 1], [], []>} : vector<32x32xbf16>, vector<32x8xbf16>, vector<32x8xf32> -> vector<32x8xf32>
    %c0_26 = arith.constant 0 : index
    %c0_27 = arith.constant 0 : index
    %26 = vector.load %arg11[%c0_26, %c0_27] : memref<1x32xf32, #tpu.memory_space<vmem>>, vector<1x8xf32>
    %27 = vector.broadcast %26 : vector<1x8xf32> to vector<32x8xf32>
    %28 = arith.addf %25, %27 : vector<32x8xf32>
    %29 = arith.truncf %18 : vector<1x8xf32> to vector<1x8xbf16>
    %30 = arith.truncf %23 : vector<32x8xf32> to vector<32x8xbf16>
    %cst_28 = arith.constant dense<0.000000e+00> : vector<1x32xf32>
    %31 = tpu.matmul %29, %30, %cst_28 {dimension_numbers = #tpu.dot_dimension_numbers<[1], [1], [0], [0], [0, 0, 1, 0], [], []>} : vector<1x8xbf16>, vector<32x8xbf16>, vector<1x32xf32> -> vector<1x32xf32>
    %32 = arith.addf %31, %14 : vector<1x32xf32>
    %cst_29 = arith.constant dense<0xFF800000> : vector<1xf32>
    %33 = vector.multi_reduction <maximumf>, %32, %cst_29 [1] : vector<1x32xf32> to vector<1xf32>
    %34 = vector.shape_cast %33 : vector<1xf32> to vector<1x1xf32>
    %35 = vector.broadcast %34 : vector<1x1xf32> to vector<1x32xf32>
    %36 = arith.subf %32, %35 : vector<1x32xf32>
    %37 = math.exp %36 : vector<1x32xf32>
    %cst_30 = arith.constant dense<0.000000e+00> : vector<1xf32>
    %38 = vector.multi_reduction <add>, %37, %cst_30 [1] : vector<1x32xf32> to vector<1xf32>
    %39 = vector.shape_cast %38 : vector<1xf32> to vector<1x1xf32>
    %40 = tpu.reciprocal %39 {approx = true} : vector<1x1xf32> -> vector<1x1xf32>
    %41 = arith.truncf %37 : vector<1x32xf32> to vector<1x32xbf16>
    %42 = arith.truncf %28 : vector<32x8xf32> to vector<32x8xbf16>
    %cst_31 = arith.constant dense<0.000000e+00> : vector<1x8xf32>
    %43 = tpu.matmul %41, %42, %cst_31 {dimension_numbers = #tpu.dot_dimension_numbers<[1], [0], [0], [1], [0, 0, 1, 1], [], []>} : vector<1x32xbf16>, vector<32x8xbf16>, vector<1x8xf32> -> vector<1x8xf32>
    %44 = vector.broadcast %40 : vector<1x1xf32> to vector<1x8xf32>
    %45 = arith.mulf %43, %44 : vector<1x8xf32>
    %46 = arith.truncf %45 : vector<1x8xf32> to vector<1x8xbf16>
    %c0_32 = arith.constant 0 : index
    %c0_33 = arith.constant 0 : index
    %47 = vector.load %arg12[%c0_32, %c0_33] : memref<32x32xbf16, #tpu.memory_space<vmem>>, vector<8x32xbf16>
    %cst_34 = arith.constant dense<0.000000e+00> : vector<1x32xf32>
    %48 = tpu.matmul %46, %47, %cst_34 {dimension_numbers = #tpu.dot_dimension_numbers<[1], [0], [0], [1], [0, 0, 1, 1], [], []>} : vector<1x8xbf16>, vector<8x32xbf16>, vector<1x32xf32> -> vector<1x32xf32>
    %c0_35 = arith.constant 0 : index
    %c8 = arith.constant 8 : index
    %49 = vector.load %arg6[%c0_35, %c8] : memref<32x32xbf16, #tpu.memory_space<vmem>>, vector<32x8xbf16>
    %cst_36 = arith.constant dense<0.000000e+00> : vector<1x8xf32>
    %50 = tpu.matmul %5, %49, %cst_36 {dimension_numbers = #tpu.dot_dimension_numbers<[1], [0], [0], [1], [0, 0, 1, 1], [], []>} : vector<1x32xbf16>, vector<32x8xbf16>, vector<1x8xf32> -> vector<1x8xf32>
    %c0_37 = arith.constant 0 : index
    %c8_38 = arith.constant 8 : index
    %51 = vector.load %arg9[%c0_37, %c8_38] : memref<1x32xf32, #tpu.memory_space<vmem>>, vector<1x8xf32>
    %52 = arith.addf %50, %51 : vector<1x8xf32>
    %c0_39 = arith.constant 0 : index
    %c8_40 = arith.constant 8 : index
    %53 = vector.load %arg7[%c0_39, %c8_40] : memref<32x32xbf16, #tpu.memory_space<vmem>>, vector<32x8xbf16>
    %cst_41 = arith.constant dense<0.000000e+00> : vector<32x8xf32>
    %54 = tpu.matmul %11, %53, %cst_41 {dimension_numbers = #tpu.dot_dimension_numbers<[1], [0], [0], [1], [0, 0, 1, 1], [], []>} : vector<32x32xbf16>, vector<32x8xbf16>, vector<32x8xf32> -> vector<32x8xf32>
    %c0_42 = arith.constant 0 : index
    %c8_43 = arith.constant 8 : index
    %55 = vector.load %arg10[%c0_42, %c8_43] : memref<1x32xf32, #tpu.memory_space<vmem>>, vector<1x8xf32>
    %56 = vector.broadcast %55 : vector<1x8xf32> to vector<32x8xf32>
    %57 = arith.addf %54, %56 : vector<32x8xf32>
    %c0_44 = arith.constant 0 : index
    %c8_45 = arith.constant 8 : index
    %58 = vector.load %arg8[%c0_44, %c8_45] : memref<32x32xbf16, #tpu.memory_space<vmem>>, vector<32x8xbf16>
    %cst_46 = arith.constant dense<0.000000e+00> : vector<32x8xf32>
    %59 = tpu.matmul %12, %58, %cst_46 {dimension_numbers = #tpu.dot_dimension_numbers<[1], [0], [0], [1], [0, 0, 1, 1], [], []>} : vector<32x32xbf16>, vector<32x8xbf16>, vector<32x8xf32> -> vector<32x8xf32>
    %c0_47 = arith.constant 0 : index
    %c8_48 = arith.constant 8 : index
    %60 = vector.load %arg11[%c0_47, %c8_48] : memref<1x32xf32, #tpu.memory_space<vmem>>, vector<1x8xf32>
    %61 = vector.broadcast %60 : vector<1x8xf32> to vector<32x8xf32>
    %62 = arith.addf %59, %61 : vector<32x8xf32>
    %63 = arith.truncf %52 : vector<1x8xf32> to vector<1x8xbf16>
    %64 = arith.truncf %57 : vector<32x8xf32> to vector<32x8xbf16>
    %cst_49 = arith.constant dense<0.000000e+00> : vector<1x32xf32>
    %65 = tpu.matmul %63, %64, %cst_49 {dimension_numbers = #tpu.dot_dimension_numbers<[1], [1], [0], [0], [0, 0, 1, 0], [], []>} : vector<1x8xbf16>, vector<32x8xbf16>, vector<1x32xf32> -> vector<1x32xf32>
    %66 = arith.addf %65, %14 : vector<1x32xf32>
    %cst_50 = arith.constant dense<0xFF800000> : vector<1xf32>
    %67 = vector.multi_reduction <maximumf>, %66, %cst_50 [1] : vector<1x32xf32> to vector<1xf32>
    %68 = vector.shape_cast %67 : vector<1xf32> to vector<1x1xf32>
    %69 = vector.broadcast %68 : vector<1x1xf32> to vector<1x32xf32>
    %70 = arith.subf %66, %69 : vector<1x32xf32>
    %71 = math.exp %70 : vector<1x32xf32>
    %cst_51 = arith.constant dense<0.000000e+00> : vector<1xf32>
    %72 = vector.multi_reduction <add>, %71, %cst_51 [1] : vector<1x32xf32> to vector<1xf32>
    %73 = vector.shape_cast %72 : vector<1xf32> to vector<1x1xf32>
    %74 = tpu.reciprocal %73 {approx = true} : vector<1x1xf32> -> vector<1x1xf32>
    %75 = arith.truncf %71 : vector<1x32xf32> to vector<1x32xbf16>
    %76 = arith.truncf %62 : vector<32x8xf32> to vector<32x8xbf16>
    %cst_52 = arith.constant dense<0.000000e+00> : vector<1x8xf32>
    %77 = tpu.matmul %75, %76, %cst_52 {dimension_numbers = #tpu.dot_dimension_numbers<[1], [0], [0], [1], [0, 0, 1, 1], [], []>} : vector<1x32xbf16>, vector<32x8xbf16>, vector<1x8xf32> -> vector<1x8xf32>
    %78 = vector.broadcast %74 : vector<1x1xf32> to vector<1x8xf32>
    %79 = arith.mulf %77, %78 : vector<1x8xf32>
    %80 = arith.truncf %79 : vector<1x8xf32> to vector<1x8xbf16>
    %c8_53 = arith.constant 8 : index
    %c0_54 = arith.constant 0 : index
    %81 = vector.load %arg12[%c8_53, %c0_54] : memref<32x32xbf16, #tpu.memory_space<vmem>>, vector<8x32xbf16>
    %cst_55 = arith.constant dense<0.000000e+00> : vector<1x32xf32>
    %82 = tpu.matmul %80, %81, %cst_55 {dimension_numbers = #tpu.dot_dimension_numbers<[1], [0], [0], [1], [0, 0, 1, 1], [], []>} : vector<1x8xbf16>, vector<8x32xbf16>, vector<1x32xf32> -> vector<1x32xf32>
    %83 = arith.addf %48, %82 : vector<1x32xf32>
    %c0_56 = arith.constant 0 : index
    %c16 = arith.constant 16 : index
    %84 = vector.load %arg6[%c0_56, %c16] : memref<32x32xbf16, #tpu.memory_space<vmem>>, vector<32x8xbf16>
    %cst_57 = arith.constant dense<0.000000e+00> : vector<1x8xf32>
    %85 = tpu.matmul %5, %84, %cst_57 {dimension_numbers = #tpu.dot_dimension_numbers<[1], [0], [0], [1], [0, 0, 1, 1], [], []>} : vector<1x32xbf16>, vector<32x8xbf16>, vector<1x8xf32> -> vector<1x8xf32>
    %c0_58 = arith.constant 0 : index
    %c16_59 = arith.constant 16 : index
    %86 = vector.load %arg9[%c0_58, %c16_59] : memref<1x32xf32, #tpu.memory_space<vmem>>, vector<1x8xf32>
    %87 = arith.addf %85, %86 : vector<1x8xf32>
    %c0_60 = arith.constant 0 : index
    %c16_61 = arith.constant 16 : index
    %88 = vector.load %arg7[%c0_60, %c16_61] : memref<32x32xbf16, #tpu.memory_space<vmem>>, vector<32x8xbf16>
    %cst_62 = arith.constant dense<0.000000e+00> : vector<32x8xf32>
    %89 = tpu.matmul %11, %88, %cst_62 {dimension_numbers = #tpu.dot_dimension_numbers<[1], [0], [0], [1], [0, 0, 1, 1], [], []>} : vector<32x32xbf16>, vector<32x8xbf16>, vector<32x8xf32> -> vector<32x8xf32>
    %c0_63 = arith.constant 0 : index
    %c16_64 = arith.constant 16 : index
    %90 = vector.load %arg10[%c0_63, %c16_64] : memref<1x32xf32, #tpu.memory_space<vmem>>, vector<1x8xf32>
    %91 = vector.broadcast %90 : vector<1x8xf32> to vector<32x8xf32>
    %92 = arith.addf %89, %91 : vector<32x8xf32>
    %c0_65 = arith.constant 0 : index
    %c16_66 = arith.constant 16 : index
    %93 = vector.load %arg8[%c0_65, %c16_66] : memref<32x32xbf16, #tpu.memory_space<vmem>>, vector<32x8xbf16>
    %cst_67 = arith.constant dense<0.000000e+00> : vector<32x8xf32>
    %94 = tpu.matmul %12, %93, %cst_67 {dimension_numbers = #tpu.dot_dimension_numbers<[1], [0], [0], [1], [0, 0, 1, 1], [], []>} : vector<32x32xbf16>, vector<32x8xbf16>, vector<32x8xf32> -> vector<32x8xf32>
    %c0_68 = arith.constant 0 : index
    %c16_69 = arith.constant 16 : index
    %95 = vector.load %arg11[%c0_68, %c16_69] : memref<1x32xf32, #tpu.memory_space<vmem>>, vector<1x8xf32>
    %96 = vector.broadcast %95 : vector<1x8xf32> to vector<32x8xf32>
    %97 = arith.addf %94, %96 : vector<32x8xf32>
    %98 = arith.truncf %87 : vector<1x8xf32> to vector<1x8xbf16>
    %99 = arith.truncf %92 : vector<32x8xf32> to vector<32x8xbf16>
    %cst_70 = arith.constant dense<0.000000e+00> : vector<1x32xf32>
    %100 = tpu.matmul %98, %99, %cst_70 {dimension_numbers = #tpu.dot_dimension_numbers<[1], [1], [0], [0], [0, 0, 1, 0], [], []>} : vector<1x8xbf16>, vector<32x8xbf16>, vector<1x32xf32> -> vector<1x32xf32>
    %101 = arith.addf %100, %14 : vector<1x32xf32>
    %cst_71 = arith.constant dense<0xFF800000> : vector<1xf32>
    %102 = vector.multi_reduction <maximumf>, %101, %cst_71 [1] : vector<1x32xf32> to vector<1xf32>
    %103 = vector.shape_cast %102 : vector<1xf32> to vector<1x1xf32>
    %104 = vector.broadcast %103 : vector<1x1xf32> to vector<1x32xf32>
    %105 = arith.subf %101, %104 : vector<1x32xf32>
    %106 = math.exp %105 : vector<1x32xf32>
    %cst_72 = arith.constant dense<0.000000e+00> : vector<1xf32>
    %107 = vector.multi_reduction <add>, %106, %cst_72 [1] : vector<1x32xf32> to vector<1xf32>
    %108 = vector.shape_cast %107 : vector<1xf32> to vector<1x1xf32>
    %109 = tpu.reciprocal %108 {approx = true} : vector<1x1xf32> -> vector<1x1xf32>
    %110 = arith.truncf %106 : vector<1x32xf32> to vector<1x32xbf16>
    %111 = arith.truncf %97 : vector<32x8xf32> to vector<32x8xbf16>
    %cst_73 = arith.constant dense<0.000000e+00> : vector<1x8xf32>
    %112 = tpu.matmul %110, %111, %cst_73 {dimension_numbers = #tpu.dot_dimension_numbers<[1], [0], [0], [1], [0, 0, 1, 1], [], []>} : vector<1x32xbf16>, vector<32x8xbf16>, vector<1x8xf32> -> vector<1x8xf32>
    %113 = vector.broadcast %109 : vector<1x1xf32> to vector<1x8xf32>
    %114 = arith.mulf %112, %113 : vector<1x8xf32>
    %115 = arith.truncf %114 : vector<1x8xf32> to vector<1x8xbf16>
    %c16_74 = arith.constant 16 : index
    %c0_75 = arith.constant 0 : index
    %116 = vector.load %arg12[%c16_74, %c0_75] : memref<32x32xbf16, #tpu.memory_space<vmem>>, vector<8x32xbf16>
    %cst_76 = arith.constant dense<0.000000e+00> : vector<1x32xf32>
    %117 = tpu.matmul %115, %116, %cst_76 {dimension_numbers = #tpu.dot_dimension_numbers<[1], [0], [0], [1], [0, 0, 1, 1], [], []>} : vector<1x8xbf16>, vector<8x32xbf16>, vector<1x32xf32> -> vector<1x32xf32>
    %118 = arith.addf %83, %117 : vector<1x32xf32>
    %c0_77 = arith.constant 0 : index
    %c24 = arith.constant 24 : index
    %119 = vector.load %arg6[%c0_77, %c24] : memref<32x32xbf16, #tpu.memory_space<vmem>>, vector<32x8xbf16>
    %cst_78 = arith.constant dense<0.000000e+00> : vector<1x8xf32>
    %120 = tpu.matmul %5, %119, %cst_78 {dimension_numbers = #tpu.dot_dimension_numbers<[1], [0], [0], [1], [0, 0, 1, 1], [], []>} : vector<1x32xbf16>, vector<32x8xbf16>, vector<1x8xf32> -> vector<1x8xf32>
    %c0_79 = arith.constant 0 : index
    %c24_80 = arith.constant 24 : index
    %121 = vector.load %arg9[%c0_79, %c24_80] : memref<1x32xf32, #tpu.memory_space<vmem>>, vector<1x8xf32>
    %122 = arith.addf %120, %121 : vector<1x8xf32>
    %c0_81 = arith.constant 0 : index
    %c24_82 = arith.constant 24 : index
    %123 = vector.load %arg7[%c0_81, %c24_82] : memref<32x32xbf16, #tpu.memory_space<vmem>>, vector<32x8xbf16>
    %cst_83 = arith.constant dense<0.000000e+00> : vector<32x8xf32>
    %124 = tpu.matmul %11, %123, %cst_83 {dimension_numbers = #tpu.dot_dimension_numbers<[1], [0], [0], [1], [0, 0, 1, 1], [], []>} : vector<32x32xbf16>, vector<32x8xbf16>, vector<32x8xf32> -> vector<32x8xf32>
    %c0_84 = arith.constant 0 : index
    %c24_85 = arith.constant 24 : index
    %125 = vector.load %arg10[%c0_84, %c24_85] : memref<1x32xf32, #tpu.memory_space<vmem>>, vector<1x8xf32>
    %126 = vector.broadcast %125 : vector<1x8xf32> to vector<32x8xf32>
    %127 = arith.addf %124, %126 : vector<32x8xf32>
    %c0_86 = arith.constant 0 : index
    %c24_87 = arith.constant 24 : index
    %128 = vector.load %arg8[%c0_86, %c24_87] : memref<32x32xbf16, #tpu.memory_space<vmem>>, vector<32x8xbf16>
    %cst_88 = arith.constant dense<0.000000e+00> : vector<32x8xf32>
    %129 = tpu.matmul %12, %128, %cst_88 {dimension_numbers = #tpu.dot_dimension_numbers<[1], [0], [0], [1], [0, 0, 1, 1], [], []>} : vector<32x32xbf16>, vector<32x8xbf16>, vector<32x8xf32> -> vector<32x8xf32>
    %c0_89 = arith.constant 0 : index
    %c24_90 = arith.constant 24 : index
    %130 = vector.load %arg11[%c0_89, %c24_90] : memref<1x32xf32, #tpu.memory_space<vmem>>, vector<1x8xf32>
    %131 = vector.broadcast %130 : vector<1x8xf32> to vector<32x8xf32>
    %132 = arith.addf %129, %131 : vector<32x8xf32>
    %133 = arith.truncf %122 : vector<1x8xf32> to vector<1x8xbf16>
    %134 = arith.truncf %127 : vector<32x8xf32> to vector<32x8xbf16>
    %cst_91 = arith.constant dense<0.000000e+00> : vector<1x32xf32>
    %135 = tpu.matmul %133, %134, %cst_91 {dimension_numbers = #tpu.dot_dimension_numbers<[1], [1], [0], [0], [0, 0, 1, 0], [], []>} : vector<1x8xbf16>, vector<32x8xbf16>, vector<1x32xf32> -> vector<1x32xf32>
    %136 = arith.addf %135, %14 : vector<1x32xf32>
    %cst_92 = arith.constant dense<0xFF800000> : vector<1xf32>
    %137 = vector.multi_reduction <maximumf>, %136, %cst_92 [1] : vector<1x32xf32> to vector<1xf32>
    %138 = vector.shape_cast %137 : vector<1xf32> to vector<1x1xf32>
    %139 = vector.broadcast %138 : vector<1x1xf32> to vector<1x32xf32>
    %140 = arith.subf %136, %139 : vector<1x32xf32>
    %141 = math.exp %140 : vector<1x32xf32>
    %cst_93 = arith.constant dense<0.000000e+00> : vector<1xf32>
    %142 = vector.multi_reduction <add>, %141, %cst_93 [1] : vector<1x32xf32> to vector<1xf32>
    %143 = vector.shape_cast %142 : vector<1xf32> to vector<1x1xf32>
    %144 = tpu.reciprocal %143 {approx = true} : vector<1x1xf32> -> vector<1x1xf32>
    %145 = arith.truncf %141 : vector<1x32xf32> to vector<1x32xbf16>
    %146 = arith.truncf %132 : vector<32x8xf32> to vector<32x8xbf16>
    %cst_94 = arith.constant dense<0.000000e+00> : vector<1x8xf32>
    %147 = tpu.matmul %145, %146, %cst_94 {dimension_numbers = #tpu.dot_dimension_numbers<[1], [0], [0], [1], [0, 0, 1, 1], [], []>} : vector<1x32xbf16>, vector<32x8xbf16>, vector<1x8xf32> -> vector<1x8xf32>
    %148 = vector.broadcast %144 : vector<1x1xf32> to vector<1x8xf32>
    %149 = arith.mulf %147, %148 : vector<1x8xf32>
    %150 = arith.truncf %149 : vector<1x8xf32> to vector<1x8xbf16>
    %c24_95 = arith.constant 24 : index
    %c0_96 = arith.constant 0 : index
    %151 = vector.load %arg12[%c24_95, %c0_96] : memref<32x32xbf16, #tpu.memory_space<vmem>>, vector<8x32xbf16>
    %cst_97 = arith.constant dense<0.000000e+00> : vector<1x32xf32>
    %152 = tpu.matmul %150, %151, %cst_97 {dimension_numbers = #tpu.dot_dimension_numbers<[1], [0], [0], [1], [0, 0, 1, 1], [], []>} : vector<1x8xbf16>, vector<8x32xbf16>, vector<1x32xf32> -> vector<1x32xf32>
    %153 = arith.addf %118, %152 : vector<1x32xf32>
    %154 = arith.addf %1, %153 : vector<1x32xf32>
    %c0_98 = arith.constant 0 : index
    %c0_99 = arith.constant 0 : index
    %155 = vector.load %arg13[%c0_98, %c0_99] : memref<1x32xf32, #tpu.memory_space<vmem>>, vector<1x32xf32>
    %156 = arith.addf %154, %155 : vector<1x32xf32>
    %c0_100 = arith.constant 0 : index
    %c0_101 = arith.constant 0 : index
    %157 = vector.load %arg14[%c0_100, %c0_101] : memref<1x32xf32, #tpu.memory_space<vmem>>, vector<1x32xf32>
    %c0_102 = arith.constant 0 : index
    %c0_103 = arith.constant 0 : index
    %158 = vector.load %arg15[%c0_102, %c0_103] : memref<1x32xf32, #tpu.memory_space<vmem>>, vector<1x32xf32>
    %cst_104 = arith.constant dense<0.000000e+00> : vector<1xf32>
    %159 = vector.multi_reduction <add>, %156, %cst_104 [1] : vector<1x32xf32> to vector<1xf32>
    %160 = vector.shape_cast %159 : vector<1xf32> to vector<1x1xf32>
    %cst_105 = arith.constant 3.200000e+01 : f32
    %161 = vector.broadcast %cst_105 : f32 to vector<1x1xf32>
    %162 = arith.divf %160, %161 : vector<1x1xf32>
    %163 = vector.broadcast %162 : vector<1x1xf32> to vector<1x32xf32>
    %164 = arith.subf %156, %163 : vector<1x32xf32>
    %165 = arith.mulf %164, %164 : vector<1x32xf32>
    %cst_106 = arith.constant dense<0.000000e+00> : vector<1xf32>
    %166 = vector.multi_reduction <add>, %165, %cst_106 [1] : vector<1x32xf32> to vector<1xf32>
    %167 = vector.shape_cast %166 : vector<1xf32> to vector<1x1xf32>
    %cst_107 = arith.constant 3.200000e+01 : f32
    %168 = vector.broadcast %cst_107 : f32 to vector<1x1xf32>
    %169 = arith.divf %167, %168 : vector<1x1xf32>
    %170 = vector.broadcast %162 : vector<1x1xf32> to vector<1x32xf32>
    %171 = arith.subf %156, %170 : vector<1x32xf32>
    %cst_108 = arith.constant 9.99999974E-6 : f32
    %172 = vector.broadcast %cst_108 : f32 to vector<1x1xf32>
    %173 = arith.addf %169, %172 : vector<1x1xf32>
    %174 = math.rsqrt %173 : vector<1x1xf32>
    %175 = vector.broadcast %174 : vector<1x1xf32> to vector<1x32xf32>
    %176 = arith.mulf %171, %175 : vector<1x32xf32>
    %177 = arith.mulf %176, %157 : vector<1x32xf32>
    %178 = arith.addf %177, %158 : vector<1x32xf32>
    %c0_109 = arith.constant 0 : index
    %c0_110 = arith.constant 0 : index
    %c0_111 = arith.constant 0 : index
    %179 = vector.load %arg16[%c0_109, %c0_110, %c0_111] : memref<1x1x32xf32, #tpu.memory_space<vmem>>, vector<1x1x32xf32>
    %180 = vector.shape_cast %179 : vector<1x1x32xf32> to vector<1x32xf32>
    %181 = vector.shape_cast %178 : vector<1x32xf32> to vector<1x1x32xf32>
    tpu.vector_store %arg16[%c0_109, %c0_110, %c0_111], %181 {strides = array<i32>} : memref<1x1x32xf32, #tpu.memory_space<vmem>>, vector<1x1x32xf32>,
    return
  }
  func.func @transform_0(%arg0: i32) -> (i32, i32, i32) {
    %c0_i32 = arith.constant 0 : i32
    %c0_i32_0 = arith.constant 0 : i32
    %c0_i32_1 = arith.constant 0 : i32
    return %arg0, %c0_i32, %c0_i32_0 : i32, i32, i32
  }
  func.func @transform_1(%arg0: i32) -> (i32, i32, i32) {
    %c0_i32 = arith.constant 0 : i32
    %c0_i32_0 = arith.constant 0 : i32
    %c0_i32_1 = arith.constant 0 : i32
    return %arg0, %c0_i32, %c0_i32_0 : i32, i32, i32
  }
  func.func @transform_2(%arg0: i32) -> (i32, i32, i32) {
    %c0_i32 = arith.constant 0 : i32
    %c0_i32_0 = arith.constant 0 : i32
    %c0_i32_1 = arith.constant 0 : i32
    return %arg0, %c0_i32, %c0_i32_0 : i32, i32, i32
  }
  func.func @transform_3(%arg0: i32) -> (i32, i32, i32) {
    %c0_i32 = arith.constant 0 : i32
    %c0_i32_0 = arith.constant 0 : i32
    %c0_i32_1 = arith.constant 0 : i32
    return %arg0, %c0_i32, %c0_i32_0 : i32, i32, i32
  }
  func.func @transform_4(%arg0: i32) -> (i32, i32, i32) {
    %c0_i32 = arith.constant 0 : i32
    %c0_i32_0 = arith.constant 0 : i32
    %c0_i32_1 = arith.constant 0 : i32
    return %arg0, %c0_i32, %c0_i32_0 : i32, i32, i32
  }
  func.func @transform_5(%arg0: i32) -> (i32, i32) {
    %c0_i32 = arith.constant 0 : i32
    %c0_i32_0 = arith.constant 0 : i32
    %c0_i32_1 = arith.constant 0 : i32
    return %c0_i32, %c0_i32_0 : i32, i32
  }
  func.func @transform_6(%arg0: i32) -> (i32, i32) {
    %c0_i32 = arith.constant 0 : i32
    %c0_i32_0 = arith.constant 0 : i32
    %c0_i32_1 = arith.constant 0 : i32
    return %c0_i32, %c0_i32_0 : i32, i32
  }
  func.func @transform_7(%arg0: i32) -> (i32, i32) {
    %c0_i32 = arith.constant 0 : i32
    %c0_i32_0 = arith.constant 0 : i32
    %c0_i32_1 = arith.constant 0 : i32
    return %c0_i32, %c0_i32_0 : i32, i32
  }
  func.func @transform_8(%arg0: i32) -> (i32, i32) {
    %c0_i32 = arith.constant 0 : i32
    %c0_i32_0 = arith.constant 0 : i32
    %c0_i32_1 = arith.constant 0 : i32
    return %c0_i32, %c0_i32_0 : i32, i32
  }
  func.func @transform_9(%arg0: i32) -> (i32, i32) {
    %c0_i32 = arith.constant 0 : i32
    %c0_i32_0 = arith.constant 0 : i32
    %c0_i32_1 = arith.constant 0 : i32
    return %c0_i32, %c0_i32_0 : i32, i32
  }
  func.func @transform_10(%arg0: i32) -> (i32, i32) {
    %c0_i32 = arith.constant 0 : i32
    %c0_i32_0 = arith.constant 0 : i32
    %c0_i32_1 = arith.constant 0 : i32
    return %c0_i32, %c0_i32_0 : i32, i32
  }
  func.func @transform_11(%arg0: i32) -> (i32, i32) {
    %c0_i32 = arith.constant 0 : i32
    %c0_i32_0 = arith.constant 0 : i32
    %c0_i32_1 = arith.constant 0 : i32
    return %c0_i32, %c0_i32_0 : i32, i32
  }
  func.func @transform_12(%arg0: i32) -> (i32, i32) {
    %c0_i32 = arith.constant 0 : i32
    %c0_i32_0 = arith.constant 0 : i32
    %c0_i32_1 = arith.constant 0 : i32
    return %c0_i32, %c0_i32_0 : i32, i32
  }
  func.func @transform_13(%arg0: i32) -> (i32, i32) {
    %c0_i32 = arith.constant 0 : i32
    %c0_i32_0 = arith.constant 0 : i32
    %c0_i32_1 = arith.constant 0 : i32
    return %c0_i32, %c0_i32_0 : i32, i32
  }
  func.func @transform_14(%arg0: i32) -> (i32, i32) {
    %c0_i32 = arith.constant 0 : i32
    %c0_i32_0 = arith.constant 0 : i32
    %c0_i32_1 = arith.constant 0 : i32
    return %c0_i32, %c0_i32_0 : i32, i32
  }
  func.func @transform_15(%arg0: i32) -> (i32, i32, i32) {
    %c0_i32 = arith.constant 0 : i32
    %c0_i32_0 = arith.constant 0 : i32
    %c0_i32_1 = arith.constant 0 : i32
    return %arg0, %c0_i32, %c0_i32_0 : i32, i32, i32
  }
}

module attributes {stable_mosaic.version = 11 : i64} {
  func.func @_ffn_block_kernel(%arg0: i32, %arg1: memref<1x1x32xf32, #tpu.memory_space<vmem>>, %arg2: memref<32x64xbf16, #tpu.memory_space<vmem>>, %arg3: memref<1x64xf32, #tpu.memory_space<vmem>>, %arg4: memref<64x32xbf16, #tpu.memory_space<vmem>>, %arg5: memref<1x32xf32, #tpu.memory_space<vmem>>, %arg6: memref<1x32xf32, #tpu.memory_space<vmem>>, %arg7: memref<1x32xf32, #tpu.memory_space<vmem>>, %arg8: memref<1x32xf32, #tpu.memory_space<vmem>>, %arg9: memref<1x32xf32, #tpu.memory_space<vmem>>, %arg10: memref<1x1x32xf32, #tpu.memory_space<vmem>>, %arg11: memref<1x1x32xf32, #tpu.memory_space<vmem>>) attributes {dimension_semantics = [#tpu.dimension_semantics<parallel>], iteration_bounds = array<i64: 2>, scalar_prefetch = 0 : i64, scratch_operands = 0 : i64, tpu.core_type = #tpu.core_type<tc>, window_params = [{transform_indices = @transform_0, window_bounds = array<i64: 1, 1, 32>}, {pipeline_mode = #tpu.pipeline_mode<synchronous>, transform_indices = @transform_1, window_bounds = array<i64: 32, 64>}, {pipeline_mode = #tpu.pipeline_mode<synchronous>, transform_indices = @transform_2, window_bounds = array<i64: 1, 64>}, {pipeline_mode = #tpu.pipeline_mode<synchronous>, transform_indices = @transform_3, window_bounds = array<i64: 64, 32>}, {pipeline_mode = #tpu.pipeline_mode<synchronous>, transform_indices = @transform_4, window_bounds = array<i64: 1, 32>}, {pipeline_mode = #tpu.pipeline_mode<synchronous>, transform_indices = @transform_5, window_bounds = array<i64: 1, 32>}, {pipeline_mode = #tpu.pipeline_mode<synchronous>, transform_indices = @transform_6, window_bounds = array<i64: 1, 32>}, {pipeline_mode = #tpu.pipeline_mode<synchronous>, transform_indices = @transform_7, window_bounds = array<i64: 1, 32>}, {pipeline_mode = #tpu.pipeline_mode<synchronous>, transform_indices = @transform_8, window_bounds = array<i64: 1, 32>}, {transform_indices = @transform_9, window_bounds = array<i64: 1, 1, 32>}, {transform_indices = @transform_10, window_bounds = array<i64: 1, 1, 32>}]} {
    %c0 = arith.constant 0 : index
    %c0_0 = arith.constant 0 : index
    %c0_1 = arith.constant 0 : index
    %0 = vector.load %arg1[%c0, %c0_0, %c0_1] : memref<1x1x32xf32, #tpu.memory_space<vmem>>, vector<1x1x32xf32>
    %1 = vector.shape_cast %0 : vector<1x1x32xf32> to vector<1x32xf32>
    %2 = arith.truncf %1 : vector<1x32xf32> to vector<1x32xbf16>
    %c0_2 = arith.constant 0 : index
    %c0_3 = arith.constant 0 : index
    %3 = vector.load %arg2[%c0_2, %c0_3] : memref<32x64xbf16, #tpu.memory_space<vmem>>, vector<32x64xbf16>
    %cst = arith.constant dense<0.000000e+00> : vector<1x64xf32>
    %4 = tpu.matmul %2, %3, %cst {dimension_numbers = #tpu.dot_dimension_numbers<[1], [0], [0], [1], [0, 0, 1, 1], [], []>} : vector<1x32xbf16>, vector<32x64xbf16>, vector<1x64xf32> -> vector<1x64xf32>
    %c0_4 = arith.constant 0 : index
    %c0_5 = arith.constant 0 : index
    %5 = vector.load %arg3[%c0_4, %c0_5] : memref<1x64xf32, #tpu.memory_space<vmem>>, vector<1x64xf32>
    %6 = arith.addf %4, %5 : vector<1x64xf32>
    %cst_6 = arith.constant 0.000000e+00 : f32
    %7 = vector.broadcast %cst_6 : f32 to vector<1x64xf32>
    %8 = arith.maximumf %6, %7 : vector<1x64xf32>
    %9 = arith.truncf %8 : vector<1x64xf32> to vector<1x64xbf16>
    %c0_7 = arith.constant 0 : index
    %c0_8 = arith.constant 0 : index
    %10 = vector.load %arg4[%c0_7, %c0_8] : memref<64x32xbf16, #tpu.memory_space<vmem>>, vector<64x32xbf16>
    %cst_9 = arith.constant dense<0.000000e+00> : vector<1x32xf32>
    %11 = tpu.matmul %9, %10, %cst_9 {dimension_numbers = #tpu.dot_dimension_numbers<[1], [0], [0], [1], [0, 0, 1, 1], [], []>} : vector<1x64xbf16>, vector<64x32xbf16>, vector<1x32xf32> -> vector<1x32xf32>
    %12 = arith.addf %1, %11 : vector<1x32xf32>
    %c0_10 = arith.constant 0 : index
    %c0_11 = arith.constant 0 : index
    %13 = vector.load %arg5[%c0_10, %c0_11] : memref<1x32xf32, #tpu.memory_space<vmem>>, vector<1x32xf32>
    %14 = arith.addf %12, %13 : vector<1x32xf32>
    %c0_12 = arith.constant 0 : index
    %c0_13 = arith.constant 0 : index
    %15 = vector.load %arg6[%c0_12, %c0_13] : memref<1x32xf32, #tpu.memory_space<vmem>>, vector<1x32xf32>
    %c0_14 = arith.constant 0 : index
    %c0_15 = arith.constant 0 : index
    %16 = vector.load %arg7[%c0_14, %c0_15] : memref<1x32xf32, #tpu.memory_space<vmem>>, vector<1x32xf32>
    %cst_16 = arith.constant dense<0.000000e+00> : vector<1xf32>
    %17 = vector.multi_reduction <add>, %14, %cst_16 [1] : vector<1x32xf32> to vector<1xf32>
    %18 = vector.shape_cast %17 : vector<1xf32> to vector<1x1xf32>
    %cst_17 = arith.constant 3.200000e+01 : f32
    %19 = vector.broadcast %cst_17 : f32 to vector<1x1xf32>
    %20 = arith.divf %18, %19 : vector<1x1xf32>
    %21 = vector.broadcast %20 : vector<1x1xf32> to vector<1x32xf32>
    %22 = arith.subf %14, %21 : vector<1x32xf32>
    %23 = arith.mulf %22, %22 : vector<1x32xf32>
    %cst_18 = arith.constant dense<0.000000e+00> : vector<1xf32>
    %24 = vector.multi_reduction <add>, %23, %cst_18 [1] : vector<1x32xf32> to vector<1xf32>
    %25 = vector.shape_cast %24 : vector<1xf32> to vector<1x1xf32>
    %cst_19 = arith.constant 3.200000e+01 : f32
    %26 = vector.broadcast %cst_19 : f32 to vector<1x1xf32>
    %27 = arith.divf %25, %26 : vector<1x1xf32>
    %28 = vector.broadcast %20 : vector<1x1xf32> to vector<1x32xf32>
    %29 = arith.subf %14, %28 : vector<1x32xf32>
    %cst_20 = arith.constant 9.99999974E-6 : f32
    %30 = vector.broadcast %cst_20 : f32 to vector<1x1xf32>
    %31 = arith.addf %27, %30 : vector<1x1xf32>
    %32 = math.rsqrt %31 : vector<1x1xf32>
    %33 = vector.broadcast %32 : vector<1x1xf32> to vector<1x32xf32>
    %34 = arith.mulf %29, %33 : vector<1x32xf32>
    %35 = arith.mulf %34, %15 : vector<1x32xf32>
    %36 = arith.addf %35, %16 : vector<1x32xf32>
    %c0_21 = arith.constant 0 : index
    %c0_22 = arith.constant 0 : index
    %c0_23 = arith.constant 0 : index
    %37 = vector.load %arg10[%c0_21, %c0_22, %c0_23] : memref<1x1x32xf32, #tpu.memory_space<vmem>>, vector<1x1x32xf32>
    %38 = vector.shape_cast %37 : vector<1x1x32xf32> to vector<1x32xf32>
    %39 = vector.shape_cast %36 : vector<1x32xf32> to vector<1x1x32xf32>
    tpu.vector_store %arg10[%c0_21, %c0_22, %c0_23], %39 {strides = array<i32>} : memref<1x1x32xf32, #tpu.memory_space<vmem>>, vector<1x1x32xf32>,
    %c0_24 = arith.constant 0 : index
    %c0_25 = arith.constant 0 : index
    %40 = vector.load %arg8[%c0_24, %c0_25] : memref<1x32xf32, #tpu.memory_space<vmem>>, vector<1x32xf32>
    %c0_26 = arith.constant 0 : index
    %c0_27 = arith.constant 0 : index
    %41 = vector.load %arg9[%c0_26, %c0_27] : memref<1x32xf32, #tpu.memory_space<vmem>>, vector<1x32xf32>
    %cst_28 = arith.constant dense<0.000000e+00> : vector<1xf32>
    %42 = vector.multi_reduction <add>, %36, %cst_28 [1] : vector<1x32xf32> to vector<1xf32>
    %43 = vector.shape_cast %42 : vector<1xf32> to vector<1x1xf32>
    %cst_29 = arith.constant 3.200000e+01 : f32
    %44 = vector.broadcast %cst_29 : f32 to vector<1x1xf32>
    %45 = arith.divf %43, %44 : vector<1x1xf32>
    %46 = vector.broadcast %45 : vector<1x1xf32> to vector<1x32xf32>
    %47 = arith.subf %36, %46 : vector<1x32xf32>
    %48 = arith.mulf %47, %47 : vector<1x32xf32>
    %cst_30 = arith.constant dense<0.000000e+00> : vector<1xf32>
    %49 = vector.multi_reduction <add>, %48, %cst_30 [1] : vector<1x32xf32> to vector<1xf32>
    %50 = vector.shape_cast %49 : vector<1xf32> to vector<1x1xf32>
    %cst_31 = arith.constant 3.200000e+01 : f32
    %51 = vector.broadcast %cst_31 : f32 to vector<1x1xf32>
    %52 = arith.divf %50, %51 : vector<1x1xf32>
    %53 = vector.broadcast %45 : vector<1x1xf32> to vector<1x32xf32>
    %54 = arith.subf %36, %53 : vector<1x32xf32>
    %cst_32 = arith.constant 9.99999974E-6 : f32
    %55 = vector.broadcast %cst_32 : f32 to vector<1x1xf32>
    %56 = arith.addf %52, %55 : vector<1x1xf32>
    %57 = math.rsqrt %56 : vector<1x1xf32>
    %58 = vector.broadcast %57 : vector<1x1xf32> to vector<1x32xf32>
    %59 = arith.mulf %54, %58 : vector<1x32xf32>
    %60 = arith.mulf %59, %40 : vector<1x32xf32>
    %61 = arith.addf %60, %41 : vector<1x32xf32>
    %c0_33 = arith.constant 0 : index
    %c0_34 = arith.constant 0 : index
    %c0_35 = arith.constant 0 : index
    %62 = vector.load %arg11[%c0_33, %c0_34, %c0_35] : memref<1x1x32xf32, #tpu.memory_space<vmem>>, vector<1x1x32xf32>
    %63 = vector.shape_cast %62 : vector<1x1x32xf32> to vector<1x32xf32>
    %64 = vector.shape_cast %61 : vector<1x32xf32> to vector<1x1x32xf32>
    tpu.vector_store %arg11[%c0_33, %c0_34, %c0_35], %64 {strides = array<i32>} : memref<1x1x32xf32, #tpu.memory_space<vmem>>, vector<1x1x32xf32>,
    return
  }
  func.func @transform_0(%arg0: i32) -> (i32, i32, i32) {
    %c0_i32 = arith.constant 0 : i32
    %c0_i32_0 = arith.constant 0 : i32
    %c0_i32_1 = arith.constant 0 : i32
    return %arg0, %c0_i32, %c0_i32_0 : i32, i32, i32
  }
  func.func @transform_1(%arg0: i32) -> (i32, i32) {
    %c0_i32 = arith.constant 0 : i32
    %c0_i32_0 = arith.constant 0 : i32
    %c0_i32_1 = arith.constant 0 : i32
    return %c0_i32, %c0_i32_0 : i32, i32
  }
  func.func @transform_2(%arg0: i32) -> (i32, i32) {
    %c0_i32 = arith.constant 0 : i32
    %c0_i32_0 = arith.constant 0 : i32
    %c0_i32_1 = arith.constant 0 : i32
    return %c0_i32, %c0_i32_0 : i32, i32
  }
  func.func @transform_3(%arg0: i32) -> (i32, i32) {
    %c0_i32 = arith.constant 0 : i32
    %c0_i32_0 = arith.constant 0 : i32
    %c0_i32_1 = arith.constant 0 : i32
    return %c0_i32, %c0_i32_0 : i32, i32
  }
  func.func @transform_4(%arg0: i32) -> (i32, i32) {
    %c0_i32 = arith.constant 0 : i32
    %c0_i32_0 = arith.constant 0 : i32
    %c0_i32_1 = arith.constant 0 : i32
    return %c0_i32, %c0_i32_0 : i32, i32
  }
  func.func @transform_5(%arg0: i32) -> (i32, i32) {
    %c0_i32 = arith.constant 0 : i32
    %c0_i32_0 = arith.constant 0 : i32
    %c0_i32_1 = arith.constant 0 : i32
    return %c0_i32, %c0_i32_0 : i32, i32
  }
  func.func @transform_6(%arg0: i32) -> (i32, i32) {
    %c0_i32 = arith.constant 0 : i32
    %c0_i32_0 = arith.constant 0 : i32
    %c0_i32_1 = arith.constant 0 : i32
    return %c0_i32, %c0_i32_0 : i32, i32
  }
  func.func @transform_7(%arg0: i32) -> (i32, i32) {
    %c0_i32 = arith.constant 0 : i32
    %c0_i32_0 = arith.constant 0 : i32
    %c0_i32_1 = arith.constant 0 : i32
    return %c0_i32, %c0_i32_0 : i32, i32
  }
  func.func @transform_8(%arg0: i32) -> (i32, i32) {
    %c0_i32 = arith.constant 0 : i32
    %c0_i32_0 = arith.constant 0 : i32
    %c0_i32_1 = arith.constant 0 : i32
    return %c0_i32, %c0_i32_0 : i32, i32
  }
  func.func @transform_9(%arg0: i32) -> (i32, i32, i32) {
    %c0_i32 = arith.constant 0 : i32
    %c0_i32_0 = arith.constant 0 : i32
    %c0_i32_1 = arith.constant 0 : i32
    return %arg0, %c0_i32, %c0_i32_0 : i32, i32, i32
  }
  func.func @transform_10(%arg0: i32) -> (i32, i32, i32) {
    %c0_i32 = arith.constant 0 : i32
    %c0_i32_0 = arith.constant 0 : i32
    %c0_i32_1 = arith.constant 0 : i32
    return %arg0, %c0_i32, %c0_i32_0 : i32, i32, i32
  }
}

module attributes {stable_mosaic.version = 11 : i64} {
  func.func @_mlp_kernel(%arg0: i32, %arg1: memref<2x32xf32, #tpu.memory_space<vmem>>, %arg2: memref<32x64xbf16, #tpu.memory_space<vmem>>, %arg3: memref<1x64xf32, #tpu.memory_space<vmem>>, %arg4: memref<64x64xbf16, #tpu.memory_space<vmem>>, %arg5: memref<1x64xf32, #tpu.memory_space<vmem>>, %arg6: memref<2x64xf32, #tpu.memory_space<vmem>>) attributes {dimension_semantics = [#tpu.dimension_semantics<parallel>], iteration_bounds = array<i64: 1>, scalar_prefetch = 0 : i64, scratch_operands = 0 : i64, tpu.core_type = #tpu.core_type<tc>, window_params = [{transform_indices = @transform_0, window_bounds = array<i64: 2, 32>}, {pipeline_mode = #tpu.pipeline_mode<synchronous>, transform_indices = @transform_1, window_bounds = array<i64: 32, 64>}, {pipeline_mode = #tpu.pipeline_mode<synchronous>, transform_indices = @transform_2, window_bounds = array<i64: 1, 64>}, {pipeline_mode = #tpu.pipeline_mode<synchronous>, transform_indices = @transform_3, window_bounds = array<i64: 64, 64>}, {pipeline_mode = #tpu.pipeline_mode<synchronous>, transform_indices = @transform_4, window_bounds = array<i64: 1, 64>}, {transform_indices = @transform_5, window_bounds = array<i64: 2, 64>}]} {
    %c0 = arith.constant 0 : index
    %c0_0 = arith.constant 0 : index
    %0 = vector.load %arg1[%c0, %c0_0] : memref<2x32xf32, #tpu.memory_space<vmem>>, vector<2x32xf32>
    %1 = arith.truncf %0 : vector<2x32xf32> to vector<2x32xbf16>
    %c0_1 = arith.constant 0 : index
    %c0_2 = arith.constant 0 : index
    %2 = vector.load %arg2[%c0_1, %c0_2] : memref<32x64xbf16, #tpu.memory_space<vmem>>, vector<32x64xbf16>
    %cst = arith.constant dense<0.000000e+00> : vector<2x64xf32>
    %3 = tpu.matmul %1, %2, %cst {dimension_numbers = #tpu.dot_dimension_numbers<[1], [0], [0], [1], [0, 0, 1, 1], [], []>} : vector<2x32xbf16>, vector<32x64xbf16>, vector<2x64xf32> -> vector<2x64xf32>
    %c0_3 = arith.constant 0 : index
    %c0_4 = arith.constant 0 : index
    %4 = vector.load %arg3[%c0_3, %c0_4] : memref<1x64xf32, #tpu.memory_space<vmem>>, vector<1x64xf32>
    %5 = vector.broadcast %4 : vector<1x64xf32> to vector<2x64xf32>
    %6 = arith.addf %3, %5 : vector<2x64xf32>
    %cst_5 = arith.constant 0.000000e+00 : f32
    %7 = vector.broadcast %cst_5 : f32 to vector<2x64xf32>
    %8 = arith.maximumf %6, %7 : vector<2x64xf32>
    %9 = arith.truncf %8 : vector<2x64xf32> to vector<2x64xbf16>
    %c0_6 = arith.constant 0 : index
    %c0_7 = arith.constant 0 : index
    %10 = vector.load %arg4[%c0_6, %c0_7] : memref<64x64xbf16, #tpu.memory_space<vmem>>, vector<64x64xbf16>
    %cst_8 = arith.constant dense<0.000000e+00> : vector<2x64xf32>
    %11 = tpu.matmul %9, %10, %cst_8 {dimension_numbers = #tpu.dot_dimension_numbers<[1], [0], [0], [1], [0, 0, 1, 1], [], []>} : vector<2x64xbf16>, vector<64x64xbf16>, vector<2x64xf32> -> vector<2x64xf32>
    %c0_9 = arith.constant 0 : index
    %c0_10 = arith.constant 0 : index
    %12 = vector.load %arg5[%c0_9, %c0_10] : memref<1x64xf32, #tpu.memory_space<vmem>>, vector<1x64xf32>
    %13 = vector.broadcast %12 : vector<1x64xf32> to vector<2x64xf32>
    %14 = arith.addf %11, %13 : vector<2x64xf32>
    %c0_11 = arith.constant 0 : index
    %c0_12 = arith.constant 0 : index
    %15 = vector.load %arg6[%c0_11, %c0_12] : memref<2x64xf32, #tpu.memory_space<vmem>>, vector<2x64xf32>
    tpu.vector_store %arg6[%c0_11, %c0_12], %14 {strides = array<i32>} : memref<2x64xf32, #tpu.memory_space<vmem>>, vector<2x64xf32>,
    return
  }
  func.func @transform_0(%arg0: i32) -> (i32, i32) {
    %c0_i32 = arith.constant 0 : i32
    %c0_i32_0 = arith.constant 0 : i32
    return %arg0, %c0_i32 : i32, i32
  }
  func.func @transform_1(%arg0: i32) -> (i32, i32) {
    %c0_i32 = arith.constant 0 : i32
    %c0_i32_0 = arith.constant 0 : i32
    %c0_i32_1 = arith.constant 0 : i32
    return %c0_i32, %c0_i32_0 : i32, i32
  }
  func.func @transform_2(%arg0: i32) -> (i32, i32) {
    %c0_i32 = arith.constant 0 : i32
    %c0_i32_0 = arith.constant 0 : i32
    %c0_i32_1 = arith.constant 0 : i32
    return %c0_i32, %c0_i32_0 : i32, i32
  }
  func.func @transform_3(%arg0: i32) -> (i32, i32) {
    %c0_i32 = arith.constant 0 : i32
    %c0_i32_0 = arith.constant 0 : i32
    %c0_i32_1 = arith.constant 0 : i32
    return %c0_i32, %c0_i32_0 : i32, i32
  }
  func.func @transform_4(%arg0: i32) -> (i32, i32) {
    %c0_i32 = arith.constant 0 : i32
    %c0_i32_0 = arith.constant 0 : i32
    %c0_i32_1 = arith.constant 0 : i32
    return %c0_i32, %c0_i32_0 : i32, i32
  }
  func.func @transform_5(%arg0: i32) -> (i32, i32) {
    %c0_i32 = arith.constant 0 : i32
    %c0_i32_0 = arith.constant 0 : i32
    return %arg0, %c0_i32 : i32, i32
  }
}

</mosaic_0001>

<llo_original>
// kernel: rise_forward.11
$region0: #{rise_forward.11}
  #allocation0 [shape = 'u32[]', space=smem, size = 0x4, offset = 0x4, fixed_abs, tag = 'smem constant byte address 0x4 - core index']
  #allocation1 [shape = 'u32[144,128]{1,0:T(1,128)}', space=vmem, size = 0x12000, scoped, tag = 'internal scratch']
  %s0 = inlined_call_operand.vmem [shape: f32[10,8], index: 0, kind: input, shape index: {}]
  %s1 = inlined_call_operand.vmem [shape: bf16[8,32], index: 1, kind: input, shape index: {}]
  %s2 = inlined_call_operand.vmem [shape: f32[1,32], index: 2, kind: input, shape index: {}]
  %s3 = inlined_call_operand.vmem [shape: f32[10,32], index: 3, kind: output, shape index: {}]
  %s4 = sld [smem:[#allocation0]]
  $region22: #{rise_forward.11} parent=0
    _
  %s6 = ssub.s32 1, %s4
  %s7 = scalar_select 0, %s6, %s4
  // Predicated region
  $region2: #{rise_forward.11} parent=0 // pred_check
    _
  $region3: #{rise_forward.11} parent=0 // pred_check_branch
    %9 = sbr.rel (0) target = $region5
  $region4: #{rise_forward.11} parent=0 // pred_region
    _
  $region5: #{rise_forward.11} parent=0 // pred_fallthru
    _
  // Predicated region
  $region6: #{rise_forward.11} parent=0 // pred_check
    _
  $region7: #{rise_forward.11} parent=0 // pred_check_branch
    %11 = sbr.rel (0) target = $region9
  $region8: #{rise_forward.11} parent=0 // pred_region
    _
  $region9: #{rise_forward.11} parent=0 // pred_fallthru
    _
  // Predicated region
  $region10: #{rise_forward.11} parent=0 // pred_check
    _
  $region11: #{rise_forward.11} parent=0 // pred_check_branch
    %13 = sbr.rel (0) target = $region13
  $region12: #{rise_forward.11} parent=0 // pred_region
    _
  $region13: #{rise_forward.11} parent=0 // pred_fallthru
    _
  %v15 = vld [vmem:[%s0] sm:$0xff]
  %v16 = vld [vmem:[%s0 + $0x8] sm:$0x3]
  %v17 = vpack.c.bf16 %v16, %v15
  %v18 = vld [vmem:[%s1] sm:$0xf]
  %v19 = vld [vmem:[%s2] sm:$0x1]
  %v21 = vlaneseq
  %v22 = vshrl.u32 %v21, 7
  %v23 = vsub.s32 0, %v22
  %v24 = vrot.slane %v19, %v23
  %vm26 = vcmask 64512
  %v28 = vsel %vm26, %v17, 0
  %vm30 = vcmask 1043456
  %v32 = vsel %vm30, %v18, 0
  %34 = vmatprep.subr.bf16.mxu0 0
  %35 = vmatpush1.bf16.msra.mxu0 %v32
  %36 = vmatprep.subr.bf16.mxu0 0
  %37 = vmatpush1.bf16.msra.mxu0 0
  %38 = vmatprep.subr.bf16.mxu0 0
  %39 = vmatpush1.bf16.msra.mxu0 0
  %40 = vmatprep.subr.bf16.mxu0 0
  %41 = vmatpush1.bf16.msra.mxu0 0
  %42 = vmatprep.subr.bf16.mxu0 0
  %43 = vmatpush1.bf16.msra.mxu0 0
  %44 = vmatprep.subr.bf16.mxu0 0
  %45 = vmatpush1.bf16.msra.mxu0 0
  %46 = vmatprep.subr.bf16.mxu0 0
  %47 = vmatpush1.bf16.msra.mxu0 0
  %48 = vmatprep.subr.bf16.mxu0 0
  %49 = vmatpush1.bf16.msra.mxu0 0
  %50 = vmatprep.subr.bf16.mxu0 0
  %51 = vmatpush1.bf16.msra.mxu0 0
  %52 = vmatprep.subr.bf16.mxu0 0
  %53 = vmatpush1.bf16.msra.mxu0 0
  %54 = vmatprep.subr.bf16.mxu0 0
  %55 = vmatpush1.bf16.msra.mxu0 0
  %56 = vmatprep.subr.bf16.mxu0 0
  %57 = vmatpush1.bf16.msra.mxu0 0
  %58 = vmatprep.subr.bf16.mxu0 0
  %59 = vmatpush1.bf16.msra.mxu0 0
  %60 = vmatprep.subr.bf16.mxu0 0
  %61 = vmatpush1.bf16.msra.mxu0 0
  %62 = vmatprep.subr.bf16.mxu0 0
  %63 = vmatpush1.bf16.msra.mxu0 0
  %64 = vmatprep.subr.bf16.mxu0 0
  %65 = vmatpush1.bf16.msra.mxu0 0
  %66 = vmatprep.mubr.bf16.mxu0 0
  %67 = vmatmul.mubr.bf16.gmra.mrb[0].mxu0 %v28
  %v68 = vpop.f32.mrb[0].mxu0
  %v69 = vadd.f32 %v24, %v68
  %v70 = vpop.f32.mrb[0].mxu0
  %v71 = vpop.f32.mrb[0].mxu0
  %v72 = vadd.f32 %v24, %v71
  %v73 = vpop.f32.mrb[0].mxu0
  %74 = vdwg.mxu0
  %vm75 = vcmask 261120
  %76 = vst.msk [vmem:[%s3] sm:$0xff] %vm75, %v69
  %vm77 = vcmask 254976
  %78 = vst.msk [vmem:[%s3 + $0x8] sm:$0x3] %vm77, %v72
  // Predicated region
  $region14: #{rise_forward.11} parent=0 // pred_check
    _
  $region15: #{rise_forward.11} parent=0 // pred_check_branch
    %80 = sbr.rel (0) target = $region17
  $region16: #{rise_forward.11} parent=0 // pred_region
    _
  $region17: #{rise_forward.11} parent=0 // pred_fallthru
    _
  // Predicated region
  $region18: #{rise_forward.11} parent=0 // pred_check
    _
  $region19: #{rise_forward.11} parent=0 // pred_check_branch
    %82 = sbr.rel (0) target = $region21
  $region20: #{rise_forward.11} parent=0 // pred_region
    _
  $region21: #{rise_forward.11} parent=0 // pred_fallthru
    _

// kernel: rise_forward.10
$region0: #{rise_forward.10}
  #allocation0 [shape = 'u32[]', space=smem, size = 0x4, offset = 0x4, fixed_abs, tag = 'smem constant byte address 0x4 - core index']
  #allocation1 [shape = 'u32[144,128]{1,0:T(1,128)}', space=vmem, size = 0x12000, scoped, tag = 'internal scratch']
  %s0 = inlined_call_operand.vmem [shape: f32[2,27,6], index: 0, kind: input, shape index: {}]
  %s1 = inlined_call_operand.vmem [shape: bf16[6,32], index: 1, kind: input, shape index: {}]
  %s2 = inlined_call_operand.vmem [shape: f32[1,32], index: 2, kind: input, shape index: {}]
  %s3 = inlined_call_operand.vmem [shape: bf16[32,32], index: 3, kind: input, shape index: {}]
  %s4 = inlined_call_operand.vmem [shape: f32[1,32], index: 4, kind: input, shape index: {}]
  %s5 = inlined_call_operand.vmem [shape: bf16[6,32], index: 5, kind: input, shape index: {}]
  %s6 = inlined_call_operand.vmem [shape: f32[1,32], index: 6, kind: input, shape index: {}]
  %s7 = inlined_call_operand.vmem [shape: f32[2,27,32], index: 7, kind: output, shape index: {0}]
  %s8 = inlined_call_operand.vmem [shape: f32[2,27,32], index: 8, kind: output, shape index: {1}]
  %9 = xla_tuple %s7, %s8
  %s10 = sld [smem:[#allocation0]]
  $region69: #{rise_forward.10} parent=0
    _
  %s12 = ssub.s32 1, %s10
  %s13 = scalar_select 0, %s12, %s10
  loop: start=0, step=1, limit=4
  $region2: #{rise_forward.10} parent=0 // loop_pre_header
    _
  $region3: #{rise_forward.10} parent=0 // loop_header
    %s15 = sphi 0, %s19
    %p16 = scmp.ge.s32.totalorder %s15, 4
    %s25 = sphi 0, %s27
    %s28 = sphi 0, %s25
    %s29 = sphi 0, %s28
    %s45 = sphi 0, %s29
    %s49 = sphi 0, %s49
    %s51 = sphi 0, %s49
    %s52 = sphi 0, %s51
    %s66 = sphi 0, %s52
    %s70 = sphi 0, %s70
    %s72 = sphi 0, %s70
    %s73 = sphi 0, %s72
    %s87 = sphi 0, %s73
    %s91 = sphi 0, %s91
    %s93 = sphi 0, %s91
    %s94 = sphi 0, %s93
    %s108 = sphi 0, %s94
    %s112 = sphi 0, %s112
    %s114 = sphi 0, %s112
    %s115 = sphi 0, %s114
    %s129 = sphi 0, %s115
    %s133 = sphi 0, %s133
    %s135 = sphi 0, %s133
    %s136 = sphi 0, %s135
    %s150 = sphi 0, %s136
    %s154 = sphi 0, %s154
    %s156 = sphi 0, %s154
    %s157 = sphi 0, %s156
    %s171 = sphi 0, %s157
    %s177 = sphi 0, %s179
    %s180 = sphi 0, %s177
    %s181 = sphi 0, %s180
    %s197 = sphi 0, %s181
    %s203 = sphi 0, %s205
    %s206 = sphi 0, %s203
    %s207 = sphi 0, %s206
    %s223 = sphi 0, %s207
  $region4: #{rise_forward.10} parent=0 // loop_header_branch
    %18 = sbr.rel (%p16) target = $region8
  $region5: #{rise_forward.10} parent=0 // loop_body
    %s20 = ssub.s32 %s15, 1
    %s21 = ssub.s32 %s15, 2
    %s22 = sadd.s32 %s15, 1
    %s23 = ssub.s32 %s15, %s22
    %p24 = scmp.eq.s32.totalorder %s23, 0
    %s26 = sadd.s32 %s25, 1
    %s27 = scalar_select %p24, %s25, %s26
    %p30 = pneg %p24
    %p31 = scmp.eq.s32.totalorder %s15, 1
    %p32 = por %p30, %p31
    %p33 = scmp.ne.s32.totalorder %s25, %s28
    %p34 = scmp.eq.s32.totalorder %s15, 0
    %p35 = por %p33, %p34
    %p36 = scmp.ne.s32.totalorder %s25, %s28
    %p37 = scmp.eq.s32.totalorder %s20, 1
    %p38 = por %p36, %p37
    %p39 = scmp.ne.s32.totalorder %s28, %s29
    %p40 = scmp.eq.s32.totalorder %s20, 0
    %p41 = por %p39, %p40
    %p42 = scmp.ne.s32.totalorder %s28, %s29
    %p43 = scmp.eq.s32.totalorder %s21, 1
    %p44 = por %p42, %p43
    %p46 = scmp.ne.s32.totalorder %s29, %s45
    %p47 = scmp.eq.s32.totalorder %s21, 0
    %p48 = por %p46, %p47
    %s50 = sadd.s32 %s49, 1
    %p53 = scmp.eq.s32.totalorder %s15, 1
    %p54 = scmp.ne.s32.totalorder %s49, %s51
    %p55 = scmp.eq.s32.totalorder %s15, 0
    %p56 = por %p54, %p55
    %p57 = scmp.ne.s32.totalorder %s49, %s51
    %p58 = scmp.eq.s32.totalorder %s20, 1
    %p59 = por %p57, %p58
    %p60 = scmp.ne.s32.totalorder %s51, %s52
    %p61 = scmp.eq.s32.totalorder %s20, 0
    %p62 = por %p60, %p61
    %p63 = scmp.ne.s32.totalorder %s51, %s52
    %p64 = scmp.eq.s32.totalorder %s21, 1
    %p65 = por %p63, %p64
    %p67 = scmp.ne.s32.totalorder %s52, %s66
    %p68 = scmp.eq.s32.totalorder %s21, 0
    %p69 = por %p67, %p68
    %s71 = sadd.s32 %s70, 1
    %p74 = scmp.eq.s32.totalorder %s15, 1
    %p75 = scmp.ne.s32.totalorder %s70, %s72
    %p76 = scmp.eq.s32.totalorder %s15, 0
    %p77 = por %p75, %p76
    %p78 = scmp.ne.s32.totalorder %s70, %s72
    %p79 = scmp.eq.s32.totalorder %s20, 1
    %p80 = por %p78, %p79
    %p81 = scmp.ne.s32.totalorder %s72, %s73
    %p82 = scmp.eq.s32.totalorder %s20, 0
    %p83 = por %p81, %p82
    %p84 = scmp.ne.s32.totalorder %s72, %s73
    %p85 = scmp.eq.s32.totalorder %s21, 1
    %p86 = por %p84, %p85
    %p88 = scmp.ne.s32.totalorder %s73, %s87
    %p89 = scmp.eq.s32.totalorder %s21, 0
    %p90 = por %p88, %p89
    %s92 = sadd.s32 %s91, 1
    %p95 = scmp.eq.s32.totalorder %s15, 1
    %p96 = scmp.ne.s32.totalorder %s91, %s93
    %p97 = scmp.eq.s32.totalorder %s15, 0
    %p98 = por %p96, %p97
    %p99 = scmp.ne.s32.totalorder %s91, %s93
    %p100 = scmp.eq.s32.totalorder %s20, 1
    %p101 = por %p99, %p100
    %p102 = scmp.ne.s32.totalorder %s93, %s94
    %p103 = scmp.eq.s32.totalorder %s20, 0
    %p104 = por %p102, %p103
    %p105 = scmp.ne.s32.totalorder %s93, %s94
    %p106 = scmp.eq.s32.totalorder %s21, 1
    %p107 = por %p105, %p106
    %p109 = scmp.ne.s32.totalorder %s94, %s108
    %p110 = scmp.eq.s32.totalorder %s21, 0
    %p111 = por %p109, %p110
    %s113 = sadd.s32 %s112, 1
    %p116 = scmp.eq.s32.totalorder %s15, 1
    %p117 = scmp.ne.s32.totalorder %s112, %s114
    %p118 = scmp.eq.s32.totalorder %s15, 0
    %p119 = por %p117, %p118
    %p120 = scmp.ne.s32.totalorder %s112, %s114
    %p121 = scmp.eq.s32.totalorder %s20, 1
    %p122 = por %p120, %p121
    %p123 = scmp.ne.s32.totalorder %s114, %s115
    %p124 = scmp.eq.s32.totalorder %s20, 0
    %p125 = por %p123, %p124
    %p126 = scmp.ne.s32.totalorder %s114, %s115
    %p127 = scmp.eq.s32.totalorder %s21, 1
    %p128 = por %p126, %p127
    %p130 = scmp.ne.s32.totalorder %s115, %s129
    %p131 = scmp.eq.s32.totalorder %s21, 0
    %p132 = por %p130, %p131
    %s134 = sadd.s32 %s133, 1
    %p137 = scmp.eq.s32.totalorder %s15, 1
    %p138 = scmp.ne.s32.totalorder %s133, %s135
    %p139 = scmp.eq.s32.totalorder %s15, 0
    %p140 = por %p138, %p139
    %p141 = scmp.ne.s32.totalorder %s133, %s135
    %p142 = scmp.eq.s32.totalorder %s20, 1
    %p143 = por %p141, %p142
    %p144 = scmp.ne.s32.totalorder %s135, %s136
    %p145 = scmp.eq.s32.totalorder %s20, 0
    %p146 = por %p144, %p145
    %p147 = scmp.ne.s32.totalorder %s135, %s136
    %p148 = scmp.eq.s32.totalorder %s21, 1
    %p149 = por %p147, %p148
    %p151 = scmp.ne.s32.totalorder %s136, %s150
    %p152 = scmp.eq.s32.totalorder %s21, 0
    %p153 = por %p151, %p152
    %s155 = sadd.s32 %s154, 1
    %p158 = scmp.eq.s32.totalorder %s15, 1
    %p159 = scmp.ne.s32.totalorder %s154, %s156
    %p160 = scmp.eq.s32.totalorder %s15, 0
    %p161 = por %p159, %p160
    %p162 = scmp.ne.s32.totalorder %s154, %s156
    %p163 = scmp.eq.s32.totalorder %s20, 1
    %p164 = por %p162, %p163
    %p165 = scmp.ne.s32.totalorder %s156, %s157
    %p166 = scmp.eq.s32.totalorder %s20, 0
    %p167 = por %p165, %p166
    %p168 = scmp.ne.s32.totalorder %s156, %s157
    %p169 = scmp.eq.s32.totalorder %s21, 1
    %p170 = por %p168, %p169
    %p172 = scmp.ne.s32.totalorder %s157, %s171
    %p173 = scmp.eq.s32.totalorder %s21, 0
    %p174 = por %p172, %p173
    %s175 = ssub.s32 %s15, %s22
    %p176 = scmp.eq.s32.totalorder %s175, 0
    %s178 = sadd.s32 %s177, 1
    %s179 = scalar_select %p176, %s177, %s178
    %p182 = pneg %p176
    %p183 = scmp.eq.s32.totalorder %s15, 1
    %p184 = por %p182, %p183
    %p185 = scmp.ne.s32.totalorder %s177, %s180
    %p186 = scmp.eq.s32.totalorder %s15, 0
    %p187 = por %p185, %p186
    %p188 = scmp.ne.s32.totalorder %s177, %s180
    %p189 = scmp.eq.s32.totalorder %s20, 1
    %p190 = por %p188, %p189
    %p191 = scmp.ne.s32.totalorder %s180, %s181
    %p192 = scmp.eq.s32.totalorder %s20, 0
    %p193 = por %p191, %p192
    %p194 = scmp.ne.s32.totalorder %s180, %s181
    %p195 = scmp.eq.s32.totalorder %s21, 1
    %p196 = por %p194, %p195
    %p198 = scmp.ne.s32.totalorder %s181, %s197
    %p199 = scmp.eq.s32.totalorder %s21, 0
    %p200 = por %p198, %p199
    %s201 = ssub.s32 %s15, %s22
    %p202 = scmp.eq.s32.totalorder %s201, 0
    %s204 = sadd.s32 %s203, 1
    %s205 = scalar_select %p202, %s203, %s204
    %p208 = pneg %p202
    %p209 = scmp.eq.s32.totalorder %s15, 1
    %p210 = por %p208, %p209
    %p211 = scmp.ne.s32.totalorder %s203, %s206
    %p212 = scmp.eq.s32.totalorder %s15, 0
    %p213 = por %p211, %p212
    %p214 = scmp.ne.s32.totalorder %s203, %s206
    %p215 = scmp.eq.s32.totalorder %s20, 1
    %p216 = por %p214, %p215
    %p217 = scmp.ne.s32.totalorder %s206, %s207
    %p218 = scmp.eq.s32.totalorder %s20, 0
    %p219 = por %p217, %p218
    %p220 = scmp.ne.s32.totalorder %s206, %s207
    %p221 = scmp.eq.s32.totalorder %s21, 1
    %p222 = por %p220, %p221
    %p224 = scmp.ne.s32.totalorder %s207, %s223
    %p225 = scmp.eq.s32.totalorder %s21, 0
    %p226 = por %p224, %p225
    %p227 = scmp.le.s32.totalorder 1, %s15
    %p228 = scmp.lt.s32.totalorder %s15, 3
    %p229 = pnand %p227, %p228
    %p230 = pneg %p229
    // Predicated region
    $region9: #{rise_forward.10} parent=5 // pred_check
      _
    $region10: #{rise_forward.10} parent=5 // pred_check_branch
      %232 = sbr.rel (%p229) target = $region12
    $region11: #{rise_forward.10} parent=5 // pred_region
      %s233 = ssub.s32 %s15, 1
      // Predicated region
      $region13: #{rise_forward.10} parent=11 // pred_check
        %p234 = pneg %p62
      $region14: #{rise_forward.10} parent=11 // pred_check_branch
        %236 = sbr.rel (%p234) target = $region16
      $region15: #{rise_forward.10} parent=11 // pred_region
        _
      $region16: #{rise_forward.10} parent=11 // pred_fallthru
        _
      // Predicated region
      $region17: #{rise_forward.10} parent=11 // pred_check
        %p237 = pneg %p83
      $region18: #{rise_forward.10} parent=11 // pred_check_branch
        %239 = sbr.rel (%p237) target = $region20
      $region19: #{rise_forward.10} parent=11 // pred_region
        _
      $region20: #{rise_forward.10} parent=11 // pred_fallthru
        _
      // Predicated region
      $region21: #{rise_forward.10} parent=11 // pred_check
        %p240 = pneg %p104
      $region22: #{rise_forward.10} parent=11 // pred_check_branch
        %242 = sbr.rel (%p240) target = $region24
      $region23: #{rise_forward.10} parent=11 // pred_region
        _
      $region24: #{rise_forward.10} parent=11 // pred_fallthru
        _
      // Predicated region
      $region25: #{rise_forward.10} parent=11 // pred_check
        %p243 = pneg %p125
      $region26: #{rise_forward.10} parent=11 // pred_check_branch
        %245 = sbr.rel (%p243) target = $region28
      $region27: #{rise_forward.10} parent=11 // pred_region
        _
      $region28: #{rise_forward.10} parent=11 // pred_fallthru
        _
      // Predicated region
      $region29: #{rise_forward.10} parent=11 // pred_check
        %p246 = pneg %p146
      $region30: #{rise_forward.10} parent=11 // pred_check_branch
        %248 = sbr.rel (%p246) target = $region32
      $region31: #{rise_forward.10} parent=11 // pred_region
        _
      $region32: #{rise_forward.10} parent=11 // pred_fallthru
        _
      // Predicated region
      $region33: #{rise_forward.10} parent=11 // pred_check
        %p249 = pneg %p167
      $region34: #{rise_forward.10} parent=11 // pred_check_branch
        %251 = sbr.rel (%p249) target = $region36
      $region35: #{rise_forward.10} parent=11 // pred_region
        _
      $region36: #{rise_forward.10} parent=11 // pred_fallthru
        _
    $region12: #{rise_forward.10} parent=5 // pred_fallthru
      _
    %p252 = scmp.lt.s32.totalorder %s15, 2
    // Predicated region
    $region37: #{rise_forward.10} parent=5 // pred_check
      %p253 = pneg %p252
    $region38: #{rise_forward.10} parent=5 // pred_check_branch
      %255 = sbr.rel (%p253) target = $region40
    $region39: #{rise_forward.10} parent=5 // pred_region
      // Predicated region
      $region41: #{rise_forward.10} parent=39 // pred_check
        %p256 = pneg %p35
      $region42: #{rise_forward.10} parent=39 // pred_check_branch
        %258 = sbr.rel (%p256) target = $region44
      $region43: #{rise_forward.10} parent=39 // pred_region
        %p259 = scmp.lt.s32.totalorder %s15, 1
        %s260 = scalar_select %p259, %s15, 1
        %s261 = smul.addr %s260, 4
        %s262 = smul.addr %s261, 8
        %s263 = scalar_lea.vmem %s0, %s262
      $region44: #{rise_forward.10} parent=39 // pred_fallthru
        _
    $region40: #{rise_forward.10} parent=5 // pred_fallthru
      _
    %p264 = scmp.le.s32.totalorder 1, %s15
    %p265 = scmp.lt.s32.totalorder %s15, 3
    %p266 = pnand %p264, %p265
    %p267 = pneg %p266
    // Predicated region
    $region45: #{rise_forward.10} parent=5 // pred_check
      _
    $region46: #{rise_forward.10} parent=5 // pred_check_branch
      %269 = sbr.rel (%p266) target = $region48
    $region47: #{rise_forward.10} parent=5 // pred_region
      %s270 = ssub.s32 %s15, 1
      %p271 = scmp.lt.s32.totalorder %s20, 1
      %s272 = scalar_select %p271, %s20, 1
      %s273 = smul.addr %s272, 4
      %s274 = smul.addr %s273, 8
      %s275 = scalar_lea.vmem %s0, %s274
      %p276 = pneg %p41
      %p277 = pneg %p38
      %p278 = pneg %p62
      %p279 = pneg %p59
      %p280 = pneg %p83
      %p281 = pneg %p80
      %p282 = pneg %p104
      %p283 = pneg %p101
      %p284 = pneg %p125
      %p285 = pneg %p122
      %p286 = pneg %p146
      %p287 = pneg %p143
      %p288 = pneg %p167
      %p289 = pneg %p164
      %p290 = pneg %p193
      %p291 = pneg %p190
      %p292 = scmp.lt.s32.totalorder %s20, 1
      %s293 = scalar_select %p292, %s20, 1
      %s294 = smul.addr %s293, 4
      %s295 = smul.addr %s294, 8
      %s296 = scalar_lea.vmem %s7, %s295
      %p297 = pneg %p219
      %p298 = pneg %p216
      %p299 = scmp.lt.s32.totalorder %s20, 1
      %s300 = scalar_select %p299, %s20, 1
      %s301 = smul.addr %s300, 4
      %s302 = smul.addr %s301, 8
      %s303 = scalar_lea.vmem %s8, %s302
      %p304 = scmp.lt.s32.totalorder %s20, 1
      %s305 = scalar_select %p304, %s20, 1
      %s306 = smul.addr %s305, 4
      %s307 = smul.addr %s306, 8
      %s308 = scalar_lea.vmem %s0, %s307
      %p309 = scmp.lt.s32.totalorder %s20, 1
      %s310 = scalar_select %p309, %s20, 1
      %s311 = smul.addr %s310, 4
      %s312 = smul.addr %s311, 8
      %s313 = scalar_lea.vmem %s7, %s312
      %p314 = scmp.lt.s32.totalorder %s20, 1
      %s315 = scalar_select %p314, %s20, 1
      %s316 = smul.addr %s315, 4
      %s317 = smul.addr %s316, 8
      %s318 = scalar_lea.vmem %s8, %s317
      %v320 = vld [vmem:[%s308] sm:$0xff]
      %v321 = vld [vmem:[%s308 + $0x8] sm:$0xff]
      %v322 = vld [vmem:[%s308 + $0x10] sm:$0xff]
      %v323 = vld [vmem:[%s308 + $0x18] sm:$0x7]
      %v324 = vpack.c.bf16 %v321, %v320
      %v325 = vpack.c.bf16 %v323, %v322
      %v326 = vld [vmem:[%s1] sm:$0x7]
      %v327 = vld [vmem:[%s2] sm:$0x1]
      %v329 = vlaneseq
      %v330 = vshrl.u32 %v329, 7
      %v331 = vsub.s32 0, %v330
      %v332 = vrot.slane %v327, %v331
      %vm334 = vcmask 48128
      %v336 = vsel %vm334, %v324, 0
      %v339 = vsel %vm334, %v325, 0
      %vm341 = vcmask 1042432
      %v343 = vsel %vm341, %v326, 0
      %345 = vmatprep.subr.bf16.mxu0 0
      %346 = vmatpush1.bf16.msra.mxu0 %v343
      %347 = vmatprep.subr.bf16.mxu0 0
      %348 = vmatpush1.bf16.msra.mxu0 0
      %349 = vmatprep.subr.bf16.mxu0 0
      %350 = vmatpush1.bf16.msra.mxu0 0
      %351 = vmatprep.subr.bf16.mxu0 0
      %352 = vmatpush1.bf16.msra.mxu0 0
      %353 = vmatprep.subr.bf16.mxu0 0
      %354 = vmatpush1.bf16.msra.mxu0 0
      %355 = vmatprep.subr.bf16.mxu0 0
      %356 = vmatpush1.bf16.msra.mxu0 0
      %357 = vmatprep.subr.bf16.mxu0 0
      %358 = vmatpush1.bf16.msra.mxu0 0
      %359 = vmatprep.subr.bf16.mxu0 0
      %360 = vmatpush1.bf16.msra.mxu0 0
      %361 = vmatprep.subr.bf16.mxu0 0
      %362 = vmatpush1.bf16.msra.mxu0 0
      %363 = vmatprep.subr.bf16.mxu0 0
      %364 = vmatpush1.bf16.msra.mxu0 0
      %365 = vmatprep.subr.bf16.mxu0 0
      %366 = vmatpush1.bf16.msra.mxu0 0
      %367 = vmatprep.subr.bf16.mxu0 0
      %368 = vmatpush1.bf16.msra.mxu0 0
      %369 = vmatprep.subr.bf16.mxu0 0
      %370 = vmatpush1.bf16.msra.mxu0 0
      %371 = vmatprep.subr.bf16.mxu0 0
      %372 = vmatpush1.bf16.msra.mxu0 0
      %373 = vmatprep.subr.bf16.mxu0 0
      %374 = vmatpush1.bf16.msra.mxu0 0
      %375 = vmatprep.subr.bf16.mxu0 0
      %376 = vmatpush1.bf16.msra.mxu0 0
      %377 = vmatprep.mubr.bf16.mxu0 0
      %378 = vmatmul.mubr.bf16.gmra.mrb[0].mxu0 %v336
      %v379 = vpop.f32.mrb[0].mxu0
      %v380 = vadd.f32 %v332, %v379
      %v381 = vpop.f32.mrb[0].mxu0
      %v382 = vpop.f32.mrb[0].mxu0
      %v383 = vadd.f32 %v332, %v382
      %v384 = vpop.f32.mrb[0].mxu0
      %385 = vmatprep.mubr.bf16.mxu0 0
      %386 = vmatmul.mubr.bf16.gmra.mrb[0].mxu0 %v339
      %v387 = vpop.f32.mrb[0].mxu0
      %v388 = vadd.f32 %v332, %v387
      %v389 = vpop.f32.mrb[0].mxu0
      %v390 = vpop.f32.mrb[0].mxu0
      %v391 = vadd.f32 %v332, %v390
      %v392 = vpop.f32.mrb[0].mxu0
      %393 = vdwg.mxu0
      %v394 = vmax.f32 %v380, 0.0
      %v395 = vmax.f32 %v383, 0.0
      %v396 = vmax.f32 %v388, 0.0
      %v397 = vmax.f32 %v391, 0.0
      %v398 = vpack.c.bf16 %v395, %v394
      %v399 = vpack.c.bf16 %v397, %v396
      %v400 = vld [vmem:[%s3] sm:$0xf]
      %v401 = vld [vmem:[%s3 + $0x4] sm:$0xf]
      %v402 = vld [vmem:[%s3 + $0x8] sm:$0xf]
      %v403 = vld [vmem:[%s3 + $0xc] sm:$0xf]
      %v404 = vld [vmem:[%s4] sm:$0x1]
      %v406 = vlaneseq
      %v407 = vshrl.u32 %v406, 7
      %v408 = vsub.s32 0, %v407
      %v409 = vrot.slane %v404, %v408
      %v415 = vunpack.c.l.b16 %v400
      %v416 = vunpack.c.l.b16 %v401
      %v417 = vunpack.c.l.b16 %v402
      %v418 = vunpack.c.l.b16 %v403
      %v419 = vpack.c.b16 %v416, %v415
      %v420 = vpack.c.b16 %v418, %v417
      %vm423 = vcmask 261120
      %v425 = vsel %vm423, %v398, 0
      %v428 = vsel %vm423, %v399, 0
      %430 = vmatprep.subr.bf16.mxu0 0
      %431 = vmatpush1.bf16.msra.mxu0 %v419
      %432 = vmatprep.subr.bf16.mxu0 0
      %433 = vmatpush1.bf16.msra.mxu0 %v420
      %434 = vmatprep.subr.bf16.mxu0 0
      %435 = vmatpush1.bf16.msra.mxu0 0
      %436 = vmatprep.subr.bf16.mxu0 0
      %437 = vmatpush1.bf16.msra.mxu0 0
      %438 = vmatprep.subr.bf16.mxu0 0
      %439 = vmatpush1.bf16.msra.mxu0 0
      %440 = vmatprep.subr.bf16.mxu0 0
      %441 = vmatpush1.bf16.msra.mxu0 0
      %442 = vmatprep.subr.bf16.mxu0 0
      %443 = vmatpush1.bf16.msra.mxu0 0
      %444 = vmatprep.subr.bf16.mxu0 0
      %445 = vmatpush1.bf16.msra.mxu0 0
      %446 = vmatprep.subr.bf16.mxu0 0
      %447 = vmatpush1.bf16.msra.mxu0 0
      %448 = vmatprep.subr.bf16.mxu0 0
      %449 = vmatpush1.bf16.msra.mxu0 0
      %450 = vmatprep.subr.bf16.mxu0 0
      %451 = vmatpush1.bf16.msra.mxu0 0
      %452 = vmatprep.subr.bf16.mxu0 0
      %453 = vmatpush1.bf16.msra.mxu0 0
      %454 = vmatprep.subr.bf16.mxu0 0
      %455 = vmatpush1.bf16.msra.mxu0 0
      %456 = vmatprep.subr.bf16.mxu0 0
      %457 = vmatpush1.bf16.msra.mxu0 0
      %458 = vmatprep.subr.bf16.mxu0 0
      %459 = vmatpush1.bf16.msra.mxu0 0
      %460 = vmatprep.subr.bf16.mxu0 0
      %461 = vmatpush1.bf16.msra.mxu0 0
      %462 = vmatprep.mubr.bf16.mxu0 0
      %463 = vmatmul.mubr.bf16.gmra.mrb[0].mxu0 %v425
      %v464 = vpop.f32.mrb[0].mxu0
      %v465 = vadd.f32 %v409, %v464
      %v466 = vpop.f32.mrb[0].mxu0
      %v467 = vpop.f32.mrb[0].mxu0
      %v468 = vadd.f32 %v409, %v467
      %v469 = vpop.f32.mrb[0].mxu0
      %470 = vmatprep.mubr.bf16.mxu0 0
      %471 = vmatmul.mubr.bf16.gmra.mrb[0].mxu0 %v428
      %v472 = vpop.f32.mrb[0].mxu0
      %v473 = vadd.f32 %v409, %v472
      %v474 = vpop.f32.mrb[0].mxu0
      %v475 = vpop.f32.mrb[0].mxu0
      %v476 = vadd.f32 %v409, %v475
      %v477 = vpop.f32.mrb[0].mxu0
      %478 = vdwg.mxu0
      %479 = vst.msk [vmem:[%s313] sm:$0xff] %vm423, %v465
      %480 = vst.msk [vmem:[%s313 + $0x8] sm:$0xff] %vm423, %v468
      %481 = vst.msk [vmem:[%s313 + $0x10] sm:$0xff] %vm423, %v473
      %vm482 = vcmask 256000
      %483 = vst.msk [vmem:[%s313 + $0x18] sm:$0x7] %vm482, %v476
      %v484 = vld [vmem:[%s5] sm:$0x7]
      %v485 = vld [vmem:[%s6] sm:$0x1]
      %v487 = vlaneseq
      %v488 = vshrl.u32 %v487, 7
      %v489 = vsub.s32 0, %v488
      %v490 = vrot.slane %v485, %v489
      %v493 = vsel %vm341, %v484, 0
      %495 = vmatprep.subr.bf16.mxu0 0
      %496 = vmatpush1.bf16.msra.mxu0 %v493
      %497 = vmatprep.subr.bf16.mxu0 0
      %498 = vmatpush1.bf16.msra.mxu0 0
      %499 = vmatprep.subr.bf16.mxu0 0
      %500 = vmatpush1.bf16.msra.mxu0 0
      %501 = vmatprep.subr.bf16.mxu0 0
      %502 = vmatpush1.bf16.msra.mxu0 0
      %503 = vmatprep.subr.bf16.mxu0 0
      %504 = vmatpush1.bf16.msra.mxu0 0
      %505 = vmatprep.subr.bf16.mxu0 0
      %506 = vmatpush1.bf16.msra.mxu0 0
      %507 = vmatprep.subr.bf16.mxu0 0
      %508 = vmatpush1.bf16.msra.mxu0 0
      %509 = vmatprep.subr.bf16.mxu0 0
      %510 = vmatpush1.bf16.msra.mxu0 0
      %511 = vmatprep.subr.bf16.mxu0 0
      %512 = vmatpush1.bf16.msra.mxu0 0
      %513 = vmatprep.subr.bf16.mxu0 0
      %514 = vmatpush1.bf16.msra.mxu0 0
      %515 = vmatprep.subr.bf16.mxu0 0
      %516 = vmatpush1.bf16.msra.mxu0 0
      %517 = vmatprep.subr.bf16.mxu0 0
      %518 = vmatpush1.bf16.msra.mxu0 0
      %519 = vmatprep.subr.bf16.mxu0 0
      %520 = vmatpush1.bf16.msra.mxu0 0
      %521 = vmatprep.subr.bf16.mxu0 0
      %522 = vmatpush1.bf16.msra.mxu0 0
      %523 = vmatprep.subr.bf16.mxu0 0
      %524 = vmatpush1.bf16.msra.mxu0 0
      %525 = vmatprep.subr.bf16.mxu0 0
      %526 = vmatpush1.bf16.msra.mxu0 0
      %527 = vmatprep.mubr.bf16.mxu0 0
      %528 = vmatmul.mubr.bf16.gmra.mrb[0].mxu0 %v336
      %v529 = vpop.f32.mrb[0].mxu0
      %v530 = vadd.f32 %v490, %v529
      %v531 = vpop.f32.mrb[0].mxu0
      %v532 = vpop.f32.mrb[0].mxu0
      %v533 = vadd.f32 %v490, %v532
      %v534 = vpop.f32.mrb[0].mxu0
      %535 = vmatprep.mubr.bf16.mxu0 0
      %536 = vmatmul.mubr.bf16.gmra.mrb[0].mxu0 %v339
      %v537 = vpop.f32.mrb[0].mxu0
      %v538 = vadd.f32 %v490, %v537
      %v539 = vpop.f32.mrb[0].mxu0
      %v540 = vpop.f32.mrb[0].mxu0
      %v541 = vadd.f32 %v490, %v540
      %v542 = vpop.f32.mrb[0].mxu0
      %543 = vdwg.mxu0
      %544 = vst.msk [vmem:[%s318] sm:$0xff] %vm423, %v530
      %545 = vst.msk [vmem:[%s318 + $0x8] sm:$0xff] %vm423, %v533
      %546 = vst.msk [vmem:[%s318 + $0x10] sm:$0xff] %vm423, %v538
      %547 = vst.msk [vmem:[%s318 + $0x18] sm:$0x7] %vm482, %v541
      %p548 = scmp.lt.s32.totalorder %s20, 1
      %s549 = scalar_select %p548, %s20, 1
      %s550 = smul.addr %s549, 4
      %s551 = smul.addr %s550, 8
      %s552 = scalar_lea.vmem %s7, %s551
      %p553 = scmp.lt.s32.totalorder %s20, 1
      %s554 = scalar_select %p553, %s20, 1
      %s555 = smul.addr %s554, 4
      %s556 = smul.addr %s555, 8
      %s557 = scalar_lea.vmem %s8, %s556
      // Predicated region
      $region49: #{rise_forward.10} parent=47 // pred_check
        %p558 = pneg %p190
      $region50: #{rise_forward.10} parent=47 // pred_check_branch
        %560 = sbr.rel (%p558) target = $region52
      $region51: #{rise_forward.10} parent=47 // pred_region
        _
      $region52: #{rise_forward.10} parent=47 // pred_fallthru
        _
      // Predicated region
      $region53: #{rise_forward.10} parent=47 // pred_check
        %p561 = pneg %p216
      $region54: #{rise_forward.10} parent=47 // pred_check_branch
        %563 = sbr.rel (%p561) target = $region56
      $region55: #{rise_forward.10} parent=47 // pred_region
        _
      $region56: #{rise_forward.10} parent=47 // pred_fallthru
        _
    $region48: #{rise_forward.10} parent=5 // pred_fallthru
      _
    %p564 = scmp.le.s32.totalorder 2, %s15
    // Predicated region
    $region57: #{rise_forward.10} parent=5 // pred_check
      %p565 = pneg %p564
    $region58: #{rise_forward.10} parent=5 // pred_check_branch
      %567 = sbr.rel (%p565) target = $region60
    $region59: #{rise_forward.10} parent=5 // pred_region
      %s568 = ssub.s32 %s15, 2
      // Predicated region
      $region61: #{rise_forward.10} parent=59 // pred_check
        %p569 = pneg %p196
      $region62: #{rise_forward.10} parent=59 // pred_check_branch
        %571 = sbr.rel (%p569) target = $region64
      $region63: #{rise_forward.10} parent=59 // pred_region
        %p572 = scmp.lt.s32.totalorder %s21, 1
        %s573 = scalar_select %p572, %s21, 1
        %s574 = smul.addr %s573, 4
        %s575 = smul.addr %s574, 8
        %s576 = scalar_lea.vmem %s7, %s575
      $region64: #{rise_forward.10} parent=59 // pred_fallthru
        _
      // Predicated region
      $region65: #{rise_forward.10} parent=59 // pred_check
        %p577 = pneg %p222
      $region66: #{rise_forward.10} parent=59 // pred_check_branch
        %579 = sbr.rel (%p577) target = $region68
      $region67: #{rise_forward.10} parent=59 // pred_region
        %p580 = scmp.lt.s32.totalorder %s21, 1
        %s581 = scalar_select %p580, %s21, 1
        %s582 = smul.addr %s581, 4
        %s583 = smul.addr %s582, 8
        %s584 = scalar_lea.vmem %s8, %s583
      $region68: #{rise_forward.10} parent=59 // pred_fallthru
        _
    $region60: #{rise_forward.10} parent=5 // pred_fallthru
      _
  $region6: #{rise_forward.10} parent=0 // loop_footer
    %s19 = sadd.s32 1, %s15
  $region7: #{rise_forward.10} parent=0 // loop_footer_branch
    %14 = sbr.rel target = $region3
  $region8: #{rise_forward.10} parent=0 // loop_exit
    _

// kernel: rise_forward.13
$region0: #{rise_forward.13}
  #allocation0 [shape = 'u32[]', space=smem, size = 0x4, offset = 0x4, fixed_abs, tag = 'smem constant byte address 0x4 - core index']
  #allocation1 [shape = 'u32[144,128]{1,0:T(1,128)}', space=vmem, size = 0x12000, scoped, tag = 'internal scratch']
  %s0 = inlined_call_operand.vmem [shape: f32[2,32,32], index: 0, kind: input, shape index: {}]
  %s1 = inlined_call_operand.vmem [shape: bf16[32,64], index: 1, kind: input, shape index: {}]
  %s2 = inlined_call_operand.vmem [shape: f32[1,64], index: 2, kind: input, shape index: {}]
  %s3 = inlined_call_operand.vmem [shape: bf16[64,32], index: 3, kind: input, shape index: {}]
  %s4 = inlined_call_operand.vmem [shape: f32[1,32], index: 4, kind: input, shape index: {}]
  %s5 = inlined_call_operand.vmem [shape: f32[1,32], index: 5, kind: input, shape index: {}]
  %s6 = inlined_call_operand.vmem [shape: f32[1,32], index: 6, kind: input, shape index: {}]
  %s7 = inlined_call_operand.vmem [shape: f32[2,32,32], index: 7, kind: output, shape index: {}]
  %s8 = sld [smem:[#allocation0]]
  $region61: #{rise_forward.13} parent=0
    _
  %s10 = ssub.s32 1, %s8
  %s11 = scalar_select 0, %s10, %s8
  loop: start=0, step=1, limit=4
  $region2: #{rise_forward.13} parent=0 // loop_pre_header
    _
  $region3: #{rise_forward.13} parent=0 // loop_header
    %s13 = sphi 0, %s17
    %p14 = scmp.ge.s32.totalorder %s13, 4
    %s23 = sphi 0, %s25
    %s26 = sphi 0, %s23
    %s27 = sphi 0, %s26
    %s43 = sphi 0, %s27
    %s47 = sphi 0, %s47
    %s49 = sphi 0, %s47
    %s50 = sphi 0, %s49
    %s64 = sphi 0, %s50
    %s68 = sphi 0, %s68
    %s70 = sphi 0, %s68
    %s71 = sphi 0, %s70
    %s85 = sphi 0, %s71
    %s89 = sphi 0, %s89
    %s91 = sphi 0, %s89
    %s92 = sphi 0, %s91
    %s106 = sphi 0, %s92
    %s110 = sphi 0, %s110
    %s112 = sphi 0, %s110
    %s113 = sphi 0, %s112
    %s127 = sphi 0, %s113
    %s131 = sphi 0, %s131
    %s133 = sphi 0, %s131
    %s134 = sphi 0, %s133
    %s148 = sphi 0, %s134
    %s152 = sphi 0, %s152
    %s154 = sphi 0, %s152
    %s155 = sphi 0, %s154
    %s169 = sphi 0, %s155
    %s175 = sphi 0, %s177
    %s178 = sphi 0, %s175
    %s179 = sphi 0, %s178
    %s195 = sphi 0, %s179
  $region4: #{rise_forward.13} parent=0 // loop_header_branch
    %16 = sbr.rel (%p14) target = $region8
  $region5: #{rise_forward.13} parent=0 // loop_body
    %s18 = ssub.s32 %s13, 1
    %s19 = ssub.s32 %s13, 2
    %s20 = sadd.s32 %s13, 1
    %s21 = ssub.s32 %s13, %s20
    %p22 = scmp.eq.s32.totalorder %s21, 0
    %s24 = sadd.s32 %s23, 1
    %s25 = scalar_select %p22, %s23, %s24
    %p28 = pneg %p22
    %p29 = scmp.eq.s32.totalorder %s13, 1
    %p30 = por %p28, %p29
    %p31 = scmp.ne.s32.totalorder %s23, %s26
    %p32 = scmp.eq.s32.totalorder %s13, 0
    %p33 = por %p31, %p32
    %p34 = scmp.ne.s32.totalorder %s23, %s26
    %p35 = scmp.eq.s32.totalorder %s18, 1
    %p36 = por %p34, %p35
    %p37 = scmp.ne.s32.totalorder %s26, %s27
    %p38 = scmp.eq.s32.totalorder %s18, 0
    %p39 = por %p37, %p38
    %p40 = scmp.ne.s32.totalorder %s26, %s27
    %p41 = scmp.eq.s32.totalorder %s19, 1
    %p42 = por %p40, %p41
    %p44 = scmp.ne.s32.totalorder %s27, %s43
    %p45 = scmp.eq.s32.totalorder %s19, 0
    %p46 = por %p44, %p45
    %s48 = sadd.s32 %s47, 1
    %p51 = scmp.eq.s32.totalorder %s13, 1
    %p52 = scmp.ne.s32.totalorder %s47, %s49
    %p53 = scmp.eq.s32.totalorder %s13, 0
    %p54 = por %p52, %p53
    %p55 = scmp.ne.s32.totalorder %s47, %s49
    %p56 = scmp.eq.s32.totalorder %s18, 1
    %p57 = por %p55, %p56
    %p58 = scmp.ne.s32.totalorder %s49, %s50
    %p59 = scmp.eq.s32.totalorder %s18, 0
    %p60 = por %p58, %p59
    %p61 = scmp.ne.s32.totalorder %s49, %s50
    %p62 = scmp.eq.s32.totalorder %s19, 1
    %p63 = por %p61, %p62
    %p65 = scmp.ne.s32.totalorder %s50, %s64
    %p66 = scmp.eq.s32.totalorder %s19, 0
    %p67 = por %p65, %p66
    %s69 = sadd.s32 %s68, 1
    %p72 = scmp.eq.s32.totalorder %s13, 1
    %p73 = scmp.ne.s32.totalorder %s68, %s70
    %p74 = scmp.eq.s32.totalorder %s13, 0
    %p75 = por %p73, %p74
    %p76 = scmp.ne.s32.totalorder %s68, %s70
    %p77 = scmp.eq.s32.totalorder %s18, 1
    %p78 = por %p76, %p77
    %p79 = scmp.ne.s32.totalorder %s70, %s71
    %p80 = scmp.eq.s32.totalorder %s18, 0
    %p81 = por %p79, %p80
    %p82 = scmp.ne.s32.totalorder %s70, %s71
    %p83 = scmp.eq.s32.totalorder %s19, 1
    %p84 = por %p82, %p83
    %p86 = scmp.ne.s32.totalorder %s71, %s85
    %p87 = scmp.eq.s32.totalorder %s19, 0
    %p88 = por %p86, %p87
    %s90 = sadd.s32 %s89, 1
    %p93 = scmp.eq.s32.totalorder %s13, 1
    %p94 = scmp.ne.s32.totalorder %s89, %s91
    %p95 = scmp.eq.s32.totalorder %s13, 0
    %p96 = por %p94, %p95
    %p97 = scmp.ne.s32.totalorder %s89, %s91
    %p98 = scmp.eq.s32.totalorder %s18, 1
    %p99 = por %p97, %p98
    %p100 = scmp.ne.s32.totalorder %s91, %s92
    %p101 = scmp.eq.s32.totalorder %s18, 0
    %p102 = por %p100, %p101
    %p103 = scmp.ne.s32.totalorder %s91, %s92
    %p104 = scmp.eq.s32.totalorder %s19, 1
    %p105 = por %p103, %p104
    %p107 = scmp.ne.s32.totalorder %s92, %s106
    %p108 = scmp.eq.s32.totalorder %s19, 0
    %p109 = por %p107, %p108
    %s111 = sadd.s32 %s110, 1
    %p114 = scmp.eq.s32.totalorder %s13, 1
    %p115 = scmp.ne.s32.totalorder %s110, %s112
    %p116 = scmp.eq.s32.totalorder %s13, 0
    %p117 = por %p115, %p116
    %p118 = scmp.ne.s32.totalorder %s110, %s112
    %p119 = scmp.eq.s32.totalorder %s18, 1
    %p120 = por %p118, %p119
    %p121 = scmp.ne.s32.totalorder %s112, %s113
    %p122 = scmp.eq.s32.totalorder %s18, 0
    %p123 = por %p121, %p122
    %p124 = scmp.ne.s32.totalorder %s112, %s113
    %p125 = scmp.eq.s32.totalorder %s19, 1
    %p126 = por %p124, %p125
    %p128 = scmp.ne.s32.totalorder %s113, %s127
    %p129 = scmp.eq.s32.totalorder %s19, 0
    %p130 = por %p128, %p129
    %s132 = sadd.s32 %s131, 1
    %p135 = scmp.eq.s32.totalorder %s13, 1
    %p136 = scmp.ne.s32.totalorder %s131, %s133
    %p137 = scmp.eq.s32.totalorder %s13, 0
    %p138 = por %p136, %p137
    %p139 = scmp.ne.s32.totalorder %s131, %s133
    %p140 = scmp.eq.s32.totalorder %s18, 1
    %p141 = por %p139, %p140
    %p142 = scmp.ne.s32.totalorder %s133, %s134
    %p143 = scmp.eq.s32.totalorder %s18, 0
    %p144 = por %p142, %p143
    %p145 = scmp.ne.s32.totalorder %s133, %s134
    %p146 = scmp.eq.s32.totalorder %s19, 1
    %p147 = por %p145, %p146
    %p149 = scmp.ne.s32.totalorder %s134, %s148
    %p150 = scmp.eq.s32.totalorder %s19, 0
    %p151 = por %p149, %p150
    %s153 = sadd.s32 %s152, 1
    %p156 = scmp.eq.s32.totalorder %s13, 1
    %p157 = scmp.ne.s32.totalorder %s152, %s154
    %p158 = scmp.eq.s32.totalorder %s13, 0
    %p159 = por %p157, %p158
    %p160 = scmp.ne.s32.totalorder %s152, %s154
    %p161 = scmp.eq.s32.totalorder %s18, 1
    %p162 = por %p160, %p161
    %p163 = scmp.ne.s32.totalorder %s154, %s155
    %p164 = scmp.eq.s32.totalorder %s18, 0
    %p165 = por %p163, %p164
    %p166 = scmp.ne.s32.totalorder %s154, %s155
    %p167 = scmp.eq.s32.totalorder %s19, 1
    %p168 = por %p166, %p167
    %p170 = scmp.ne.s32.totalorder %s155, %s169
    %p171 = scmp.eq.s32.totalorder %s19, 0
    %p172 = por %p170, %p171
    %s173 = ssub.s32 %s13, %s20
    %p174 = scmp.eq.s32.totalorder %s173, 0
    %s176 = sadd.s32 %s175, 1
    %s177 = scalar_select %p174, %s175, %s176
    %p180 = pneg %p174
    %p181 = scmp.eq.s32.totalorder %s13, 1
    %p182 = por %p180, %p181
    %p183 = scmp.ne.s32.totalorder %s175, %s178
    %p184 = scmp.eq.s32.totalorder %s13, 0
    %p185 = por %p183, %p184
    %p186 = scmp.ne.s32.totalorder %s175, %s178
    %p187 = scmp.eq.s32.totalorder %s18, 1
    %p188 = por %p186, %p187
    %p189 = scmp.ne.s32.totalorder %s178, %s179
    %p190 = scmp.eq.s32.totalorder %s18, 0
    %p191 = por %p189, %p190
    %p192 = scmp.ne.s32.totalorder %s178, %s179
    %p193 = scmp.eq.s32.totalorder %s19, 1
    %p194 = por %p192, %p193
    %p196 = scmp.ne.s32.totalorder %s179, %s195
    %p197 = scmp.eq.s32.totalorder %s19, 0
    %p198 = por %p196, %p197
    %p199 = scmp.le.s32.totalorder 1, %s13
    %p200 = scmp.lt.s32.totalorder %s13, 3
    %p201 = pnand %p199, %p200
    %p202 = pneg %p201
    // Predicated region
    $region9: #{rise_forward.13} parent=5 // pred_check
      _
    $region10: #{rise_forward.13} parent=5 // pred_check_branch
      %204 = sbr.rel (%p201) target = $region12
    $region11: #{rise_forward.13} parent=5 // pred_region
      %s205 = ssub.s32 %s13, 1
      // Predicated region
      $region13: #{rise_forward.13} parent=11 // pred_check
        %p206 = pneg %p60
      $region14: #{rise_forward.13} parent=11 // pred_check_branch
        %208 = sbr.rel (%p206) target = $region16
      $region15: #{rise_forward.13} parent=11 // pred_region
        _
      $region16: #{rise_forward.13} parent=11 // pred_fallthru
        _
      // Predicated region
      $region17: #{rise_forward.13} parent=11 // pred_check
        %p209 = pneg %p81
      $region18: #{rise_forward.13} parent=11 // pred_check_branch
        %211 = sbr.rel (%p209) target = $region20
      $region19: #{rise_forward.13} parent=11 // pred_region
        _
      $region20: #{rise_forward.13} parent=11 // pred_fallthru
        _
      // Predicated region
      $region21: #{rise_forward.13} parent=11 // pred_check
        %p212 = pneg %p102
      $region22: #{rise_forward.13} parent=11 // pred_check_branch
        %214 = sbr.rel (%p212) target = $region24
      $region23: #{rise_forward.13} parent=11 // pred_region
        _
      $region24: #{rise_forward.13} parent=11 // pred_fallthru
        _
      // Predicated region
      $region25: #{rise_forward.13} parent=11 // pred_check
        %p215 = pneg %p123
      $region26: #{rise_forward.13} parent=11 // pred_check_branch
        %217 = sbr.rel (%p215) target = $region28
      $region27: #{rise_forward.13} parent=11 // pred_region
        _
      $region28: #{rise_forward.13} parent=11 // pred_fallthru
        _
      // Predicated region
      $region29: #{rise_forward.13} parent=11 // pred_check
        %p218 = pneg %p144
      $region30: #{rise_forward.13} parent=11 // pred_check_branch
        %220 = sbr.rel (%p218) target = $region32
      $region31: #{rise_forward.13} parent=11 // pred_region
        _
      $region32: #{rise_forward.13} parent=11 // pred_fallthru
        _
      // Predicated region
      $region33: #{rise_forward.13} parent=11 // pred_check
        %p221 = pneg %p165
      $region34: #{rise_forward.13} parent=11 // pred_check_branch
        %223 = sbr.rel (%p221) target = $region36
      $region35: #{rise_forward.13} parent=11 // pred_region
        _
      $region36: #{rise_forward.13} parent=11 // pred_fallthru
        _
    $region12: #{rise_forward.13} parent=5 // pred_fallthru
      _
    %p224 = scmp.lt.s32.totalorder %s13, 2
    // Predicated region
    $region37: #{rise_forward.13} parent=5 // pred_check
      %p225 = pneg %p224
    $region38: #{rise_forward.13} parent=5 // pred_check_branch
      %227 = sbr.rel (%p225) target = $region40
    $region39: #{rise_forward.13} parent=5 // pred_region
      // Predicated region
      $region41: #{rise_forward.13} parent=39 // pred_check
        %p228 = pneg %p33
      $region42: #{rise_forward.13} parent=39 // pred_check_branch
        %230 = sbr.rel (%p228) target = $region44
      $region43: #{rise_forward.13} parent=39 // pred_region
        %p231 = scmp.lt.s32.totalorder %s13, 1
        %s232 = scalar_select %p231, %s13, 1
        %s233 = smul.addr %s232, 4
        %s234 = smul.addr %s233, 8
        %s235 = scalar_lea.vmem %s0, %s234
      $region44: #{rise_forward.13} parent=39 // pred_fallthru
        _
    $region40: #{rise_forward.13} parent=5 // pred_fallthru
      _
    %p236 = scmp.le.s32.totalorder 1, %s13
    %p237 = scmp.lt.s32.totalorder %s13, 3
    %p238 = pnand %p236, %p237
    %p239 = pneg %p238
    // Predicated region
    $region45: #{rise_forward.13} parent=5 // pred_check
      _
    $region46: #{rise_forward.13} parent=5 // pred_check_branch
      %241 = sbr.rel (%p238) target = $region48
    $region47: #{rise_forward.13} parent=5 // pred_region
      %s242 = ssub.s32 %s13, 1
      %p243 = scmp.lt.s32.totalorder %s18, 1
      %s244 = scalar_select %p243, %s18, 1
      %s245 = smul.addr %s244, 4
      %s246 = smul.addr %s245, 8
      %s247 = scalar_lea.vmem %s0, %s246
      %p248 = pneg %p39
      %p249 = pneg %p36
      %p250 = pneg %p60
      %p251 = pneg %p57
      %p252 = pneg %p81
      %p253 = pneg %p78
      %p254 = pneg %p102
      %p255 = pneg %p99
      %p256 = pneg %p123
      %p257 = pneg %p120
      %p258 = pneg %p144
      %p259 = pneg %p141
      %p260 = pneg %p165
      %p261 = pneg %p162
      %p262 = pneg %p191
      %p263 = pneg %p188
      %p264 = scmp.lt.s32.totalorder %s18, 1
      %s265 = scalar_select %p264, %s18, 1
      %s266 = smul.addr %s265, 4
      %s267 = smul.addr %s266, 8
      %s268 = scalar_lea.vmem %s7, %s267
      %p269 = scmp.lt.s32.totalorder %s18, 1
      %s270 = scalar_select %p269, %s18, 1
      %s271 = smul.addr %s270, 4
      %s272 = smul.addr %s271, 8
      %s273 = scalar_lea.vmem %s0, %s272
      %p274 = scmp.lt.s32.totalorder %s18, 1
      %s275 = scalar_select %p274, %s18, 1
      %s276 = smul.addr %s275, 4
      %s277 = smul.addr %s276, 8
      %s278 = scalar_lea.vmem %s7, %s277
      %v280 = vld [vmem:[%s273] sm:$0xff]
      %v281 = vld [vmem:[%s273 + $0x8] sm:$0xff]
      %v282 = vld [vmem:[%s273 + $0x10] sm:$0xff]
      %v283 = vld [vmem:[%s273 + $0x18] sm:$0xff]
      %v284 = vpack.c.bf16 %v281, %v280
      %v285 = vpack.c.bf16 %v283, %v282
      %v286 = vld [vmem:[%s1] sm:$0xf]
      %v287 = vld [vmem:[%s1 + $0x4] sm:$0xf]
      %v288 = vld [vmem:[%s1 + $0x8] sm:$0xf]
      %v289 = vld [vmem:[%s1 + $0xc] sm:$0xf]
      %v290 = vld [vmem:[%s2] sm:$0x1]
      %v292 = vlaneseq
      %v293 = vshrl.u32 %v292, 7
      %v294 = vsub.s32 0, %v293
      %v295 = vrot.slane %v290, %v294
      %v301 = vunpack.c.l.b16 %v286
      %v302 = vunpack.c.l.b16 %v287
      %v303 = vunpack.c.l.b16 %v288
      %v304 = vunpack.c.l.b16 %v289
      %v305 = vpack.c.b16 %v302, %v301
      %v306 = vpack.c.b16 %v304, %v303
      %vm309 = vcmask 261120
      %v311 = vsel %vm309, %v284, 0
      %v314 = vsel %vm309, %v285, 0
      %316 = vmatprep.subr.bf16.mxu0 0
      %317 = vmatpush1.bf16.msra.mxu0 %v305
      %318 = vmatprep.subr.bf16.mxu0 0
      %319 = vmatpush1.bf16.msra.mxu0 %v306
      %320 = vmatprep.subr.bf16.mxu0 0
      %321 = vmatpush1.bf16.msra.mxu0 0
      %322 = vmatprep.subr.bf16.mxu0 0
      %323 = vmatpush1.bf16.msra.mxu0 0
      %324 = vmatprep.subr.bf16.mxu0 0
      %325 = vmatpush1.bf16.msra.mxu0 0
      %326 = vmatprep.subr.bf16.mxu0 0
      %327 = vmatpush1.bf16.msra.mxu0 0
      %328 = vmatprep.subr.bf16.mxu0 0
      %329 = vmatpush1.bf16.msra.mxu0 0
      %330 = vmatprep.subr.bf16.mxu0 0
      %331 = vmatpush1.bf16.msra.mxu0 0
      %332 = vmatprep.subr.bf16.mxu0 0
      %333 = vmatpush1.bf16.msra.mxu0 0
      %334 = vmatprep.subr.bf16.mxu0 0
      %335 = vmatpush1.bf16.msra.mxu0 0
      %336 = vmatprep.subr.bf16.mxu0 0
      %337 = vmatpush1.bf16.msra.mxu0 0
      %338 = vmatprep.subr.bf16.mxu0 0
      %339 = vmatpush1.bf16.msra.mxu0 0
      %340 = vmatprep.subr.bf16.mxu0 0
      %341 = vmatpush1.bf16.msra.mxu0 0
      %342 = vmatprep.subr.bf16.mxu0 0
      %343 = vmatpush1.bf16.msra.mxu0 0
      %344 = vmatprep.subr.bf16.mxu0 0
      %345 = vmatpush1.bf16.msra.mxu0 0
      %346 = vmatprep.subr.bf16.mxu0 0
      %347 = vmatpush1.bf16.msra.mxu0 0
      %348 = vmatprep.mubr.bf16.mxu0 0
      %349 = vmatmul.mubr.bf16.gmra.mrb[0].mxu0 %v311
      %v350 = vpop.f32.mrb[0].mxu0
      %v351 = vadd.f32 %v295, %v350
      %v352 = vpop.f32.mrb[0].mxu0
      %v353 = vpop.f32.mrb[0].mxu0
      %v354 = vadd.f32 %v295, %v353
      %v355 = vpop.f32.mrb[0].mxu0
      %356 = vmatprep.mubr.bf16.mxu0 0
      %357 = vmatmul.mubr.bf16.gmra.mrb[0].mxu0 %v314
      %v358 = vpop.f32.mrb[0].mxu0
      %v359 = vadd.f32 %v295, %v358
      %v360 = vpop.f32.mrb[0].mxu0
      %v361 = vpop.f32.mrb[0].mxu0
      %v362 = vadd.f32 %v295, %v361
      %v363 = vpop.f32.mrb[0].mxu0
      %364 = vdwg.mxu0
      %v365 = vmax.f32 %v351, 0.0
      %v366 = vmax.f32 %v354, 0.0
      %v367 = vmax.f32 %v359, 0.0
      %v368 = vmax.f32 %v362, 0.0
      %v369 = vpack.c.bf16 %v366, %v365
      %v370 = vpack.c.bf16 %v368, %v367
      %v371 = vld [vmem:[%s3] sm:$0xf]
      %v372 = vld [vmem:[%s3 + $0x4] sm:$0xf]
      %v373 = vld [vmem:[%s3 + $0x8] sm:$0xf]
      %v374 = vld [vmem:[%s3 + $0xc] sm:$0xf]
      %v375 = vld [vmem:[%s3 + $0x10] sm:$0xf]
      %v376 = vld [vmem:[%s3 + $0x14] sm:$0xf]
      %v377 = vld [vmem:[%s3 + $0x18] sm:$0xf]
      %v378 = vld [vmem:[%s3 + $0x1c] sm:$0xf]
      %v387 = vunpack.c.l.b16 %v371
      %v388 = vunpack.c.l.b16 %v372
      %v389 = vunpack.c.l.b16 %v373
      %v390 = vunpack.c.l.b16 %v374
      %v391 = vunpack.c.l.b16 %v375
      %v392 = vunpack.c.l.b16 %v376
      %v393 = vunpack.c.l.b16 %v377
      %v394 = vunpack.c.l.b16 %v378
      %v395 = vpack.c.b16 %v388, %v387
      %v396 = vpack.c.b16 %v390, %v389
      %v397 = vpack.c.b16 %v392, %v391
      %v398 = vpack.c.b16 %v394, %v393
      %vm403 = vcmask 523264
      %v405 = vsel %vm403, %v369, 0
      %v408 = vsel %vm403, %v370, 0
      %410 = vmatprep.subr.bf16.mxu0 0
      %411 = vmatpush1.bf16.msra.mxu0 %v395
      %412 = vmatprep.subr.bf16.mxu0 0
      %413 = vmatpush1.bf16.msra.mxu0 %v396
      %414 = vmatprep.subr.bf16.mxu0 0
      %415 = vmatpush1.bf16.msra.mxu0 %v397
      %416 = vmatprep.subr.bf16.mxu0 0
      %417 = vmatpush1.bf16.msra.mxu0 %v398
      %418 = vmatprep.subr.bf16.mxu0 0
      %419 = vmatpush1.bf16.msra.mxu0 0
      %420 = vmatprep.subr.bf16.mxu0 0
      %421 = vmatpush1.bf16.msra.mxu0 0
      %422 = vmatprep.subr.bf16.mxu0 0
      %423 = vmatpush1.bf16.msra.mxu0 0
      %424 = vmatprep.subr.bf16.mxu0 0
      %425 = vmatpush1.bf16.msra.mxu0 0
      %426 = vmatprep.subr.bf16.mxu0 0
      %427 = vmatpush1.bf16.msra.mxu0 0
      %428 = vmatprep.subr.bf16.mxu0 0
      %429 = vmatpush1.bf16.msra.mxu0 0
      %430 = vmatprep.subr.bf16.mxu0 0
      %431 = vmatpush1.bf16.msra.mxu0 0
      %432 = vmatprep.subr.bf16.mxu0 0
      %433 = vmatpush1.bf16.msra.mxu0 0
      %434 = vmatprep.subr.bf16.mxu0 0
      %435 = vmatpush1.bf16.msra.mxu0 0
      %436 = vmatprep.subr.bf16.mxu0 0
      %437 = vmatpush1.bf16.msra.mxu0 0
      %438 = vmatprep.subr.bf16.mxu0 0
      %439 = vmatpush1.bf16.msra.mxu0 0
      %440 = vmatprep.subr.bf16.mxu0 0
      %441 = vmatpush1.bf16.msra.mxu0 0
      %442 = vmatprep.mubr.bf16.mxu0 0
      %443 = vmatmul.mubr.bf16.gmra.mrb[0].mxu0 %v405
      %v444 = vpop.f32.mrb[0].mxu0
      %v445 = vadd.f32 0.0, %v444
      %v446 = vpop.f32.mrb[0].mxu0
      %v447 = vpop.f32.mrb[0].mxu0
      %v448 = vadd.f32 0.0, %v447
      %v449 = vpop.f32.mrb[0].mxu0
      %450 = vmatprep.mubr.bf16.mxu0 0
      %451 = vmatmul.mubr.bf16.gmra.mrb[0].mxu0 %v408
      %v452 = vpop.f32.mrb[0].mxu0
      %v453 = vadd.f32 0.0, %v452
      %v454 = vpop.f32.mrb[0].mxu0
      %v455 = vpop.f32.mrb[0].mxu0
      %v456 = vadd.f32 0.0, %v455
      %v457 = vpop.f32.mrb[0].mxu0
      %458 = vdwg.mxu0
      %v459 = vadd.f32 %v280, %v445
      %v460 = vadd.f32 %v281, %v448
      %v461 = vadd.f32 %v282, %v453
      %v462 = vadd.f32 %v283, %v456
      %v463 = vld [vmem:[%s4] sm:$0x1]
      %v465 = vlaneseq
      %v466 = vshrl.u32 %v465, 7
      %v467 = vsub.s32 0, %v466
      %v468 = vrot.slane %v463, %v467
      %v470 = vadd.f32 %v459, %v468
      %v471 = vadd.f32 %v460, %v468
      %v472 = vadd.f32 %v461, %v468
      %v473 = vadd.f32 %v462, %v468
      %v474 = vld [vmem:[%s5] sm:$0x1]
      %v475 = vld [vmem:[%s6] sm:$0x1]
      %v476 = vsel %vm309, %v470, 0.0
      %477 = vadd.xlane.f32.xlu0 %v476
      %v478 = vpop.xlane.xlu0 %477
      %v479 = vsel %vm309, %v471, 0.0
      %480 = vadd.xlane.f32.xlu0 %v479
      %v481 = vpop.xlane.xlu0 %480
      %v482 = vsel %vm309, %v472, 0.0
      %483 = vadd.xlane.f32.xlu0 %v482
      %v484 = vpop.xlane.xlu0 %483
      %v485 = vsel %vm309, %v473, 0.0
      %486 = vadd.xlane.f32.xlu0 %v485
      %v487 = vpop.xlane.xlu0 %486
      %v488 = vrcp.pop 32.0
      %v489 = vmul.f32 %v478, %v488
      %v490 = vmul.f32 %v481, %v488
      %v491 = vmul.f32 %v484, %v488
      %v492 = vmul.f32 %v487, %v488
      %v493 = vsub.f32 %v470, %v489
      %v494 = vsub.f32 %v471, %v490
      %v495 = vsub.f32 %v472, %v491
      %v496 = vsub.f32 %v473, %v492
      %v497 = vmul.f32 %v493, %v493
      %v498 = vmul.f32 %v494, %v494
      %v499 = vmul.f32 %v495, %v495
      %v500 = vmul.f32 %v496, %v496
      %v501 = vsel %vm309, %v497, 0.0
      %502 = vadd.xlane.f32.xlu0 %v501
      %v503 = vpop.xlane.xlu0 %502
      %v504 = vsel %vm309, %v498, 0.0
      %505 = vadd.xlane.f32.xlu0 %v504
      %v506 = vpop.xlane.xlu0 %505
      %v507 = vsel %vm309, %v499, 0.0
      %508 = vadd.xlane.f32.xlu0 %v507
      %v509 = vpop.xlane.xlu0 %508
      %v510 = vsel %vm309, %v500, 0.0
      %511 = vadd.xlane.f32.xlu0 %v510
      %v512 = vpop.xlane.xlu0 %511
      %v513 = vmul.f32 %v503, %v488
      %v514 = vmul.f32 %v506, %v488
      %v515 = vmul.f32 %v509, %v488
      %v516 = vmul.f32 %v512, %v488
      %v517 = vadd.f32 %v513, 1e-05
      %v518 = vadd.f32 %v514, 1e-05
      %v519 = vadd.f32 %v515, 1e-05
      %v520 = vadd.f32 %v516, 1e-05
      %v521 = vrsqrt.pop %v517
      %v522 = vrsqrt.pop %v518
      %v523 = vrsqrt.pop %v519
      %v524 = vrsqrt.pop %v520
      %v525 = vmul.f32 %v493, %v521
      %v526 = vmul.f32 %v494, %v522
      %v527 = vmul.f32 %v495, %v523
      %v528 = vmul.f32 %v496, %v524
      %v530 = vlaneseq
      %v531 = vshrl.u32 %v530, 7
      %v532 = vsub.s32 0, %v531
      %v533 = vrot.slane %v474, %v532
      %v535 = vmul.f32 %v525, %v533
      %v536 = vmul.f32 %v526, %v533
      %v537 = vmul.f32 %v527, %v533
      %v538 = vmul.f32 %v528, %v533
      %v540 = vlaneseq
      %v541 = vshrl.u32 %v540, 7
      %v542 = vsub.s32 0, %v541
      %v543 = vrot.slane %v475, %v542
      %v545 = vadd.f32 %v535, %v543
      %v546 = vadd.f32 %v536, %v543
      %v547 = vadd.f32 %v537, %v543
      %v548 = vadd.f32 %v538, %v543
      %549 = vst.msk [vmem:[%s278] sm:$0xff] %vm309, %v545
      %550 = vst.msk [vmem:[%s278 + $0x8] sm:$0xff] %vm309, %v546
      %551 = vst.msk [vmem:[%s278 + $0x10] sm:$0xff] %vm309, %v547
      %552 = vst.msk [vmem:[%s278 + $0x18] sm:$0xff] %vm309, %v548
      %p553 = scmp.lt.s32.totalorder %s18, 1
      %s554 = scalar_select %p553, %s18, 1
      %s555 = smul.addr %s554, 4
      %s556 = smul.addr %s555, 8
      %s557 = scalar_lea.vmem %s7, %s556
      // Predicated region
      $region49: #{rise_forward.13} parent=47 // pred_check
        %p558 = pneg %p188
      $region50: #{rise_forward.13} parent=47 // pred_check_branch
        %560 = sbr.rel (%p558) target = $region52
      $region51: #{rise_forward.13} parent=47 // pred_region
        _
      $region52: #{rise_forward.13} parent=47 // pred_fallthru
        _
    $region48: #{rise_forward.13} parent=5 // pred_fallthru
      _
    %p561 = scmp.le.s32.totalorder 2, %s13
    // Predicated region
    $region53: #{rise_forward.13} parent=5 // pred_check
      %p562 = pneg %p561
    $region54: #{rise_forward.13} parent=5 // pred_check_branch
      %564 = sbr.rel (%p562) target = $region56
    $region55: #{rise_forward.13} parent=5 // pred_region
      %s565 = ssub.s32 %s13, 2
      // Predicated region
      $region57: #{rise_forward.13} parent=55 // pred_check
        %p566 = pneg %p194
      $region58: #{rise_forward.13} parent=55 // pred_check_branch
        %568 = sbr.rel (%p566) target = $region60
      $region59: #{rise_forward.13} parent=55 // pred_region
        %p569 = scmp.lt.s32.totalorder %s19, 1
        %s570 = scalar_select %p569, %s19, 1
        %s571 = smul.addr %s570, 4
        %s572 = smul.addr %s571, 8
        %s573 = scalar_lea.vmem %s7, %s572
      $region60: #{rise_forward.13} parent=55 // pred_fallthru
        _
    $region56: #{rise_forward.13} parent=5 // pred_fallthru
      _
  $region6: #{rise_forward.13} parent=0 // loop_footer
    %s17 = sadd.s32 1, %s13
  $region7: #{rise_forward.13} parent=0 // loop_footer_branch
    %12 = sbr.rel target = $region3
  $region8: #{rise_forward.13} parent=0 // loop_exit
    _

// kernel: rise_forward.12
$region0: #{rise_forward.12}
  #allocation0 [shape = 'u32[]', space=smem, size = 0x4, offset = 0x4, fixed_abs, tag = 'smem constant byte address 0x4 - core index']
  #allocation1 [shape = 'u32[144,128]{1,0:T(1,128)}', space=vmem, size = 0x12000, scoped, tag = 'internal scratch']
  %s0 = inlined_call_operand.vmem [shape: f32[2,32,32], index: 0, kind: input, shape index: {}, may-alias: {0,2}]
  %s1 = inlined_call_operand.vmem [shape: f32[2,32,32], index: 1, kind: input, shape index: {}, may-alias: {1,3}]
  %s2 = inlined_call_operand.vmem [shape: f32[2,32,32], index: 2, kind: input, shape index: {}, may-alias: {0,2}]
  %s3 = inlined_call_operand.vmem [shape: f32[2,32,32], index: 3, kind: input, shape index: {}, may-alias: {1,3}]
  %s4 = inlined_call_operand.vmem [shape: f32[2,1,32], index: 4, kind: input, shape index: {}]
  %s5 = inlined_call_operand.vmem [shape: bf16[32,32], index: 5, kind: input, shape index: {}]
  %s6 = inlined_call_operand.vmem [shape: bf16[32,32], index: 6, kind: input, shape index: {}]
  %s7 = inlined_call_operand.vmem [shape: bf16[32,32], index: 7, kind: input, shape index: {}]
  %s8 = inlined_call_operand.vmem [shape: f32[1,32], index: 8, kind: input, shape index: {}]
  %s9 = inlined_call_operand.vmem [shape: f32[1,32], index: 9, kind: input, shape index: {}]
  %s10 = inlined_call_operand.vmem [shape: f32[1,32], index: 10, kind: input, shape index: {}]
  %s11 = inlined_call_operand.vmem [shape: bf16[32,32], index: 11, kind: input, shape index: {}]
  %s12 = inlined_call_operand.vmem [shape: f32[1,32], index: 12, kind: input, shape index: {}]
  %s13 = inlined_call_operand.vmem [shape: f32[1,32], index: 13, kind: input, shape index: {}]
  %s14 = inlined_call_operand.vmem [shape: f32[1,32], index: 14, kind: input, shape index: {}]
  %s15 = inlined_call_operand.vmem [shape: f32[2,32,32], index: 15, kind: output, shape index: {}]
  %s16 = sld [smem:[#allocation0]]
  $region93: #{rise_forward.12} parent=0
    _
  %s18 = ssub.s32 1, %s16
  %s19 = scalar_select 0, %s18, %s16
  loop: start=0, step=1, limit=4
  $region2: #{rise_forward.12} parent=0 // loop_pre_header
    _
  $region3: #{rise_forward.12} parent=0 // loop_header
    %s21 = sphi 0, %s25
    %p22 = scmp.ge.s32.totalorder %s21, 4
    %s31 = sphi 0, %s33
    %s34 = sphi 0, %s31
    %s35 = sphi 0, %s34
    %s51 = sphi 0, %s35
    %s57 = sphi 0, %s59
    %s60 = sphi 0, %s57
    %s61 = sphi 0, %s60
    %s77 = sphi 0, %s61
    %s83 = sphi 0, %s85
    %s86 = sphi 0, %s83
    %s87 = sphi 0, %s86
    %s103 = sphi 0, %s87
    %s109 = sphi 0, %s111
    %s112 = sphi 0, %s109
    %s113 = sphi 0, %s112
    %s129 = sphi 0, %s113
    %s135 = sphi 0, %s137
    %s138 = sphi 0, %s135
    %s139 = sphi 0, %s138
    %s155 = sphi 0, %s139
    %s159 = sphi 0, %s159
    %s161 = sphi 0, %s159
    %s162 = sphi 0, %s161
    %s176 = sphi 0, %s162
    %s180 = sphi 0, %s180
    %s182 = sphi 0, %s180
    %s183 = sphi 0, %s182
    %s197 = sphi 0, %s183
    %s201 = sphi 0, %s201
    %s203 = sphi 0, %s201
    %s204 = sphi 0, %s203
    %s218 = sphi 0, %s204
    %s222 = sphi 0, %s222
    %s224 = sphi 0, %s222
    %s225 = sphi 0, %s224
    %s239 = sphi 0, %s225
    %s243 = sphi 0, %s243
    %s245 = sphi 0, %s243
    %s246 = sphi 0, %s245
    %s260 = sphi 0, %s246
    %s264 = sphi 0, %s264
    %s266 = sphi 0, %s264
    %s267 = sphi 0, %s266
    %s281 = sphi 0, %s267
    %s285 = sphi 0, %s285
    %s287 = sphi 0, %s285
    %s288 = sphi 0, %s287
    %s302 = sphi 0, %s288
    %s306 = sphi 0, %s306
    %s308 = sphi 0, %s306
    %s309 = sphi 0, %s308
    %s323 = sphi 0, %s309
    %s327 = sphi 0, %s327
    %s329 = sphi 0, %s327
    %s330 = sphi 0, %s329
    %s344 = sphi 0, %s330
    %s348 = sphi 0, %s348
    %s350 = sphi 0, %s348
    %s351 = sphi 0, %s350
    %s365 = sphi 0, %s351
    %s371 = sphi 0, %s373
    %s374 = sphi 0, %s371
    %s375 = sphi 0, %s374
    %s391 = sphi 0, %s375
  $region4: #{rise_forward.12} parent=0 // loop_header_branch
    %24 = sbr.rel (%p22) target = $region8
  $region5: #{rise_forward.12} parent=0 // loop_body
    %s26 = ssub.s32 %s21, 1
    %s27 = ssub.s32 %s21, 2
    %s28 = sadd.s32 %s21, 1
    %s29 = ssub.s32 %s21, %s28
    %p30 = scmp.eq.s32.totalorder %s29, 0
    %s32 = sadd.s32 %s31, 1
    %s33 = scalar_select %p30, %s31, %s32
    %p36 = pneg %p30
    %p37 = scmp.eq.s32.totalorder %s21, 1
    %p38 = por %p36, %p37
    %p39 = scmp.ne.s32.totalorder %s31, %s34
    %p40 = scmp.eq.s32.totalorder %s21, 0
    %p41 = por %p39, %p40
    %p42 = scmp.ne.s32.totalorder %s31, %s34
    %p43 = scmp.eq.s32.totalorder %s26, 1
    %p44 = por %p42, %p43
    %p45 = scmp.ne.s32.totalorder %s34, %s35
    %p46 = scmp.eq.s32.totalorder %s26, 0
    %p47 = por %p45, %p46
    %p48 = scmp.ne.s32.totalorder %s34, %s35
    %p49 = scmp.eq.s32.totalorder %s27, 1
    %p50 = por %p48, %p49
    %p52 = scmp.ne.s32.totalorder %s35, %s51
    %p53 = scmp.eq.s32.totalorder %s27, 0
    %p54 = por %p52, %p53
    %s55 = ssub.s32 %s21, %s28
    %p56 = scmp.eq.s32.totalorder %s55, 0
    %s58 = sadd.s32 %s57, 1
    %s59 = scalar_select %p56, %s57, %s58
    %p62 = pneg %p56
    %p63 = scmp.eq.s32.totalorder %s21, 1
    %p64 = por %p62, %p63
    %p65 = scmp.ne.s32.totalorder %s57, %s60
    %p66 = scmp.eq.s32.totalorder %s21, 0
    %p67 = por %p65, %p66
    %p68 = scmp.ne.s32.totalorder %s57, %s60
    %p69 = scmp.eq.s32.totalorder %s26, 1
    %p70 = por %p68, %p69
    %p71 = scmp.ne.s32.totalorder %s60, %s61
    %p72 = scmp.eq.s32.totalorder %s26, 0
    %p73 = por %p71, %p72
    %p74 = scmp.ne.s32.totalorder %s60, %s61
    %p75 = scmp.eq.s32.totalorder %s27, 1
    %p76 = por %p74, %p75
    %p78 = scmp.ne.s32.totalorder %s61, %s77
    %p79 = scmp.eq.s32.totalorder %s27, 0
    %p80 = por %p78, %p79
    %s81 = ssub.s32 %s21, %s28
    %p82 = scmp.eq.s32.totalorder %s81, 0
    %s84 = sadd.s32 %s83, 1
    %s85 = scalar_select %p82, %s83, %s84
    %p88 = pneg %p82
    %p89 = scmp.eq.s32.totalorder %s21, 1
    %p90 = por %p88, %p89
    %p91 = scmp.ne.s32.totalorder %s83, %s86
    %p92 = scmp.eq.s32.totalorder %s21, 0
    %p93 = por %p91, %p92
    %p94 = scmp.ne.s32.totalorder %s83, %s86
    %p95 = scmp.eq.s32.totalorder %s26, 1
    %p96 = por %p94, %p95
    %p97 = scmp.ne.s32.totalorder %s86, %s87
    %p98 = scmp.eq.s32.totalorder %s26, 0
    %p99 = por %p97, %p98
    %p100 = scmp.ne.s32.totalorder %s86, %s87
    %p101 = scmp.eq.s32.totalorder %s27, 1
    %p102 = por %p100, %p101
    %p104 = scmp.ne.s32.totalorder %s87, %s103
    %p105 = scmp.eq.s32.totalorder %s27, 0
    %p106 = por %p104, %p105
    %s107 = ssub.s32 %s21, %s28
    %p108 = scmp.eq.s32.totalorder %s107, 0
    %s110 = sadd.s32 %s109, 1
    %s111 = scalar_select %p108, %s109, %s110
    %p114 = pneg %p108
    %p115 = scmp.eq.s32.totalorder %s21, 1
    %p116 = por %p114, %p115
    %p117 = scmp.ne.s32.totalorder %s109, %s112
    %p118 = scmp.eq.s32.totalorder %s21, 0
    %p119 = por %p117, %p118
    %p120 = scmp.ne.s32.totalorder %s109, %s112
    %p121 = scmp.eq.s32.totalorder %s26, 1
    %p122 = por %p120, %p121
    %p123 = scmp.ne.s32.totalorder %s112, %s113
    %p124 = scmp.eq.s32.totalorder %s26, 0
    %p125 = por %p123, %p124
    %p126 = scmp.ne.s32.totalorder %s112, %s113
    %p127 = scmp.eq.s32.totalorder %s27, 1
    %p128 = por %p126, %p127
    %p130 = scmp.ne.s32.totalorder %s113, %s129
    %p131 = scmp.eq.s32.totalorder %s27, 0
    %p132 = por %p130, %p131
    %s133 = ssub.s32 %s21, %s28
    %p134 = scmp.eq.s32.totalorder %s133, 0
    %s136 = sadd.s32 %s135, 1
    %s137 = scalar_select %p134, %s135, %s136
    %p140 = pneg %p134
    %p141 = scmp.eq.s32.totalorder %s21, 1
    %p142 = por %p140, %p141
    %p143 = scmp.ne.s32.totalorder %s135, %s138
    %p144 = scmp.eq.s32.totalorder %s21, 0
    %p145 = por %p143, %p144
    %p146 = scmp.ne.s32.totalorder %s135, %s138
    %p147 = scmp.eq.s32.totalorder %s26, 1
    %p148 = por %p146, %p147
    %p149 = scmp.ne.s32.totalorder %s138, %s139
    %p150 = scmp.eq.s32.totalorder %s26, 0
    %p151 = por %p149, %p150
    %p152 = scmp.ne.s32.totalorder %s138, %s139
    %p153 = scmp.eq.s32.totalorder %s27, 1
    %p154 = por %p152, %p153
    %p156 = scmp.ne.s32.totalorder %s139, %s155
    %p157 = scmp.eq.s32.totalorder %s27, 0
    %p158 = por %p156, %p157
    %s160 = sadd.s32 %s159, 1
    %p163 = scmp.eq.s32.totalorder %s21, 1
    %p164 = scmp.ne.s32.totalorder %s159, %s161
    %p165 = scmp.eq.s32.totalorder %s21, 0
    %p166 = por %p164, %p165
    %p167 = scmp.ne.s32.totalorder %s159, %s161
    %p168 = scmp.eq.s32.totalorder %s26, 1
    %p169 = por %p167, %p168
    %p170 = scmp.ne.s32.totalorder %s161, %s162
    %p171 = scmp.eq.s32.totalorder %s26, 0
    %p172 = por %p170, %p171
    %p173 = scmp.ne.s32.totalorder %s161, %s162
    %p174 = scmp.eq.s32.totalorder %s27, 1
    %p175 = por %p173, %p174
    %p177 = scmp.ne.s32.totalorder %s162, %s176
    %p178 = scmp.eq.s32.totalorder %s27, 0
    %p179 = por %p177, %p178
    %s181 = sadd.s32 %s180, 1
    %p184 = scmp.eq.s32.totalorder %s21, 1
    %p185 = scmp.ne.s32.totalorder %s180, %s182
    %p186 = scmp.eq.s32.totalorder %s21, 0
    %p187 = por %p185, %p186
    %p188 = scmp.ne.s32.totalorder %s180, %s182
    %p189 = scmp.eq.s32.totalorder %s26, 1
    %p190 = por %p188, %p189
    %p191 = scmp.ne.s32.totalorder %s182, %s183
    %p192 = scmp.eq.s32.totalorder %s26, 0
    %p193 = por %p191, %p192
    %p194 = scmp.ne.s32.totalorder %s182, %s183
    %p195 = scmp.eq.s32.totalorder %s27, 1
    %p196 = por %p194, %p195
    %p198 = scmp.ne.s32.totalorder %s183, %s197
    %p199 = scmp.eq.s32.totalorder %s27, 0
    %p200 = por %p198, %p199
    %s202 = sadd.s32 %s201, 1
    %p205 = scmp.eq.s32.totalorder %s21, 1
    %p206 = scmp.ne.s32.totalorder %s201, %s203
    %p207 = scmp.eq.s32.totalorder %s21, 0
    %p208 = por %p206, %p207
    %p209 = scmp.ne.s32.totalorder %s201, %s203
    %p210 = scmp.eq.s32.totalorder %s26, 1
    %p211 = por %p209, %p210
    %p212 = scmp.ne.s32.totalorder %s203, %s204
    %p213 = scmp.eq.s32.totalorder %s26, 0
    %p214 = por %p212, %p213
    %p215 = scmp.ne.s32.totalorder %s203, %s204
    %p216 = scmp.eq.s32.totalorder %s27, 1
    %p217 = por %p215, %p216
    %p219 = scmp.ne.s32.totalorder %s204, %s218
    %p220 = scmp.eq.s32.totalorder %s27, 0
    %p221 = por %p219, %p220
    %s223 = sadd.s32 %s222, 1
    %p226 = scmp.eq.s32.totalorder %s21, 1
    %p227 = scmp.ne.s32.totalorder %s222, %s224
    %p228 = scmp.eq.s32.totalorder %s21, 0
    %p229 = por %p227, %p228
    %p230 = scmp.ne.s32.totalorder %s222, %s224
    %p231 = scmp.eq.s32.totalorder %s26, 1
    %p232 = por %p230, %p231
    %p233 = scmp.ne.s32.totalorder %s224, %s225
    %p234 = scmp.eq.s32.totalorder %s26, 0
    %p235 = por %p233, %p234
    %p236 = scmp.ne.s32.totalorder %s224, %s225
    %p237 = scmp.eq.s32.totalorder %s27, 1
    %p238 = por %p236, %p237
    %p240 = scmp.ne.s32.totalorder %s225, %s239
    %p241 = scmp.eq.s32.totalorder %s27, 0
    %p242 = por %p240, %p241
    %s244 = sadd.s32 %s243, 1
    %p247 = scmp.eq.s32.totalorder %s21, 1
    %p248 = scmp.ne.s32.totalorder %s243, %s245
    %p249 = scmp.eq.s32.totalorder %s21, 0
    %p250 = por %p248, %p249
    %p251 = scmp.ne.s32.totalorder %s243, %s245
    %p252 = scmp.eq.s32.totalorder %s26, 1
    %p253 = por %p251, %p252
    %p254 = scmp.ne.s32.totalorder %s245, %s246
    %p255 = scmp.eq.s32.totalorder %s26, 0
    %p256 = por %p254, %p255
    %p257 = scmp.ne.s32.totalorder %s245, %s246
    %p258 = scmp.eq.s32.totalorder %s27, 1
    %p259 = por %p257, %p258
    %p261 = scmp.ne.s32.totalorder %s246, %s260
    %p262 = scmp.eq.s32.totalorder %s27, 0
    %p263 = por %p261, %p262
    %s265 = sadd.s32 %s264, 1
    %p268 = scmp.eq.s32.totalorder %s21, 1
    %p269 = scmp.ne.s32.totalorder %s264, %s266
    %p270 = scmp.eq.s32.totalorder %s21, 0
    %p271 = por %p269, %p270
    %p272 = scmp.ne.s32.totalorder %s264, %s266
    %p273 = scmp.eq.s32.totalorder %s26, 1
    %p274 = por %p272, %p273
    %p275 = scmp.ne.s32.totalorder %s266, %s267
    %p276 = scmp.eq.s32.totalorder %s26, 0
    %p277 = por %p275, %p276
    %p278 = scmp.ne.s32.totalorder %s266, %s267
    %p279 = scmp.eq.s32.totalorder %s27, 1
    %p280 = por %p278, %p279
    %p282 = scmp.ne.s32.totalorder %s267, %s281
    %p283 = scmp.eq.s32.totalorder %s27, 0
    %p284 = por %p282, %p283
    %s286 = sadd.s32 %s285, 1
    %p289 = scmp.eq.s32.totalorder %s21, 1
    %p290 = scmp.ne.s32.totalorder %s285, %s287
    %p291 = scmp.eq.s32.totalorder %s21, 0
    %p292 = por %p290, %p291
    %p293 = scmp.ne.s32.totalorder %s285, %s287
    %p294 = scmp.eq.s32.totalorder %s26, 1
    %p295 = por %p293, %p294
    %p296 = scmp.ne.s32.totalorder %s287, %s288
    %p297 = scmp.eq.s32.totalorder %s26, 0
    %p298 = por %p296, %p297
    %p299 = scmp.ne.s32.totalorder %s287, %s288
    %p300 = scmp.eq.s32.totalorder %s27, 1
    %p301 = por %p299, %p300
    %p303 = scmp.ne.s32.totalorder %s288, %s302
    %p304 = scmp.eq.s32.totalorder %s27, 0
    %p305 = por %p303, %p304
    %s307 = sadd.s32 %s306, 1
    %p310 = scmp.eq.s32.totalorder %s21, 1
    %p311 = scmp.ne.s32.totalorder %s306, %s308
    %p312 = scmp.eq.s32.totalorder %s21, 0
    %p313 = por %p311, %p312
    %p314 = scmp.ne.s32.totalorder %s306, %s308
    %p315 = scmp.eq.s32.totalorder %s26, 1
    %p316 = por %p314, %p315
    %p317 = scmp.ne.s32.totalorder %s308, %s309
    %p318 = scmp.eq.s32.totalorder %s26, 0
    %p319 = por %p317, %p318
    %p320 = scmp.ne.s32.totalorder %s308, %s309
    %p321 = scmp.eq.s32.totalorder %s27, 1
    %p322 = por %p320, %p321
    %p324 = scmp.ne.s32.totalorder %s309, %s323
    %p325 = scmp.eq.s32.totalorder %s27, 0
    %p326 = por %p324, %p325
    %s328 = sadd.s32 %s327, 1
    %p331 = scmp.eq.s32.totalorder %s21, 1
    %p332 = scmp.ne.s32.totalorder %s327, %s329
    %p333 = scmp.eq.s32.totalorder %s21, 0
    %p334 = por %p332, %p333
    %p335 = scmp.ne.s32.totalorder %s327, %s329
    %p336 = scmp.eq.s32.totalorder %s26, 1
    %p337 = por %p335, %p336
    %p338 = scmp.ne.s32.totalorder %s329, %s330
    %p339 = scmp.eq.s32.totalorder %s26, 0
    %p340 = por %p338, %p339
    %p341 = scmp.ne.s32.totalorder %s329, %s330
    %p342 = scmp.eq.s32.totalorder %s27, 1
    %p343 = por %p341, %p342
    %p345 = scmp.ne.s32.totalorder %s330, %s344
    %p346 = scmp.eq.s32.totalorder %s27, 0
    %p347 = por %p345, %p346
    %s349 = sadd.s32 %s348, 1
    %p352 = scmp.eq.s32.totalorder %s21, 1
    %p353 = scmp.ne.s32.totalorder %s348, %s350
    %p354 = scmp.eq.s32.totalorder %s21, 0
    %p355 = por %p353, %p354
    %p356 = scmp.ne.s32.totalorder %s348, %s350
    %p357 = scmp.eq.s32.totalorder %s26, 1
    %p358 = por %p356, %p357
    %p359 = scmp.ne.s32.totalorder %s350, %s351
    %p360 = scmp.eq.s32.totalorder %s26, 0
    %p361 = por %p359, %p360
    %p362 = scmp.ne.s32.totalorder %s350, %s351
    %p363 = scmp.eq.s32.totalorder %s27, 1
    %p364 = por %p362, %p363
    %p366 = scmp.ne.s32.totalorder %s351, %s365
    %p367 = scmp.eq.s32.totalorder %s27, 0
    %p368 = por %p366, %p367
    %s369 = ssub.s32 %s21, %s28
    %p370 = scmp.eq.s32.totalorder %s369, 0
    %s372 = sadd.s32 %s371, 1
    %s373 = scalar_select %p370, %s371, %s372
    %p376 = pneg %p370
    %p377 = scmp.eq.s32.totalorder %s21, 1
    %p378 = por %p376, %p377
    %p379 = scmp.ne.s32.totalorder %s371, %s374
    %p380 = scmp.eq.s32.totalorder %s21, 0
    %p381 = por %p379, %p380
    %p382 = scmp.ne.s32.totalorder %s371, %s374
    %p383 = scmp.eq.s32.totalorder %s26, 1
    %p384 = por %p382, %p383
    %p385 = scmp.ne.s32.totalorder %s374, %s375
    %p386 = scmp.eq.s32.totalorder %s26, 0
    %p387 = por %p385, %p386
    %p388 = scmp.ne.s32.totalorder %s374, %s375
    %p389 = scmp.eq.s32.totalorder %s27, 1
    %p390 = por %p388, %p389
    %p392 = scmp.ne.s32.totalorder %s375, %s391
    %p393 = scmp.eq.s32.totalorder %s27, 0
    %p394 = por %p392, %p393
    %p395 = scmp.le.s32.totalorder 1, %s21
    %p396 = scmp.lt.s32.totalorder %s21, 3
    %p397 = pnand %p395, %p396
    %p398 = pneg %p397
    // Predicated region
    $region9: #{rise_forward.12} parent=5 // pred_check
      _
    $region10: #{rise_forward.12} parent=5 // pred_check_branch
      %400 = sbr.rel (%p397) target = $region12
    $region11: #{rise_forward.12} parent=5 // pred_region
      %s401 = ssub.s32 %s21, 1
      // Predicated region
      $region13: #{rise_forward.12} parent=11 // pred_check
        %p402 = pneg %p172
      $region14: #{rise_forward.12} parent=11 // pred_check_branch
        %404 = sbr.rel (%p402) target = $region16
      $region15: #{rise_forward.12} parent=11 // pred_region
        _
      $region16: #{rise_forward.12} parent=11 // pred_fallthru
        _
      // Predicated region
      $region17: #{rise_forward.12} parent=11 // pred_check
        %p405 = pneg %p193
      $region18: #{rise_forward.12} parent=11 // pred_check_branch
        %407 = sbr.rel (%p405) target = $region20
      $region19: #{rise_forward.12} parent=11 // pred_region
        _
      $region20: #{rise_forward.12} parent=11 // pred_fallthru
        _
      // Predicated region
      $region21: #{rise_forward.12} parent=11 // pred_check
        %p408 = pneg %p214
      $region22: #{rise_forward.12} parent=11 // pred_check_branch
        %410 = sbr.rel (%p408) target = $region24
      $region23: #{rise_forward.12} parent=11 // pred_region
        _
      $region24: #{rise_forward.12} parent=11 // pred_fallthru
        _
      // Predicated region
      $region25: #{rise_forward.12} parent=11 // pred_check
        %p411 = pneg %p235
      $region26: #{rise_forward.12} parent=11 // pred_check_branch
        %413 = sbr.rel (%p411) target = $region28
      $region27: #{rise_forward.12} parent=11 // pred_region
        _
      $region28: #{rise_forward.12} parent=11 // pred_fallthru
        _
      // Predicated region
      $region29: #{rise_forward.12} parent=11 // pred_check
        %p414 = pneg %p256
      $region30: #{rise_forward.12} parent=11 // pred_check_branch
        %416 = sbr.rel (%p414) target = $region32
      $region31: #{rise_forward.12} parent=11 // pred_region
        _
      $region32: #{rise_forward.12} parent=11 // pred_fallthru
        _
      // Predicated region
      $region33: #{rise_forward.12} parent=11 // pred_check
        %p417 = pneg %p277
      $region34: #{rise_forward.12} parent=11 // pred_check_branch
        %419 = sbr.rel (%p417) target = $region36
      $region35: #{rise_forward.12} parent=11 // pred_region
        _
      $region36: #{rise_forward.12} parent=11 // pred_fallthru
        _
      // Predicated region
      $region37: #{rise_forward.12} parent=11 // pred_check
        %p420 = pneg %p298
      $region38: #{rise_forward.12} parent=11 // pred_check_branch
        %422 = sbr.rel (%p420) target = $region40
      $region39: #{rise_forward.12} parent=11 // pred_region
        _
      $region40: #{rise_forward.12} parent=11 // pred_fallthru
        _
      // Predicated region
      $region41: #{rise_forward.12} parent=11 // pred_check
        %p423 = pneg %p319
      $region42: #{rise_forward.12} parent=11 // pred_check_branch
        %425 = sbr.rel (%p423) target = $region44
      $region43: #{rise_forward.12} parent=11 // pred_region
        _
      $region44: #{rise_forward.12} parent=11 // pred_fallthru
        _
      // Predicated region
      $region45: #{rise_forward.12} parent=11 // pred_check
        %p426 = pneg %p340
      $region46: #{rise_forward.12} parent=11 // pred_check_branch
        %428 = sbr.rel (%p426) target = $region48
      $region47: #{rise_forward.12} parent=11 // pred_region
        _
      $region48: #{rise_forward.12} parent=11 // pred_fallthru
        _
      // Predicated region
      $region49: #{rise_forward.12} parent=11 // pred_check
        %p429 = pneg %p361
      $region50: #{rise_forward.12} parent=11 // pred_check_branch
        %431 = sbr.rel (%p429) target = $region52
      $region51: #{rise_forward.12} parent=11 // pred_region
        _
      $region52: #{rise_forward.12} parent=11 // pred_fallthru
        _
    $region12: #{rise_forward.12} parent=5 // pred_fallthru
      _
    %p432 = scmp.lt.s32.totalorder %s21, 2
    // Predicated region
    $region53: #{rise_forward.12} parent=5 // pred_check
      %p433 = pneg %p432
    $region54: #{rise_forward.12} parent=5 // pred_check_branch
      %435 = sbr.rel (%p433) target = $region56
    $region55: #{rise_forward.12} parent=5 // pred_region
      // Predicated region
      $region57: #{rise_forward.12} parent=55 // pred_check
        %p436 = pneg %p41
      $region58: #{rise_forward.12} parent=55 // pred_check_branch
        %438 = sbr.rel (%p436) target = $region60
      $region59: #{rise_forward.12} parent=55 // pred_region
        %p439 = scmp.lt.s32.totalorder %s21, 1
        %s440 = scalar_select %p439, %s21, 1
        %s441 = smul.addr %s440, 4
        %s442 = smul.addr %s441, 8
        %s443 = scalar_lea.vmem %s0, %s442
      $region60: #{rise_forward.12} parent=55 // pred_fallthru
        _
      // Predicated region
      $region61: #{rise_forward.12} parent=55 // pred_check
        %p444 = pneg %p67
      $region62: #{rise_forward.12} parent=55 // pred_check_branch
        %446 = sbr.rel (%p444) target = $region64
      $region63: #{rise_forward.12} parent=55 // pred_region
        %p447 = scmp.lt.s32.totalorder %s21, 1
        %s448 = scalar_select %p447, %s21, 1
        %s449 = smul.addr %s448, 4
        %s450 = smul.addr %s449, 8
        %s451 = scalar_lea.vmem %s1, %s450
      $region64: #{rise_forward.12} parent=55 // pred_fallthru
        _
      // Predicated region
      $region65: #{rise_forward.12} parent=55 // pred_check
        %p452 = pneg %p93
      $region66: #{rise_forward.12} parent=55 // pred_check_branch
        %454 = sbr.rel (%p452) target = $region68
      $region67: #{rise_forward.12} parent=55 // pred_region
        %p455 = scmp.lt.s32.totalorder %s21, 1
        %s456 = scalar_select %p455, %s21, 1
        %s457 = smul.addr %s456, 4
        %s458 = smul.addr %s457, 8
        %s459 = scalar_lea.vmem %s2, %s458
      $region68: #{rise_forward.12} parent=55 // pred_fallthru
        _
      // Predicated region
      $region69: #{rise_forward.12} parent=55 // pred_check
        %p460 = pneg %p119
      $region70: #{rise_forward.12} parent=55 // pred_check_branch
        %462 = sbr.rel (%p460) target = $region72
      $region71: #{rise_forward.12} parent=55 // pred_region
        %p463 = scmp.lt.s32.totalorder %s21, 1
        %s464 = scalar_select %p463, %s21, 1
        %s465 = smul.addr %s464, 4
        %s466 = smul.addr %s465, 8
        %s467 = scalar_lea.vmem %s3, %s466
      $region72: #{rise_forward.12} parent=55 // pred_fallthru
        _
      // Predicated region
      $region73: #{rise_forward.12} parent=55 // pred_check
        %p468 = pneg %p145
      $region74: #{rise_forward.12} parent=55 // pred_check_branch
        %470 = sbr.rel (%p468) target = $region76
      $region75: #{rise_forward.12} parent=55 // pred_region
        %p471 = scmp.lt.s32.totalorder %s21, 1
        %s472 = scalar_select %p471, %s21, 1
        %s473 = scalar_lea.vmem %s4, %s472
      $region76: #{rise_forward.12} parent=55 // pred_fallthru
        _
    $region56: #{rise_forward.12} parent=5 // pred_fallthru
      _
    %p474 = scmp.le.s32.totalorder 1, %s21
    %p475 = scmp.lt.s32.totalorder %s21, 3
    %p476 = pnand %p474, %p475
    %p477 = pneg %p476
    // Predicated region
    $region77: #{rise_forward.12} parent=5 // pred_check
      _
    $region78: #{rise_forward.12} parent=5 // pred_check_branch
      %479 = sbr.rel (%p476) target = $region80
    $region79: #{rise_forward.12} parent=5 // pred_region
      %s480 = ssub.s32 %s21, 1
      %p481 = scmp.lt.s32.totalorder %s26, 1
      %s482 = scalar_select %p481, %s26, 1
      %s483 = smul.addr %s482, 4
      %s484 = smul.addr %s483, 8
      %s485 = scalar_lea.vmem %s0, %s484
      %p486 = pneg %p47
      %p487 = pneg %p44
      %p488 = scmp.lt.s32.totalorder %s26, 1
      %s489 = scalar_select %p488, %s26, 1
      %s490 = smul.addr %s489, 4
      %s491 = smul.addr %s490, 8
      %s492 = scalar_lea.vmem %s1, %s491
      %p493 = pneg %p73
      %p494 = pneg %p70
      %p495 = scmp.lt.s32.totalorder %s26, 1
      %s496 = scalar_select %p495, %s26, 1
      %s497 = smul.addr %s496, 4
      %s498 = smul.addr %s497, 8
      %s499 = scalar_lea.vmem %s2, %s498
      %p500 = pneg %p99
      %p501 = pneg %p96
      %p502 = scmp.lt.s32.totalorder %s26, 1
      %s503 = scalar_select %p502, %s26, 1
      %s504 = smul.addr %s503, 4
      %s505 = smul.addr %s504, 8
      %s506 = scalar_lea.vmem %s3, %s505
      %p507 = pneg %p125
      %p508 = pneg %p122
      %p509 = scmp.lt.s32.totalorder %s26, 1
      %s510 = scalar_select %p509, %s26, 1
      %s511 = scalar_lea.vmem %s4, %s510
      %p512 = pneg %p151
      %p513 = pneg %p148
      %p514 = pneg %p172
      %p515 = pneg %p169
      %p516 = pneg %p193
      %p517 = pneg %p190
      %p518 = pneg %p214
      %p519 = pneg %p211
      %p520 = pneg %p235
      %p521 = pneg %p232
      %p522 = pneg %p256
      %p523 = pneg %p253
      %p524 = pneg %p277
      %p525 = pneg %p274
      %p526 = pneg %p298
      %p527 = pneg %p295
      %p528 = pneg %p319
      %p529 = pneg %p316
      %p530 = pneg %p340
      %p531 = pneg %p337
      %p532 = pneg %p361
      %p533 = pneg %p358
      %p534 = pneg %p387
      %p535 = pneg %p384
      %p536 = scmp.lt.s32.totalorder %s26, 1
      %s537 = scalar_select %p536, %s26, 1
      %s538 = smul.addr %s537, 4
      %s539 = smul.addr %s538, 8
      %s540 = scalar_lea.vmem %s15, %s539
      %p541 = scmp.lt.s32.totalorder %s26, 1
      %s542 = scalar_select %p541, %s26, 1
      %s543 = smul.addr %s542, 4
      %s544 = smul.addr %s543, 8
      %s545 = scalar_lea.vmem %s0, %s544
      %p546 = scmp.lt.s32.totalorder %s26, 1
      %s547 = scalar_select %p546, %s26, 1
      %s548 = smul.addr %s547, 4
      %s549 = smul.addr %s548, 8
      %s550 = scalar_lea.vmem %s1, %s549
      %p551 = scmp.lt.s32.totalorder %s26, 1
      %s552 = scalar_select %p551, %s26, 1
      %s553 = smul.addr %s552, 4
      %s554 = smul.addr %s553, 8
      %s555 = scalar_lea.vmem %s2, %s554
      %p556 = scmp.lt.s32.totalorder %s26, 1
      %s557 = scalar_select %p556, %s26, 1
      %s558 = smul.addr %s557, 4
      %s559 = smul.addr %s558, 8
      %s560 = scalar_lea.vmem %s3, %s559
      %p561 = scmp.lt.s32.totalorder %s26, 1
      %s562 = scalar_select %p561, %s26, 1
      %s563 = scalar_lea.vmem %s4, %s562
      %p564 = scmp.lt.s32.totalorder %s26, 1
      %s565 = scalar_select %p564, %s26, 1
      %s566 = smul.addr %s565, 4
      %s567 = smul.addr %s566, 8
      %s568 = scalar_lea.vmem %s15, %s567
      %v570 = vld [vmem:[%s545] sm:$0xff]
      %v571 = vld [vmem:[%s545 + $0x8] sm:$0xff]
      %v572 = vld [vmem:[%s545 + $0x10] sm:$0xff]
      %v573 = vld [vmem:[%s545 + $0x18] sm:$0xff]
      %v574 = vld [vmem:[%s550] sm:$0xff]
      %v575 = vld [vmem:[%s550 + $0x8] sm:$0xff]
      %v576 = vld [vmem:[%s550 + $0x10] sm:$0xff]
      %v577 = vld [vmem:[%s550 + $0x18] sm:$0xff]
      %v578 = vadd.f32 %v570, %v574
      %v579 = vadd.f32 %v571, %v575
      %v580 = vadd.f32 %v572, %v576
      %v581 = vadd.f32 %v573, %v577
      %v582 = vpack.c.bf16 %v579, %v578
      %v583 = vpack.c.bf16 %v581, %v580
      %v584 = vld [vmem:[%s555] sm:$0xff]
      %v585 = vld [vmem:[%s555 + $0x8] sm:$0xff]
      %v586 = vld [vmem:[%s555 + $0x10] sm:$0xff]
      %v587 = vld [vmem:[%s555 + $0x18] sm:$0xff]
      %v588 = vld [vmem:[%s560] sm:$0xff]
      %v589 = vld [vmem:[%s560 + $0x8] sm:$0xff]
      %v590 = vld [vmem:[%s560 + $0x10] sm:$0xff]
      %v591 = vld [vmem:[%s560 + $0x18] sm:$0xff]
      %v592 = vadd.f32 %v584, %v588
      %v593 = vadd.f32 %v585, %v589
      %v594 = vadd.f32 %v586, %v590
      %v595 = vadd.f32 %v587, %v591
      %v596 = vpack.c.bf16 %v593, %v592
      %v597 = vpack.c.bf16 %v595, %v594
      %v598 = vpack.c.bf16 %v585, %v584
      %v599 = vpack.c.bf16 %v587, %v586
      %v600 = vld [vmem:[%s563] sm:$0x1]
      %v601 = vld [vmem:[%s5] sm:$0xf]
      %v602 = vld [vmem:[%s5 + $0x4] sm:$0xf]
      %v603 = vld [vmem:[%s5 + $0x8] sm:$0xf]
      %v604 = vld [vmem:[%s5 + $0xc] sm:$0xf]
      %v605 = vld [vmem:[%s8] sm:$0x1]
      %v607 = vlaneseq
      %v608 = vshrl.u32 %v607, 7
      %v609 = vsub.s32 0, %v608
      %v610 = vrot.slane %v605, %v609
      %v616 = vunpack.c.l.b16 %v601
      %v617 = vunpack.c.l.b16 %v602
      %v618 = vunpack.c.l.b16 %v603
      %v619 = vunpack.c.l.b16 %v604
      %v620 = vpack.c.b16 %v617, %v616
      %v621 = vpack.c.b16 %v619, %v618
      %vm624 = vcmask 261120
      %v626 = vsel %vm624, %v582, 0
      %v629 = vsel %vm624, %v583, 0
      %631 = vmatprep.subr.bf16.mxu0 0
      %632 = vmatpush1.bf16.msra.mxu0 %v620
      %633 = vmatprep.subr.bf16.mxu0 0
      %634 = vmatpush1.bf16.msra.mxu0 %v621
      %635 = vmatprep.subr.bf16.mxu0 0
      %636 = vmatpush1.bf16.msra.mxu0 0
      %637 = vmatprep.subr.bf16.mxu0 0
      %638 = vmatpush1.bf16.msra.mxu0 0
      %639 = vmatprep.subr.bf16.mxu0 0
      %640 = vmatpush1.bf16.msra.mxu0 0
      %641 = vmatprep.subr.bf16.mxu0 0
      %642 = vmatpush1.bf16.msra.mxu0 0
      %643 = vmatprep.subr.bf16.mxu0 0
      %644 = vmatpush1.bf16.msra.mxu0 0
      %645 = vmatprep.subr.bf16.mxu0 0
      %646 = vmatpush1.bf16.msra.mxu0 0
      %647 = vmatprep.subr.bf16.mxu0 0
      %648 = vmatpush1.bf16.msra.mxu0 0
      %649 = vmatprep.subr.bf16.mxu0 0
      %650 = vmatpush1.bf16.msra.mxu0 0
      %651 = vmatprep.subr.bf16.mxu0 0
      %652 = vmatpush1.bf16.msra.mxu0 0
      %653 = vmatprep.subr.bf16.mxu0 0
      %654 = vmatpush1.bf16.msra.mxu0 0
      %655 = vmatprep.subr.bf16.mxu0 0
      %656 = vmatpush1.bf16.msra.mxu0 0
      %657 = vmatprep.subr.bf16.mxu0 0
      %658 = vmatpush1.bf16.msra.mxu0 0
      %659 = vmatprep.subr.bf16.mxu0 0
      %660 = vmatpush1.bf16.msra.mxu0 0
      %661 = vmatprep.subr.bf16.mxu0 0
      %662 = vmatpush1.bf16.msra.mxu0 0
      %663 = vmatprep.mubr.bf16.mxu0 0
      %664 = vmatmul.mubr.bf16.gmra.mrb[0].mxu0 %v626
      %v665 = vpop.f32.mrb[0].mxu0
      %v666 = vadd.f32 %v610, %v665
      %v667 = vpop.f32.mrb[0].mxu0
      %v668 = vpop.f32.mrb[0].mxu0
      %v669 = vadd.f32 %v610, %v668
      %v670 = vpop.f32.mrb[0].mxu0
      %671 = vmatprep.mubr.bf16.mxu0 0
      %672 = vmatmul.mubr.bf16.gmra.mrb[0].mxu0 %v629
      %v673 = vpop.f32.mrb[0].mxu0
      %v674 = vadd.f32 %v610, %v673
      %v675 = vpop.f32.mrb[0].mxu0
      %v676 = vpop.f32.mrb[0].mxu0
      %v677 = vadd.f32 %v610, %v676
      %v678 = vpop.f32.mrb[0].mxu0
      %679 = vdwg.mxu0
      %v680 = vld [vmem:[%s6] sm:$0xf]
      %v681 = vld [vmem:[%s6 + $0x4] sm:$0xf]
      %v682 = vld [vmem:[%s6 + $0x8] sm:$0xf]
      %v683 = vld [vmem:[%s6 + $0xc] sm:$0xf]
      %v684 = vld [vmem:[%s9] sm:$0x1]
      %v686 = vlaneseq
      %v687 = vshrl.u32 %v686, 7
      %v688 = vsub.s32 0, %v687
      %v689 = vrot.slane %v684, %v688
      %v695 = vunpack.c.l.b16 %v680
      %v696 = vunpack.c.l.b16 %v681
      %v697 = vunpack.c.l.b16 %v682
      %v698 = vunpack.c.l.b16 %v683
      %v699 = vpack.c.b16 %v696, %v695
      %v700 = vpack.c.b16 %v698, %v697
      %v704 = vsel %vm624, %v596, 0
      %v707 = vsel %vm624, %v597, 0
      %709 = vmatprep.subr.bf16.mxu0 0
      %710 = vmatpush1.bf16.msra.mxu0 %v699
      %711 = vmatprep.subr.bf16.mxu0 0
      %712 = vmatpush1.bf16.msra.mxu0 %v700
      %713 = vmatprep.subr.bf16.mxu0 0
      %714 = vmatpush1.bf16.msra.mxu0 0
      %715 = vmatprep.subr.bf16.mxu0 0
      %716 = vmatpush1.bf16.msra.mxu0 0
      %717 = vmatprep.subr.bf16.mxu0 0
      %718 = vmatpush1.bf16.msra.mxu0 0
      %719 = vmatprep.subr.bf16.mxu0 0
      %720 = vmatpush1.bf16.msra.mxu0 0
      %721 = vmatprep.subr.bf16.mxu0 0
      %722 = vmatpush1.bf16.msra.mxu0 0
      %723 = vmatprep.subr.bf16.mxu0 0
      %724 = vmatpush1.bf16.msra.mxu0 0
      %725 = vmatprep.subr.bf16.mxu0 0
      %726 = vmatpush1.bf16.msra.mxu0 0
      %727 = vmatprep.subr.bf16.mxu0 0
      %728 = vmatpush1.bf16.msra.mxu0 0
      %729 = vmatprep.subr.bf16.mxu0 0
      %730 = vmatpush1.bf16.msra.mxu0 0
      %731 = vmatprep.subr.bf16.mxu0 0
      %732 = vmatpush1.bf16.msra.mxu0 0
      %733 = vmatprep.subr.bf16.mxu0 0
      %734 = vmatpush1.bf16.msra.mxu0 0
      %735 = vmatprep.subr.bf16.mxu0 0
      %736 = vmatpush1.bf16.msra.mxu0 0
      %737 = vmatprep.subr.bf16.mxu0 0
      %738 = vmatpush1.bf16.msra.mxu0 0
      %739 = vmatprep.subr.bf16.mxu0 0
      %740 = vmatpush1.bf16.msra.mxu0 0
      %741 = vmatprep.mubr.bf16.mxu0 0
      %742 = vmatmul.mubr.bf16.gmra.mrb[0].mxu0 %v704
      %v743 = vpop.f32.mrb[0].mxu0
      %v744 = vadd.f32 %v689, %v743
      %v745 = vpop.f32.mrb[0].mxu0
      %v746 = vpop.f32.mrb[0].mxu0
      %v747 = vadd.f32 %v689, %v746
      %v748 = vpop.f32.mrb[0].mxu0
      %749 = vmatprep.mubr.bf16.mxu0 0
      %750 = vmatmul.mubr.bf16.gmra.mrb[0].mxu0 %v707
      %v751 = vpop.f32.mrb[0].mxu0
      %v752 = vadd.f32 %v689, %v751
      %v753 = vpop.f32.mrb[0].mxu0
      %v754 = vpop.f32.mrb[0].mxu0
      %v755 = vadd.f32 %v689, %v754
      %v756 = vpop.f32.mrb[0].mxu0
      %757 = vdwg.mxu0
      %v758 = vld [vmem:[%s7] sm:$0xf]
      %v759 = vld [vmem:[%s7 + $0x4] sm:$0xf]
      %v760 = vld [vmem:[%s7 + $0x8] sm:$0xf]
      %v761 = vld [vmem:[%s7 + $0xc] sm:$0xf]
      %v762 = vld [vmem:[%s10] sm:$0x1]
      %v764 = vlaneseq
      %v765 = vshrl.u32 %v764, 7
      %v766 = vsub.s32 0, %v765
      %v767 = vrot.slane %v762, %v766
      %v773 = vunpack.c.l.b16 %v758
      %v774 = vunpack.c.l.b16 %v759
      %v775 = vunpack.c.l.b16 %v760
      %v776 = vunpack.c.l.b16 %v761
      %v777 = vpack.c.b16 %v774, %v773
      %v778 = vpack.c.b16 %v776, %v775
      %v782 = vsel %vm624, %v598, 0
      %v785 = vsel %vm624, %v599, 0
      %787 = vmatprep.subr.bf16.mxu0 0
      %788 = vmatpush1.bf16.msra.mxu0 %v777
      %789 = vmatprep.subr.bf16.mxu0 0
      %790 = vmatpush1.bf16.msra.mxu0 %v778
      %791 = vmatprep.subr.bf16.mxu0 0
      %792 = vmatpush1.bf16.msra.mxu0 0
      %793 = vmatprep.subr.bf16.mxu0 0
      %794 = vmatpush1.bf16.msra.mxu0 0
      %795 = vmatprep.subr.bf16.mxu0 0
      %796 = vmatpush1.bf16.msra.mxu0 0
      %797 = vmatprep.subr.bf16.mxu0 0
      %798 = vmatpush1.bf16.msra.mxu0 0
      %799 = vmatprep.subr.bf16.mxu0 0
      %800 = vmatpush1.bf16.msra.mxu0 0
      %801 = vmatprep.subr.bf16.mxu0 0
      %802 = vmatpush1.bf16.msra.mxu0 0
      %803 = vmatprep.subr.bf16.mxu0 0
      %804 = vmatpush1.bf16.msra.mxu0 0
      %805 = vmatprep.subr.bf16.mxu0 0
      %806 = vmatpush1.bf16.msra.mxu0 0
      %807 = vmatprep.subr.bf16.mxu0 0
      %808 = vmatpush1.bf16.msra.mxu0 0
      %809 = vmatprep.subr.bf16.mxu0 0
      %810 = vmatpush1.bf16.msra.mxu0 0
      %811 = vmatprep.subr.bf16.mxu0 0
      %812 = vmatpush1.bf16.msra.mxu0 0
      %813 = vmatprep.subr.bf16.mxu0 0
      %814 = vmatpush1.bf16.msra.mxu0 0
      %815 = vmatprep.subr.bf16.mxu0 0
      %816 = vmatpush1.bf16.msra.mxu0 0
      %817 = vmatprep.subr.bf16.mxu0 0
      %818 = vmatpush1.bf16.msra.mxu0 0
      %819 = vmatprep.mubr.bf16.mxu0 0
      %820 = vmatmul.mubr.bf16.gmra.mrb[0].mxu0 %v782
      %v821 = vpop.f32.mrb[0].mxu0
      %v822 = vadd.f32 %v767, %v821
      %v823 = vpop.f32.mrb[0].mxu0
      %v824 = vpop.f32.mrb[0].mxu0
      %v825 = vadd.f32 %v767, %v824
      %v826 = vpop.f32.mrb[0].mxu0
      %827 = vmatprep.mubr.bf16.mxu0 0
      %828 = vmatmul.mubr.bf16.gmra.mrb[0].mxu0 %v785
      %v829 = vpop.f32.mrb[0].mxu0
      %v830 = vadd.f32 %v767, %v829
      %v831 = vpop.f32.mrb[0].mxu0
      %v832 = vpop.f32.mrb[0].mxu0
      %v833 = vadd.f32 %v767, %v832
      %v834 = vpop.f32.mrb[0].mxu0
      %835 = vdwg.mxu0
      %v836 = vpack.c.bf16 %v669, %v666
      %v837 = vpack.c.bf16 %v677, %v674
      %v838 = vpack.c.bf16 %v747, %v744
      %v839 = vpack.c.bf16 %v755, %v752
      %v841 = vlaneseq
      %v842 = vshrl.u32 %v841, 7
      %v843 = vsub.s32 0, %v842
      %v844 = vrot.slane %v600, %v843
      %vm846 = vcmask 64512
      %v848 = vsel %vm846, %v836, 0
      %v851 = vsel %vm846, %v837, 0
      %v854 = vsel %vm846, %v838, 0
      %v857 = vsel %vm846, %v839, 0
      %859 = vmatprep.subr.bf16.mxu0 0
      %860 = vmatpush1.bf16.xpose.msra.mxu0 %v854
      %861 = vmatprep.subr.bf16.mxu0 0
      %862 = vmatpush1.bf16.xpose.msra.mxu0 %v857
      %863 = vmatprep.subr.bf16.mxu0 0
      %864 = vmatpush1.bf16.xpose.msra.mxu0 0
      %865 = vmatprep.subr.bf16.mxu0 0
      %866 = vmatpush1.bf16.xpose.msra.mxu0 0
      %867 = vmatprep.subr.bf16.mxu0 0
      %868 = vmatpush1.bf16.xpose.msra.mxu0 0
      %869 = vmatprep.subr.bf16.mxu0 0
      %870 = vmatpush1.bf16.xpose.msra.mxu0 0
      %871 = vmatprep.subr.bf16.mxu0 0
      %872 = vmatpush1.bf16.xpose.msra.mxu0 0
      %873 = vmatprep.subr.bf16.mxu0 0
      %874 = vmatpush1.bf16.xpose.msra.mxu0 0
      %875 = vmatprep.subr.bf16.mxu0 0
      %876 = vmatpush1.bf16.xpose.msra.mxu0 0
      %877 = vmatprep.subr.bf16.mxu0 0
      %878 = vmatpush1.bf16.xpose.msra.mxu0 0
      %879 = vmatprep.subr.bf16.mxu0 0
      %880 = vmatpush1.bf16.xpose.msra.mxu0 0
      %881 = vmatprep.subr.bf16.mxu0 0
      %882 = vmatpush1.bf16.xpose.msra.mxu0 0
      %883 = vmatprep.subr.bf16.mxu0 0
      %884 = vmatpush1.bf16.xpose.msra.mxu0 0
      %885 = vmatprep.subr.bf16.mxu0 0
      %886 = vmatpush1.bf16.xpose.msra.mxu0 0
      %887 = vmatprep.subr.bf16.mxu0 0
      %888 = vmatpush1.bf16.xpose.msra.mxu0 0
      %889 = vmatprep.subr.bf16.mxu0 0
      %890 = vmatpush1.bf16.xpose.msra.mxu0 0
      %891 = vmatprep.mubr.bf16.mxu0 0
      %892 = vmatmul.mubr.bf16.gmra.mrb[0].mxu0 %v848
      %v893 = vpop.f32.mrb[0].mxu0
      %v894 = vadd.f32 %v844, %v893
      %v895 = vpop.f32.mrb[0].mxu0
      %v896 = vpop.f32.mrb[0].mxu0
      %v897 = vadd.f32 %v844, %v896
      %v898 = vpop.f32.mrb[0].mxu0
      %899 = vmatprep.mubr.bf16.mxu0 0
      %900 = vmatmul.mubr.bf16.gmra.mrb[0].mxu0 %v851
      %v901 = vpop.f32.mrb[0].mxu0
      %v902 = vadd.f32 %v844, %v901
      %v903 = vpop.f32.mrb[0].mxu0
      %v904 = vpop.f32.mrb[0].mxu0
      %v905 = vadd.f32 %v844, %v904
      %v906 = vpop.f32.mrb[0].mxu0
      %907 = vdwg.mxu0
      %v908 = vsel %vm624, %v894, -inf
      %909 = vmax.xlane.f32.xlu0 %v908
      %v910 = vpop.xlane.xlu0 %909
      %v911 = vsel %vm624, %v897, -inf
      %912 = vmax.xlane.f32.xlu0 %v911
      %v913 = vpop.xlane.xlu0 %912
      %v914 = vsel %vm624, %v902, -inf
      %915 = vmax.xlane.f32.xlu0 %v914
      %v916 = vpop.xlane.xlu0 %915
      %v917 = vsel %vm624, %v905, -inf
      %918 = vmax.xlane.f32.xlu0 %v917
      %v919 = vpop.xlane.xlu0 %918
      %v920 = vsub.f32 %v894, %v910
      %v921 = vsub.f32 %v897, %v913
      %v922 = vsub.f32 %v902, %v916
      %v923 = vsub.f32 %v905, %v919
      %v924 = vmul.f32 %v920, 1.442695
      %v925 = vpow.pop %v924
      %v926 = vmul.f32 %v921, 1.442695
      %v927 = vpow.pop %v926
      %v928 = vmul.f32 %v922, 1.442695
      %v929 = vpow.pop %v928
      %v930 = vmul.f32 %v923, 1.442695
      %v931 = vpow.pop %v930
      %v932 = vsel %vm624, %v925, 0.0
      %933 = vadd.xlane.f32.xlu0 %v932
      %v934 = vpop.xlane.xlu0 %933
      %v935 = vsel %vm624, %v927, 0.0
      %936 = vadd.xlane.f32.xlu0 %v935
      %v937 = vpop.xlane.xlu0 %936
      %v938 = vsel %vm624, %v929, 0.0
      %939 = vadd.xlane.f32.xlu0 %v938
      %v940 = vpop.xlane.xlu0 %939
      %v941 = vsel %vm624, %v931, 0.0
      %942 = vadd.xlane.f32.xlu0 %v941
      %v943 = vpop.xlane.xlu0 %942
      %v944 = vrcp.pop %v934
      %v945 = vrcp.pop %v937
      %v946 = vrcp.pop %v940
      %v947 = vrcp.pop %v943
      %v948 = vpack.c.bf16 %v927, %v925
      %v949 = vpack.c.bf16 %v931, %v929
      %v950 = vpack.c.bf16 %v825, %v822
      %v951 = vpack.c.bf16 %v833, %v830
      %v953 = vsel %vm624, %v948, 0
      %v956 = vsel %vm624, %v949, 0
      %958 = vmatprep.subr.bf16.mxu0 0
      %959 = vmatpush1.bf16.msra.mxu0 %v950
      %960 = vmatprep.subr.bf16.mxu0 0
      %961 = vmatpush1.bf16.msra.mxu0 %v951
      %962 = vmatprep.subr.bf16.mxu0 0
      %963 = vmatpush1.bf16.msra.mxu0 0
      %964 = vmatprep.subr.bf16.mxu0 0
      %965 = vmatpush1.bf16.msra.mxu0 0
      %966 = vmatprep.subr.bf16.mxu0 0
      %967 = vmatpush1.bf16.msra.mxu0 0
      %968 = vmatprep.subr.bf16.mxu0 0
      %969 = vmatpush1.bf16.msra.mxu0 0
      %970 = vmatprep.subr.bf16.mxu0 0
      %971 = vmatpush1.bf16.msra.mxu0 0
      %972 = vmatprep.subr.bf16.mxu0 0
      %973 = vmatpush1.bf16.msra.mxu0 0
      %974 = vmatprep.subr.bf16.mxu0 0
      %975 = vmatpush1.bf16.msra.mxu0 0
      %976 = vmatprep.subr.bf16.mxu0 0
      %977 = vmatpush1.bf16.msra.mxu0 0
      %978 = vmatprep.subr.bf16.mxu0 0
      %979 = vmatpush1.bf16.msra.mxu0 0
      %980 = vmatprep.subr.bf16.mxu0 0
      %981 = vmatpush1.bf16.msra.mxu0 0
      %982 = vmatprep.subr.bf16.mxu0 0
      %983 = vmatpush1.bf16.msra.mxu0 0
      %984 = vmatprep.subr.bf16.mxu0 0
      %985 = vmatpush1.bf16.msra.mxu0 0
      %986 = vmatprep.subr.bf16.mxu0 0
      %987 = vmatpush1.bf16.msra.mxu0 0
      %988 = vmatprep.subr.bf16.mxu0 0
      %989 = vmatpush1.bf16.msra.mxu0 0
      %990 = vmatprep.mubr.bf16.mxu0 0
      %991 = vmatmul.mubr.bf16.gmra.mrb[0].mxu0 %v953
      %v992 = vpop.f32.mrb[0].mxu0
      %v993 = vadd.f32 0.0, %v992
      %v994 = vpop.f32.mrb[0].mxu0
      %v995 = vpop.f32.mrb[0].mxu0
      %v996 = vadd.f32 0.0, %v995
      %v997 = vpop.f32.mrb[0].mxu0
      %998 = vmatprep.mubr.bf16.mxu0 0
      %999 = vmatmul.mubr.bf16.gmra.mrb[0].mxu0 %v956
      %v1000 = vpop.f32.mrb[0].mxu0
      %v1001 = vadd.f32 0.0, %v1000
      %v1002 = vpop.f32.mrb[0].mxu0
      %v1003 = vpop.f32.mrb[0].mxu0
      %v1004 = vadd.f32 0.0, %v1003
      %v1005 = vpop.f32.mrb[0].mxu0
      %1006 = vdwg.mxu0
      %v1007 = vmul.f32 %v993, %v944
      %v1008 = vmul.f32 %v996, %v945
      %v1009 = vmul.f32 %v1001, %v946
      %v1010 = vmul.f32 %v1004, %v947
      %v1011 = vpack.c.bf16 %v1008, %v1007
      %v1012 = vpack.c.bf16 %v1010, %v1009
      %v1013 = vld [vmem:[%s11] sm:$0xf]
      %1014 = vrot.lane.b32.xlu0 %v620, 120
      %v1015 = vpop.permute.xlu0 %1014
      %1016 = vrot.lane.b32.xlu0 %v621, 120
      %v1017 = vpop.permute.xlu0 %1016
      %1020 = vrot.lane.b32.xlu0 %v610, 120
      %v1021 = vpop.permute.xlu0 %1020
      %1023 = vmatprep.subr.bf16.mxu0 0
      %1024 = vmatpush1.bf16.msra.mxu0 %v1015
      %1025 = vmatprep.subr.bf16.mxu0 0
      %1026 = vmatpush1.bf16.msra.mxu0 %v1017
      %1027 = vmatprep.subr.bf16.mxu0 0
      %1028 = vmatpush1.bf16.msra.mxu0 0
      %1029 = vmatprep.subr.bf16.mxu0 0
      %1030 = vmatpush1.bf16.msra.mxu0 0
      %1031 = vmatprep.subr.bf16.mxu0 0
      %1032 = vmatpush1.bf16.msra.mxu0 0
      %1033 = vmatprep.subr.bf16.mxu0 0
      %1034 = vmatpush1.bf16.msra.mxu0 0
      %1035 = vmatprep.subr.bf16.mxu0 0
      %1036 = vmatpush1.bf16.msra.mxu0 0
      %1037 = vmatprep.subr.bf16.mxu0 0
      %1038 = vmatpush1.bf16.msra.mxu0 0
      %1039 = vmatprep.subr.bf16.mxu0 0
      %1040 = vmatpush1.bf16.msra.mxu0 0
      %1041 = vmatprep.subr.bf16.mxu0 0
      %1042 = vmatpush1.bf16.msra.mxu0 0
      %1043 = vmatprep.subr.bf16.mxu0 0
      %1044 = vmatpush1.bf16.msra.mxu0 0
      %1045 = vmatprep.subr.bf16.mxu0 0
      %1046 = vmatpush1.bf16.msra.mxu0 0
      %1047 = vmatprep.subr.bf16.mxu0 0
      %1048 = vmatpush1.bf16.msra.mxu0 0
      %1049 = vmatprep.subr.bf16.mxu0 0
      %1050 = vmatpush1.bf16.msra.mxu0 0
      %1051 = vmatprep.subr.bf16.mxu0 0
      %1052 = vmatpush1.bf16.msra.mxu0 0
      %1053 = vmatprep.subr.bf16.mxu0 0
      %1054 = vmatpush1.bf16.msra.mxu0 0
      %1055 = vmatprep.mubr.bf16.mxu0 0
      %1056 = vmatmul.mubr.bf16.gmra.mrb[0].mxu0 %v626
      %v1057 = vpop.f32.mrb[0].mxu0
      %v1058 = vadd.f32 %v1021, %v1057
      %v1059 = vpop.f32.mrb[0].mxu0
      %v1060 = vpop.f32.mrb[0].mxu0
      %v1061 = vadd.f32 %v1021, %v1060
      %v1062 = vpop.f32.mrb[0].mxu0
      %1063 = vmatprep.mubr.bf16.mxu0 0
      %1064 = vmatmul.mubr.bf16.gmra.mrb[0].mxu0 %v629
      %v1065 = vpop.f32.mrb[0].mxu0
      %v1066 = vadd.f32 %v1021, %v1065
      %v1067 = vpop.f32.mrb[0].mxu0
      %v1068 = vpop.f32.mrb[0].mxu0
      %v1069 = vadd.f32 %v1021, %v1068
      %v1070 = vpop.f32.mrb[0].mxu0
      %1071 = vdwg.mxu0
      %1072 = vrot.lane.b32.xlu0 %v699, 120
      %v1073 = vpop.permute.xlu0 %1072
      %1074 = vrot.lane.b32.xlu0 %v700, 120
      %v1075 = vpop.permute.xlu0 %1074
      %1078 = vrot.lane.b32.xlu0 %v689, 120
      %v1079 = vpop.permute.xlu0 %1078
      %1081 = vmatprep.subr.bf16.mxu0 0
      %1082 = vmatpush1.bf16.msra.mxu0 %v1073
      %1083 = vmatprep.subr.bf16.mxu0 0
      %1084 = vmatpush1.bf16.msra.mxu0 %v1075
      %1085 = vmatprep.subr.bf16.mxu0 0
      %1086 = vmatpush1.bf16.msra.mxu0 0
      %1087 = vmatprep.subr.bf16.mxu0 0
      %1088 = vmatpush1.bf16.msra.mxu0 0
      %1089 = vmatprep.subr.bf16.mxu0 0
      %1090 = vmatpush1.bf16.msra.mxu0 0
      %1091 = vmatprep.subr.bf16.mxu0 0
      %1092 = vmatpush1.bf16.msra.mxu0 0
      %1093 = vmatprep.subr.bf16.mxu0 0
      %1094 = vmatpush1.bf16.msra.mxu0 0
      %1095 = vmatprep.subr.bf16.mxu0 0
      %1096 = vmatpush1.bf16.msra.mxu0 0
      %1097 = vmatprep.subr.bf16.mxu0 0
      %1098 = vmatpush1.bf16.msra.mxu0 0
      %1099 = vmatprep.subr.bf16.mxu0 0
      %1100 = vmatpush1.bf16.msra.mxu0 0
      %1101 = vmatprep.subr.bf16.mxu0 0
      %1102 = vmatpush1.bf16.msra.mxu0 0
      %1103 = vmatprep.subr.bf16.mxu0 0
      %1104 = vmatpush1.bf16.msra.mxu0 0
      %1105 = vmatprep.subr.bf16.mxu0 0
      %1106 = vmatpush1.bf16.msra.mxu0 0
      %1107 = vmatprep.subr.bf16.mxu0 0
      %1108 = vmatpush1.bf16.msra.mxu0 0
      %1109 = vmatprep.subr.bf16.mxu0 0
      %1110 = vmatpush1.bf16.msra.mxu0 0
      %1111 = vmatprep.subr.bf16.mxu0 0
      %1112 = vmatpush1.bf16.msra.mxu0 0
      %1113 = vmatprep.mubr.bf16.mxu0 0
      %1114 = vmatmul.mubr.bf16.gmra.mrb[0].mxu0 %v704
      %v1115 = vpop.f32.mrb[0].mxu0
      %v1116 = vadd.f32 %v1079, %v1115
      %v1117 = vpop.f32.mrb[0].mxu0
      %v1118 = vpop.f32.mrb[0].mxu0
      %v1119 = vadd.f32 %v1079, %v1118
      %v1120 = vpop.f32.mrb[0].mxu0
      %1121 = vmatprep.mubr.bf16.mxu0 0
      %1122 = vmatmul.mubr.bf16.gmra.mrb[0].mxu0 %v707
      %v1123 = vpop.f32.mrb[0].mxu0
      %v1124 = vadd.f32 %v1079, %v1123
      %v1125 = vpop.f32.mrb[0].mxu0
      %v1126 = vpop.f32.mrb[0].mxu0
      %v1127 = vadd.f32 %v1079, %v1126
      %v1128 = vpop.f32.mrb[0].mxu0
      %1129 = vdwg.mxu0
      %1130 = vrot.lane.b32.xlu0 %v777, 120
      %v1131 = vpop.permute.xlu0 %1130
      %1132 = vrot.lane.b32.xlu0 %v778, 120
      %v1133 = vpop.permute.xlu0 %1132
      %1136 = vrot.lane.b32.xlu0 %v767, 120
      %v1137 = vpop.permute.xlu0 %1136
      %1139 = vmatprep.subr.bf16.mxu0 0
      %1140 = vmatpush1.bf16.msra.mxu0 %v1131
      %1141 = vmatprep.subr.bf16.mxu0 0
      %1142 = vmatpush1.bf16.msra.mxu0 %v1133
      %1143 = vmatprep.subr.bf16.mxu0 0
      %1144 = vmatpush1.bf16.msra.mxu0 0
      %1145 = vmatprep.subr.bf16.mxu0 0
      %1146 = vmatpush1.bf16.msra.mxu0 0
      %1147 = vmatprep.subr.bf16.mxu0 0
      %1148 = vmatpush1.bf16.msra.mxu0 0
      %1149 = vmatprep.subr.bf16.mxu0 0
      %1150 = vmatpush1.bf16.msra.mxu0 0
      %1151 = vmatprep.subr.bf16.mxu0 0
      %1152 = vmatpush1.bf16.msra.mxu0 0
      %1153 = vmatprep.subr.bf16.mxu0 0
      %1154 = vmatpush1.bf16.msra.mxu0 0
      %1155 = vmatprep.subr.bf16.mxu0 0
      %1156 = vmatpush1.bf16.msra.mxu0 0
      %1157 = vmatprep.subr.bf16.mxu0 0
      %1158 = vmatpush1.bf16.msra.mxu0 0
      %1159 = vmatprep.subr.bf16.mxu0 0
      %1160 = vmatpush1.bf16.msra.mxu0 0
      %1161 = vmatprep.subr.bf16.mxu0 0
      %1162 = vmatpush1.bf16.msra.mxu0 0
      %1163 = vmatprep.subr.bf16.mxu0 0
      %1164 = vmatpush1.bf16.msra.mxu0 0
      %1165 = vmatprep.subr.bf16.mxu0 0
      %1166 = vmatpush1.bf16.msra.mxu0 0
      %1167 = vmatprep.subr.bf16.mxu0 0
      %1168 = vmatpush1.bf16.msra.mxu0 0
      %1169 = vmatprep.subr.bf16.mxu0 0
      %1170 = vmatpush1.bf16.msra.mxu0 0
      %1171 = vmatprep.mubr.bf16.mxu0 0
      %1172 = vmatmul.mubr.bf16.gmra.mrb[0].mxu0 %v782
      %v1173 = vpop.f32.mrb[0].mxu0
      %v1174 = vadd.f32 %v1137, %v1173
      %v1175 = vpop.f32.mrb[0].mxu0
      %v1176 = vpop.f32.mrb[0].mxu0
      %v1177 = vadd.f32 %v1137, %v1176
      %v1178 = vpop.f32.mrb[0].mxu0
      %1179 = vmatprep.mubr.bf16.mxu0 0
      %1180 = vmatmul.mubr.bf16.gmra.mrb[0].mxu0 %v785
      %v1181 = vpop.f32.mrb[0].mxu0
      %v1182 = vadd.f32 %v1137, %v1181
      %v1183 = vpop.f32.mrb[0].mxu0
      %v1184 = vpop.f32.mrb[0].mxu0
      %v1185 = vadd.f32 %v1137, %v1184
      %v1186 = vpop.f32.mrb[0].mxu0
      %1187 = vdwg.mxu0
      %v1188 = vpack.c.bf16 %v1061, %v1058
      %v1189 = vpack.c.bf16 %v1069, %v1066
      %v1190 = vpack.c.bf16 %v1119, %v1116
      %v1191 = vpack.c.bf16 %v1127, %v1124
      %v1193 = vsel %vm846, %v1188, 0
      %v1196 = vsel %vm846, %v1189, 0
      %v1199 = vsel %vm846, %v1190, 0
      %v1202 = vsel %vm846, %v1191, 0
      %1204 = vmatprep.subr.bf16.mxu0 0
      %1205 = vmatpush1.bf16.xpose.msra.mxu0 %v1199
      %1206 = vmatprep.subr.bf16.mxu0 0
      %1207 = vmatpush1.bf16.xpose.msra.mxu0 %v1202
      %1208 = vmatprep.subr.bf16.mxu0 0
      %1209 = vmatpush1.bf16.xpose.msra.mxu0 0
      %1210 = vmatprep.subr.bf16.mxu0 0
      %1211 = vmatpush1.bf16.xpose.msra.mxu0 0
      %1212 = vmatprep.subr.bf16.mxu0 0
      %1213 = vmatpush1.bf16.xpose.msra.mxu0 0
      %1214 = vmatprep.subr.bf16.mxu0 0
      %1215 = vmatpush1.bf16.xpose.msra.mxu0 0
      %1216 = vmatprep.subr.bf16.mxu0 0
      %1217 = vmatpush1.bf16.xpose.msra.mxu0 0
      %1218 = vmatprep.subr.bf16.mxu0 0
      %1219 = vmatpush1.bf16.xpose.msra.mxu0 0
      %1220 = vmatprep.subr.bf16.mxu0 0
      %1221 = vmatpush1.bf16.xpose.msra.mxu0 0
      %1222 = vmatprep.subr.bf16.mxu0 0
      %1223 = vmatpush1.bf16.xpose.msra.mxu0 0
      %1224 = vmatprep.subr.bf16.mxu0 0
      %1225 = vmatpush1.bf16.xpose.msra.mxu0 0
      %1226 = vmatprep.subr.bf16.mxu0 0
      %1227 = vmatpush1.bf16.xpose.msra.mxu0 0
      %1228 = vmatprep.subr.bf16.mxu0 0
      %1229 = vmatpush1.bf16.xpose.msra.mxu0 0
      %1230 = vmatprep.subr.bf16.mxu0 0
      %1231 = vmatpush1.bf16.xpose.msra.mxu0 0
      %1232 = vmatprep.subr.bf16.mxu0 0
      %1233 = vmatpush1.bf16.xpose.msra.mxu0 0
      %1234 = vmatprep.subr.bf16.mxu0 0
      %1235 = vmatpush1.bf16.xpose.msra.mxu0 0
      %1236 = vmatprep.mubr.bf16.mxu0 0
      %1237 = vmatmul.mubr.bf16.gmra.mrb[0].mxu0 %v1193
      %v1238 = vpop.f32.mrb[0].mxu0
      %v1239 = vadd.f32 %v844, %v1238
      %v1240 = vpop.f32.mrb[0].mxu0
      %v1241 = vpop.f32.mrb[0].mxu0
      %v1242 = vadd.f32 %v844, %v1241
      %v1243 = vpop.f32.mrb[0].mxu0
      %1244 = vmatprep.mubr.bf16.mxu0 0
      %1245 = vmatmul.mubr.bf16.gmra.mrb[0].mxu0 %v1196
      %v1246 = vpop.f32.mrb[0].mxu0
      %v1247 = vadd.f32 %v844, %v1246
      %v1248 = vpop.f32.mrb[0].mxu0
      %v1249 = vpop.f32.mrb[0].mxu0
      %v1250 = vadd.f32 %v844, %v1249
      %v1251 = vpop.f32.mrb[0].mxu0
      %1252 = vdwg.mxu0
      %v1253 = vsel %vm624, %v1239, -inf
      %1254 = vmax.xlane.f32.xlu0 %v1253
      %v1255 = vpop.xlane.xlu0 %1254
      %v1256 = vsel %vm624, %v1242, -inf
      %1257 = vmax.xlane.f32.xlu0 %v1256
      %v1258 = vpop.xlane.xlu0 %1257
      %v1259 = vsel %vm624, %v1247, -inf
      %1260 = vmax.xlane.f32.xlu0 %v1259
      %v1261 = vpop.xlane.xlu0 %1260
      %v1262 = vsel %vm624, %v1250, -inf
      %1263 = vmax.xlane.f32.xlu0 %v1262
      %v1264 = vpop.xlane.xlu0 %1263
      %v1265 = vsub.f32 %v1239, %v1255
      %v1266 = vsub.f32 %v1242, %v1258
      %v1267 = vsub.f32 %v1247, %v1261
      %v1268 = vsub.f32 %v1250, %v1264
      %v1269 = vmul.f32 %v1265, 1.442695
      %v1270 = vpow.pop %v1269
      %v1271 = vmul.f32 %v1266, 1.442695
      %v1272 = vpow.pop %v1271
      %v1273 = vmul.f32 %v1267, 1.442695
      %v1274 = vpow.pop %v1273
      %v1275 = vmul.f32 %v1268, 1.442695
      %v1276 = vpow.pop %v1275
      %v1277 = vsel %vm624, %v1270, 0.0
      %1278 = vadd.xlane.f32.xlu0 %v1277
      %v1279 = vpop.xlane.xlu0 %1278
      %v1280 = vsel %vm624, %v1272, 0.0
      %1281 = vadd.xlane.f32.xlu0 %v1280
      %v1282 = vpop.xlane.xlu0 %1281
      %v1283 = vsel %vm624, %v1274, 0.0
      %1284 = vadd.xlane.f32.xlu0 %v1283
      %v1285 = vpop.xlane.xlu0 %1284
      %v1286 = vsel %vm624, %v1276, 0.0
      %1287 = vadd.xlane.f32.xlu0 %v1286
      %v1288 = vpop.xlane.xlu0 %1287
      %v1289 = vrcp.pop %v1279
      %v1290 = vrcp.pop %v1282
      %v1291 = vrcp.pop %v1285
      %v1292 = vrcp.pop %v1288
      %v1293 = vpack.c.bf16 %v1272, %v1270
      %v1294 = vpack.c.bf16 %v1276, %v1274
      %v1295 = vpack.c.bf16 %v1177, %v1174
      %v1296 = vpack.c.bf16 %v1185, %v1182
      %v1298 = vsel %vm624, %v1293, 0
      %v1301 = vsel %vm624, %v1294, 0
      %1303 = vmatprep.subr.bf16.mxu0 0
      %1304 = vmatpush1.bf16.msra.mxu0 %v1295
      %1305 = vmatprep.subr.bf16.mxu0 0
      %1306 = vmatpush1.bf16.msra.mxu0 %v1296
      %1307 = vmatprep.subr.bf16.mxu0 0
      %1308 = vmatpush1.bf16.msra.mxu0 0
      %1309 = vmatprep.subr.bf16.mxu0 0
      %1310 = vmatpush1.bf16.msra.mxu0 0
      %1311 = vmatprep.subr.bf16.mxu0 0
      %1312 = vmatpush1.bf16.msra.mxu0 0
      %1313 = vmatprep.subr.bf16.mxu0 0
      %1314 = vmatpush1.bf16.msra.mxu0 0
      %1315 = vmatprep.subr.bf16.mxu0 0
      %1316 = vmatpush1.bf16.msra.mxu0 0
      %1317 = vmatprep.subr.bf16.mxu0 0
      %1318 = vmatpush1.bf16.msra.mxu0 0
      %1319 = vmatprep.subr.bf16.mxu0 0
      %1320 = vmatpush1.bf16.msra.mxu0 0
      %1321 = vmatprep.subr.bf16.mxu0 0
      %1322 = vmatpush1.bf16.msra.mxu0 0
      %1323 = vmatprep.subr.bf16.mxu0 0
      %1324 = vmatpush1.bf16.msra.mxu0 0
      %1325 = vmatprep.subr.bf16.mxu0 0
      %1326 = vmatpush1.bf16.msra.mxu0 0
      %1327 = vmatprep.subr.bf16.mxu0 0
      %1328 = vmatpush1.bf16.msra.mxu0 0
      %1329 = vmatprep.subr.bf16.mxu0 0
      %1330 = vmatpush1.bf16.msra.mxu0 0
      %1331 = vmatprep.subr.bf16.mxu0 0
      %1332 = vmatpush1.bf16.msra.mxu0 0
      %1333 = vmatprep.subr.bf16.mxu0 0
      %1334 = vmatpush1.bf16.msra.mxu0 0
      %1335 = vmatprep.mubr.bf16.mxu0 0
      %1336 = vmatmul.mubr.bf16.gmra.mrb[0].mxu0 %v1298
      %v1337 = vpop.f32.mrb[0].mxu0
      %v1338 = vadd.f32 0.0, %v1337
      %v1339 = vpop.f32.mrb[0].mxu0
      %v1340 = vpop.f32.mrb[0].mxu0
      %v1341 = vadd.f32 0.0, %v1340
      %v1342 = vpop.f32.mrb[0].mxu0
      %1343 = vmatprep.mubr.bf16.mxu0 0
      %1344 = vmatmul.mubr.bf16.gmra.mrb[0].mxu0 %v1301
      %v1345 = vpop.f32.mrb[0].mxu0
      %v1346 = vadd.f32 0.0, %v1345
      %v1347 = vpop.f32.mrb[0].mxu0
      %v1348 = vpop.f32.mrb[0].mxu0
      %v1349 = vadd.f32 0.0, %v1348
      %v1350 = vpop.f32.mrb[0].mxu0
      %1351 = vdwg.mxu0
      %v1352 = vmul.f32 %v1338, %v1289
      %v1353 = vmul.f32 %v1341, %v1290
      %v1354 = vmul.f32 %v1346, %v1291
      %v1355 = vmul.f32 %v1349, %v1292
      %v1356 = vpack.c.bf16 %v1353, %v1352
      %v1357 = vpack.c.bf16 %v1355, %v1354
      %v1358 = vld [vmem:[%s11 + $0x4] sm:$0xf]
      %v1360 = vsel %vm846, %v1356, 0
      %v1363 = vsel %vm846, %v1357, 0
      %vm1365 = vcmask 1043456
      %v1367 = vsel %vm1365, %v1358, 0
      %1369 = vmatprep.subr.bf16.mxu0 0
      %1370 = vmatpush1.bf16.msra.mxu0 %v1367
      %1371 = vmatprep.subr.bf16.mxu0 0
      %1372 = vmatpush1.bf16.msra.mxu0 0
      %1373 = vmatprep.subr.bf16.mxu0 0
      %1374 = vmatpush1.bf16.msra.mxu0 0
      %1375 = vmatprep.subr.bf16.mxu0 0
      %1376 = vmatpush1.bf16.msra.mxu0 0
      %1377 = vmatprep.subr.bf16.mxu0 0
      %1378 = vmatpush1.bf16.msra.mxu0 0
      %1379 = vmatprep.subr.bf16.mxu0 0
      %1380 = vmatpush1.bf16.msra.mxu0 0
      %1381 = vmatprep.subr.bf16.mxu0 0
      %1382 = vmatpush1.bf16.msra.mxu0 0
      %1383 = vmatprep.subr.bf16.mxu0 0
      %1384 = vmatpush1.bf16.msra.mxu0 0
      %1385 = vmatprep.subr.bf16.mxu0 0
      %1386 = vmatpush1.bf16.msra.mxu0 0
      %1387 = vmatprep.subr.bf16.mxu0 0
      %1388 = vmatpush1.bf16.msra.mxu0 0
      %1389 = vmatprep.subr.bf16.mxu0 0
      %1390 = vmatpush1.bf16.msra.mxu0 0
      %1391 = vmatprep.subr.bf16.mxu0 0
      %1392 = vmatpush1.bf16.msra.mxu0 0
      %1393 = vmatprep.subr.bf16.mxu0 0
      %1394 = vmatpush1.bf16.msra.mxu0 0
      %1395 = vmatprep.subr.bf16.mxu0 0
      %1396 = vmatpush1.bf16.msra.mxu0 0
      %1397 = vmatprep.subr.bf16.mxu0 0
      %1398 = vmatpush1.bf16.msra.mxu0 0
      %1399 = vmatprep.subr.bf16.mxu0 0
      %1400 = vmatpush1.bf16.msra.mxu0 0
      %1401 = vmatprep.mubr.bf16.mxu0 0
      %1402 = vmatmul.mubr.bf16.gmra.mrb[0].mxu0 %v1360
      %v1403 = vpop.f32.mrb[0].mxu0
      %v1404 = vadd.f32 0.0, %v1403
      %v1405 = vpop.f32.mrb[0].mxu0
      %v1406 = vpop.f32.mrb[0].mxu0
      %v1407 = vadd.f32 0.0, %v1406
      %v1408 = vpop.f32.mrb[0].mxu0
      %1409 = vmatprep.mubr.bf16.mxu0 0
      %1410 = vmatmul.mubr.bf16.gmra.mrb[0].mxu0 %v1363
      %v1411 = vpop.f32.mrb[0].mxu0
      %v1412 = vadd.f32 0.0, %v1411
      %v1413 = vpop.f32.mrb[0].mxu0
      %v1414 = vpop.f32.mrb[0].mxu0
      %v1415 = vadd.f32 0.0, %v1414
      %v1416 = vpop.f32.mrb[0].mxu0
      %1417 = vdwg.mxu0
      %v1419 = vsel %vm846, %v1011, 0
      %v1422 = vsel %vm846, %v1012, 0
      %v1425 = vsel %vm1365, %v1013, 0
      %1427 = vmatprep.subr.bf16.mxu0 0
      %1428 = vmatpush1.bf16.msra.mxu0 %v1425
      %1429 = vmatprep.subr.bf16.mxu0 0
      %1430 = vmatpush1.bf16.msra.mxu0 0
      %1431 = vmatprep.subr.bf16.mxu0 0
      %1432 = vmatpush1.bf16.msra.mxu0 0
      %1433 = vmatprep.subr.bf16.mxu0 0
      %1434 = vmatpush1.bf16.msra.mxu0 0
      %1435 = vmatprep.subr.bf16.mxu0 0
      %1436 = vmatpush1.bf16.msra.mxu0 0
      %1437 = vmatprep.subr.bf16.mxu0 0
      %1438 = vmatpush1.bf16.msra.mxu0 0
      %1439 = vmatprep.subr.bf16.mxu0 0
      %1440 = vmatpush1.bf16.msra.mxu0 0
      %1441 = vmatprep.subr.bf16.mxu0 0
      %1442 = vmatpush1.bf16.msra.mxu0 0
      %1443 = vmatprep.subr.bf16.mxu0 0
      %1444 = vmatpush1.bf16.msra.mxu0 0
      %1445 = vmatprep.subr.bf16.mxu0 0
      %1446 = vmatpush1.bf16.msra.mxu0 0
      %1447 = vmatprep.subr.bf16.mxu0 0
      %1448 = vmatpush1.bf16.msra.mxu0 0
      %1449 = vmatprep.subr.bf16.mxu0 0
      %1450 = vmatpush1.bf16.msra.mxu0 0
      %1451 = vmatprep.subr.bf16.mxu0 0
      %1452 = vmatpush1.bf16.msra.mxu0 0
      %1453 = vmatprep.subr.bf16.mxu0 0
      %1454 = vmatpush1.bf16.msra.mxu0 0
      %1455 = vmatprep.subr.bf16.mxu0 0
      %1456 = vmatpush1.bf16.msra.mxu0 0
      %1457 = vmatprep.subr.bf16.mxu0 0
      %1458 = vmatpush1.bf16.msra.mxu0 0
      %1459 = vmatprep.mubr.bf16.mxu0 0
      %1460 = vmatmul.mubr.bf16.gmra.mrb[0].mxu0 %v1419
      %v1461 = vpop.f32.mrb[0].mxu0
      %v1462 = vadd.f32 %v1404, %v1461
      %v1463 = vpop.f32.mrb[0].mxu0
      %v1464 = vpop.f32.mrb[0].mxu0
      %v1465 = vadd.f32 %v1407, %v1464
      %v1466 = vpop.f32.mrb[0].mxu0
      %1467 = vmatprep.mubr.bf16.mxu0 0
      %1468 = vmatmul.mubr.bf16.gmra.mrb[0].mxu0 %v1422
      %v1469 = vpop.f32.mrb[0].mxu0
      %v1470 = vadd.f32 %v1412, %v1469
      %v1471 = vpop.f32.mrb[0].mxu0
      %v1472 = vpop.f32.mrb[0].mxu0
      %v1473 = vadd.f32 %v1415, %v1472
      %v1474 = vpop.f32.mrb[0].mxu0
      %1475 = vdwg.mxu0
      %1476 = vrot.lane.b32.xlu0 %v620, 112
      %v1477 = vpop.permute.xlu0 %1476
      %1478 = vrot.lane.b32.xlu0 %v621, 112
      %v1479 = vpop.permute.xlu0 %1478
      %1482 = vrot.lane.b32.xlu0 %v610, 112
      %v1483 = vpop.permute.xlu0 %1482
      %1485 = vmatprep.subr.bf16.mxu0 0
      %1486 = vmatpush1.bf16.msra.mxu0 %v1477
      %1487 = vmatprep.subr.bf16.mxu0 0
      %1488 = vmatpush1.bf16.msra.mxu0 %v1479
      %1489 = vmatprep.subr.bf16.mxu0 0
      %1490 = vmatpush1.bf16.msra.mxu0 0
      %1491 = vmatprep.subr.bf16.mxu0 0
      %1492 = vmatpush1.bf16.msra.mxu0 0
      %1493 = vmatprep.subr.bf16.mxu0 0
      %1494 = vmatpush1.bf16.msra.mxu0 0
      %1495 = vmatprep.subr.bf16.mxu0 0
      %1496 = vmatpush1.bf16.msra.mxu0 0
      %1497 = vmatprep.subr.bf16.mxu0 0
      %1498 = vmatpush1.bf16.msra.mxu0 0
      %1499 = vmatprep.subr.bf16.mxu0 0
      %1500 = vmatpush1.bf16.msra.mxu0 0
      %1501 = vmatprep.subr.bf16.mxu0 0
      %1502 = vmatpush1.bf16.msra.mxu0 0
      %1503 = vmatprep.subr.bf16.mxu0 0
      %1504 = vmatpush1.bf16.msra.mxu0 0
      %1505 = vmatprep.subr.bf16.mxu0 0
      %1506 = vmatpush1.bf16.msra.mxu0 0
      %1507 = vmatprep.subr.bf16.mxu0 0
      %1508 = vmatpush1.bf16.msra.mxu0 0
      %1509 = vmatprep.subr.bf16.mxu0 0
      %1510 = vmatpush1.bf16.msra.mxu0 0
      %1511 = vmatprep.subr.bf16.mxu0 0
      %1512 = vmatpush1.bf16.msra.mxu0 0
      %1513 = vmatprep.subr.bf16.mxu0 0
      %1514 = vmatpush1.bf16.msra.mxu0 0
      %1515 = vmatprep.subr.bf16.mxu0 0
      %1516 = vmatpush1.bf16.msra.mxu0 0
      %1517 = vmatprep.mubr.bf16.mxu0 0
      %1518 = vmatmul.mubr.bf16.gmra.mrb[0].mxu0 %v626
      %v1519 = vpop.f32.mrb[0].mxu0
      %v1520 = vadd.f32 %v1483, %v1519
      %v1521 = vpop.f32.mrb[0].mxu0
      %v1522 = vpop.f32.mrb[0].mxu0
      %v1523 = vadd.f32 %v1483, %v1522
      %v1524 = vpop.f32.mrb[0].mxu0
      %1525 = vmatprep.mubr.bf16.mxu0 0
      %1526 = vmatmul.mubr.bf16.gmra.mrb[0].mxu0 %v629
      %v1527 = vpop.f32.mrb[0].mxu0
      %v1528 = vadd.f32 %v1483, %v1527
      %v1529 = vpop.f32.mrb[0].mxu0
      %v1530 = vpop.f32.mrb[0].mxu0
      %v1531 = vadd.f32 %v1483, %v1530
      %v1532 = vpop.f32.mrb[0].mxu0
      %1533 = vdwg.mxu0
      %1534 = vrot.lane.b32.xlu0 %v699, 112
      %v1535 = vpop.permute.xlu0 %1534
      %1536 = vrot.lane.b32.xlu0 %v700, 112
      %v1537 = vpop.permute.xlu0 %1536
      %1540 = vrot.lane.b32.xlu0 %v689, 112
      %v1541 = vpop.permute.xlu0 %1540
      %1543 = vmatprep.subr.bf16.mxu0 0
      %1544 = vmatpush1.bf16.msra.mxu0 %v1535
      %1545 = vmatprep.subr.bf16.mxu0 0
      %1546 = vmatpush1.bf16.msra.mxu0 %v1537
      %1547 = vmatprep.subr.bf16.mxu0 0
      %1548 = vmatpush1.bf16.msra.mxu0 0
      %1549 = vmatprep.subr.bf16.mxu0 0
      %1550 = vmatpush1.bf16.msra.mxu0 0
      %1551 = vmatprep.subr.bf16.mxu0 0
      %1552 = vmatpush1.bf16.msra.mxu0 0
      %1553 = vmatprep.subr.bf16.mxu0 0
      %1554 = vmatpush1.bf16.msra.mxu0 0
      %1555 = vmatprep.subr.bf16.mxu0 0
      %1556 = vmatpush1.bf16.msra.mxu0 0
      %1557 = vmatprep.subr.bf16.mxu0 0
      %1558 = vmatpush1.bf16.msra.mxu0 0
      %1559 = vmatprep.subr.bf16.mxu0 0
      %1560 = vmatpush1.bf16.msra.mxu0 0
      %1561 = vmatprep.subr.bf16.mxu0 0
      %1562 = vmatpush1.bf16.msra.mxu0 0
      %1563 = vmatprep.subr.bf16.mxu0 0
      %1564 = vmatpush1.bf16.msra.mxu0 0
      %1565 = vmatprep.subr.bf16.mxu0 0
      %1566 = vmatpush1.bf16.msra.mxu0 0
      %1567 = vmatprep.subr.bf16.mxu0 0
      %1568 = vmatpush1.bf16.msra.mxu0 0
      %1569 = vmatprep.subr.bf16.mxu0 0
      %1570 = vmatpush1.bf16.msra.mxu0 0
      %1571 = vmatprep.subr.bf16.mxu0 0
      %1572 = vmatpush1.bf16.msra.mxu0 0
      %1573 = vmatprep.subr.bf16.mxu0 0
      %1574 = vmatpush1.bf16.msra.mxu0 0
      %1575 = vmatprep.mubr.bf16.mxu0 0
      %1576 = vmatmul.mubr.bf16.gmra.mrb[0].mxu0 %v704
      %v1577 = vpop.f32.mrb[0].mxu0
      %v1578 = vadd.f32 %v1541, %v1577
      %v1579 = vpop.f32.mrb[0].mxu0
      %v1580 = vpop.f32.mrb[0].mxu0
      %v1581 = vadd.f32 %v1541, %v1580
      %v1582 = vpop.f32.mrb[0].mxu0
      %1583 = vmatprep.mubr.bf16.mxu0 0
      %1584 = vmatmul.mubr.bf16.gmra.mrb[0].mxu0 %v707
      %v1585 = vpop.f32.mrb[0].mxu0
      %v1586 = vadd.f32 %v1541, %v1585
      %v1587 = vpop.f32.mrb[0].mxu0
      %v1588 = vpop.f32.mrb[0].mxu0
      %v1589 = vadd.f32 %v1541, %v1588
      %v1590 = vpop.f32.mrb[0].mxu0
      %1591 = vdwg.mxu0
      %1592 = vrot.lane.b32.xlu0 %v777, 112
      %v1593 = vpop.permute.xlu0 %1592
      %1594 = vrot.lane.b32.xlu0 %v778, 112
      %v1595 = vpop.permute.xlu0 %1594
      %1598 = vrot.lane.b32.xlu0 %v767, 112
      %v1599 = vpop.permute.xlu0 %1598
      %1601 = vmatprep.subr.bf16.mxu0 0
      %1602 = vmatpush1.bf16.msra.mxu0 %v1593
      %1603 = vmatprep.subr.bf16.mxu0 0
      %1604 = vmatpush1.bf16.msra.mxu0 %v1595
      %1605 = vmatprep.subr.bf16.mxu0 0
      %1606 = vmatpush1.bf16.msra.mxu0 0
      %1607 = vmatprep.subr.bf16.mxu0 0
      %1608 = vmatpush1.bf16.msra.mxu0 0
      %1609 = vmatprep.subr.bf16.mxu0 0
      %1610 = vmatpush1.bf16.msra.mxu0 0
      %1611 = vmatprep.subr.bf16.mxu0 0
      %1612 = vmatpush1.bf16.msra.mxu0 0
      %1613 = vmatprep.subr.bf16.mxu0 0
      %1614 = vmatpush1.bf16.msra.mxu0 0
      %1615 = vmatprep.subr.bf16.mxu0 0
      %1616 = vmatpush1.bf16.msra.mxu0 0
      %1617 = vmatprep.subr.bf16.mxu0 0
      %1618 = vmatpush1.bf16.msra.mxu0 0
      %1619 = vmatprep.subr.bf16.mxu0 0
      %1620 = vmatpush1.bf16.msra.mxu0 0
      %1621 = vmatprep.subr.bf16.mxu0 0
      %1622 = vmatpush1.bf16.msra.mxu0 0
      %1623 = vmatprep.subr.bf16.mxu0 0
      %1624 = vmatpush1.bf16.msra.mxu0 0
      %1625 = vmatprep.subr.bf16.mxu0 0
      %1626 = vmatpush1.bf16.msra.mxu0 0
      %1627 = vmatprep.subr.bf16.mxu0 0
      %1628 = vmatpush1.bf16.msra.mxu0 0
      %1629 = vmatprep.subr.bf16.mxu0 0
      %1630 = vmatpush1.bf16.msra.mxu0 0
      %1631 = vmatprep.subr.bf16.mxu0 0
      %1632 = vmatpush1.bf16.msra.mxu0 0
      %1633 = vmatprep.mubr.bf16.mxu0 0
      %1634 = vmatmul.mubr.bf16.gmra.mrb[0].mxu0 %v782
      %v1635 = vpop.f32.mrb[0].mxu0
      %v1636 = vadd.f32 %v1599, %v1635
      %v1637 = vpop.f32.mrb[0].mxu0
      %v1638 = vpop.f32.mrb[0].mxu0
      %v1639 = vadd.f32 %v1599, %v1638
      %v1640 = vpop.f32.mrb[0].mxu0
      %1641 = vmatprep.mubr.bf16.mxu0 0
      %1642 = vmatmul.mubr.bf16.gmra.mrb[0].mxu0 %v785
      %v1643 = vpop.f32.mrb[0].mxu0
      %v1644 = vadd.f32 %v1599, %v1643
      %v1645 = vpop.f32.mrb[0].mxu0
      %v1646 = vpop.f32.mrb[0].mxu0
      %v1647 = vadd.f32 %v1599, %v1646
      %v1648 = vpop.f32.mrb[0].mxu0
      %1649 = vdwg.mxu0
      %v1650 = vpack.c.bf16 %v1523, %v1520
      %v1651 = vpack.c.bf16 %v1531, %v1528
      %v1652 = vpack.c.bf16 %v1581, %v1578
      %v1653 = vpack.c.bf16 %v1589, %v1586
      %v1655 = vsel %vm846, %v1650, 0
      %v1658 = vsel %vm846, %v1651, 0
      %v1661 = vsel %vm846, %v1652, 0
      %v1664 = vsel %vm846, %v1653, 0
      %1666 = vmatprep.subr.bf16.mxu0 0
      %1667 = vmatpush1.bf16.xpose.msra.mxu0 %v1661
      %1668 = vmatprep.subr.bf16.mxu0 0
      %1669 = vmatpush1.bf16.xpose.msra.mxu0 %v1664
      %1670 = vmatprep.subr.bf16.mxu0 0
      %1671 = vmatpush1.bf16.xpose.msra.mxu0 0
      %1672 = vmatprep.subr.bf16.mxu0 0
      %1673 = vmatpush1.bf16.xpose.msra.mxu0 0
      %1674 = vmatprep.subr.bf16.mxu0 0
      %1675 = vmatpush1.bf16.xpose.msra.mxu0 0
      %1676 = vmatprep.subr.bf16.mxu0 0
      %1677 = vmatpush1.bf16.xpose.msra.mxu0 0
      %1678 = vmatprep.subr.bf16.mxu0 0
      %1679 = vmatpush1.bf16.xpose.msra.mxu0 0
      %1680 = vmatprep.subr.bf16.mxu0 0
      %1681 = vmatpush1.bf16.xpose.msra.mxu0 0
      %1682 = vmatprep.subr.bf16.mxu0 0
      %1683 = vmatpush1.bf16.xpose.msra.mxu0 0
      %1684 = vmatprep.subr.bf16.mxu0 0
      %1685 = vmatpush1.bf16.xpose.msra.mxu0 0
      %1686 = vmatprep.subr.bf16.mxu0 0
      %1687 = vmatpush1.bf16.xpose.msra.mxu0 0
      %1688 = vmatprep.subr.bf16.mxu0 0
      %1689 = vmatpush1.bf16.xpose.msra.mxu0 0
      %1690 = vmatprep.subr.bf16.mxu0 0
      %1691 = vmatpush1.bf16.xpose.msra.mxu0 0
      %1692 = vmatprep.subr.bf16.mxu0 0
      %1693 = vmatpush1.bf16.xpose.msra.mxu0 0
      %1694 = vmatprep.subr.bf16.mxu0 0
      %1695 = vmatpush1.bf16.xpose.msra.mxu0 0
      %1696 = vmatprep.subr.bf16.mxu0 0
      %1697 = vmatpush1.bf16.xpose.msra.mxu0 0
      %1698 = vmatprep.mubr.bf16.mxu0 0
      %1699 = vmatmul.mubr.bf16.gmra.mrb[0].mxu0 %v1655
      %v1700 = vpop.f32.mrb[0].mxu0
      %v1701 = vadd.f32 %v844, %v1700
      %v1702 = vpop.f32.mrb[0].mxu0
      %v1703 = vpop.f32.mrb[0].mxu0
      %v1704 = vadd.f32 %v844, %v1703
      %v1705 = vpop.f32.mrb[0].mxu0
      %1706 = vmatprep.mubr.bf16.mxu0 0
      %1707 = vmatmul.mubr.bf16.gmra.mrb[0].mxu0 %v1658
      %v1708 = vpop.f32.mrb[0].mxu0
      %v1709 = vadd.f32 %v844, %v1708
      %v1710 = vpop.f32.mrb[0].mxu0
      %v1711 = vpop.f32.mrb[0].mxu0
      %v1712 = vadd.f32 %v844, %v1711
      %v1713 = vpop.f32.mrb[0].mxu0
      %1714 = vdwg.mxu0
      %v1715 = vsel %vm624, %v1701, -inf
      %1716 = vmax.xlane.f32.xlu0 %v1715
      %v1717 = vpop.xlane.xlu0 %1716
      %v1718 = vsel %vm624, %v1704, -inf
      %1719 = vmax.xlane.f32.xlu0 %v1718
      %v1720 = vpop.xlane.xlu0 %1719
      %v1721 = vsel %vm624, %v1709, -inf
      %1722 = vmax.xlane.f32.xlu0 %v1721
      %v1723 = vpop.xlane.xlu0 %1722
      %v1724 = vsel %vm624, %v1712, -inf
      %1725 = vmax.xlane.f32.xlu0 %v1724
      %v1726 = vpop.xlane.xlu0 %1725
      %v1727 = vsub.f32 %v1701, %v1717
      %v1728 = vsub.f32 %v1704, %v1720
      %v1729 = vsub.f32 %v1709, %v1723
      %v1730 = vsub.f32 %v1712, %v1726
      %v1731 = vmul.f32 %v1727, 1.442695
      %v1732 = vpow.pop %v1731
      %v1733 = vmul.f32 %v1728, 1.442695
      %v1734 = vpow.pop %v1733
      %v1735 = vmul.f32 %v1729, 1.442695
      %v1736 = vpow.pop %v1735
      %v1737 = vmul.f32 %v1730, 1.442695
      %v1738 = vpow.pop %v1737
      %v1739 = vsel %vm624, %v1732, 0.0
      %1740 = vadd.xlane.f32.xlu0 %v1739
      %v1741 = vpop.xlane.xlu0 %1740
      %v1742 = vsel %vm624, %v1734, 0.0
      %1743 = vadd.xlane.f32.xlu0 %v1742
      %v1744 = vpop.xlane.xlu0 %1743
      %v1745 = vsel %vm624, %v1736, 0.0
      %1746 = vadd.xlane.f32.xlu0 %v1745
      %v1747 = vpop.xlane.xlu0 %1746
      %v1748 = vsel %vm624, %v1738, 0.0
      %1749 = vadd.xlane.f32.xlu0 %v1748
      %v1750 = vpop.xlane.xlu0 %1749
      %v1751 = vrcp.pop %v1741
      %v1752 = vrcp.pop %v1744
      %v1753 = vrcp.pop %v1747
      %v1754 = vrcp.pop %v1750
      %v1755 = vpack.c.bf16 %v1734, %v1732
      %v1756 = vpack.c.bf16 %v1738, %v1736
      %v1757 = vpack.c.bf16 %v1639, %v1636
      %v1758 = vpack.c.bf16 %v1647, %v1644
      %v1760 = vsel %vm624, %v1755, 0
      %v1763 = vsel %vm624, %v1756, 0
      %1765 = vmatprep.subr.bf16.mxu0 0
      %1766 = vmatpush1.bf16.msra.mxu0 %v1757
      %1767 = vmatprep.subr.bf16.mxu0 0
      %1768 = vmatpush1.bf16.msra.mxu0 %v1758
      %1769 = vmatprep.subr.bf16.mxu0 0
      %1770 = vmatpush1.bf16.msra.mxu0 0
      %1771 = vmatprep.subr.bf16.mxu0 0
      %1772 = vmatpush1.bf16.msra.mxu0 0
      %1773 = vmatprep.subr.bf16.mxu0 0
      %1774 = vmatpush1.bf16.msra.mxu0 0
      %1775 = vmatprep.subr.bf16.mxu0 0
      %1776 = vmatpush1.bf16.msra.mxu0 0
      %1777 = vmatprep.subr.bf16.mxu0 0
      %1778 = vmatpush1.bf16.msra.mxu0 0
      %1779 = vmatprep.subr.bf16.mxu0 0
      %1780 = vmatpush1.bf16.msra.mxu0 0
      %1781 = vmatprep.subr.bf16.mxu0 0
      %1782 = vmatpush1.bf16.msra.mxu0 0
      %1783 = vmatprep.subr.bf16.mxu0 0
      %1784 = vmatpush1.bf16.msra.mxu0 0
      %1785 = vmatprep.subr.bf16.mxu0 0
      %1786 = vmatpush1.bf16.msra.mxu0 0
      %1787 = vmatprep.subr.bf16.mxu0 0
      %1788 = vmatpush1.bf16.msra.mxu0 0
      %1789 = vmatprep.subr.bf16.mxu0 0
      %1790 = vmatpush1.bf16.msra.mxu0 0
      %1791 = vmatprep.subr.bf16.mxu0 0
      %1792 = vmatpush1.bf16.msra.mxu0 0
      %1793 = vmatprep.subr.bf16.mxu0 0
      %1794 = vmatpush1.bf16.msra.mxu0 0
      %1795 = vmatprep.subr.bf16.mxu0 0
      %1796 = vmatpush1.bf16.msra.mxu0 0
      %1797 = vmatprep.mubr.bf16.mxu0 0
      %1798 = vmatmul.mubr.bf16.gmra.mrb[0].mxu0 %v1760
      %v1799 = vpop.f32.mrb[0].mxu0
      %v1800 = vadd.f32 0.0, %v1799
      %v1801 = vpop.f32.mrb[0].mxu0
      %v1802 = vpop.f32.mrb[0].mxu0
      %v1803 = vadd.f32 0.0, %v1802
      %v1804 = vpop.f32.mrb[0].mxu0
      %1805 = vmatprep.mubr.bf16.mxu0 0
      %1806 = vmatmul.mubr.bf16.gmra.mrb[0].mxu0 %v1763
      %v1807 = vpop.f32.mrb[0].mxu0
      %v1808 = vadd.f32 0.0, %v1807
      %v1809 = vpop.f32.mrb[0].mxu0
      %v1810 = vpop.f32.mrb[0].mxu0
      %v1811 = vadd.f32 0.0, %v1810
      %v1812 = vpop.f32.mrb[0].mxu0
      %1813 = vdwg.mxu0
      %v1814 = vmul.f32 %v1800, %v1751
      %v1815 = vmul.f32 %v1803, %v1752
      %v1816 = vmul.f32 %v1808, %v1753
      %v1817 = vmul.f32 %v1811, %v1754
      %v1818 = vpack.c.bf16 %v1815, %v1814
      %v1819 = vpack.c.bf16 %v1817, %v1816
      %v1820 = vld [vmem:[%s11 + $0x8] sm:$0xf]
      %v1822 = vsel %vm846, %v1818, 0
      %v1825 = vsel %vm846, %v1819, 0
      %v1828 = vsel %vm1365, %v1820, 0
      %1830 = vmatprep.subr.bf16.mxu0 0
      %1831 = vmatpush1.bf16.msra.mxu0 %v1828
      %1832 = vmatprep.subr.bf16.mxu0 0
      %1833 = vmatpush1.bf16.msra.mxu0 0
      %1834 = vmatprep.subr.bf16.mxu0 0
      %1835 = vmatpush1.bf16.msra.mxu0 0
      %1836 = vmatprep.subr.bf16.mxu0 0
      %1837 = vmatpush1.bf16.msra.mxu0 0
      %1838 = vmatprep.subr.bf16.mxu0 0
      %1839 = vmatpush1.bf16.msra.mxu0 0
      %1840 = vmatprep.subr.bf16.mxu0 0
      %1841 = vmatpush1.bf16.msra.mxu0 0
      %1842 = vmatprep.subr.bf16.mxu0 0
      %1843 = vmatpush1.bf16.msra.mxu0 0
      %1844 = vmatprep.subr.bf16.mxu0 0
      %1845 = vmatpush1.bf16.msra.mxu0 0
      %1846 = vmatprep.subr.bf16.mxu0 0
      %1847 = vmatpush1.bf16.msra.mxu0 0
      %1848 = vmatprep.subr.bf16.mxu0 0
      %1849 = vmatpush1.bf16.msra.mxu0 0
      %1850 = vmatprep.subr.bf16.mxu0 0
      %1851 = vmatpush1.bf16.msra.mxu0 0
      %1852 = vmatprep.subr.bf16.mxu0 0
      %1853 = vmatpush1.bf16.msra.mxu0 0
      %1854 = vmatprep.subr.bf16.mxu0 0
      %1855 = vmatpush1.bf16.msra.mxu0 0
      %1856 = vmatprep.subr.bf16.mxu0 0
      %1857 = vmatpush1.bf16.msra.mxu0 0
      %1858 = vmatprep.subr.bf16.mxu0 0
      %1859 = vmatpush1.bf16.msra.mxu0 0
      %1860 = vmatprep.subr.bf16.mxu0 0
      %1861 = vmatpush1.bf16.msra.mxu0 0
      %1862 = vmatprep.mubr.bf16.mxu0 0
      %1863 = vmatmul.mubr.bf16.gmra.mrb[0].mxu0 %v1822
      %v1864 = vpop.f32.mrb[0].mxu0
      %v1865 = vadd.f32 0.0, %v1864
      %v1866 = vpop.f32.mrb[0].mxu0
      %v1867 = vpop.f32.mrb[0].mxu0
      %v1868 = vadd.f32 0.0, %v1867
      %v1869 = vpop.f32.mrb[0].mxu0
      %1870 = vmatprep.mubr.bf16.mxu0 0
      %1871 = vmatmul.mubr.bf16.gmra.mrb[0].mxu0 %v1825
      %v1872 = vpop.f32.mrb[0].mxu0
      %v1873 = vadd.f32 0.0, %v1872
      %v1874 = vpop.f32.mrb[0].mxu0
      %v1875 = vpop.f32.mrb[0].mxu0
      %v1876 = vadd.f32 0.0, %v1875
      %v1877 = vpop.f32.mrb[0].mxu0
      %1878 = vdwg.mxu0
      %v1879 = vadd.f32 %v1462, %v1865
      %v1880 = vadd.f32 %v1465, %v1868
      %v1881 = vadd.f32 %v1470, %v1873
      %v1882 = vadd.f32 %v1473, %v1876
      %1883 = vrot.lane.b32.xlu0 %v620, 104
      %v1884 = vpop.permute.xlu0 %1883
      %1885 = vrot.lane.b32.xlu0 %v621, 104
      %v1886 = vpop.permute.xlu0 %1885
      %1889 = vrot.lane.b32.xlu0 %v610, 104
      %v1890 = vpop.permute.xlu0 %1889
      %1892 = vmatprep.subr.bf16.mxu0 0
      %1893 = vmatpush1.bf16.msra.mxu0 %v1884
      %1894 = vmatprep.subr.bf16.mxu0 0
      %1895 = vmatpush1.bf16.msra.mxu0 %v1886
      %1896 = vmatprep.subr.bf16.mxu0 0
      %1897 = vmatpush1.bf16.msra.mxu0 0
      %1898 = vmatprep.subr.bf16.mxu0 0
      %1899 = vmatpush1.bf16.msra.mxu0 0
      %1900 = vmatprep.subr.bf16.mxu0 0
      %1901 = vmatpush1.bf16.msra.mxu0 0
      %1902 = vmatprep.subr.bf16.mxu0 0
      %1903 = vmatpush1.bf16.msra.mxu0 0
      %1904 = vmatprep.subr.bf16.mxu0 0
      %1905 = vmatpush1.bf16.msra.mxu0 0
      %1906 = vmatprep.subr.bf16.mxu0 0
      %1907 = vmatpush1.bf16.msra.mxu0 0
      %1908 = vmatprep.subr.bf16.mxu0 0
      %1909 = vmatpush1.bf16.msra.mxu0 0
      %1910 = vmatprep.subr.bf16.mxu0 0
      %1911 = vmatpush1.bf16.msra.mxu0 0
      %1912 = vmatprep.subr.bf16.mxu0 0
      %1913 = vmatpush1.bf16.msra.mxu0 0
      %1914 = vmatprep.subr.bf16.mxu0 0
      %1915 = vmatpush1.bf16.msra.mxu0 0
      %1916 = vmatprep.subr.bf16.mxu0 0
      %1917 = vmatpush1.bf16.msra.mxu0 0
      %1918 = vmatprep.subr.bf16.mxu0 0
      %1919 = vmatpush1.bf16.msra.mxu0 0
      %1920 = vmatprep.subr.bf16.mxu0 0
      %1921 = vmatpush1.bf16.msra.mxu0 0
      %1922 = vmatprep.subr.bf16.mxu0 0
      %1923 = vmatpush1.bf16.msra.mxu0 0
      %1924 = vmatprep.mubr.bf16.mxu0 0
      %1925 = vmatmul.mubr.bf16.gmra.mrb[0].mxu0 %v626
      %v1926 = vpop.f32.mrb[0].mxu0
      %v1927 = vadd.f32 %v1890, %v1926
      %v1928 = vpop.f32.mrb[0].mxu0
      %v1929 = vpop.f32.mrb[0].mxu0
      %v1930 = vadd.f32 %v1890, %v1929
      %v1931 = vpop.f32.mrb[0].mxu0
      %1932 = vmatprep.mubr.bf16.mxu0 0
      %1933 = vmatmul.mubr.bf16.gmra.mrb[0].mxu0 %v629
      %v1934 = vpop.f32.mrb[0].mxu0
      %v1935 = vadd.f32 %v1890, %v1934
      %v1936 = vpop.f32.mrb[0].mxu0
      %v1937 = vpop.f32.mrb[0].mxu0
      %v1938 = vadd.f32 %v1890, %v1937
      %v1939 = vpop.f32.mrb[0].mxu0
      %1940 = vdwg.mxu0
      %1941 = vrot.lane.b32.xlu0 %v699, 104
      %v1942 = vpop.permute.xlu0 %1941
      %1943 = vrot.lane.b32.xlu0 %v700, 104
      %v1944 = vpop.permute.xlu0 %1943
      %1947 = vrot.lane.b32.xlu0 %v689, 104
      %v1948 = vpop.permute.xlu0 %1947
      %1950 = vmatprep.subr.bf16.mxu0 0
      %1951 = vmatpush1.bf16.msra.mxu0 %v1942
      %1952 = vmatprep.subr.bf16.mxu0 0
      %1953 = vmatpush1.bf16.msra.mxu0 %v1944
      %1954 = vmatprep.subr.bf16.mxu0 0
      %1955 = vmatpush1.bf16.msra.mxu0 0
      %1956 = vmatprep.subr.bf16.mxu0 0
      %1957 = vmatpush1.bf16.msra.mxu0 0
      %1958 = vmatprep.subr.bf16.mxu0 0
      %1959 = vmatpush1.bf16.msra.mxu0 0
      %1960 = vmatprep.subr.bf16.mxu0 0
      %1961 = vmatpush1.bf16.msra.mxu0 0
      %1962 = vmatprep.subr.bf16.mxu0 0
      %1963 = vmatpush1.bf16.msra.mxu0 0
      %1964 = vmatprep.subr.bf16.mxu0 0
      %1965 = vmatpush1.bf16.msra.mxu0 0
      %1966 = vmatprep.subr.bf16.mxu0 0
      %1967 = vmatpush1.bf16.msra.mxu0 0
      %1968 = vmatprep.subr.bf16.mxu0 0
      %1969 = vmatpush1.bf16.msra.mxu0 0
      %1970 = vmatprep.subr.bf16.mxu0 0
      %1971 = vmatpush1.bf16.msra.mxu0 0
      %1972 = vmatprep.subr.bf16.mxu0 0
      %1973 = vmatpush1.bf16.msra.mxu0 0
      %1974 = vmatprep.subr.bf16.mxu0 0
      %1975 = vmatpush1.bf16.msra.mxu0 0
      %1976 = vmatprep.subr.bf16.mxu0 0
      %1977 = vmatpush1.bf16.msra.mxu0 0
      %1978 = vmatprep.subr.bf16.mxu0 0
      %1979 = vmatpush1.bf16.msra.mxu0 0
      %1980 = vmatprep.subr.bf16.mxu0 0
      %1981 = vmatpush1.bf16.msra.mxu0 0
      %1982 = vmatprep.mubr.bf16.mxu0 0
      %1983 = vmatmul.mubr.bf16.gmra.mrb[0].mxu0 %v704
      %v1984 = vpop.f32.mrb[0].mxu0
      %v1985 = vadd.f32 %v1948, %v1984
      %v1986 = vpop.f32.mrb[0].mxu0
      %v1987 = vpop.f32.mrb[0].mxu0
      %v1988 = vadd.f32 %v1948, %v1987
      %v1989 = vpop.f32.mrb[0].mxu0
      %1990 = vmatprep.mubr.bf16.mxu0 0
      %1991 = vmatmul.mubr.bf16.gmra.mrb[0].mxu0 %v707
      %v1992 = vpop.f32.mrb[0].mxu0
      %v1993 = vadd.f32 %v1948, %v1992
      %v1994 = vpop.f32.mrb[0].mxu0
      %v1995 = vpop.f32.mrb[0].mxu0
      %v1996 = vadd.f32 %v1948, %v1995
      %v1997 = vpop.f32.mrb[0].mxu0
      %1998 = vdwg.mxu0
      %1999 = vrot.lane.b32.xlu0 %v777, 104
      %v2000 = vpop.permute.xlu0 %1999
      %2001 = vrot.lane.b32.xlu0 %v778, 104
      %v2002 = vpop.permute.xlu0 %2001
      %2005 = vrot.lane.b32.xlu0 %v767, 104
      %v2006 = vpop.permute.xlu0 %2005
      %2008 = vmatprep.subr.bf16.mxu0 0
      %2009 = vmatpush1.bf16.msra.mxu0 %v2000
      %2010 = vmatprep.subr.bf16.mxu0 0
      %2011 = vmatpush1.bf16.msra.mxu0 %v2002
      %2012 = vmatprep.subr.bf16.mxu0 0
      %2013 = vmatpush1.bf16.msra.mxu0 0
      %2014 = vmatprep.subr.bf16.mxu0 0
      %2015 = vmatpush1.bf16.msra.mxu0 0
      %2016 = vmatprep.subr.bf16.mxu0 0
      %2017 = vmatpush1.bf16.msra.mxu0 0
      %2018 = vmatprep.subr.bf16.mxu0 0
      %2019 = vmatpush1.bf16.msra.mxu0 0
      %2020 = vmatprep.subr.bf16.mxu0 0
      %2021 = vmatpush1.bf16.msra.mxu0 0
      %2022 = vmatprep.subr.bf16.mxu0 0
      %2023 = vmatpush1.bf16.msra.mxu0 0
      %2024 = vmatprep.subr.bf16.mxu0 0
      %2025 = vmatpush1.bf16.msra.mxu0 0
      %2026 = vmatprep.subr.bf16.mxu0 0
      %2027 = vmatpush1.bf16.msra.mxu0 0
      %2028 = vmatprep.subr.bf16.mxu0 0
      %2029 = vmatpush1.bf16.msra.mxu0 0
      %2030 = vmatprep.subr.bf16.mxu0 0
      %2031 = vmatpush1.bf16.msra.mxu0 0
      %2032 = vmatprep.subr.bf16.mxu0 0
      %2033 = vmatpush1.bf16.msra.mxu0 0
      %2034 = vmatprep.subr.bf16.mxu0 0
      %2035 = vmatpush1.bf16.msra.mxu0 0
      %2036 = vmatprep.subr.bf16.mxu0 0
      %2037 = vmatpush1.bf16.msra.mxu0 0
      %2038 = vmatprep.subr.bf16.mxu0 0
      %2039 = vmatpush1.bf16.msra.mxu0 0
      %2040 = vmatprep.mubr.bf16.mxu0 0
      %2041 = vmatmul.mubr.bf16.gmra.mrb[0].mxu0 %v782
      %v2042 = vpop.f32.mrb[0].mxu0
      %v2043 = vadd.f32 %v2006, %v2042
      %v2044 = vpop.f32.mrb[0].mxu0
      %v2045 = vpop.f32.mrb[0].mxu0
      %v2046 = vadd.f32 %v2006, %v2045
      %v2047 = vpop.f32.mrb[0].mxu0
      %2048 = vmatprep.mubr.bf16.mxu0 0
      %2049 = vmatmul.mubr.bf16.gmra.mrb[0].mxu0 %v785
      %v2050 = vpop.f32.mrb[0].mxu0
      %v2051 = vadd.f32 %v2006, %v2050
      %v2052 = vpop.f32.mrb[0].mxu0
      %v2053 = vpop.f32.mrb[0].mxu0
      %v2054 = vadd.f32 %v2006, %v2053
      %v2055 = vpop.f32.mrb[0].mxu0
      %2056 = vdwg.mxu0
      %v2057 = vpack.c.bf16 %v1930, %v1927
      %v2058 = vpack.c.bf16 %v1938, %v1935
      %v2059 = vpack.c.bf16 %v1988, %v1985
      %v2060 = vpack.c.bf16 %v1996, %v1993
      %v2062 = vsel %vm846, %v2057, 0
      %v2065 = vsel %vm846, %v2058, 0
      %v2068 = vsel %vm846, %v2059, 0
      %v2071 = vsel %vm846, %v2060, 0
      %2073 = vmatprep.subr.bf16.mxu0 0
      %2074 = vmatpush1.bf16.xpose.msra.mxu0 %v2068
      %2075 = vmatprep.subr.bf16.mxu0 0
      %2076 = vmatpush1.bf16.xpose.msra.mxu0 %v2071
      %2077 = vmatprep.subr.bf16.mxu0 0
      %2078 = vmatpush1.bf16.xpose.msra.mxu0 0
      %2079 = vmatprep.subr.bf16.mxu0 0
      %2080 = vmatpush1.bf16.xpose.msra.mxu0 0
      %2081 = vmatprep.subr.bf16.mxu0 0
      %2082 = vmatpush1.bf16.xpose.msra.mxu0 0
      %2083 = vmatprep.subr.bf16.mxu0 0
      %2084 = vmatpush1.bf16.xpose.msra.mxu0 0
      %2085 = vmatprep.subr.bf16.mxu0 0
      %2086 = vmatpush1.bf16.xpose.msra.mxu0 0
      %2087 = vmatprep.subr.bf16.mxu0 0
      %2088 = vmatpush1.bf16.xpose.msra.mxu0 0
      %2089 = vmatprep.subr.bf16.mxu0 0
      %2090 = vmatpush1.bf16.xpose.msra.mxu0 0
      %2091 = vmatprep.subr.bf16.mxu0 0
      %2092 = vmatpush1.bf16.xpose.msra.mxu0 0
      %2093 = vmatprep.subr.bf16.mxu0 0
      %2094 = vmatpush1.bf16.xpose.msra.mxu0 0
      %2095 = vmatprep.subr.bf16.mxu0 0
      %2096 = vmatpush1.bf16.xpose.msra.mxu0 0
      %2097 = vmatprep.subr.bf16.mxu0 0
      %2098 = vmatpush1.bf16.xpose.msra.mxu0 0
      %2099 = vmatprep.subr.bf16.mxu0 0
      %2100 = vmatpush1.bf16.xpose.msra.mxu0 0
      %2101 = vmatprep.subr.bf16.mxu0 0
      %2102 = vmatpush1.bf16.xpose.msra.mxu0 0
      %2103 = vmatprep.subr.bf16.mxu0 0
      %2104 = vmatpush1.bf16.xpose.msra.mxu0 0
      %2105 = vmatprep.mubr.bf16.mxu0 0
      %2106 = vmatmul.mubr.bf16.gmra.mrb[0].mxu0 %v2062
      %v2107 = vpop.f32.mrb[0].mxu0
      %v2108 = vadd.f32 %v844, %v2107
      %v2109 = vpop.f32.mrb[0].mxu0
      %v2110 = vpop.f32.mrb[0].mxu0
      %v2111 = vadd.f32 %v844, %v2110
      %v2112 = vpop.f32.mrb[0].mxu0
      %2113 = vmatprep.mubr.bf16.mxu0 0
      %2114 = vmatmul.mubr.bf16.gmra.mrb[0].mxu0 %v2065
      %v2115 = vpop.f32.mrb[0].mxu0
      %v2116 = vadd.f32 %v844, %v2115
      %v2117 = vpop.f32.mrb[0].mxu0
      %v2118 = vpop.f32.mrb[0].mxu0
      %v2119 = vadd.f32 %v844, %v2118
      %v2120 = vpop.f32.mrb[0].mxu0
      %2121 = vdwg.mxu0
      %v2122 = vsel %vm624, %v2108, -inf
      %2123 = vmax.xlane.f32.xlu0 %v2122
      %v2124 = vpop.xlane.xlu0 %2123
      %v2125 = vsel %vm624, %v2111, -inf
      %2126 = vmax.xlane.f32.xlu0 %v2125
      %v2127 = vpop.xlane.xlu0 %2126
      %v2128 = vsel %vm624, %v2116, -inf
      %2129 = vmax.xlane.f32.xlu0 %v2128
      %v2130 = vpop.xlane.xlu0 %2129
      %v2131 = vsel %vm624, %v2119, -inf
      %2132 = vmax.xlane.f32.xlu0 %v2131
      %v2133 = vpop.xlane.xlu0 %2132
      %v2134 = vsub.f32 %v2108, %v2124
      %v2135 = vsub.f32 %v2111, %v2127
      %v2136 = vsub.f32 %v2116, %v2130
      %v2137 = vsub.f32 %v2119, %v2133
      %v2138 = vmul.f32 %v2134, 1.442695
      %v2139 = vpow.pop %v2138
      %v2140 = vmul.f32 %v2135, 1.442695
      %v2141 = vpow.pop %v2140
      %v2142 = vmul.f32 %v2136, 1.442695
      %v2143 = vpow.pop %v2142
      %v2144 = vmul.f32 %v2137, 1.442695
      %v2145 = vpow.pop %v2144
      %v2146 = vsel %vm624, %v2139, 0.0
      %2147 = vadd.xlane.f32.xlu0 %v2146
      %v2148 = vpop.xlane.xlu0 %2147
      %v2149 = vsel %vm624, %v2141, 0.0
      %2150 = vadd.xlane.f32.xlu0 %v2149
      %v2151 = vpop.xlane.xlu0 %2150
      %v2152 = vsel %vm624, %v2143, 0.0
      %2153 = vadd.xlane.f32.xlu0 %v2152
      %v2154 = vpop.xlane.xlu0 %2153
      %v2155 = vsel %vm624, %v2145, 0.0
      %2156 = vadd.xlane.f32.xlu0 %v2155
      %v2157 = vpop.xlane.xlu0 %2156
      %v2158 = vrcp.pop %v2148
      %v2159 = vrcp.pop %v2151
      %v2160 = vrcp.pop %v2154
      %v2161 = vrcp.pop %v2157
      %v2162 = vpack.c.bf16 %v2141, %v2139
      %v2163 = vpack.c.bf16 %v2145, %v2143
      %v2164 = vpack.c.bf16 %v2046, %v2043
      %v2165 = vpack.c.bf16 %v2054, %v2051
      %v2167 = vsel %vm624, %v2162, 0
      %v2170 = vsel %vm624, %v2163, 0
      %2172 = vmatprep.subr.bf16.mxu0 0
      %2173 = vmatpush1.bf16.msra.mxu0 %v2164
      %2174 = vmatprep.subr.bf16.mxu0 0
      %2175 = vmatpush1.bf16.msra.mxu0 %v2165
      %2176 = vmatprep.subr.bf16.mxu0 0
      %2177 = vmatpush1.bf16.msra.mxu0 0
      %2178 = vmatprep.subr.bf16.mxu0 0
      %2179 = vmatpush1.bf16.msra.mxu0 0
      %2180 = vmatprep.subr.bf16.mxu0 0
      %2181 = vmatpush1.bf16.msra.mxu0 0
      %2182 = vmatprep.subr.bf16.mxu0 0
      %2183 = vmatpush1.bf16.msra.mxu0 0
      %2184 = vmatprep.subr.bf16.mxu0 0
      %2185 = vmatpush1.bf16.msra.mxu0 0
      %2186 = vmatprep.subr.bf16.mxu0 0
      %2187 = vmatpush1.bf16.msra.mxu0 0
      %2188 = vmatprep.subr.bf16.mxu0 0
      %2189 = vmatpush1.bf16.msra.mxu0 0
      %2190 = vmatprep.subr.bf16.mxu0 0
      %2191 = vmatpush1.bf16.msra.mxu0 0
      %2192 = vmatprep.subr.bf16.mxu0 0
      %2193 = vmatpush1.bf16.msra.mxu0 0
      %2194 = vmatprep.subr.bf16.mxu0 0
      %2195 = vmatpush1.bf16.msra.mxu0 0
      %2196 = vmatprep.subr.bf16.mxu0 0
      %2197 = vmatpush1.bf16.msra.mxu0 0
      %2198 = vmatprep.subr.bf16.mxu0 0
      %2199 = vmatpush1.bf16.msra.mxu0 0
      %2200 = vmatprep.subr.bf16.mxu0 0
      %2201 = vmatpush1.bf16.msra.mxu0 0
      %2202 = vmatprep.subr.bf16.mxu0 0
      %2203 = vmatpush1.bf16.msra.mxu0 0
      %2204 = vmatprep.mubr.bf16.mxu0 0
      %2205 = vmatmul.mubr.bf16.gmra.mrb[0].mxu0 %v2167
      %v2206 = vpop.f32.mrb[0].mxu0
      %v2207 = vadd.f32 0.0, %v2206
      %v2208 = vpop.f32.mrb[0].mxu0
      %v2209 = vpop.f32.mrb[0].mxu0
      %v2210 = vadd.f32 0.0, %v2209
      %v2211 = vpop.f32.mrb[0].mxu0
      %2212 = vmatprep.mubr.bf16.mxu0 0
      %2213 = vmatmul.mubr.bf16.gmra.mrb[0].mxu0 %v2170
      %v2214 = vpop.f32.mrb[0].mxu0
      %v2215 = vadd.f32 0.0, %v2214
      %v2216 = vpop.f32.mrb[0].mxu0
      %v2217 = vpop.f32.mrb[0].mxu0
      %v2218 = vadd.f32 0.0, %v2217
      %v2219 = vpop.f32.mrb[0].mxu0
      %2220 = vdwg.mxu0
      %v2221 = vmul.f32 %v2207, %v2158
      %v2222 = vmul.f32 %v2210, %v2159
      %v2223 = vmul.f32 %v2215, %v2160
      %v2224 = vmul.f32 %v2218, %v2161
      %v2225 = vpack.c.bf16 %v2222, %v2221
      %v2226 = vpack.c.bf16 %v2224, %v2223
      %v2227 = vld [vmem:[%s11 + $0xc] sm:$0xf]
      %v2229 = vsel %vm846, %v2225, 0
      %v2232 = vsel %vm846, %v2226, 0
      %v2235 = vsel %vm1365, %v2227, 0
      %2237 = vmatprep.subr.bf16.mxu0 0
      %2238 = vmatpush1.bf16.msra.mxu0 %v2235
      %2239 = vmatprep.subr.bf16.mxu0 0
      %2240 = vmatpush1.bf16.msra.mxu0 0
      %2241 = vmatprep.subr.bf16.mxu0 0
      %2242 = vmatpush1.bf16.msra.mxu0 0
      %2243 = vmatprep.subr.bf16.mxu0 0
      %2244 = vmatpush1.bf16.msra.mxu0 0
      %2245 = vmatprep.subr.bf16.mxu0 0
      %2246 = vmatpush1.bf16.msra.mxu0 0
      %2247 = vmatprep.subr.bf16.mxu0 0
      %2248 = vmatpush1.bf16.msra.mxu0 0
      %2249 = vmatprep.subr.bf16.mxu0 0
      %2250 = vmatpush1.bf16.msra.mxu0 0
      %2251 = vmatprep.subr.bf16.mxu0 0
      %2252 = vmatpush1.bf16.msra.mxu0 0
      %2253 = vmatprep.subr.bf16.mxu0 0
      %2254 = vmatpush1.bf16.msra.mxu0 0
      %2255 = vmatprep.subr.bf16.mxu0 0
      %2256 = vmatpush1.bf16.msra.mxu0 0
      %2257 = vmatprep.subr.bf16.mxu0 0
      %2258 = vmatpush1.bf16.msra.mxu0 0
      %2259 = vmatprep.subr.bf16.mxu0 0
      %2260 = vmatpush1.bf16.msra.mxu0 0
      %2261 = vmatprep.subr.bf16.mxu0 0
      %2262 = vmatpush1.bf16.msra.mxu0 0
      %2263 = vmatprep.subr.bf16.mxu0 0
      %2264 = vmatpush1.bf16.msra.mxu0 0
      %2265 = vmatprep.subr.bf16.mxu0 0
      %2266 = vmatpush1.bf16.msra.mxu0 0
      %2267 = vmatprep.subr.bf16.mxu0 0
      %2268 = vmatpush1.bf16.msra.mxu0 0
      %2269 = vmatprep.mubr.bf16.mxu0 0
      %2270 = vmatmul.mubr.bf16.gmra.mrb[0].mxu0 %v2229
      %v2271 = vpop.f32.mrb[0].mxu0
      %v2272 = vadd.f32 0.0, %v2271
      %v2273 = vpop.f32.mrb[0].mxu0
      %v2274 = vpop.f32.mrb[0].mxu0
      %v2275 = vadd.f32 0.0, %v2274
      %v2276 = vpop.f32.mrb[0].mxu0
      %2277 = vmatprep.mubr.bf16.mxu0 0
      %2278 = vmatmul.mubr.bf16.gmra.mrb[0].mxu0 %v2232
      %v2279 = vpop.f32.mrb[0].mxu0
      %v2280 = vadd.f32 0.0, %v2279
      %v2281 = vpop.f32.mrb[0].mxu0
      %v2282 = vpop.f32.mrb[0].mxu0
      %v2283 = vadd.f32 0.0, %v2282
      %v2284 = vpop.f32.mrb[0].mxu0
      %2285 = vdwg.mxu0
      %v2286 = vadd.f32 %v1879, %v2272
      %v2287 = vadd.f32 %v1880, %v2275
      %v2288 = vadd.f32 %v1881, %v2280
      %v2289 = vadd.f32 %v1882, %v2283
      %v2290 = vadd.f32 %v570, %v2286
      %v2291 = vadd.f32 %v571, %v2287
      %v2292 = vadd.f32 %v572, %v2288
      %v2293 = vadd.f32 %v573, %v2289
      %v2294 = vld [vmem:[%s12] sm:$0x1]
      %v2296 = vlaneseq
      %v2297 = vshrl.u32 %v2296, 7
      %v2298 = vsub.s32 0, %v2297
      %v2299 = vrot.slane %v2294, %v2298
      %v2301 = vadd.f32 %v2290, %v2299
      %v2302 = vadd.f32 %v2291, %v2299
      %v2303 = vadd.f32 %v2292, %v2299
      %v2304 = vadd.f32 %v2293, %v2299
      %v2305 = vld [vmem:[%s13] sm:$0x1]
      %v2306 = vld [vmem:[%s14] sm:$0x1]
      %v2307 = vsel %vm624, %v2301, 0.0
      %2308 = vadd.xlane.f32.xlu0 %v2307
      %v2309 = vpop.xlane.xlu0 %2308
      %v2310 = vsel %vm624, %v2302, 0.0
      %2311 = vadd.xlane.f32.xlu0 %v2310
      %v2312 = vpop.xlane.xlu0 %2311
      %v2313 = vsel %vm624, %v2303, 0.0
      %2314 = vadd.xlane.f32.xlu0 %v2313
      %v2315 = vpop.xlane.xlu0 %2314
      %v2316 = vsel %vm624, %v2304, 0.0
      %2317 = vadd.xlane.f32.xlu0 %v2316
      %v2318 = vpop.xlane.xlu0 %2317
      %v2319 = vrcp.pop 32.0
      %v2320 = vmul.f32 %v2309, %v2319
      %v2321 = vmul.f32 %v2312, %v2319
      %v2322 = vmul.f32 %v2315, %v2319
      %v2323 = vmul.f32 %v2318, %v2319
      %v2324 = vsub.f32 %v2301, %v2320
      %v2325 = vsub.f32 %v2302, %v2321
      %v2326 = vsub.f32 %v2303, %v2322
      %v2327 = vsub.f32 %v2304, %v2323
      %v2328 = vmul.f32 %v2324, %v2324
      %v2329 = vmul.f32 %v2325, %v2325
      %v2330 = vmul.f32 %v2326, %v2326
      %v2331 = vmul.f32 %v2327, %v2327
      %v2332 = vsel %vm624, %v2328, 0.0
      %2333 = vadd.xlane.f32.xlu0 %v2332
      %v2334 = vpop.xlane.xlu0 %2333
      %v2335 = vsel %vm624, %v2329, 0.0
      %2336 = vadd.xlane.f32.xlu0 %v2335
      %v2337 = vpop.xlane.xlu0 %2336
      %v2338 = vsel %vm624, %v2330, 0.0
      %2339 = vadd.xlane.f32.xlu0 %v2338
      %v2340 = vpop.xlane.xlu0 %2339
      %v2341 = vsel %vm624, %v2331, 0.0
      %2342 = vadd.xlane.f32.xlu0 %v2341
      %v2343 = vpop.xlane.xlu0 %2342
      %v2344 = vmul.f32 %v2334, %v2319
      %v2345 = vmul.f32 %v2337, %v2319
      %v2346 = vmul.f32 %v2340, %v2319
      %v2347 = vmul.f32 %v2343, %v2319
      %v2348 = vadd.f32 %v2344, 1e-05
      %v2349 = vadd.f32 %v2345, 1e-05
      %v2350 = vadd.f32 %v2346, 1e-05
      %v2351 = vadd.f32 %v2347, 1e-05
      %v2352 = vrsqrt.pop %v2348
      %v2353 = vrsqrt.pop %v2349
      %v2354 = vrsqrt.pop %v2350
      %v2355 = vrsqrt.pop %v2351
      %v2356 = vmul.f32 %v2324, %v2352
      %v2357 = vmul.f32 %v2325, %v2353
      %v2358 = vmul.f32 %v2326, %v2354
      %v2359 = vmul.f32 %v2327, %v2355
      %v2361 = vlaneseq
      %v2362 = vshrl.u32 %v2361, 7
      %v2363 = vsub.s32 0, %v2362
      %v2364 = vrot.slane %v2305, %v2363
      %v2366 = vmul.f32 %v2356, %v2364
      %v2367 = vmul.f32 %v2357, %v2364
      %v2368 = vmul.f32 %v2358, %v2364
      %v2369 = vmul.f32 %v2359, %v2364
      %v2371 = vlaneseq
      %v2372 = vshrl.u32 %v2371, 7
      %v2373 = vsub.s32 0, %v2372
      %v2374 = vrot.slane %v2306, %v2373
      %v2376 = vadd.f32 %v2366, %v2374
      %v2377 = vadd.f32 %v2367, %v2374
      %v2378 = vadd.f32 %v2368, %v2374
      %v2379 = vadd.f32 %v2369, %v2374
      %2380 = vst.msk [vmem:[%s568] sm:$0xff] %vm624, %v2376
      %2381 = vst.msk [vmem:[%s568 + $0x8] sm:$0xff] %vm624, %v2377
      %2382 = vst.msk [vmem:[%s568 + $0x10] sm:$0xff] %vm624, %v2378
      %2383 = vst.msk [vmem:[%s568 + $0x18] sm:$0xff] %vm624, %v2379
      %p2384 = scmp.lt.s32.totalorder %s26, 1
      %s2385 = scalar_select %p2384, %s26, 1
      %s2386 = smul.addr %s2385, 4
      %s2387 = smul.addr %s2386, 8
      %s2388 = scalar_lea.vmem %s15, %s2387
      // Predicated region
      $region81: #{rise_forward.12} parent=79 // pred_check
        %p2389 = pneg %p384
      $region82: #{rise_forward.12} parent=79 // pred_check_branch
        %2391 = sbr.rel (%p2389) target = $region84
      $region83: #{rise_forward.12} parent=79 // pred_region
        _
      $region84: #{rise_forward.12} parent=79 // pred_fallthru
        _
    $region80: #{rise_forward.12} parent=5 // pred_fallthru
      _
    %p2392 = scmp.le.s32.totalorder 2, %s21
    // Predicated region
    $region85: #{rise_forward.12} parent=5 // pred_check
      %p2393 = pneg %p2392
    $region86: #{rise_forward.12} parent=5 // pred_check_branch
      %2395 = sbr.rel (%p2393) target = $region88
    $region87: #{rise_forward.12} parent=5 // pred_region
      %s2396 = ssub.s32 %s21, 2
      // Predicated region
      $region89: #{rise_forward.12} parent=87 // pred_check
        %p2397 = pneg %p390
      $region90: #{rise_forward.12} parent=87 // pred_check_branch
        %2399 = sbr.rel (%p2397) target = $region92
      $region91: #{rise_forward.12} parent=87 // pred_region
        %p2400 = scmp.lt.s32.totalorder %s27, 1
        %s2401 = scalar_select %p2400, %s27, 1
        %s2402 = smul.addr %s2401, 4
        %s2403 = smul.addr %s2402, 8
        %s2404 = scalar_lea.vmem %s15, %s2403
      $region92: #{rise_forward.12} parent=87 // pred_fallthru
        _
    $region88: #{rise_forward.12} parent=5 // pred_fallthru
      _
  $region6: #{rise_forward.12} parent=0 // loop_footer
    %s25 = sadd.s32 1, %s21
  $region7: #{rise_forward.12} parent=0 // loop_footer_branch
    %20 = sbr.rel target = $region3
  $region8: #{rise_forward.12} parent=0 // loop_exit
    _

// kernel: rise_forward.18
$region0: #{rise_forward.18}
  #allocation0 [shape = 'u32[]', space=smem, size = 0x4, offset = 0x4, fixed_abs, tag = 'smem constant byte address 0x4 - core index']
  #allocation1 [shape = 'u32[144,128]{1,0:T(1,128)}', space=vmem, size = 0x12000, scoped, tag = 'internal scratch']
  %s0 = inlined_call_operand.vmem [shape: f32[2,1,32], index: 0, kind: input, shape index: {}]
  %s1 = inlined_call_operand.vmem [shape: bf16[32,64], index: 1, kind: input, shape index: {}]
  %s2 = inlined_call_operand.vmem [shape: f32[1,64], index: 2, kind: input, shape index: {}]
  %s3 = inlined_call_operand.vmem [shape: bf16[64,32], index: 3, kind: input, shape index: {}]
  %s4 = inlined_call_operand.vmem [shape: f32[1,32], index: 4, kind: input, shape index: {}]
  %s5 = inlined_call_operand.vmem [shape: f32[1,32], index: 5, kind: input, shape index: {}]
  %s6 = inlined_call_operand.vmem [shape: f32[1,32], index: 6, kind: input, shape index: {}]
  %s7 = inlined_call_operand.vmem [shape: f32[1,32], index: 7, kind: input, shape index: {}]
  %s8 = inlined_call_operand.vmem [shape: f32[1,32], index: 8, kind: input, shape index: {}]
  %s9 = inlined_call_operand.hbm [shape: f32[2,1,32], index: 9, kind: output, shape index: {0}]
  %s10 = inlined_call_operand.vmem [shape: f32[2,1,32], index: 10, kind: output, shape index: {1}]
  %11 = xla_tuple %s9, %s10
  %s12 = sld [smem:[#allocation0]]
  $region77: #{rise_forward.18} parent=0
    _
  %s14 = ssub.s32 1, %s12
  %s15 = scalar_select 0, %s14, %s12
  $region1: #{rise_forward.18} parent=0
    #allocation2 [shape = 'u8[1024]{0}', space=vmem, size = 0x400, scoped, tag = 'output window, operand 0']
    #allocation3 [shape = 's32[2]{0}', space=sflag, size = 0x8, scoped, tag = 'scoped memory for rise_forward.18']
    %16 = vsyncpa [#allocation3], 0
    %s17 = scalar_lea.sflag [#allocation3], 1
    %18 = vsyncpa %s17, 0
    loop: start=0, step=1, limit=4
    $region2: #{rise_forward.18} parent=1 // loop_pre_header
      _
    $region3: #{rise_forward.18} parent=1 // loop_header
      %s20 = sphi 0, %s24
      %p21 = scmp.ge.s32.totalorder %s20, 4
      %s30 = sphi 0, %s32
      %s33 = sphi 0, %s30
      %s34 = sphi 0, %s33
      %s50 = sphi 0, %s34
      %s54 = sphi 0, %s54
      %s56 = sphi 0, %s54
      %s57 = sphi 0, %s56
      %s71 = sphi 0, %s57
      %s75 = sphi 0, %s75
      %s77 = sphi 0, %s75
      %s78 = sphi 0, %s77
      %s92 = sphi 0, %s78
      %s96 = sphi 0, %s96
      %s98 = sphi 0, %s96
      %s99 = sphi 0, %s98
      %s113 = sphi 0, %s99
      %s117 = sphi 0, %s117
      %s119 = sphi 0, %s117
      %s120 = sphi 0, %s119
      %s134 = sphi 0, %s120
      %s138 = sphi 0, %s138
      %s140 = sphi 0, %s138
      %s141 = sphi 0, %s140
      %s155 = sphi 0, %s141
      %s159 = sphi 0, %s159
      %s161 = sphi 0, %s159
      %s162 = sphi 0, %s161
      %s176 = sphi 0, %s162
      %s180 = sphi 0, %s180
      %s182 = sphi 0, %s180
      %s183 = sphi 0, %s182
      %s197 = sphi 0, %s183
      %s201 = sphi 0, %s201
      %s203 = sphi 0, %s201
      %s204 = sphi 0, %s203
      %s218 = sphi 0, %s204
      %s224 = sphi 0, %s226
      %s227 = sphi 0, %s224
      %s228 = sphi 0, %s227
      %s244 = sphi 0, %s228
      %s250 = sphi 0, %s252
      %s253 = sphi 0, %s250
      %s254 = sphi 0, %s253
      %s270 = sphi 0, %s254
    $region4: #{rise_forward.18} parent=1 // loop_header_branch
      %23 = sbr.rel (%p21) target = $region8
    $region5: #{rise_forward.18} parent=1 // loop_body
      %s25 = ssub.s32 %s20, 1
      %s26 = ssub.s32 %s20, 2
      %s27 = sadd.s32 %s20, 1
      %s28 = ssub.s32 %s20, %s27
      %p29 = scmp.eq.s32.totalorder %s28, 0
      %s31 = sadd.s32 %s30, 1
      %s32 = scalar_select %p29, %s30, %s31
      %p35 = pneg %p29
      %p36 = scmp.eq.s32.totalorder %s20, 1
      %p37 = por %p35, %p36
      %p38 = scmp.ne.s32.totalorder %s30, %s33
      %p39 = scmp.eq.s32.totalorder %s20, 0
      %p40 = por %p38, %p39
      %p41 = scmp.ne.s32.totalorder %s30, %s33
      %p42 = scmp.eq.s32.totalorder %s25, 1
      %p43 = por %p41, %p42
      %p44 = scmp.ne.s32.totalorder %s33, %s34
      %p45 = scmp.eq.s32.totalorder %s25, 0
      %p46 = por %p44, %p45
      %p47 = scmp.ne.s32.totalorder %s33, %s34
      %p48 = scmp.eq.s32.totalorder %s26, 1
      %p49 = por %p47, %p48
      %p51 = scmp.ne.s32.totalorder %s34, %s50
      %p52 = scmp.eq.s32.totalorder %s26, 0
      %p53 = por %p51, %p52
      %s55 = sadd.s32 %s54, 1
      %p58 = scmp.eq.s32.totalorder %s20, 1
      %p59 = scmp.ne.s32.totalorder %s54, %s56
      %p60 = scmp.eq.s32.totalorder %s20, 0
      %p61 = por %p59, %p60
      %p62 = scmp.ne.s32.totalorder %s54, %s56
      %p63 = scmp.eq.s32.totalorder %s25, 1
      %p64 = por %p62, %p63
      %p65 = scmp.ne.s32.totalorder %s56, %s57
      %p66 = scmp.eq.s32.totalorder %s25, 0
      %p67 = por %p65, %p66
      %p68 = scmp.ne.s32.totalorder %s56, %s57
      %p69 = scmp.eq.s32.totalorder %s26, 1
      %p70 = por %p68, %p69
      %p72 = scmp.ne.s32.totalorder %s57, %s71
      %p73 = scmp.eq.s32.totalorder %s26, 0
      %p74 = por %p72, %p73
      %s76 = sadd.s32 %s75, 1
      %p79 = scmp.eq.s32.totalorder %s20, 1
      %p80 = scmp.ne.s32.totalorder %s75, %s77
      %p81 = scmp.eq.s32.totalorder %s20, 0
      %p82 = por %p80, %p81
      %p83 = scmp.ne.s32.totalorder %s75, %s77
      %p84 = scmp.eq.s32.totalorder %s25, 1
      %p85 = por %p83, %p84
      %p86 = scmp.ne.s32.totalorder %s77, %s78
      %p87 = scmp.eq.s32.totalorder %s25, 0
      %p88 = por %p86, %p87
      %p89 = scmp.ne.s32.totalorder %s77, %s78
      %p90 = scmp.eq.s32.totalorder %s26, 1
      %p91 = por %p89, %p90
      %p93 = scmp.ne.s32.totalorder %s78, %s92
      %p94 = scmp.eq.s32.totalorder %s26, 0
      %p95 = por %p93, %p94
      %s97 = sadd.s32 %s96, 1
      %p100 = scmp.eq.s32.totalorder %s20, 1
      %p101 = scmp.ne.s32.totalorder %s96, %s98
      %p102 = scmp.eq.s32.totalorder %s20, 0
      %p103 = por %p101, %p102
      %p104 = scmp.ne.s32.totalorder %s96, %s98
      %p105 = scmp.eq.s32.totalorder %s25, 1
      %p106 = por %p104, %p105
      %p107 = scmp.ne.s32.totalorder %s98, %s99
      %p108 = scmp.eq.s32.totalorder %s25, 0
      %p109 = por %p107, %p108
      %p110 = scmp.ne.s32.totalorder %s98, %s99
      %p111 = scmp.eq.s32.totalorder %s26, 1
      %p112 = por %p110, %p111
      %p114 = scmp.ne.s32.totalorder %s99, %s113
      %p115 = scmp.eq.s32.totalorder %s26, 0
      %p116 = por %p114, %p115
      %s118 = sadd.s32 %s117, 1
      %p121 = scmp.eq.s32.totalorder %s20, 1
      %p122 = scmp.ne.s32.totalorder %s117, %s119
      %p123 = scmp.eq.s32.totalorder %s20, 0
      %p124 = por %p122, %p123
      %p125 = scmp.ne.s32.totalorder %s117, %s119
      %p126 = scmp.eq.s32.totalorder %s25, 1
      %p127 = por %p125, %p126
      %p128 = scmp.ne.s32.totalorder %s119, %s120
      %p129 = scmp.eq.s32.totalorder %s25, 0
      %p130 = por %p128, %p129
      %p131 = scmp.ne.s32.totalorder %s119, %s120
      %p132 = scmp.eq.s32.totalorder %s26, 1
      %p133 = por %p131, %p132
      %p135 = scmp.ne.s32.totalorder %s120, %s134
      %p136 = scmp.eq.s32.totalorder %s26, 0
      %p137 = por %p135, %p136
      %s139 = sadd.s32 %s138, 1
      %p142 = scmp.eq.s32.totalorder %s20, 1
      %p143 = scmp.ne.s32.totalorder %s138, %s140
      %p144 = scmp.eq.s32.totalorder %s20, 0
      %p145 = por %p143, %p144
      %p146 = scmp.ne.s32.totalorder %s138, %s140
      %p147 = scmp.eq.s32.totalorder %s25, 1
      %p148 = por %p146, %p147
      %p149 = scmp.ne.s32.totalorder %s140, %s141
      %p150 = scmp.eq.s32.totalorder %s25, 0
      %p151 = por %p149, %p150
      %p152 = scmp.ne.s32.totalorder %s140, %s141
      %p153 = scmp.eq.s32.totalorder %s26, 1
      %p154 = por %p152, %p153
      %p156 = scmp.ne.s32.totalorder %s141, %s155
      %p157 = scmp.eq.s32.totalorder %s26, 0
      %p158 = por %p156, %p157
      %s160 = sadd.s32 %s159, 1
      %p163 = scmp.eq.s32.totalorder %s20, 1
      %p164 = scmp.ne.s32.totalorder %s159, %s161
      %p165 = scmp.eq.s32.totalorder %s20, 0
      %p166 = por %p164, %p165
      %p167 = scmp.ne.s32.totalorder %s159, %s161
      %p168 = scmp.eq.s32.totalorder %s25, 1
      %p169 = por %p167, %p168
      %p170 = scmp.ne.s32.totalorder %s161, %s162
      %p171 = scmp.eq.s32.totalorder %s25, 0
      %p172 = por %p170, %p171
      %p173 = scmp.ne.s32.totalorder %s161, %s162
      %p174 = scmp.eq.s32.totalorder %s26, 1
      %p175 = por %p173, %p174
      %p177 = scmp.ne.s32.totalorder %s162, %s176
      %p178 = scmp.eq.s32.totalorder %s26, 0
      %p179 = por %p177, %p178
      %s181 = sadd.s32 %s180, 1
      %p184 = scmp.eq.s32.totalorder %s20, 1
      %p185 = scmp.ne.s32.totalorder %s180, %s182
      %p186 = scmp.eq.s32.totalorder %s20, 0
      %p187 = por %p185, %p186
      %p188 = scmp.ne.s32.totalorder %s180, %s182
      %p189 = scmp.eq.s32.totalorder %s25, 1
      %p190 = por %p188, %p189
      %p191 = scmp.ne.s32.totalorder %s182, %s183
      %p192 = scmp.eq.s32.totalorder %s25, 0
      %p193 = por %p191, %p192
      %p194 = scmp.ne.s32.totalorder %s182, %s183
      %p195 = scmp.eq.s32.totalorder %s26, 1
      %p196 = por %p194, %p195
      %p198 = scmp.ne.s32.totalorder %s183, %s197
      %p199 = scmp.eq.s32.totalorder %s26, 0
      %p200 = por %p198, %p199
      %s202 = sadd.s32 %s201, 1
      %p205 = scmp.eq.s32.totalorder %s20, 1
      %p206 = scmp.ne.s32.totalorder %s201, %s203
      %p207 = scmp.eq.s32.totalorder %s20, 0
      %p208 = por %p206, %p207
      %p209 = scmp.ne.s32.totalorder %s201, %s203
      %p210 = scmp.eq.s32.totalorder %s25, 1
      %p211 = por %p209, %p210
      %p212 = scmp.ne.s32.totalorder %s203, %s204
      %p213 = scmp.eq.s32.totalorder %s25, 0
      %p214 = por %p212, %p213
      %p215 = scmp.ne.s32.totalorder %s203, %s204
      %p216 = scmp.eq.s32.totalorder %s26, 1
      %p217 = por %p215, %p216
      %p219 = scmp.ne.s32.totalorder %s204, %s218
      %p220 = scmp.eq.s32.totalorder %s26, 0
      %p221 = por %p219, %p220
      %s222 = ssub.s32 %s20, %s27
      %p223 = scmp.eq.s32.totalorder %s222, 0
      %s225 = sadd.s32 %s224, 1
      %s226 = scalar_select %p223, %s224, %s225
      %p229 = pneg %p223
      %p230 = scmp.eq.s32.totalorder %s20, 1
      %p231 = por %p229, %p230
      %p232 = scmp.ne.s32.totalorder %s224, %s227
      %p233 = scmp.eq.s32.totalorder %s20, 0
      %p234 = por %p232, %p233
      %p235 = scmp.ne.s32.totalorder %s224, %s227
      %p236 = scmp.eq.s32.totalorder %s25, 1
      %p237 = por %p235, %p236
      %p238 = scmp.ne.s32.totalorder %s227, %s228
      %p239 = scmp.eq.s32.totalorder %s25, 0
      %p240 = por %p238, %p239
      %p241 = scmp.ne.s32.totalorder %s227, %s228
      %p242 = scmp.eq.s32.totalorder %s26, 1
      %p243 = por %p241, %p242
      %p245 = scmp.ne.s32.totalorder %s228, %s244
      %p246 = scmp.eq.s32.totalorder %s26, 0
      %p247 = por %p245, %p246
      %s248 = ssub.s32 %s20, %s27
      %p249 = scmp.eq.s32.totalorder %s248, 0
      %s251 = sadd.s32 %s250, 1
      %s252 = scalar_select %p249, %s250, %s251
      %p255 = pneg %p249
      %p256 = scmp.eq.s32.totalorder %s20, 1
      %p257 = por %p255, %p256
      %p258 = scmp.ne.s32.totalorder %s250, %s253
      %p259 = scmp.eq.s32.totalorder %s20, 0
      %p260 = por %p258, %p259
      %p261 = scmp.ne.s32.totalorder %s250, %s253
      %p262 = scmp.eq.s32.totalorder %s25, 1
      %p263 = por %p261, %p262
      %p264 = scmp.ne.s32.totalorder %s253, %s254
      %p265 = scmp.eq.s32.totalorder %s25, 0
      %p266 = por %p264, %p265
      %p267 = scmp.ne.s32.totalorder %s253, %s254
      %p268 = scmp.eq.s32.totalorder %s26, 1
      %p269 = por %p267, %p268
      %p271 = scmp.ne.s32.totalorder %s254, %s270
      %p272 = scmp.eq.s32.totalorder %s26, 0
      %p273 = por %p271, %p272
      %p274 = scmp.le.s32.totalorder 1, %s20
      %p275 = scmp.lt.s32.totalorder %s20, 3
      %p276 = pnand %p274, %p275
      %p277 = pneg %p276
      // Predicated region
      $region9: #{rise_forward.18} parent=5 // pred_check
        _
      $region10: #{rise_forward.18} parent=5 // pred_check_branch
        %279 = sbr.rel (%p276) target = $region12
      $region11: #{rise_forward.18} parent=5 // pred_region
        %s280 = ssub.s32 %s20, 1
        // Predicated region
        $region13: #{rise_forward.18} parent=11 // pred_check
          %p281 = pneg %p67
        $region14: #{rise_forward.18} parent=11 // pred_check_branch
          %283 = sbr.rel (%p281) target = $region16
        $region15: #{rise_forward.18} parent=11 // pred_region
          _
        $region16: #{rise_forward.18} parent=11 // pred_fallthru
          _
        // Predicated region
        $region17: #{rise_forward.18} parent=11 // pred_check
          %p284 = pneg %p88
        $region18: #{rise_forward.18} parent=11 // pred_check_branch
          %286 = sbr.rel (%p284) target = $region20
        $region19: #{rise_forward.18} parent=11 // pred_region
          _
        $region20: #{rise_forward.18} parent=11 // pred_fallthru
          _
        // Predicated region
        $region21: #{rise_forward.18} parent=11 // pred_check
          %p287 = pneg %p109
        $region22: #{rise_forward.18} parent=11 // pred_check_branch
          %289 = sbr.rel (%p287) target = $region24
        $region23: #{rise_forward.18} parent=11 // pred_region
          _
        $region24: #{rise_forward.18} parent=11 // pred_fallthru
          _
        // Predicated region
        $region25: #{rise_forward.18} parent=11 // pred_check
          %p290 = pneg %p130
        $region26: #{rise_forward.18} parent=11 // pred_check_branch
          %292 = sbr.rel (%p290) target = $region28
        $region27: #{rise_forward.18} parent=11 // pred_region
          _
        $region28: #{rise_forward.18} parent=11 // pred_fallthru
          _
        // Predicated region
        $region29: #{rise_forward.18} parent=11 // pred_check
          %p293 = pneg %p151
        $region30: #{rise_forward.18} parent=11 // pred_check_branch
          %295 = sbr.rel (%p293) target = $region32
        $region31: #{rise_forward.18} parent=11 // pred_region
          _
        $region32: #{rise_forward.18} parent=11 // pred_fallthru
          _
        // Predicated region
        $region33: #{rise_forward.18} parent=11 // pred_check
          %p296 = pneg %p172
        $region34: #{rise_forward.18} parent=11 // pred_check_branch
          %298 = sbr.rel (%p296) target = $region36
        $region35: #{rise_forward.18} parent=11 // pred_region
          _
        $region36: #{rise_forward.18} parent=11 // pred_fallthru
          _
        // Predicated region
        $region37: #{rise_forward.18} parent=11 // pred_check
          %p299 = pneg %p193
        $region38: #{rise_forward.18} parent=11 // pred_check_branch
          %301 = sbr.rel (%p299) target = $region40
        $region39: #{rise_forward.18} parent=11 // pred_region
          _
        $region40: #{rise_forward.18} parent=11 // pred_fallthru
          _
        // Predicated region
        $region41: #{rise_forward.18} parent=11 // pred_check
          %p302 = pneg %p214
        $region42: #{rise_forward.18} parent=11 // pred_check_branch
          %304 = sbr.rel (%p302) target = $region44
        $region43: #{rise_forward.18} parent=11 // pred_region
          _
        $region44: #{rise_forward.18} parent=11 // pred_fallthru
          _
      $region12: #{rise_forward.18} parent=5 // pred_fallthru
        _
      %p305 = scmp.lt.s32.totalorder %s20, 2
      // Predicated region
      $region45: #{rise_forward.18} parent=5 // pred_check
        %p306 = pneg %p305
      $region46: #{rise_forward.18} parent=5 // pred_check_branch
        %308 = sbr.rel (%p306) target = $region48
      $region47: #{rise_forward.18} parent=5 // pred_region
        // Predicated region
        $region49: #{rise_forward.18} parent=47 // pred_check
          %p309 = pneg %p40
        $region50: #{rise_forward.18} parent=47 // pred_check_branch
          %311 = sbr.rel (%p309) target = $region52
        $region51: #{rise_forward.18} parent=47 // pred_region
          %p312 = scmp.lt.s32.totalorder %s20, 1
          %s313 = scalar_select %p312, %s20, 1
          %s314 = scalar_lea.vmem %s0, %s313
        $region52: #{rise_forward.18} parent=47 // pred_fallthru
          _
      $region48: #{rise_forward.18} parent=5 // pred_fallthru
        _
      %p315 = scmp.le.s32.totalorder 1, %s20
      %p316 = scmp.lt.s32.totalorder %s20, 3
      %p317 = pnand %p315, %p316
      %p318 = pneg %p317
      // Predicated region
      $region53: #{rise_forward.18} parent=5 // pred_check
        _
      $region54: #{rise_forward.18} parent=5 // pred_check_branch
        %320 = sbr.rel (%p317) target = $region56
      $region55: #{rise_forward.18} parent=5 // pred_region
        %s321 = ssub.s32 %s20, 1
        %p322 = scmp.lt.s32.totalorder %s25, 1
        %s323 = scalar_select %p322, %s25, 1
        %s324 = scalar_lea.vmem %s0, %s323
        %p325 = pneg %p46
        %p326 = pneg %p43
        %p327 = pneg %p67
        %p328 = pneg %p64
        %p329 = pneg %p88
        %p330 = pneg %p85
        %p331 = pneg %p109
        %p332 = pneg %p106
        %p333 = pneg %p130
        %p334 = pneg %p127
        %p335 = pneg %p151
        %p336 = pneg %p148
        %p337 = pneg %p172
        %p338 = pneg %p169
        %p339 = pneg %p193
        %p340 = pneg %p190
        %p341 = pneg %p214
        %p342 = pneg %p211
        %p343 = pneg %p240
        %p344 = pneg %p237
        %s345 = sand.u32 %s227, 1
        %s346 = scalar_lea.sflag [#allocation3], %s345
        %s347 = sand.u32 %s227, 1
        %s348 = scalar_lea.vmem [#allocation2], %s347
        %p349 = pneg %p266
        %p350 = pneg %p263
        %p351 = scmp.lt.s32.totalorder %s25, 1
        %s352 = scalar_select %p351, %s25, 1
        %s353 = scalar_lea.vmem %s10, %s352
        %p354 = scmp.lt.s32.totalorder %s25, 1
        %s355 = scalar_select %p354, %s25, 1
        %s356 = scalar_lea.vmem %s0, %s355
        %p357 = scmp.lt.s32.totalorder %s25, 1
        %s358 = scalar_select %p357, %s25, 1
        %s359 = scalar_lea.vmem %s10, %s358
        %v361 = vld [vmem:[%s356] sm:$0x1]
        %v362 = vpack.c.bf16 %v361, %v361
        %v363 = vld [vmem:[%s1] sm:$0xf]
        %v364 = vld [vmem:[%s1 + $0x4] sm:$0xf]
        %v365 = vld [vmem:[%s1 + $0x8] sm:$0xf]
        %v366 = vld [vmem:[%s1 + $0xc] sm:$0xf]
        %v367 = vld [vmem:[%s2] sm:$0x1]
        %v372 = vunpack.c.l.b16 %v363
        %v373 = vunpack.c.l.b16 %v364
        %v374 = vunpack.c.l.b16 %v365
        %v375 = vunpack.c.l.b16 %v366
        %v376 = vpack.c.b16 %v373, %v372
        %v377 = vpack.c.b16 %v375, %v374
        %vm380 = vcmask 261120
        %v382 = vsel %vm380, %v362, 0
        %384 = vmatprep.subr.bf16.mxu0 0
        %385 = vmatpush1.bf16.msra.mxu0 %v376
        %386 = vmatprep.subr.bf16.mxu0 0
        %387 = vmatpush1.bf16.msra.mxu0 %v377
        %388 = vmatprep.subr.bf16.mxu0 0
        %389 = vmatpush1.bf16.msra.mxu0 0
        %390 = vmatprep.subr.bf16.mxu0 0
        %391 = vmatpush1.bf16.msra.mxu0 0
        %392 = vmatprep.subr.bf16.mxu0 0
        %393 = vmatpush1.bf16.msra.mxu0 0
        %394 = vmatprep.subr.bf16.mxu0 0
        %395 = vmatpush1.bf16.msra.mxu0 0
        %396 = vmatprep.subr.bf16.mxu0 0
        %397 = vmatpush1.bf16.msra.mxu0 0
        %398 = vmatprep.subr.bf16.mxu0 0
        %399 = vmatpush1.bf16.msra.mxu0 0
        %400 = vmatprep.subr.bf16.mxu0 0
        %401 = vmatpush1.bf16.msra.mxu0 0
        %402 = vmatprep.subr.bf16.mxu0 0
        %403 = vmatpush1.bf16.msra.mxu0 0
        %404 = vmatprep.subr.bf16.mxu0 0
        %405 = vmatpush1.bf16.msra.mxu0 0
        %406 = vmatprep.subr.bf16.mxu0 0
        %407 = vmatpush1.bf16.msra.mxu0 0
        %408 = vmatprep.subr.bf16.mxu0 0
        %409 = vmatpush1.bf16.msra.mxu0 0
        %410 = vmatprep.subr.bf16.mxu0 0
        %411 = vmatpush1.bf16.msra.mxu0 0
        %412 = vmatprep.subr.bf16.mxu0 0
        %413 = vmatpush1.bf16.msra.mxu0 0
        %414 = vmatprep.subr.bf16.mxu0 0
        %415 = vmatpush1.bf16.msra.mxu0 0
        %416 = vmatprep.mubr.bf16.mxu0 0
        %417 = vmatmul.mubr.bf16.gmra.mrb[0].mxu0 %v382
        %v418 = vpop.f32.mrb[0].mxu0
        %v419 = vadd.f32 %v367, %v418
        %v420 = vpop.f32.mrb[0].mxu0
        %v421 = vpop.f32.mrb[0].mxu0
        %v422 = vpop.f32.mrb[0].mxu0
        %423 = vdwg.mxu0
        %v424 = vmax.f32 %v419, 0.0
        %v425 = vpack.c.bf16 %v424, %v424
        %v426 = vld [vmem:[%s3] sm:$0xf]
        %v427 = vld [vmem:[%s3 + $0x4] sm:$0xf]
        %v428 = vld [vmem:[%s3 + $0x8] sm:$0xf]
        %v429 = vld [vmem:[%s3 + $0xc] sm:$0xf]
        %v430 = vld [vmem:[%s3 + $0x10] sm:$0xf]
        %v431 = vld [vmem:[%s3 + $0x14] sm:$0xf]
        %v432 = vld [vmem:[%s3 + $0x18] sm:$0xf]
        %v433 = vld [vmem:[%s3 + $0x1c] sm:$0xf]
        %v442 = vunpack.c.l.b16 %v426
        %v443 = vunpack.c.l.b16 %v427
        %v444 = vunpack.c.l.b16 %v428
        %v445 = vunpack.c.l.b16 %v429
        %v446 = vunpack.c.l.b16 %v430
        %v447 = vunpack.c.l.b16 %v431
        %v448 = vunpack.c.l.b16 %v432
        %v449 = vunpack.c.l.b16 %v433
        %v450 = vpack.c.b16 %v443, %v442
        %v451 = vpack.c.b16 %v445, %v444
        %v452 = vpack.c.b16 %v447, %v446
        %v453 = vpack.c.b16 %v449, %v448
        %vm458 = vcmask 523264
        %v460 = vsel %vm458, %v425, 0
        %462 = vmatprep.subr.bf16.mxu0 0
        %463 = vmatpush1.bf16.msra.mxu0 %v450
        %464 = vmatprep.subr.bf16.mxu0 0
        %465 = vmatpush1.bf16.msra.mxu0 %v451
        %466 = vmatprep.subr.bf16.mxu0 0
        %467 = vmatpush1.bf16.msra.mxu0 %v452
        %468 = vmatprep.subr.bf16.mxu0 0
        %469 = vmatpush1.bf16.msra.mxu0 %v453
        %470 = vmatprep.subr.bf16.mxu0 0
        %471 = vmatpush1.bf16.msra.mxu0 0
        %472 = vmatprep.subr.bf16.mxu0 0
        %473 = vmatpush1.bf16.msra.mxu0 0
        %474 = vmatprep.subr.bf16.mxu0 0
        %475 = vmatpush1.bf16.msra.mxu0 0
        %476 = vmatprep.subr.bf16.mxu0 0
        %477 = vmatpush1.bf16.msra.mxu0 0
        %478 = vmatprep.subr.bf16.mxu0 0
        %479 = vmatpush1.bf16.msra.mxu0 0
        %480 = vmatprep.subr.bf16.mxu0 0
        %481 = vmatpush1.bf16.msra.mxu0 0
        %482 = vmatprep.subr.bf16.mxu0 0
        %483 = vmatpush1.bf16.msra.mxu0 0
        %484 = vmatprep.subr.bf16.mxu0 0
        %485 = vmatpush1.bf16.msra.mxu0 0
        %486 = vmatprep.subr.bf16.mxu0 0
        %487 = vmatpush1.bf16.msra.mxu0 0
        %488 = vmatprep.subr.bf16.mxu0 0
        %489 = vmatpush1.bf16.msra.mxu0 0
        %490 = vmatprep.subr.bf16.mxu0 0
        %491 = vmatpush1.bf16.msra.mxu0 0
        %492 = vmatprep.subr.bf16.mxu0 0
        %493 = vmatpush1.bf16.msra.mxu0 0
        %494 = vmatprep.mubr.bf16.mxu0 0
        %495 = vmatmul.mubr.bf16.gmra.mrb[0].mxu0 %v460
        %v496 = vpop.f32.mrb[0].mxu0
        %v497 = vadd.f32 0.0, %v496
        %v498 = vpop.f32.mrb[0].mxu0
        %v499 = vpop.f32.mrb[0].mxu0
        %v500 = vpop.f32.mrb[0].mxu0
        %501 = vdwg.mxu0
        %v502 = vadd.f32 %v361, %v497
        %v503 = vld [vmem:[%s4] sm:$0x1]
        %v504 = vadd.f32 %v502, %v503
        %v505 = vld [vmem:[%s5] sm:$0x1]
        %v506 = vld [vmem:[%s6] sm:$0x1]
        %vm507 = vcmask 253952
        %v508 = vsel %vm507, %v504, 0.0
        %509 = vadd.xlane.f32.xlu0 %v508
        %v510 = vpop.xlane.xlu0 %509
        %v511 = vrcp.pop 32.0
        %v512 = vmul.f32 %v510, %v511
        %v513 = vsub.f32 %v504, %v512
        %v514 = vmul.f32 %v513, %v513
        %v515 = vsel %vm507, %v514, 0.0
        %516 = vadd.xlane.f32.xlu0 %v515
        %v517 = vpop.xlane.xlu0 %516
        %v518 = vmul.f32 %v517, %v511
        %v519 = vadd.f32 %v518, 1e-05
        %v520 = vrsqrt.pop %v519
        %v521 = vmul.f32 %v513, %v520
        %v522 = vmul.f32 %v521, %v505
        %v523 = vadd.f32 %v522, %v506
        %524 = vst.msk [vmem:[%s348] sm:$0x1] %vm507, %v523
        %v525 = vld [vmem:[%s7] sm:$0x1]
        %v526 = vld [vmem:[%s8] sm:$0x1]
        %v527 = vsel %vm507, %v523, 0.0
        %528 = vadd.xlane.f32.xlu0 %v527
        %v529 = vpop.xlane.xlu0 %528
        %v530 = vmul.f32 %v529, %v511
        %v531 = vsub.f32 %v523, %v530
        %v532 = vmul.f32 %v531, %v531
        %v533 = vsel %vm507, %v532, 0.0
        %534 = vadd.xlane.f32.xlu0 %v533
        %v535 = vpop.xlane.xlu0 %534
        %v536 = vmul.f32 %v535, %v511
        %v537 = vadd.f32 %v536, 1e-05
        %v538 = vrsqrt.pop %v537
        %v539 = vmul.f32 %v531, %v538
        %v540 = vmul.f32 %v539, %v525
        %v541 = vadd.f32 %v540, %v526
        %542 = vst.msk [vmem:[%s359] sm:$0x1] %vm507, %v541
        %s543 = sand.u32 %s227, 1
        %s544 = scalar_lea.sflag [#allocation3], %s543
        %s545 = sand.u32 %s227, 1
        %s546 = scalar_lea.vmem [#allocation2], %s545
        %p547 = scmp.lt.s32.totalorder %s25, 1
        %s548 = scalar_select %p547, %s25, 1
        %s549 = scalar_lea.vmem %s10, %s548
        // Predicated region
        $region57: #{rise_forward.18} parent=55 // pred_check
          %p550 = pneg %p237
        $region58: #{rise_forward.18} parent=55 // pred_check_branch
          %552 = sbr.rel (%p550) target = $region60
        $region59: #{rise_forward.18} parent=55 // pred_region
          %s554 = ssub.s32 16, 16
          %555 = vsyncadd %s544, %s554
          %s556 = smul.addr %s25, 16
          %s557 = scalar_lea.hbm %s9, %s556
          %s559 = sshll.u32 %s546, 4
          %s560 = int_to_ptr.vmem [resolvable:$true] %s559
          %562 = dma.vmem_to_hbm [thread:$0]  %s560, 16, %s557, %s544
        $region60: #{rise_forward.18} parent=55 // pred_fallthru
          _
        // Predicated region
        $region61: #{rise_forward.18} parent=55 // pred_check
          %p563 = pneg %p263
        $region62: #{rise_forward.18} parent=55 // pred_check_branch
          %565 = sbr.rel (%p563) target = $region64
        $region63: #{rise_forward.18} parent=55 // pred_region
          _
        $region64: #{rise_forward.18} parent=55 // pred_fallthru
          _
      $region56: #{rise_forward.18} parent=5 // pred_fallthru
        _
      %p566 = scmp.le.s32.totalorder 2, %s20
      // Predicated region
      $region65: #{rise_forward.18} parent=5 // pred_check
        %p567 = pneg %p566
      $region66: #{rise_forward.18} parent=5 // pred_check_branch
        %569 = sbr.rel (%p567) target = $region68
      $region67: #{rise_forward.18} parent=5 // pred_region
        %s570 = ssub.s32 %s20, 2
        // Predicated region
        $region69: #{rise_forward.18} parent=67 // pred_check
          %p571 = pneg %p243
        $region70: #{rise_forward.18} parent=67 // pred_check_branch
          %573 = sbr.rel (%p571) target = $region72
        $region71: #{rise_forward.18} parent=67 // pred_region
          %s574 = sand.u32 %s228, 1
          %s575 = scalar_lea.sflag [#allocation3], %s574
          %s576 = sand.u32 %s228, 1
          %s577 = scalar_lea.vmem [#allocation2], %s576
          %578 = dma.done %s575, 16
        $region72: #{rise_forward.18} parent=67 // pred_fallthru
          _
        // Predicated region
        $region73: #{rise_forward.18} parent=67 // pred_check
          %p579 = pneg %p269
        $region74: #{rise_forward.18} parent=67 // pred_check_branch
          %581 = sbr.rel (%p579) target = $region76
        $region75: #{rise_forward.18} parent=67 // pred_region
          %p582 = scmp.lt.s32.totalorder %s26, 1
          %s583 = scalar_select %p582, %s26, 1
          %s584 = scalar_lea.vmem %s10, %s583
        $region76: #{rise_forward.18} parent=67 // pred_fallthru
          _
      $region68: #{rise_forward.18} parent=5 // pred_fallthru
        _
    $region6: #{rise_forward.18} parent=1 // loop_footer
      %s24 = sadd.s32 1, %s20
    $region7: #{rise_forward.18} parent=1 // loop_footer_branch
      %19 = sbr.rel target = $region3
    $region8: #{rise_forward.18} parent=1 // loop_exit
      _
    %585 = vsyncpa [#allocation3], 1
    %s586 = scalar_lea.sflag [#allocation3], 1
    %587 = vsyncpa %s586, 1

// kernel: rise_forward.16
$region0: #{rise_forward.16}
  #allocation0 [shape = 'u32[]', space=smem, size = 0x4, offset = 0x4, fixed_abs, tag = 'smem constant byte address 0x4 - core index']
  #allocation1 [shape = 'u32[144,128]{1,0:T(1,128)}', space=vmem, size = 0x12000, scoped, tag = 'internal scratch']
  %s0 = inlined_call_operand.vmem [shape: f32[2,1,32], index: 0, kind: input, shape index: {}, may-alias: {0,2}]
  %s1 = inlined_call_operand.vmem [shape: f32[2,1,32], index: 1, kind: input, shape index: {}, may-alias: {1,3}]
  %s2 = inlined_call_operand.vmem [shape: f32[2,1,32], index: 2, kind: input, shape index: {}, may-alias: {0,2}]
  %s3 = inlined_call_operand.vmem [shape: f32[2,1,32], index: 3, kind: input, shape index: {}, may-alias: {1,3}]
  %s4 = inlined_call_operand.vmem [shape: f32[2,1,1], index: 4, kind: input, shape index: {}]
  %s5 = inlined_call_operand.vmem [shape: bf16[32,32], index: 5, kind: input, shape index: {}]
  %s6 = inlined_call_operand.vmem [shape: bf16[32,32], index: 6, kind: input, shape index: {}]
  %s7 = inlined_call_operand.vmem [shape: bf16[32,32], index: 7, kind: input, shape index: {}]
  %s8 = inlined_call_operand.vmem [shape: f32[1,32], index: 8, kind: input, shape index: {}]
  %s9 = inlined_call_operand.vmem [shape: f32[1,32], index: 9, kind: input, shape index: {}]
  %s10 = inlined_call_operand.vmem [shape: f32[1,32], index: 10, kind: input, shape index: {}]
  %s11 = inlined_call_operand.vmem [shape: bf16[32,32], index: 11, kind: input, shape index: {}]
  %s12 = inlined_call_operand.vmem [shape: f32[1,32], index: 12, kind: input, shape index: {}]
  %s13 = inlined_call_operand.vmem [shape: f32[1,32], index: 13, kind: input, shape index: {}]
  %s14 = inlined_call_operand.vmem [shape: f32[1,32], index: 14, kind: input, shape index: {}]
  %s15 = inlined_call_operand.vmem [shape: f32[2,1,32], index: 15, kind: output, shape index: {}]
  %s16 = sld [smem:[#allocation0]]
  $region93: #{rise_forward.16} parent=0
    _
  %s18 = ssub.s32 1, %s16
  %s19 = scalar_select 0, %s18, %s16
  loop: start=0, step=1, limit=4
  $region2: #{rise_forward.16} parent=0 // loop_pre_header
    _
  $region3: #{rise_forward.16} parent=0 // loop_header
    %s21 = sphi 0, %s25
    %p22 = scmp.ge.s32.totalorder %s21, 4
    %s31 = sphi 0, %s33
    %s34 = sphi 0, %s31
    %s35 = sphi 0, %s34
    %s51 = sphi 0, %s35
    %s57 = sphi 0, %s59
    %s60 = sphi 0, %s57
    %s61 = sphi 0, %s60
    %s77 = sphi 0, %s61
    %s83 = sphi 0, %s85
    %s86 = sphi 0, %s83
    %s87 = sphi 0, %s86
    %s103 = sphi 0, %s87
    %s109 = sphi 0, %s111
    %s112 = sphi 0, %s109
    %s113 = sphi 0, %s112
    %s129 = sphi 0, %s113
    %s135 = sphi 0, %s137
    %s138 = sphi 0, %s135
    %s139 = sphi 0, %s138
    %s155 = sphi 0, %s139
    %s159 = sphi 0, %s159
    %s161 = sphi 0, %s159
    %s162 = sphi 0, %s161
    %s176 = sphi 0, %s162
    %s180 = sphi 0, %s180
    %s182 = sphi 0, %s180
    %s183 = sphi 0, %s182
    %s197 = sphi 0, %s183
    %s201 = sphi 0, %s201
    %s203 = sphi 0, %s201
    %s204 = sphi 0, %s203
    %s218 = sphi 0, %s204
    %s222 = sphi 0, %s222
    %s224 = sphi 0, %s222
    %s225 = sphi 0, %s224
    %s239 = sphi 0, %s225
    %s243 = sphi 0, %s243
    %s245 = sphi 0, %s243
    %s246 = sphi 0, %s245
    %s260 = sphi 0, %s246
    %s264 = sphi 0, %s264
    %s266 = sphi 0, %s264
    %s267 = sphi 0, %s266
    %s281 = sphi 0, %s267
    %s285 = sphi 0, %s285
    %s287 = sphi 0, %s285
    %s288 = sphi 0, %s287
    %s302 = sphi 0, %s288
    %s306 = sphi 0, %s306
    %s308 = sphi 0, %s306
    %s309 = sphi 0, %s308
    %s323 = sphi 0, %s309
    %s327 = sphi 0, %s327
    %s329 = sphi 0, %s327
    %s330 = sphi 0, %s329
    %s344 = sphi 0, %s330
    %s348 = sphi 0, %s348
    %s350 = sphi 0, %s348
    %s351 = sphi 0, %s350
    %s365 = sphi 0, %s351
    %s371 = sphi 0, %s373
    %s374 = sphi 0, %s371
    %s375 = sphi 0, %s374
    %s391 = sphi 0, %s375
  $region4: #{rise_forward.16} parent=0 // loop_header_branch
    %24 = sbr.rel (%p22) target = $region8
  $region5: #{rise_forward.16} parent=0 // loop_body
    %s26 = ssub.s32 %s21, 1
    %s27 = ssub.s32 %s21, 2
    %s28 = sadd.s32 %s21, 1
    %s29 = ssub.s32 %s21, %s28
    %p30 = scmp.eq.s32.totalorder %s29, 0
    %s32 = sadd.s32 %s31, 1
    %s33 = scalar_select %p30, %s31, %s32
    %p36 = pneg %p30
    %p37 = scmp.eq.s32.totalorder %s21, 1
    %p38 = por %p36, %p37
    %p39 = scmp.ne.s32.totalorder %s31, %s34
    %p40 = scmp.eq.s32.totalorder %s21, 0
    %p41 = por %p39, %p40
    %p42 = scmp.ne.s32.totalorder %s31, %s34
    %p43 = scmp.eq.s32.totalorder %s26, 1
    %p44 = por %p42, %p43
    %p45 = scmp.ne.s32.totalorder %s34, %s35
    %p46 = scmp.eq.s32.totalorder %s26, 0
    %p47 = por %p45, %p46
    %p48 = scmp.ne.s32.totalorder %s34, %s35
    %p49 = scmp.eq.s32.totalorder %s27, 1
    %p50 = por %p48, %p49
    %p52 = scmp.ne.s32.totalorder %s35, %s51
    %p53 = scmp.eq.s32.totalorder %s27, 0
    %p54 = por %p52, %p53
    %s55 = ssub.s32 %s21, %s28
    %p56 = scmp.eq.s32.totalorder %s55, 0
    %s58 = sadd.s32 %s57, 1
    %s59 = scalar_select %p56, %s57, %s58
    %p62 = pneg %p56
    %p63 = scmp.eq.s32.totalorder %s21, 1
    %p64 = por %p62, %p63
    %p65 = scmp.ne.s32.totalorder %s57, %s60
    %p66 = scmp.eq.s32.totalorder %s21, 0
    %p67 = por %p65, %p66
    %p68 = scmp.ne.s32.totalorder %s57, %s60
    %p69 = scmp.eq.s32.totalorder %s26, 1
    %p70 = por %p68, %p69
    %p71 = scmp.ne.s32.totalorder %s60, %s61
    %p72 = scmp.eq.s32.totalorder %s26, 0
    %p73 = por %p71, %p72
    %p74 = scmp.ne.s32.totalorder %s60, %s61
    %p75 = scmp.eq.s32.totalorder %s27, 1
    %p76 = por %p74, %p75
    %p78 = scmp.ne.s32.totalorder %s61, %s77
    %p79 = scmp.eq.s32.totalorder %s27, 0
    %p80 = por %p78, %p79
    %s81 = ssub.s32 %s21, %s28
    %p82 = scmp.eq.s32.totalorder %s81, 0
    %s84 = sadd.s32 %s83, 1
    %s85 = scalar_select %p82, %s83, %s84
    %p88 = pneg %p82
    %p89 = scmp.eq.s32.totalorder %s21, 1
    %p90 = por %p88, %p89
    %p91 = scmp.ne.s32.totalorder %s83, %s86
    %p92 = scmp.eq.s32.totalorder %s21, 0
    %p93 = por %p91, %p92
    %p94 = scmp.ne.s32.totalorder %s83, %s86
    %p95 = scmp.eq.s32.totalorder %s26, 1
    %p96 = por %p94, %p95
    %p97 = scmp.ne.s32.totalorder %s86, %s87
    %p98 = scmp.eq.s32.totalorder %s26, 0
    %p99 = por %p97, %p98
    %p100 = scmp.ne.s32.totalorder %s86, %s87
    %p101 = scmp.eq.s32.totalorder %s27, 1
    %p102 = por %p100, %p101
    %p104 = scmp.ne.s32.totalorder %s87, %s103
    %p105 = scmp.eq.s32.totalorder %s27, 0
    %p106 = por %p104, %p105
    %s107 = ssub.s32 %s21, %s28
    %p108 = scmp.eq.s32.totalorder %s107, 0
    %s110 = sadd.s32 %s109, 1
    %s111 = scalar_select %p108, %s109, %s110
    %p114 = pneg %p108
    %p115 = scmp.eq.s32.totalorder %s21, 1
    %p116 = por %p114, %p115
    %p117 = scmp.ne.s32.totalorder %s109, %s112
    %p118 = scmp.eq.s32.totalorder %s21, 0
    %p119 = por %p117, %p118
    %p120 = scmp.ne.s32.totalorder %s109, %s112
    %p121 = scmp.eq.s32.totalorder %s26, 1
    %p122 = por %p120, %p121
    %p123 = scmp.ne.s32.totalorder %s112, %s113
    %p124 = scmp.eq.s32.totalorder %s26, 0
    %p125 = por %p123, %p124
    %p126 = scmp.ne.s32.totalorder %s112, %s113
    %p127 = scmp.eq.s32.totalorder %s27, 1
    %p128 = por %p126, %p127
    %p130 = scmp.ne.s32.totalorder %s113, %s129
    %p131 = scmp.eq.s32.totalorder %s27, 0
    %p132 = por %p130, %p131
    %s133 = ssub.s32 %s21, %s28
    %p134 = scmp.eq.s32.totalorder %s133, 0
    %s136 = sadd.s32 %s135, 1
    %s137 = scalar_select %p134, %s135, %s136
    %p140 = pneg %p134
    %p141 = scmp.eq.s32.totalorder %s21, 1
    %p142 = por %p140, %p141
    %p143 = scmp.ne.s32.totalorder %s135, %s138
    %p144 = scmp.eq.s32.totalorder %s21, 0
    %p145 = por %p143, %p144
    %p146 = scmp.ne.s32.totalorder %s135, %s138
    %p147 = scmp.eq.s32.totalorder %s26, 1
    %p148 = por %p146, %p147
    %p149 = scmp.ne.s32.totalorder %s138, %s139
    %p150 = scmp.eq.s32.totalorder %s26, 0
    %p151 = por %p149, %p150
    %p152 = scmp.ne.s32.totalorder %s138, %s139
    %p153 = scmp.eq.s32.totalorder %s27, 1
    %p154 = por %p152, %p153
    %p156 = scmp.ne.s32.totalorder %s139, %s155
    %p157 = scmp.eq.s32.totalorder %s27, 0
    %p158 = por %p156, %p157
    %s160 = sadd.s32 %s159, 1
    %p163 = scmp.eq.s32.totalorder %s21, 1
    %p164 = scmp.ne.s32.totalorder %s159, %s161
    %p165 = scmp.eq.s32.totalorder %s21, 0
    %p166 = por %p164, %p165
    %p167 = scmp.ne.s32.totalorder %s159, %s161
    %p168 = scmp.eq.s32.totalorder %s26, 1
    %p169 = por %p167, %p168
    %p170 = scmp.ne.s32.totalorder %s161, %s162
    %p171 = scmp.eq.s32.totalorder %s26, 0
    %p172 = por %p170, %p171
    %p173 = scmp.ne.s32.totalorder %s161, %s162
    %p174 = scmp.eq.s32.totalorder %s27, 1
    %p175 = por %p173, %p174
    %p177 = scmp.ne.s32.totalorder %s162, %s176
    %p178 = scmp.eq.s32.totalorder %s27, 0
    %p179 = por %p177, %p178
    %s181 = sadd.s32 %s180, 1
    %p184 = scmp.eq.s32.totalorder %s21, 1
    %p185 = scmp.ne.s32.totalorder %s180, %s182
    %p186 = scmp.eq.s32.totalorder %s21, 0
    %p187 = por %p185, %p186
    %p188 = scmp.ne.s32.totalorder %s180, %s182
    %p189 = scmp.eq.s32.totalorder %s26, 1
    %p190 = por %p188, %p189
    %p191 = scmp.ne.s32.totalorder %s182, %s183
    %p192 = scmp.eq.s32.totalorder %s26, 0
    %p193 = por %p191, %p192
    %p194 = scmp.ne.s32.totalorder %s182, %s183
    %p195 = scmp.eq.s32.totalorder %s27, 1
    %p196 = por %p194, %p195
    %p198 = scmp.ne.s32.totalorder %s183, %s197
    %p199 = scmp.eq.s32.totalorder %s27, 0
    %p200 = por %p198, %p199
    %s202 = sadd.s32 %s201, 1
    %p205 = scmp.eq.s32.totalorder %s21, 1
    %p206 = scmp.ne.s32.totalorder %s201, %s203
    %p207 = scmp.eq.s32.totalorder %s21, 0
    %p208 = por %p206, %p207
    %p209 = scmp.ne.s32.totalorder %s201, %s203
    %p210 = scmp.eq.s32.totalorder %s26, 1
    %p211 = por %p209, %p210
    %p212 = scmp.ne.s32.totalorder %s203, %s204
    %p213 = scmp.eq.s32.totalorder %s26, 0
    %p214 = por %p212, %p213
    %p215 = scmp.ne.s32.totalorder %s203, %s204
    %p216 = scmp.eq.s32.totalorder %s27, 1
    %p217 = por %p215, %p216
    %p219 = scmp.ne.s32.totalorder %s204, %s218
    %p220 = scmp.eq.s32.totalorder %s27, 0
    %p221 = por %p219, %p220
    %s223 = sadd.s32 %s222, 1
    %p226 = scmp.eq.s32.totalorder %s21, 1
    %p227 = scmp.ne.s32.totalorder %s222, %s224
    %p228 = scmp.eq.s32.totalorder %s21, 0
    %p229 = por %p227, %p228
    %p230 = scmp.ne.s32.totalorder %s222, %s224
    %p231 = scmp.eq.s32.totalorder %s26, 1
    %p232 = por %p230, %p231
    %p233 = scmp.ne.s32.totalorder %s224, %s225
    %p234 = scmp.eq.s32.totalorder %s26, 0
    %p235 = por %p233, %p234
    %p236 = scmp.ne.s32.totalorder %s224, %s225
    %p237 = scmp.eq.s32.totalorder %s27, 1
    %p238 = por %p236, %p237
    %p240 = scmp.ne.s32.totalorder %s225, %s239
    %p241 = scmp.eq.s32.totalorder %s27, 0
    %p242 = por %p240, %p241
    %s244 = sadd.s32 %s243, 1
    %p247 = scmp.eq.s32.totalorder %s21, 1
    %p248 = scmp.ne.s32.totalorder %s243, %s245
    %p249 = scmp.eq.s32.totalorder %s21, 0
    %p250 = por %p248, %p249
    %p251 = scmp.ne.s32.totalorder %s243, %s245
    %p252 = scmp.eq.s32.totalorder %s26, 1
    %p253 = por %p251, %p252
    %p254 = scmp.ne.s32.totalorder %s245, %s246
    %p255 = scmp.eq.s32.totalorder %s26, 0
    %p256 = por %p254, %p255
    %p257 = scmp.ne.s32.totalorder %s245, %s246
    %p258 = scmp.eq.s32.totalorder %s27, 1
    %p259 = por %p257, %p258
    %p261 = scmp.ne.s32.totalorder %s246, %s260
    %p262 = scmp.eq.s32.totalorder %s27, 0
    %p263 = por %p261, %p262
    %s265 = sadd.s32 %s264, 1
    %p268 = scmp.eq.s32.totalorder %s21, 1
    %p269 = scmp.ne.s32.totalorder %s264, %s266
    %p270 = scmp.eq.s32.totalorder %s21, 0
    %p271 = por %p269, %p270
    %p272 = scmp.ne.s32.totalorder %s264, %s266
    %p273 = scmp.eq.s32.totalorder %s26, 1
    %p274 = por %p272, %p273
    %p275 = scmp.ne.s32.totalorder %s266, %s267
    %p276 = scmp.eq.s32.totalorder %s26, 0
    %p277 = por %p275, %p276
    %p278 = scmp.ne.s32.totalorder %s266, %s267
    %p279 = scmp.eq.s32.totalorder %s27, 1
    %p280 = por %p278, %p279
    %p282 = scmp.ne.s32.totalorder %s267, %s281
    %p283 = scmp.eq.s32.totalorder %s27, 0
    %p284 = por %p282, %p283
    %s286 = sadd.s32 %s285, 1
    %p289 = scmp.eq.s32.totalorder %s21, 1
    %p290 = scmp.ne.s32.totalorder %s285, %s287
    %p291 = scmp.eq.s32.totalorder %s21, 0
    %p292 = por %p290, %p291
    %p293 = scmp.ne.s32.totalorder %s285, %s287
    %p294 = scmp.eq.s32.totalorder %s26, 1
    %p295 = por %p293, %p294
    %p296 = scmp.ne.s32.totalorder %s287, %s288
    %p297 = scmp.eq.s32.totalorder %s26, 0
    %p298 = por %p296, %p297
    %p299 = scmp.ne.s32.totalorder %s287, %s288
    %p300 = scmp.eq.s32.totalorder %s27, 1
    %p301 = por %p299, %p300
    %p303 = scmp.ne.s32.totalorder %s288, %s302
    %p304 = scmp.eq.s32.totalorder %s27, 0
    %p305 = por %p303, %p304
    %s307 = sadd.s32 %s306, 1
    %p310 = scmp.eq.s32.totalorder %s21, 1
    %p311 = scmp.ne.s32.totalorder %s306, %s308
    %p312 = scmp.eq.s32.totalorder %s21, 0
    %p313 = por %p311, %p312
    %p314 = scmp.ne.s32.totalorder %s306, %s308
    %p315 = scmp.eq.s32.totalorder %s26, 1
    %p316 = por %p314, %p315
    %p317 = scmp.ne.s32.totalorder %s308, %s309
    %p318 = scmp.eq.s32.totalorder %s26, 0
    %p319 = por %p317, %p318
    %p320 = scmp.ne.s32.totalorder %s308, %s309
    %p321 = scmp.eq.s32.totalorder %s27, 1
    %p322 = por %p320, %p321
    %p324 = scmp.ne.s32.totalorder %s309, %s323
    %p325 = scmp.eq.s32.totalorder %s27, 0
    %p326 = por %p324, %p325
    %s328 = sadd.s32 %s327, 1
    %p331 = scmp.eq.s32.totalorder %s21, 1
    %p332 = scmp.ne.s32.totalorder %s327, %s329
    %p333 = scmp.eq.s32.totalorder %s21, 0
    %p334 = por %p332, %p333
    %p335 = scmp.ne.s32.totalorder %s327, %s329
    %p336 = scmp.eq.s32.totalorder %s26, 1
    %p337 = por %p335, %p336
    %p338 = scmp.ne.s32.totalorder %s329, %s330
    %p339 = scmp.eq.s32.totalorder %s26, 0
    %p340 = por %p338, %p339
    %p341 = scmp.ne.s32.totalorder %s329, %s330
    %p342 = scmp.eq.s32.totalorder %s27, 1
    %p343 = por %p341, %p342
    %p345 = scmp.ne.s32.totalorder %s330, %s344
    %p346 = scmp.eq.s32.totalorder %s27, 0
    %p347 = por %p345, %p346
    %s349 = sadd.s32 %s348, 1
    %p352 = scmp.eq.s32.totalorder %s21, 1
    %p353 = scmp.ne.s32.totalorder %s348, %s350
    %p354 = scmp.eq.s32.totalorder %s21, 0
    %p355 = por %p353, %p354
    %p356 = scmp.ne.s32.totalorder %s348, %s350
    %p357 = scmp.eq.s32.totalorder %s26, 1
    %p358 = por %p356, %p357
    %p359 = scmp.ne.s32.totalorder %s350, %s351
    %p360 = scmp.eq.s32.totalorder %s26, 0
    %p361 = por %p359, %p360
    %p362 = scmp.ne.s32.totalorder %s350, %s351
    %p363 = scmp.eq.s32.totalorder %s27, 1
    %p364 = por %p362, %p363
    %p366 = scmp.ne.s32.totalorder %s351, %s365
    %p367 = scmp.eq.s32.totalorder %s27, 0
    %p368 = por %p366, %p367
    %s369 = ssub.s32 %s21, %s28
    %p370 = scmp.eq.s32.totalorder %s369, 0
    %s372 = sadd.s32 %s371, 1
    %s373 = scalar_select %p370, %s371, %s372
    %p376 = pneg %p370
    %p377 = scmp.eq.s32.totalorder %s21, 1
    %p378 = por %p376, %p377
    %p379 = scmp.ne.s32.totalorder %s371, %s374
    %p380 = scmp.eq.s32.totalorder %s21, 0
    %p381 = por %p379, %p380
    %p382 = scmp.ne.s32.totalorder %s371, %s374
    %p383 = scmp.eq.s32.totalorder %s26, 1
    %p384 = por %p382, %p383
    %p385 = scmp.ne.s32.totalorder %s374, %s375
    %p386 = scmp.eq.s32.totalorder %s26, 0
    %p387 = por %p385, %p386
    %p388 = scmp.ne.s32.totalorder %s374, %s375
    %p389 = scmp.eq.s32.totalorder %s27, 1
    %p390 = por %p388, %p389
    %p392 = scmp.ne.s32.totalorder %s375, %s391
    %p393 = scmp.eq.s32.totalorder %s27, 0
    %p394 = por %p392, %p393
    %p395 = scmp.le.s32.totalorder 1, %s21
    %p396 = scmp.lt.s32.totalorder %s21, 3
    %p397 = pnand %p395, %p396
    %p398 = pneg %p397
    // Predicated region
    $region9: #{rise_forward.16} parent=5 // pred_check
      _
    $region10: #{rise_forward.16} parent=5 // pred_check_branch
      %400 = sbr.rel (%p397) target = $region12
    $region11: #{rise_forward.16} parent=5 // pred_region
      %s401 = ssub.s32 %s21, 1
      // Predicated region
      $region13: #{rise_forward.16} parent=11 // pred_check
        %p402 = pneg %p172
      $region14: #{rise_forward.16} parent=11 // pred_check_branch
        %404 = sbr.rel (%p402) target = $region16
      $region15: #{rise_forward.16} parent=11 // pred_region
        _
      $region16: #{rise_forward.16} parent=11 // pred_fallthru
        _
      // Predicated region
      $region17: #{rise_forward.16} parent=11 // pred_check
        %p405 = pneg %p193
      $region18: #{rise_forward.16} parent=11 // pred_check_branch
        %407 = sbr.rel (%p405) target = $region20
      $region19: #{rise_forward.16} parent=11 // pred_region
        _
      $region20: #{rise_forward.16} parent=11 // pred_fallthru
        _
      // Predicated region
      $region21: #{rise_forward.16} parent=11 // pred_check
        %p408 = pneg %p214
      $region22: #{rise_forward.16} parent=11 // pred_check_branch
        %410 = sbr.rel (%p408) target = $region24
      $region23: #{rise_forward.16} parent=11 // pred_region
        _
      $region24: #{rise_forward.16} parent=11 // pred_fallthru
        _
      // Predicated region
      $region25: #{rise_forward.16} parent=11 // pred_check
        %p411 = pneg %p235
      $region26: #{rise_forward.16} parent=11 // pred_check_branch
        %413 = sbr.rel (%p411) target = $region28
      $region27: #{rise_forward.16} parent=11 // pred_region
        _
      $region28: #{rise_forward.16} parent=11 // pred_fallthru
        _
      // Predicated region
      $region29: #{rise_forward.16} parent=11 // pred_check
        %p414 = pneg %p256
      $region30: #{rise_forward.16} parent=11 // pred_check_branch
        %416 = sbr.rel (%p414) target = $region32
      $region31: #{rise_forward.16} parent=11 // pred_region
        _
      $region32: #{rise_forward.16} parent=11 // pred_fallthru
        _
      // Predicated region
      $region33: #{rise_forward.16} parent=11 // pred_check
        %p417 = pneg %p277
      $region34: #{rise_forward.16} parent=11 // pred_check_branch
        %419 = sbr.rel (%p417) target = $region36
      $region35: #{rise_forward.16} parent=11 // pred_region
        _
      $region36: #{rise_forward.16} parent=11 // pred_fallthru
        _
      // Predicated region
      $region37: #{rise_forward.16} parent=11 // pred_check
        %p420 = pneg %p298
      $region38: #{rise_forward.16} parent=11 // pred_check_branch
        %422 = sbr.rel (%p420) target = $region40
      $region39: #{rise_forward.16} parent=11 // pred_region
        _
      $region40: #{rise_forward.16} parent=11 // pred_fallthru
        _
      // Predicated region
      $region41: #{rise_forward.16} parent=11 // pred_check
        %p423 = pneg %p319
      $region42: #{rise_forward.16} parent=11 // pred_check_branch
        %425 = sbr.rel (%p423) target = $region44
      $region43: #{rise_forward.16} parent=11 // pred_region
        _
      $region44: #{rise_forward.16} parent=11 // pred_fallthru
        _
      // Predicated region
      $region45: #{rise_forward.16} parent=11 // pred_check
        %p426 = pneg %p340
      $region46: #{rise_forward.16} parent=11 // pred_check_branch
        %428 = sbr.rel (%p426) target = $region48
      $region47: #{rise_forward.16} parent=11 // pred_region
        _
      $region48: #{rise_forward.16} parent=11 // pred_fallthru
        _
      // Predicated region
      $region49: #{rise_forward.16} parent=11 // pred_check
        %p429 = pneg %p361
      $region50: #{rise_forward.16} parent=11 // pred_check_branch
        %431 = sbr.rel (%p429) target = $region52
      $region51: #{rise_forward.16} parent=11 // pred_region
        _
      $region52: #{rise_forward.16} parent=11 // pred_fallthru
        _
    $region12: #{rise_forward.16} parent=5 // pred_fallthru
      _
    %p432 = scmp.lt.s32.totalorder %s21, 2
    // Predicated region
    $region53: #{rise_forward.16} parent=5 // pred_check
      %p433 = pneg %p432
    $region54: #{rise_forward.16} parent=5 // pred_check_branch
      %435 = sbr.rel (%p433) target = $region56
    $region55: #{rise_forward.16} parent=5 // pred_region
      // Predicated region
      $region57: #{rise_forward.16} parent=55 // pred_check
        %p436 = pneg %p41
      $region58: #{rise_forward.16} parent=55 // pred_check_branch
        %438 = sbr.rel (%p436) target = $region60
      $region59: #{rise_forward.16} parent=55 // pred_region
        %p439 = scmp.lt.s32.totalorder %s21, 1
        %s440 = scalar_select %p439, %s21, 1
        %s441 = scalar_lea.vmem %s0, %s440
      $region60: #{rise_forward.16} parent=55 // pred_fallthru
        _
      // Predicated region
      $region61: #{rise_forward.16} parent=55 // pred_check
        %p442 = pneg %p67
      $region62: #{rise_forward.16} parent=55 // pred_check_branch
        %444 = sbr.rel (%p442) target = $region64
      $region63: #{rise_forward.16} parent=55 // pred_region
        %p445 = scmp.lt.s32.totalorder %s21, 1
        %s446 = scalar_select %p445, %s21, 1
        %s447 = scalar_lea.vmem %s1, %s446
      $region64: #{rise_forward.16} parent=55 // pred_fallthru
        _
      // Predicated region
      $region65: #{rise_forward.16} parent=55 // pred_check
        %p448 = pneg %p93
      $region66: #{rise_forward.16} parent=55 // pred_check_branch
        %450 = sbr.rel (%p448) target = $region68
      $region67: #{rise_forward.16} parent=55 // pred_region
        %p451 = scmp.lt.s32.totalorder %s21, 1
        %s452 = scalar_select %p451, %s21, 1
        %s453 = scalar_lea.vmem %s2, %s452
      $region68: #{rise_forward.16} parent=55 // pred_fallthru
        _
      // Predicated region
      $region69: #{rise_forward.16} parent=55 // pred_check
        %p454 = pneg %p119
      $region70: #{rise_forward.16} parent=55 // pred_check_branch
        %456 = sbr.rel (%p454) target = $region72
      $region71: #{rise_forward.16} parent=55 // pred_region
        %p457 = scmp.lt.s32.totalorder %s21, 1
        %s458 = scalar_select %p457, %s21, 1
        %s459 = scalar_lea.vmem %s3, %s458
      $region72: #{rise_forward.16} parent=55 // pred_fallthru
        _
      // Predicated region
      $region73: #{rise_forward.16} parent=55 // pred_check
        %p460 = pneg %p145
      $region74: #{rise_forward.16} parent=55 // pred_check_branch
        %462 = sbr.rel (%p460) target = $region76
      $region75: #{rise_forward.16} parent=55 // pred_region
        %p463 = scmp.lt.s32.totalorder %s21, 1
        %s464 = scalar_select %p463, %s21, 1
        %s465 = scalar_lea.vmem %s4, %s464
      $region76: #{rise_forward.16} parent=55 // pred_fallthru
        _
    $region56: #{rise_forward.16} parent=5 // pred_fallthru
      _
    %p466 = scmp.le.s32.totalorder 1, %s21
    %p467 = scmp.lt.s32.totalorder %s21, 3
    %p468 = pnand %p466, %p467
    %p469 = pneg %p468
    // Predicated region
    $region77: #{rise_forward.16} parent=5 // pred_check
      _
    $region78: #{rise_forward.16} parent=5 // pred_check_branch
      %471 = sbr.rel (%p468) target = $region80
    $region79: #{rise_forward.16} parent=5 // pred_region
      %s472 = ssub.s32 %s21, 1
      %p473 = scmp.lt.s32.totalorder %s26, 1
      %s474 = scalar_select %p473, %s26, 1
      %s475 = scalar_lea.vmem %s0, %s474
      %p476 = pneg %p47
      %p477 = pneg %p44
      %p478 = scmp.lt.s32.totalorder %s26, 1
      %s479 = scalar_select %p478, %s26, 1
      %s480 = scalar_lea.vmem %s1, %s479
      %p481 = pneg %p73
      %p482 = pneg %p70
      %p483 = scmp.lt.s32.totalorder %s26, 1
      %s484 = scalar_select %p483, %s26, 1
      %s485 = scalar_lea.vmem %s2, %s484
      %p486 = pneg %p99
      %p487 = pneg %p96
      %p488 = scmp.lt.s32.totalorder %s26, 1
      %s489 = scalar_select %p488, %s26, 1
      %s490 = scalar_lea.vmem %s3, %s489
      %p491 = pneg %p125
      %p492 = pneg %p122
      %p493 = scmp.lt.s32.totalorder %s26, 1
      %s494 = scalar_select %p493, %s26, 1
      %s495 = scalar_lea.vmem %s4, %s494
      %p496 = pneg %p151
      %p497 = pneg %p148
      %p498 = pneg %p172
      %p499 = pneg %p169
      %p500 = pneg %p193
      %p501 = pneg %p190
      %p502 = pneg %p214
      %p503 = pneg %p211
      %p504 = pneg %p235
      %p505 = pneg %p232
      %p506 = pneg %p256
      %p507 = pneg %p253
      %p508 = pneg %p277
      %p509 = pneg %p274
      %p510 = pneg %p298
      %p511 = pneg %p295
      %p512 = pneg %p319
      %p513 = pneg %p316
      %p514 = pneg %p340
      %p515 = pneg %p337
      %p516 = pneg %p361
      %p517 = pneg %p358
      %p518 = pneg %p387
      %p519 = pneg %p384
      %p520 = scmp.lt.s32.totalorder %s26, 1
      %s521 = scalar_select %p520, %s26, 1
      %s522 = scalar_lea.vmem %s15, %s521
      %p523 = scmp.lt.s32.totalorder %s26, 1
      %s524 = scalar_select %p523, %s26, 1
      %s525 = scalar_lea.vmem %s0, %s524
      %p526 = scmp.lt.s32.totalorder %s26, 1
      %s527 = scalar_select %p526, %s26, 1
      %s528 = scalar_lea.vmem %s1, %s527
      %p529 = scmp.lt.s32.totalorder %s26, 1
      %s530 = scalar_select %p529, %s26, 1
      %s531 = scalar_lea.vmem %s2, %s530
      %p532 = scmp.lt.s32.totalorder %s26, 1
      %s533 = scalar_select %p532, %s26, 1
      %s534 = scalar_lea.vmem %s3, %s533
      %p535 = scmp.lt.s32.totalorder %s26, 1
      %s536 = scalar_select %p535, %s26, 1
      %s537 = scalar_lea.vmem %s4, %s536
      %p538 = scmp.lt.s32.totalorder %s26, 1
      %s539 = scalar_select %p538, %s26, 1
      %s540 = scalar_lea.vmem %s15, %s539
      %v542 = vld [vmem:[%s525] sm:$0x1]
      %v543 = vld [vmem:[%s528] sm:$0x1]
      %v544 = vadd.f32 %v542, %v543
      %v545 = vpack.c.bf16 %v544, %v544
      %v546 = vld [vmem:[%s531] sm:$0x1]
      %v547 = vld [vmem:[%s534] sm:$0x1]
      %v548 = vadd.f32 %v546, %v547
      %v549 = vpack.c.bf16 %v548, %v548
      %v550 = vpack.c.bf16 %v546, %v546
      %v551 = vld [vmem:[%s537] sm:$0x1]
      %v552 = vld [vmem:[%s5] sm:$0xf]
      %v553 = vld [vmem:[%s5 + $0x4] sm:$0xf]
      %v554 = vld [vmem:[%s5 + $0x8] sm:$0xf]
      %v555 = vld [vmem:[%s5 + $0xc] sm:$0xf]
      %v556 = vld [vmem:[%s8] sm:$0x1]
      %v561 = vunpack.c.l.b16 %v552
      %v562 = vunpack.c.l.b16 %v553
      %v563 = vunpack.c.l.b16 %v554
      %v564 = vunpack.c.l.b16 %v555
      %v565 = vpack.c.b16 %v562, %v561
      %v566 = vpack.c.b16 %v564, %v563
      %vm569 = vcmask 261120
      %v571 = vsel %vm569, %v545, 0
      %573 = vmatprep.subr.bf16.mxu0 0
      %574 = vmatpush1.bf16.msra.mxu0 %v565
      %575 = vmatprep.subr.bf16.mxu0 0
      %576 = vmatpush1.bf16.msra.mxu0 %v566
      %577 = vmatprep.subr.bf16.mxu0 0
      %578 = vmatpush1.bf16.msra.mxu0 0
      %579 = vmatprep.subr.bf16.mxu0 0
      %580 = vmatpush1.bf16.msra.mxu0 0
      %581 = vmatprep.subr.bf16.mxu0 0
      %582 = vmatpush1.bf16.msra.mxu0 0
      %583 = vmatprep.subr.bf16.mxu0 0
      %584 = vmatpush1.bf16.msra.mxu0 0
      %585 = vmatprep.subr.bf16.mxu0 0
      %586 = vmatpush1.bf16.msra.mxu0 0
      %587 = vmatprep.subr.bf16.mxu0 0
      %588 = vmatpush1.bf16.msra.mxu0 0
      %589 = vmatprep.subr.bf16.mxu0 0
      %590 = vmatpush1.bf16.msra.mxu0 0
      %591 = vmatprep.subr.bf16.mxu0 0
      %592 = vmatpush1.bf16.msra.mxu0 0
      %593 = vmatprep.subr.bf16.mxu0 0
      %594 = vmatpush1.bf16.msra.mxu0 0
      %595 = vmatprep.subr.bf16.mxu0 0
      %596 = vmatpush1.bf16.msra.mxu0 0
      %597 = vmatprep.subr.bf16.mxu0 0
      %598 = vmatpush1.bf16.msra.mxu0 0
      %599 = vmatprep.subr.bf16.mxu0 0
      %600 = vmatpush1.bf16.msra.mxu0 0
      %601 = vmatprep.subr.bf16.mxu0 0
      %602 = vmatpush1.bf16.msra.mxu0 0
      %603 = vmatprep.subr.bf16.mxu0 0
      %604 = vmatpush1.bf16.msra.mxu0 0
      %605 = vmatprep.mubr.bf16.mxu0 0
      %606 = vmatmul.mubr.bf16.gmra.mrb[0].mxu0 %v571
      %v607 = vpop.f32.mrb[0].mxu0
      %v608 = vadd.f32 %v556, %v607
      %v609 = vpop.f32.mrb[0].mxu0
      %v610 = vpop.f32.mrb[0].mxu0
      %v611 = vpop.f32.mrb[0].mxu0
      %612 = vdwg.mxu0
      %v613 = vld [vmem:[%s6] sm:$0xf]
      %v614 = vld [vmem:[%s6 + $0x4] sm:$0xf]
      %v615 = vld [vmem:[%s6 + $0x8] sm:$0xf]
      %v616 = vld [vmem:[%s6 + $0xc] sm:$0xf]
      %v617 = vld [vmem:[%s9] sm:$0x1]
      %v622 = vunpack.c.l.b16 %v613
      %v623 = vunpack.c.l.b16 %v614
      %v624 = vunpack.c.l.b16 %v615
      %v625 = vunpack.c.l.b16 %v616
      %v626 = vpack.c.b16 %v623, %v622
      %v627 = vpack.c.b16 %v625, %v624
      %v631 = vsel %vm569, %v549, 0
      %633 = vmatprep.subr.bf16.mxu0 0
      %634 = vmatpush1.bf16.msra.mxu0 %v626
      %635 = vmatprep.subr.bf16.mxu0 0
      %636 = vmatpush1.bf16.msra.mxu0 %v627
      %637 = vmatprep.subr.bf16.mxu0 0
      %638 = vmatpush1.bf16.msra.mxu0 0
      %639 = vmatprep.subr.bf16.mxu0 0
      %640 = vmatpush1.bf16.msra.mxu0 0
      %641 = vmatprep.subr.bf16.mxu0 0
      %642 = vmatpush1.bf16.msra.mxu0 0
      %643 = vmatprep.subr.bf16.mxu0 0
      %644 = vmatpush1.bf16.msra.mxu0 0
      %645 = vmatprep.subr.bf16.mxu0 0
      %646 = vmatpush1.bf16.msra.mxu0 0
      %647 = vmatprep.subr.bf16.mxu0 0
      %648 = vmatpush1.bf16.msra.mxu0 0
      %649 = vmatprep.subr.bf16.mxu0 0
      %650 = vmatpush1.bf16.msra.mxu0 0
      %651 = vmatprep.subr.bf16.mxu0 0
      %652 = vmatpush1.bf16.msra.mxu0 0
      %653 = vmatprep.subr.bf16.mxu0 0
      %654 = vmatpush1.bf16.msra.mxu0 0
      %655 = vmatprep.subr.bf16.mxu0 0
      %656 = vmatpush1.bf16.msra.mxu0 0
      %657 = vmatprep.subr.bf16.mxu0 0
      %658 = vmatpush1.bf16.msra.mxu0 0
      %659 = vmatprep.subr.bf16.mxu0 0
      %660 = vmatpush1.bf16.msra.mxu0 0
      %661 = vmatprep.subr.bf16.mxu0 0
      %662 = vmatpush1.bf16.msra.mxu0 0
      %663 = vmatprep.subr.bf16.mxu0 0
      %664 = vmatpush1.bf16.msra.mxu0 0
      %665 = vmatprep.mubr.bf16.mxu0 0
      %666 = vmatmul.mubr.bf16.gmra.mrb[0].mxu0 %v631
      %v667 = vpop.f32.mrb[0].mxu0
      %v668 = vadd.f32 %v617, %v667
      %v669 = vpop.f32.mrb[0].mxu0
      %v670 = vpop.f32.mrb[0].mxu0
      %v671 = vpop.f32.mrb[0].mxu0
      %672 = vdwg.mxu0
      %v673 = vld [vmem:[%s7] sm:$0xf]
      %v674 = vld [vmem:[%s7 + $0x4] sm:$0xf]
      %v675 = vld [vmem:[%s7 + $0x8] sm:$0xf]
      %v676 = vld [vmem:[%s7 + $0xc] sm:$0xf]
      %v677 = vld [vmem:[%s10] sm:$0x1]
      %v682 = vunpack.c.l.b16 %v673
      %v683 = vunpack.c.l.b16 %v674
      %v684 = vunpack.c.l.b16 %v675
      %v685 = vunpack.c.l.b16 %v676
      %v686 = vpack.c.b16 %v683, %v682
      %v687 = vpack.c.b16 %v685, %v684
      %v691 = vsel %vm569, %v550, 0
      %693 = vmatprep.subr.bf16.mxu0 0
      %694 = vmatpush1.bf16.msra.mxu0 %v686
      %695 = vmatprep.subr.bf16.mxu0 0
      %696 = vmatpush1.bf16.msra.mxu0 %v687
      %697 = vmatprep.subr.bf16.mxu0 0
      %698 = vmatpush1.bf16.msra.mxu0 0
      %699 = vmatprep.subr.bf16.mxu0 0
      %700 = vmatpush1.bf16.msra.mxu0 0
      %701 = vmatprep.subr.bf16.mxu0 0
      %702 = vmatpush1.bf16.msra.mxu0 0
      %703 = vmatprep.subr.bf16.mxu0 0
      %704 = vmatpush1.bf16.msra.mxu0 0
      %705 = vmatprep.subr.bf16.mxu0 0
      %706 = vmatpush1.bf16.msra.mxu0 0
      %707 = vmatprep.subr.bf16.mxu0 0
      %708 = vmatpush1.bf16.msra.mxu0 0
      %709 = vmatprep.subr.bf16.mxu0 0
      %710 = vmatpush1.bf16.msra.mxu0 0
      %711 = vmatprep.subr.bf16.mxu0 0
      %712 = vmatpush1.bf16.msra.mxu0 0
      %713 = vmatprep.subr.bf16.mxu0 0
      %714 = vmatpush1.bf16.msra.mxu0 0
      %715 = vmatprep.subr.bf16.mxu0 0
      %716 = vmatpush1.bf16.msra.mxu0 0
      %717 = vmatprep.subr.bf16.mxu0 0
      %718 = vmatpush1.bf16.msra.mxu0 0
      %719 = vmatprep.subr.bf16.mxu0 0
      %720 = vmatpush1.bf16.msra.mxu0 0
      %721 = vmatprep.subr.bf16.mxu0 0
      %722 = vmatpush1.bf16.msra.mxu0 0
      %723 = vmatprep.subr.bf16.mxu0 0
      %724 = vmatpush1.bf16.msra.mxu0 0
      %725 = vmatprep.mubr.bf16.mxu0 0
      %726 = vmatmul.mubr.bf16.gmra.mrb[0].mxu0 %v691
      %v727 = vpop.f32.mrb[0].mxu0
      %v728 = vadd.f32 %v677, %v727
      %v729 = vpop.f32.mrb[0].mxu0
      %v730 = vpop.f32.mrb[0].mxu0
      %v731 = vpop.f32.mrb[0].mxu0
      %732 = vdwg.mxu0
      %v733 = vpack.c.bf16 %v608, %v608
      %v734 = vpack.c.bf16 %v668, %v668
      %v735 = vunpack.c.l.bf16 %v733
      %v736 = vunpack.c.l.bf16 %v734
      %v737 = vmul.f32 %v735, %v736
      %vm738 = vcmask 57344
      %v739 = vsel %vm738, %v737, 0.0
      %740 = vadd.xlane.f32.xlu0 %v739
      %v741 = vpop.xlane.xlu0 %740
      %v742 = vadd.f32 %v741, %v551
      %v743 = vsub.f32 %v742, %v742
      %v744 = vmul.f32 %v743, 1.442695
      %v745 = vpow.pop %v744
      %v746 = vadd.f32 %v745, 0.0
      %v747 = vrcp.pop %v746
      %v748 = vpack.c.bf16 %v745, %v745
      %v749 = vpack.c.bf16 %v728, %v728
      %vm750 = vcmask 7168
      %v752 = vsel %vm750, %v748, 0
      %vm754 = vcmask 1040384
      %v755 = vsel 0, 4294967295, 65535
      %v756 = vsel %vm754, %v755, 0
      %v758 = vand.u32 %v749, %v756
      %760 = vmatprep.subr.bf16.mxu0 0
      %761 = vmatpush1.bf16.msra.mxu0 %v758
      %762 = vmatprep.subr.bf16.mxu0 0
      %763 = vmatpush1.bf16.msra.mxu0 0
      %764 = vmatprep.subr.bf16.mxu0 0
      %765 = vmatpush1.bf16.msra.mxu0 0
      %766 = vmatprep.subr.bf16.mxu0 0
      %767 = vmatpush1.bf16.msra.mxu0 0
      %768 = vmatprep.subr.bf16.mxu0 0
      %769 = vmatpush1.bf16.msra.mxu0 0
      %770 = vmatprep.subr.bf16.mxu0 0
      %771 = vmatpush1.bf16.msra.mxu0 0
      %772 = vmatprep.subr.bf16.mxu0 0
      %773 = vmatpush1.bf16.msra.mxu0 0
      %774 = vmatprep.subr.bf16.mxu0 0
      %775 = vmatpush1.bf16.msra.mxu0 0
      %776 = vmatprep.subr.bf16.mxu0 0
      %777 = vmatpush1.bf16.msra.mxu0 0
      %778 = vmatprep.subr.bf16.mxu0 0
      %779 = vmatpush1.bf16.msra.mxu0 0
      %780 = vmatprep.subr.bf16.mxu0 0
      %781 = vmatpush1.bf16.msra.mxu0 0
      %782 = vmatprep.subr.bf16.mxu0 0
      %783 = vmatpush1.bf16.msra.mxu0 0
      %784 = vmatprep.subr.bf16.mxu0 0
      %785 = vmatpush1.bf16.msra.mxu0 0
      %786 = vmatprep.subr.bf16.mxu0 0
      %787 = vmatpush1.bf16.msra.mxu0 0
      %788 = vmatprep.subr.bf16.mxu0 0
      %789 = vmatpush1.bf16.msra.mxu0 0
      %790 = vmatprep.subr.bf16.mxu0 0
      %791 = vmatpush1.bf16.msra.mxu0 0
      %792 = vmatprep.mubr.bf16.mxu0 0
      %793 = vmatmul.mubr.bf16.gmra.mrb[0].mxu0 %v752
      %v794 = vpop.f32.mrb[0].mxu0
      %v795 = vadd.f32 0.0, %v794
      %v796 = vpop.f32.mrb[0].mxu0
      %v797 = vpop.f32.mrb[0].mxu0
      %v798 = vpop.f32.mrb[0].mxu0
      %799 = vdwg.mxu0
      %801 = vset.pattern.permute.xlu0 0
      %802 = vperm.xlu0 %801, %v747
      %v803 = vpop.permute.xlu0 %802
      %v805 = vmul.f32 %v795, %v803
      %v806 = vpack.c.bf16 %v805, %v805
      %v807 = vld [vmem:[%s11] sm:$0xf]
      %808 = vrot.lane.b32.xlu0 %v565, 120
      %v809 = vpop.permute.xlu0 %808
      %810 = vrot.lane.b32.xlu0 %v566, 120
      %v811 = vpop.permute.xlu0 %810
      %v815 = vlaneseq
      %v816 = vshrl.u32 %v815, 7
      %v817 = vsub.s32 0, %v816
      %v818 = vrot.slane %v556, %v817
      %819 = vrot.lane.b32.xlu0 %v818, 120
      %v820 = vpop.permute.xlu0 %819
      %822 = vmatprep.subr.bf16.mxu0 0
      %823 = vmatpush1.bf16.msra.mxu0 %v809
      %824 = vmatprep.subr.bf16.mxu0 0
      %825 = vmatpush1.bf16.msra.mxu0 %v811
      %826 = vmatprep.subr.bf16.mxu0 0
      %827 = vmatpush1.bf16.msra.mxu0 0
      %828 = vmatprep.subr.bf16.mxu0 0
      %829 = vmatpush1.bf16.msra.mxu0 0
      %830 = vmatprep.subr.bf16.mxu0 0
      %831 = vmatpush1.bf16.msra.mxu0 0
      %832 = vmatprep.subr.bf16.mxu0 0
      %833 = vmatpush1.bf16.msra.mxu0 0
      %834 = vmatprep.subr.bf16.mxu0 0
      %835 = vmatpush1.bf16.msra.mxu0 0
      %836 = vmatprep.subr.bf16.mxu0 0
      %837 = vmatpush1.bf16.msra.mxu0 0
      %838 = vmatprep.subr.bf16.mxu0 0
      %839 = vmatpush1.bf16.msra.mxu0 0
      %840 = vmatprep.subr.bf16.mxu0 0
      %841 = vmatpush1.bf16.msra.mxu0 0
      %842 = vmatprep.subr.bf16.mxu0 0
      %843 = vmatpush1.bf16.msra.mxu0 0
      %844 = vmatprep.subr.bf16.mxu0 0
      %845 = vmatpush1.bf16.msra.mxu0 0
      %846 = vmatprep.subr.bf16.mxu0 0
      %847 = vmatpush1.bf16.msra.mxu0 0
      %848 = vmatprep.subr.bf16.mxu0 0
      %849 = vmatpush1.bf16.msra.mxu0 0
      %850 = vmatprep.subr.bf16.mxu0 0
      %851 = vmatpush1.bf16.msra.mxu0 0
      %852 = vmatprep.subr.bf16.mxu0 0
      %853 = vmatpush1.bf16.msra.mxu0 0
      %854 = vmatprep.mubr.bf16.mxu0 0
      %855 = vmatmul.mubr.bf16.gmra.mrb[0].mxu0 %v571
      %v856 = vpop.f32.mrb[0].mxu0
      %v857 = vadd.f32 %v820, %v856
      %v858 = vpop.f32.mrb[0].mxu0
      %v859 = vpop.f32.mrb[0].mxu0
      %v860 = vpop.f32.mrb[0].mxu0
      %861 = vdwg.mxu0
      %862 = vrot.lane.b32.xlu0 %v626, 120
      %v863 = vpop.permute.xlu0 %862
      %864 = vrot.lane.b32.xlu0 %v627, 120
      %v865 = vpop.permute.xlu0 %864
      %v869 = vlaneseq
      %v870 = vshrl.u32 %v869, 7
      %v871 = vsub.s32 0, %v870
      %v872 = vrot.slane %v617, %v871
      %873 = vrot.lane.b32.xlu0 %v872, 120
      %v874 = vpop.permute.xlu0 %873
      %876 = vmatprep.subr.bf16.mxu0 0
      %877 = vmatpush1.bf16.msra.mxu0 %v863
      %878 = vmatprep.subr.bf16.mxu0 0
      %879 = vmatpush1.bf16.msra.mxu0 %v865
      %880 = vmatprep.subr.bf16.mxu0 0
      %881 = vmatpush1.bf16.msra.mxu0 0
      %882 = vmatprep.subr.bf16.mxu0 0
      %883 = vmatpush1.bf16.msra.mxu0 0
      %884 = vmatprep.subr.bf16.mxu0 0
      %885 = vmatpush1.bf16.msra.mxu0 0
      %886 = vmatprep.subr.bf16.mxu0 0
      %887 = vmatpush1.bf16.msra.mxu0 0
      %888 = vmatprep.subr.bf16.mxu0 0
      %889 = vmatpush1.bf16.msra.mxu0 0
      %890 = vmatprep.subr.bf16.mxu0 0
      %891 = vmatpush1.bf16.msra.mxu0 0
      %892 = vmatprep.subr.bf16.mxu0 0
      %893 = vmatpush1.bf16.msra.mxu0 0
      %894 = vmatprep.subr.bf16.mxu0 0
      %895 = vmatpush1.bf16.msra.mxu0 0
      %896 = vmatprep.subr.bf16.mxu0 0
      %897 = vmatpush1.bf16.msra.mxu0 0
      %898 = vmatprep.subr.bf16.mxu0 0
      %899 = vmatpush1.bf16.msra.mxu0 0
      %900 = vmatprep.subr.bf16.mxu0 0
      %901 = vmatpush1.bf16.msra.mxu0 0
      %902 = vmatprep.subr.bf16.mxu0 0
      %903 = vmatpush1.bf16.msra.mxu0 0
      %904 = vmatprep.subr.bf16.mxu0 0
      %905 = vmatpush1.bf16.msra.mxu0 0
      %906 = vmatprep.subr.bf16.mxu0 0
      %907 = vmatpush1.bf16.msra.mxu0 0
      %908 = vmatprep.mubr.bf16.mxu0 0
      %909 = vmatmul.mubr.bf16.gmra.mrb[0].mxu0 %v631
      %v910 = vpop.f32.mrb[0].mxu0
      %v911 = vadd.f32 %v874, %v910
      %v912 = vpop.f32.mrb[0].mxu0
      %v913 = vpop.f32.mrb[0].mxu0
      %v914 = vpop.f32.mrb[0].mxu0
      %915 = vdwg.mxu0
      %916 = vrot.lane.b32.xlu0 %v686, 120
      %v917 = vpop.permute.xlu0 %916
      %918 = vrot.lane.b32.xlu0 %v687, 120
      %v919 = vpop.permute.xlu0 %918
      %v923 = vlaneseq
      %v924 = vshrl.u32 %v923, 7
      %v925 = vsub.s32 0, %v924
      %v926 = vrot.slane %v677, %v925
      %927 = vrot.lane.b32.xlu0 %v926, 120
      %v928 = vpop.permute.xlu0 %927
      %930 = vmatprep.subr.bf16.mxu0 0
      %931 = vmatpush1.bf16.msra.mxu0 %v917
      %932 = vmatprep.subr.bf16.mxu0 0
      %933 = vmatpush1.bf16.msra.mxu0 %v919
      %934 = vmatprep.subr.bf16.mxu0 0
      %935 = vmatpush1.bf16.msra.mxu0 0
      %936 = vmatprep.subr.bf16.mxu0 0
      %937 = vmatpush1.bf16.msra.mxu0 0
      %938 = vmatprep.subr.bf16.mxu0 0
      %939 = vmatpush1.bf16.msra.mxu0 0
      %940 = vmatprep.subr.bf16.mxu0 0
      %941 = vmatpush1.bf16.msra.mxu0 0
      %942 = vmatprep.subr.bf16.mxu0 0
      %943 = vmatpush1.bf16.msra.mxu0 0
      %944 = vmatprep.subr.bf16.mxu0 0
      %945 = vmatpush1.bf16.msra.mxu0 0
      %946 = vmatprep.subr.bf16.mxu0 0
      %947 = vmatpush1.bf16.msra.mxu0 0
      %948 = vmatprep.subr.bf16.mxu0 0
      %949 = vmatpush1.bf16.msra.mxu0 0
      %950 = vmatprep.subr.bf16.mxu0 0
      %951 = vmatpush1.bf16.msra.mxu0 0
      %952 = vmatprep.subr.bf16.mxu0 0
      %953 = vmatpush1.bf16.msra.mxu0 0
      %954 = vmatprep.subr.bf16.mxu0 0
      %955 = vmatpush1.bf16.msra.mxu0 0
      %956 = vmatprep.subr.bf16.mxu0 0
      %957 = vmatpush1.bf16.msra.mxu0 0
      %958 = vmatprep.subr.bf16.mxu0 0
      %959 = vmatpush1.bf16.msra.mxu0 0
      %960 = vmatprep.subr.bf16.mxu0 0
      %961 = vmatpush1.bf16.msra.mxu0 0
      %962 = vmatprep.mubr.bf16.mxu0 0
      %963 = vmatmul.mubr.bf16.gmra.mrb[0].mxu0 %v691
      %v964 = vpop.f32.mrb[0].mxu0
      %v965 = vadd.f32 %v928, %v964
      %v966 = vpop.f32.mrb[0].mxu0
      %v967 = vpop.f32.mrb[0].mxu0
      %v968 = vpop.f32.mrb[0].mxu0
      %969 = vdwg.mxu0
      %v970 = vpack.c.bf16 %v857, %v857
      %v971 = vpack.c.bf16 %v911, %v911
      %v972 = vunpack.c.l.bf16 %v970
      %v973 = vunpack.c.l.bf16 %v971
      %v974 = vmul.f32 %v972, %v973
      %v975 = vsel %vm738, %v974, 0.0
      %976 = vadd.xlane.f32.xlu0 %v975
      %v977 = vpop.xlane.xlu0 %976
      %v978 = vadd.f32 %v977, %v551
      %v979 = vsub.f32 %v978, %v978
      %v980 = vmul.f32 %v979, 1.442695
      %v981 = vpow.pop %v980
      %v982 = vadd.f32 %v981, 0.0
      %v983 = vrcp.pop %v982
      %v984 = vpack.c.bf16 %v981, %v981
      %v985 = vpack.c.bf16 %v965, %v965
      %v987 = vsel %vm750, %v984, 0
      %v990 = vand.u32 %v985, %v756
      %992 = vmatprep.subr.bf16.mxu0 0
      %993 = vmatpush1.bf16.msra.mxu0 %v990
      %994 = vmatprep.subr.bf16.mxu0 0
      %995 = vmatpush1.bf16.msra.mxu0 0
      %996 = vmatprep.subr.bf16.mxu0 0
      %997 = vmatpush1.bf16.msra.mxu0 0
      %998 = vmatprep.subr.bf16.mxu0 0
      %999 = vmatpush1.bf16.msra.mxu0 0
      %1000 = vmatprep.subr.bf16.mxu0 0
      %1001 = vmatpush1.bf16.msra.mxu0 0
      %1002 = vmatprep.subr.bf16.mxu0 0
      %1003 = vmatpush1.bf16.msra.mxu0 0
      %1004 = vmatprep.subr.bf16.mxu0 0
      %1005 = vmatpush1.bf16.msra.mxu0 0
      %1006 = vmatprep.subr.bf16.mxu0 0
      %1007 = vmatpush1.bf16.msra.mxu0 0
      %1008 = vmatprep.subr.bf16.mxu0 0
      %1009 = vmatpush1.bf16.msra.mxu0 0
      %1010 = vmatprep.subr.bf16.mxu0 0
      %1011 = vmatpush1.bf16.msra.mxu0 0
      %1012 = vmatprep.subr.bf16.mxu0 0
      %1013 = vmatpush1.bf16.msra.mxu0 0
      %1014 = vmatprep.subr.bf16.mxu0 0
      %1015 = vmatpush1.bf16.msra.mxu0 0
      %1016 = vmatprep.subr.bf16.mxu0 0
      %1017 = vmatpush1.bf16.msra.mxu0 0
      %1018 = vmatprep.subr.bf16.mxu0 0
      %1019 = vmatpush1.bf16.msra.mxu0 0
      %1020 = vmatprep.subr.bf16.mxu0 0
      %1021 = vmatpush1.bf16.msra.mxu0 0
      %1022 = vmatprep.subr.bf16.mxu0 0
      %1023 = vmatpush1.bf16.msra.mxu0 0
      %1024 = vmatprep.mubr.bf16.mxu0 0
      %1025 = vmatmul.mubr.bf16.gmra.mrb[0].mxu0 %v987
      %v1026 = vpop.f32.mrb[0].mxu0
      %v1027 = vadd.f32 0.0, %v1026
      %v1028 = vpop.f32.mrb[0].mxu0
      %v1029 = vpop.f32.mrb[0].mxu0
      %v1030 = vpop.f32.mrb[0].mxu0
      %1031 = vdwg.mxu0
      %1033 = vset.pattern.permute.xlu0 0
      %1034 = vperm.xlu0 %1033, %v983
      %v1035 = vpop.permute.xlu0 %1034
      %v1037 = vmul.f32 %v1027, %v1035
      %v1038 = vpack.c.bf16 %v1037, %v1037
      %v1039 = vld [vmem:[%s11 + $0x4] sm:$0xf]
      %vm1040 = vcmask 64512
      %v1042 = vsel %vm1040, %v1038, 0
      %vm1044 = vcmask 1043456
      %v1046 = vsel %vm1044, %v1039, 0
      %1048 = vmatprep.subr.bf16.mxu0 0
      %1049 = vmatpush1.bf16.msra.mxu0 %v1046
      %1050 = vmatprep.subr.bf16.mxu0 0
      %1051 = vmatpush1.bf16.msra.mxu0 0
      %1052 = vmatprep.subr.bf16.mxu0 0
      %1053 = vmatpush1.bf16.msra.mxu0 0
      %1054 = vmatprep.subr.bf16.mxu0 0
      %1055 = vmatpush1.bf16.msra.mxu0 0
      %1056 = vmatprep.subr.bf16.mxu0 0
      %1057 = vmatpush1.bf16.msra.mxu0 0
      %1058 = vmatprep.subr.bf16.mxu0 0
      %1059 = vmatpush1.bf16.msra.mxu0 0
      %1060 = vmatprep.subr.bf16.mxu0 0
      %1061 = vmatpush1.bf16.msra.mxu0 0
      %1062 = vmatprep.subr.bf16.mxu0 0
      %1063 = vmatpush1.bf16.msra.mxu0 0
      %1064 = vmatprep.subr.bf16.mxu0 0
      %1065 = vmatpush1.bf16.msra.mxu0 0
      %1066 = vmatprep.subr.bf16.mxu0 0
      %1067 = vmatpush1.bf16.msra.mxu0 0
      %1068 = vmatprep.subr.bf16.mxu0 0
      %1069 = vmatpush1.bf16.msra.mxu0 0
      %1070 = vmatprep.subr.bf16.mxu0 0
      %1071 = vmatpush1.bf16.msra.mxu0 0
      %1072 = vmatprep.subr.bf16.mxu0 0
      %1073 = vmatpush1.bf16.msra.mxu0 0
      %1074 = vmatprep.subr.bf16.mxu0 0
      %1075 = vmatpush1.bf16.msra.mxu0 0
      %1076 = vmatprep.subr.bf16.mxu0 0
      %1077 = vmatpush1.bf16.msra.mxu0 0
      %1078 = vmatprep.subr.bf16.mxu0 0
      %1079 = vmatpush1.bf16.msra.mxu0 0
      %1080 = vmatprep.mubr.bf16.mxu0 0
      %1081 = vmatmul.mubr.bf16.gmra.mrb[0].mxu0 %v1042
      %v1082 = vpop.f32.mrb[0].mxu0
      %v1083 = vadd.f32 0.0, %v1082
      %v1084 = vpop.f32.mrb[0].mxu0
      %v1085 = vpop.f32.mrb[0].mxu0
      %v1086 = vpop.f32.mrb[0].mxu0
      %1087 = vdwg.mxu0
      %v1089 = vsel %vm1040, %v806, 0
      %v1092 = vsel %vm1044, %v807, 0
      %1094 = vmatprep.subr.bf16.mxu0 0
      %1095 = vmatpush1.bf16.msra.mxu0 %v1092
      %1096 = vmatprep.subr.bf16.mxu0 0
      %1097 = vmatpush1.bf16.msra.mxu0 0
      %1098 = vmatprep.subr.bf16.mxu0 0
      %1099 = vmatpush1.bf16.msra.mxu0 0
      %1100 = vmatprep.subr.bf16.mxu0 0
      %1101 = vmatpush1.bf16.msra.mxu0 0
      %1102 = vmatprep.subr.bf16.mxu0 0
      %1103 = vmatpush1.bf16.msra.mxu0 0
      %1104 = vmatprep.subr.bf16.mxu0 0
      %1105 = vmatpush1.bf16.msra.mxu0 0
      %1106 = vmatprep.subr.bf16.mxu0 0
      %1107 = vmatpush1.bf16.msra.mxu0 0
      %1108 = vmatprep.subr.bf16.mxu0 0
      %1109 = vmatpush1.bf16.msra.mxu0 0
      %1110 = vmatprep.subr.bf16.mxu0 0
      %1111 = vmatpush1.bf16.msra.mxu0 0
      %1112 = vmatprep.subr.bf16.mxu0 0
      %1113 = vmatpush1.bf16.msra.mxu0 0
      %1114 = vmatprep.subr.bf16.mxu0 0
      %1115 = vmatpush1.bf16.msra.mxu0 0
      %1116 = vmatprep.subr.bf16.mxu0 0
      %1117 = vmatpush1.bf16.msra.mxu0 0
      %1118 = vmatprep.subr.bf16.mxu0 0
      %1119 = vmatpush1.bf16.msra.mxu0 0
      %1120 = vmatprep.subr.bf16.mxu0 0
      %1121 = vmatpush1.bf16.msra.mxu0 0
      %1122 = vmatprep.subr.bf16.mxu0 0
      %1123 = vmatpush1.bf16.msra.mxu0 0
      %1124 = vmatprep.subr.bf16.mxu0 0
      %1125 = vmatpush1.bf16.msra.mxu0 0
      %1126 = vmatprep.mubr.bf16.mxu0 0
      %1127 = vmatmul.mubr.bf16.gmra.mrb[0].mxu0 %v1089
      %v1128 = vpop.f32.mrb[0].mxu0
      %v1129 = vadd.f32 %v1083, %v1128
      %v1130 = vpop.f32.mrb[0].mxu0
      %v1131 = vpop.f32.mrb[0].mxu0
      %v1132 = vpop.f32.mrb[0].mxu0
      %1133 = vdwg.mxu0
      %1134 = vrot.lane.b32.xlu0 %v565, 112
      %v1135 = vpop.permute.xlu0 %1134
      %1136 = vrot.lane.b32.xlu0 %v566, 112
      %v1137 = vpop.permute.xlu0 %1136
      %1140 = vrot.lane.b32.xlu0 %v818, 112
      %v1141 = vpop.permute.xlu0 %1140
      %1143 = vmatprep.subr.bf16.mxu0 0
      %1144 = vmatpush1.bf16.msra.mxu0 %v1135
      %1145 = vmatprep.subr.bf16.mxu0 0
      %1146 = vmatpush1.bf16.msra.mxu0 %v1137
      %1147 = vmatprep.subr.bf16.mxu0 0
      %1148 = vmatpush1.bf16.msra.mxu0 0
      %1149 = vmatprep.subr.bf16.mxu0 0
      %1150 = vmatpush1.bf16.msra.mxu0 0
      %1151 = vmatprep.subr.bf16.mxu0 0
      %1152 = vmatpush1.bf16.msra.mxu0 0
      %1153 = vmatprep.subr.bf16.mxu0 0
      %1154 = vmatpush1.bf16.msra.mxu0 0
      %1155 = vmatprep.subr.bf16.mxu0 0
      %1156 = vmatpush1.bf16.msra.mxu0 0
      %1157 = vmatprep.subr.bf16.mxu0 0
      %1158 = vmatpush1.bf16.msra.mxu0 0
      %1159 = vmatprep.subr.bf16.mxu0 0
      %1160 = vmatpush1.bf16.msra.mxu0 0
      %1161 = vmatprep.subr.bf16.mxu0 0
      %1162 = vmatpush1.bf16.msra.mxu0 0
      %1163 = vmatprep.subr.bf16.mxu0 0
      %1164 = vmatpush1.bf16.msra.mxu0 0
      %1165 = vmatprep.subr.bf16.mxu0 0
      %1166 = vmatpush1.bf16.msra.mxu0 0
      %1167 = vmatprep.subr.bf16.mxu0 0
      %1168 = vmatpush1.bf16.msra.mxu0 0
      %1169 = vmatprep.subr.bf16.mxu0 0
      %1170 = vmatpush1.bf16.msra.mxu0 0
      %1171 = vmatprep.subr.bf16.mxu0 0
      %1172 = vmatpush1.bf16.msra.mxu0 0
      %1173 = vmatprep.subr.bf16.mxu0 0
      %1174 = vmatpush1.bf16.msra.mxu0 0
      %1175 = vmatprep.mubr.bf16.mxu0 0
      %1176 = vmatmul.mubr.bf16.gmra.mrb[0].mxu0 %v571
      %v1177 = vpop.f32.mrb[0].mxu0
      %v1178 = vadd.f32 %v1141, %v1177
      %v1179 = vpop.f32.mrb[0].mxu0
      %v1180 = vpop.f32.mrb[0].mxu0
      %v1181 = vpop.f32.mrb[0].mxu0
      %1182 = vdwg.mxu0
      %1183 = vrot.lane.b32.xlu0 %v626, 112
      %v1184 = vpop.permute.xlu0 %1183
      %1185 = vrot.lane.b32.xlu0 %v627, 112
      %v1186 = vpop.permute.xlu0 %1185
      %1189 = vrot.lane.b32.xlu0 %v872, 112
      %v1190 = vpop.permute.xlu0 %1189
      %1192 = vmatprep.subr.bf16.mxu0 0
      %1193 = vmatpush1.bf16.msra.mxu0 %v1184
      %1194 = vmatprep.subr.bf16.mxu0 0
      %1195 = vmatpush1.bf16.msra.mxu0 %v1186
      %1196 = vmatprep.subr.bf16.mxu0 0
      %1197 = vmatpush1.bf16.msra.mxu0 0
      %1198 = vmatprep.subr.bf16.mxu0 0
      %1199 = vmatpush1.bf16.msra.mxu0 0
      %1200 = vmatprep.subr.bf16.mxu0 0
      %1201 = vmatpush1.bf16.msra.mxu0 0
      %1202 = vmatprep.subr.bf16.mxu0 0
      %1203 = vmatpush1.bf16.msra.mxu0 0
      %1204 = vmatprep.subr.bf16.mxu0 0
      %1205 = vmatpush1.bf16.msra.mxu0 0
      %1206 = vmatprep.subr.bf16.mxu0 0
      %1207 = vmatpush1.bf16.msra.mxu0 0
      %1208 = vmatprep.subr.bf16.mxu0 0
      %1209 = vmatpush1.bf16.msra.mxu0 0
      %1210 = vmatprep.subr.bf16.mxu0 0
      %1211 = vmatpush1.bf16.msra.mxu0 0
      %1212 = vmatprep.subr.bf16.mxu0 0
      %1213 = vmatpush1.bf16.msra.mxu0 0
      %1214 = vmatprep.subr.bf16.mxu0 0
      %1215 = vmatpush1.bf16.msra.mxu0 0
      %1216 = vmatprep.subr.bf16.mxu0 0
      %1217 = vmatpush1.bf16.msra.mxu0 0
      %1218 = vmatprep.subr.bf16.mxu0 0
      %1219 = vmatpush1.bf16.msra.mxu0 0
      %1220 = vmatprep.subr.bf16.mxu0 0
      %1221 = vmatpush1.bf16.msra.mxu0 0
      %1222 = vmatprep.subr.bf16.mxu0 0
      %1223 = vmatpush1.bf16.msra.mxu0 0
      %1224 = vmatprep.mubr.bf16.mxu0 0
      %1225 = vmatmul.mubr.bf16.gmra.mrb[0].mxu0 %v631
      %v1226 = vpop.f32.mrb[0].mxu0
      %v1227 = vadd.f32 %v1190, %v1226
      %v1228 = vpop.f32.mrb[0].mxu0
      %v1229 = vpop.f32.mrb[0].mxu0
      %v1230 = vpop.f32.mrb[0].mxu0
      %1231 = vdwg.mxu0
      %1232 = vrot.lane.b32.xlu0 %v686, 112
      %v1233 = vpop.permute.xlu0 %1232
      %1234 = vrot.lane.b32.xlu0 %v687, 112
      %v1235 = vpop.permute.xlu0 %1234
      %1238 = vrot.lane.b32.xlu0 %v926, 112
      %v1239 = vpop.permute.xlu0 %1238
      %1241 = vmatprep.subr.bf16.mxu0 0
      %1242 = vmatpush1.bf16.msra.mxu0 %v1233
      %1243 = vmatprep.subr.bf16.mxu0 0
      %1244 = vmatpush1.bf16.msra.mxu0 %v1235
      %1245 = vmatprep.subr.bf16.mxu0 0
      %1246 = vmatpush1.bf16.msra.mxu0 0
      %1247 = vmatprep.subr.bf16.mxu0 0
      %1248 = vmatpush1.bf16.msra.mxu0 0
      %1249 = vmatprep.subr.bf16.mxu0 0
      %1250 = vmatpush1.bf16.msra.mxu0 0
      %1251 = vmatprep.subr.bf16.mxu0 0
      %1252 = vmatpush1.bf16.msra.mxu0 0
      %1253 = vmatprep.subr.bf16.mxu0 0
      %1254 = vmatpush1.bf16.msra.mxu0 0
      %1255 = vmatprep.subr.bf16.mxu0 0
      %1256 = vmatpush1.bf16.msra.mxu0 0
      %1257 = vmatprep.subr.bf16.mxu0 0
      %1258 = vmatpush1.bf16.msra.mxu0 0
      %1259 = vmatprep.subr.bf16.mxu0 0
      %1260 = vmatpush1.bf16.msra.mxu0 0
      %1261 = vmatprep.subr.bf16.mxu0 0
      %1262 = vmatpush1.bf16.msra.mxu0 0
      %1263 = vmatprep.subr.bf16.mxu0 0
      %1264 = vmatpush1.bf16.msra.mxu0 0
      %1265 = vmatprep.subr.bf16.mxu0 0
      %1266 = vmatpush1.bf16.msra.mxu0 0
      %1267 = vmatprep.subr.bf16.mxu0 0
      %1268 = vmatpush1.bf16.msra.mxu0 0
      %1269 = vmatprep.subr.bf16.mxu0 0
      %1270 = vmatpush1.bf16.msra.mxu0 0
      %1271 = vmatprep.subr.bf16.mxu0 0
      %1272 = vmatpush1.bf16.msra.mxu0 0
      %1273 = vmatprep.mubr.bf16.mxu0 0
      %1274 = vmatmul.mubr.bf16.gmra.mrb[0].mxu0 %v691
      %v1275 = vpop.f32.mrb[0].mxu0
      %v1276 = vadd.f32 %v1239, %v1275
      %v1277 = vpop.f32.mrb[0].mxu0
      %v1278 = vpop.f32.mrb[0].mxu0
      %v1279 = vpop.f32.mrb[0].mxu0
      %1280 = vdwg.mxu0
      %v1281 = vpack.c.bf16 %v1178, %v1178
      %v1282 = vpack.c.bf16 %v1227, %v1227
      %v1283 = vunpack.c.l.bf16 %v1281
      %v1284 = vunpack.c.l.bf16 %v1282
      %v1285 = vmul.f32 %v1283, %v1284
      %v1286 = vsel %vm738, %v1285, 0.0
      %1287 = vadd.xlane.f32.xlu0 %v1286
      %v1288 = vpop.xlane.xlu0 %1287
      %v1289 = vadd.f32 %v1288, %v551
      %v1290 = vsub.f32 %v1289, %v1289
      %v1291 = vmul.f32 %v1290, 1.442695
      %v1292 = vpow.pop %v1291
      %v1293 = vadd.f32 %v1292, 0.0
      %v1294 = vrcp.pop %v1293
      %v1295 = vpack.c.bf16 %v1292, %v1292
      %v1296 = vpack.c.bf16 %v1276, %v1276
      %v1298 = vsel %vm750, %v1295, 0
      %v1301 = vand.u32 %v1296, %v756
      %1303 = vmatprep.subr.bf16.mxu0 0
      %1304 = vmatpush1.bf16.msra.mxu0 %v1301
      %1305 = vmatprep.subr.bf16.mxu0 0
      %1306 = vmatpush1.bf16.msra.mxu0 0
      %1307 = vmatprep.subr.bf16.mxu0 0
      %1308 = vmatpush1.bf16.msra.mxu0 0
      %1309 = vmatprep.subr.bf16.mxu0 0
      %1310 = vmatpush1.bf16.msra.mxu0 0
      %1311 = vmatprep.subr.bf16.mxu0 0
      %1312 = vmatpush1.bf16.msra.mxu0 0
      %1313 = vmatprep.subr.bf16.mxu0 0
      %1314 = vmatpush1.bf16.msra.mxu0 0
      %1315 = vmatprep.subr.bf16.mxu0 0
      %1316 = vmatpush1.bf16.msra.mxu0 0
      %1317 = vmatprep.subr.bf16.mxu0 0
      %1318 = vmatpush1.bf16.msra.mxu0 0
      %1319 = vmatprep.subr.bf16.mxu0 0
      %1320 = vmatpush1.bf16.msra.mxu0 0
      %1321 = vmatprep.subr.bf16.mxu0 0
      %1322 = vmatpush1.bf16.msra.mxu0 0
      %1323 = vmatprep.subr.bf16.mxu0 0
      %1324 = vmatpush1.bf16.msra.mxu0 0
      %1325 = vmatprep.subr.bf16.mxu0 0
      %1326 = vmatpush1.bf16.msra.mxu0 0
      %1327 = vmatprep.subr.bf16.mxu0 0
      %1328 = vmatpush1.bf16.msra.mxu0 0
      %1329 = vmatprep.subr.bf16.mxu0 0
      %1330 = vmatpush1.bf16.msra.mxu0 0
      %1331 = vmatprep.subr.bf16.mxu0 0
      %1332 = vmatpush1.bf16.msra.mxu0 0
      %1333 = vmatprep.subr.bf16.mxu0 0
      %1334 = vmatpush1.bf16.msra.mxu0 0
      %1335 = vmatprep.mubr.bf16.mxu0 0
      %1336 = vmatmul.mubr.bf16.gmra.mrb[0].mxu0 %v1298
      %v1337 = vpop.f32.mrb[0].mxu0
      %v1338 = vadd.f32 0.0, %v1337
      %v1339 = vpop.f32.mrb[0].mxu0
      %v1340 = vpop.f32.mrb[0].mxu0
      %v1341 = vpop.f32.mrb[0].mxu0
      %1342 = vdwg.mxu0
      %1344 = vset.pattern.permute.xlu0 0
      %1345 = vperm.xlu0 %1344, %v1294
      %v1346 = vpop.permute.xlu0 %1345
      %v1348 = vmul.f32 %v1338, %v1346
      %v1349 = vpack.c.bf16 %v1348, %v1348
      %v1350 = vld [vmem:[%s11 + $0x8] sm:$0xf]
      %v1352 = vsel %vm1040, %v1349, 0
      %v1355 = vsel %vm1044, %v1350, 0
      %1357 = vmatprep.subr.bf16.mxu0 0
      %1358 = vmatpush1.bf16.msra.mxu0 %v1355
      %1359 = vmatprep.subr.bf16.mxu0 0
      %1360 = vmatpush1.bf16.msra.mxu0 0
      %1361 = vmatprep.subr.bf16.mxu0 0
      %1362 = vmatpush1.bf16.msra.mxu0 0
      %1363 = vmatprep.subr.bf16.mxu0 0
      %1364 = vmatpush1.bf16.msra.mxu0 0
      %1365 = vmatprep.subr.bf16.mxu0 0
      %1366 = vmatpush1.bf16.msra.mxu0 0
      %1367 = vmatprep.subr.bf16.mxu0 0
      %1368 = vmatpush1.bf16.msra.mxu0 0
      %1369 = vmatprep.subr.bf16.mxu0 0
      %1370 = vmatpush1.bf16.msra.mxu0 0
      %1371 = vmatprep.subr.bf16.mxu0 0
      %1372 = vmatpush1.bf16.msra.mxu0 0
      %1373 = vmatprep.subr.bf16.mxu0 0
      %1374 = vmatpush1.bf16.msra.mxu0 0
      %1375 = vmatprep.subr.bf16.mxu0 0
      %1376 = vmatpush1.bf16.msra.mxu0 0
      %1377 = vmatprep.subr.bf16.mxu0 0
      %1378 = vmatpush1.bf16.msra.mxu0 0
      %1379 = vmatprep.subr.bf16.mxu0 0
      %1380 = vmatpush1.bf16.msra.mxu0 0
      %1381 = vmatprep.subr.bf16.mxu0 0
      %1382 = vmatpush1.bf16.msra.mxu0 0
      %1383 = vmatprep.subr.bf16.mxu0 0
      %1384 = vmatpush1.bf16.msra.mxu0 0
      %1385 = vmatprep.subr.bf16.mxu0 0
      %1386 = vmatpush1.bf16.msra.mxu0 0
      %1387 = vmatprep.subr.bf16.mxu0 0
      %1388 = vmatpush1.bf16.msra.mxu0 0
      %1389 = vmatprep.mubr.bf16.mxu0 0
      %1390 = vmatmul.mubr.bf16.gmra.mrb[0].mxu0 %v1352
      %v1391 = vpop.f32.mrb[0].mxu0
      %v1392 = vadd.f32 0.0, %v1391
      %v1393 = vpop.f32.mrb[0].mxu0
      %v1394 = vpop.f32.mrb[0].mxu0
      %v1395 = vpop.f32.mrb[0].mxu0
      %1396 = vdwg.mxu0
      %v1397 = vadd.f32 %v1129, %v1392
      %1398 = vrot.lane.b32.xlu0 %v565, 104
      %v1399 = vpop.permute.xlu0 %1398
      %1400 = vrot.lane.b32.xlu0 %v566, 104
      %v1401 = vpop.permute.xlu0 %1400
      %1404 = vrot.lane.b32.xlu0 %v818, 104
      %v1405 = vpop.permute.xlu0 %1404
      %1407 = vmatprep.subr.bf16.mxu0 0
      %1408 = vmatpush1.bf16.msra.mxu0 %v1399
      %1409 = vmatprep.subr.bf16.mxu0 0
      %1410 = vmatpush1.bf16.msra.mxu0 %v1401
      %1411 = vmatprep.subr.bf16.mxu0 0
      %1412 = vmatpush1.bf16.msra.mxu0 0
      %1413 = vmatprep.subr.bf16.mxu0 0
      %1414 = vmatpush1.bf16.msra.mxu0 0
      %1415 = vmatprep.subr.bf16.mxu0 0
      %1416 = vmatpush1.bf16.msra.mxu0 0
      %1417 = vmatprep.subr.bf16.mxu0 0
      %1418 = vmatpush1.bf16.msra.mxu0 0
      %1419 = vmatprep.subr.bf16.mxu0 0
      %1420 = vmatpush1.bf16.msra.mxu0 0
      %1421 = vmatprep.subr.bf16.mxu0 0
      %1422 = vmatpush1.bf16.msra.mxu0 0
      %1423 = vmatprep.subr.bf16.mxu0 0
      %1424 = vmatpush1.bf16.msra.mxu0 0
      %1425 = vmatprep.subr.bf16.mxu0 0
      %1426 = vmatpush1.bf16.msra.mxu0 0
      %1427 = vmatprep.subr.bf16.mxu0 0
      %1428 = vmatpush1.bf16.msra.mxu0 0
      %1429 = vmatprep.subr.bf16.mxu0 0
      %1430 = vmatpush1.bf16.msra.mxu0 0
      %1431 = vmatprep.subr.bf16.mxu0 0
      %1432 = vmatpush1.bf16.msra.mxu0 0
      %1433 = vmatprep.subr.bf16.mxu0 0
      %1434 = vmatpush1.bf16.msra.mxu0 0
      %1435 = vmatprep.subr.bf16.mxu0 0
      %1436 = vmatpush1.bf16.msra.mxu0 0
      %1437 = vmatprep.subr.bf16.mxu0 0
      %1438 = vmatpush1.bf16.msra.mxu0 0
      %1439 = vmatprep.mubr.bf16.mxu0 0
      %1440 = vmatmul.mubr.bf16.gmra.mrb[0].mxu0 %v571
      %v1441 = vpop.f32.mrb[0].mxu0
      %v1442 = vadd.f32 %v1405, %v1441
      %v1443 = vpop.f32.mrb[0].mxu0
      %v1444 = vpop.f32.mrb[0].mxu0
      %v1445 = vpop.f32.mrb[0].mxu0
      %1446 = vdwg.mxu0
      %1447 = vrot.lane.b32.xlu0 %v626, 104
      %v1448 = vpop.permute.xlu0 %1447
      %1449 = vrot.lane.b32.xlu0 %v627, 104
      %v1450 = vpop.permute.xlu0 %1449
      %1453 = vrot.lane.b32.xlu0 %v872, 104
      %v1454 = vpop.permute.xlu0 %1453
      %1456 = vmatprep.subr.bf16.mxu0 0
      %1457 = vmatpush1.bf16.msra.mxu0 %v1448
      %1458 = vmatprep.subr.bf16.mxu0 0
      %1459 = vmatpush1.bf16.msra.mxu0 %v1450
      %1460 = vmatprep.subr.bf16.mxu0 0
      %1461 = vmatpush1.bf16.msra.mxu0 0
      %1462 = vmatprep.subr.bf16.mxu0 0
      %1463 = vmatpush1.bf16.msra.mxu0 0
      %1464 = vmatprep.subr.bf16.mxu0 0
      %1465 = vmatpush1.bf16.msra.mxu0 0
      %1466 = vmatprep.subr.bf16.mxu0 0
      %1467 = vmatpush1.bf16.msra.mxu0 0
      %1468 = vmatprep.subr.bf16.mxu0 0
      %1469 = vmatpush1.bf16.msra.mxu0 0
      %1470 = vmatprep.subr.bf16.mxu0 0
      %1471 = vmatpush1.bf16.msra.mxu0 0
      %1472 = vmatprep.subr.bf16.mxu0 0
      %1473 = vmatpush1.bf16.msra.mxu0 0
      %1474 = vmatprep.subr.bf16.mxu0 0
      %1475 = vmatpush1.bf16.msra.mxu0 0
      %1476 = vmatprep.subr.bf16.mxu0 0
      %1477 = vmatpush1.bf16.msra.mxu0 0
      %1478 = vmatprep.subr.bf16.mxu0 0
      %1479 = vmatpush1.bf16.msra.mxu0 0
      %1480 = vmatprep.subr.bf16.mxu0 0
      %1481 = vmatpush1.bf16.msra.mxu0 0
      %1482 = vmatprep.subr.bf16.mxu0 0
      %1483 = vmatpush1.bf16.msra.mxu0 0
      %1484 = vmatprep.subr.bf16.mxu0 0
      %1485 = vmatpush1.bf16.msra.mxu0 0
      %1486 = vmatprep.subr.bf16.mxu0 0
      %1487 = vmatpush1.bf16.msra.mxu0 0
      %1488 = vmatprep.mubr.bf16.mxu0 0
      %1489 = vmatmul.mubr.bf16.gmra.mrb[0].mxu0 %v631
      %v1490 = vpop.f32.mrb[0].mxu0
      %v1491 = vadd.f32 %v1454, %v1490
      %v1492 = vpop.f32.mrb[0].mxu0
      %v1493 = vpop.f32.mrb[0].mxu0
      %v1494 = vpop.f32.mrb[0].mxu0
      %1495 = vdwg.mxu0
      %1496 = vrot.lane.b32.xlu0 %v686, 104
      %v1497 = vpop.permute.xlu0 %1496
      %1498 = vrot.lane.b32.xlu0 %v687, 104
      %v1499 = vpop.permute.xlu0 %1498
      %1502 = vrot.lane.b32.xlu0 %v926, 104
      %v1503 = vpop.permute.xlu0 %1502
      %1505 = vmatprep.subr.bf16.mxu0 0
      %1506 = vmatpush1.bf16.msra.mxu0 %v1497
      %1507 = vmatprep.subr.bf16.mxu0 0
      %1508 = vmatpush1.bf16.msra.mxu0 %v1499
      %1509 = vmatprep.subr.bf16.mxu0 0
      %1510 = vmatpush1.bf16.msra.mxu0 0
      %1511 = vmatprep.subr.bf16.mxu0 0
      %1512 = vmatpush1.bf16.msra.mxu0 0
      %1513 = vmatprep.subr.bf16.mxu0 0
      %1514 = vmatpush1.bf16.msra.mxu0 0
      %1515 = vmatprep.subr.bf16.mxu0 0
      %1516 = vmatpush1.bf16.msra.mxu0 0
      %1517 = vmatprep.subr.bf16.mxu0 0
      %1518 = vmatpush1.bf16.msra.mxu0 0
      %1519 = vmatprep.subr.bf16.mxu0 0
      %1520 = vmatpush1.bf16.msra.mxu0 0
      %1521 = vmatprep.subr.bf16.mxu0 0
      %1522 = vmatpush1.bf16.msra.mxu0 0
      %1523 = vmatprep.subr.bf16.mxu0 0
      %1524 = vmatpush1.bf16.msra.mxu0 0
      %1525 = vmatprep.subr.bf16.mxu0 0
      %1526 = vmatpush1.bf16.msra.mxu0 0
      %1527 = vmatprep.subr.bf16.mxu0 0
      %1528 = vmatpush1.bf16.msra.mxu0 0
      %1529 = vmatprep.subr.bf16.mxu0 0
      %1530 = vmatpush1.bf16.msra.mxu0 0
      %1531 = vmatprep.subr.bf16.mxu0 0
      %1532 = vmatpush1.bf16.msra.mxu0 0
      %1533 = vmatprep.subr.bf16.mxu0 0
      %1534 = vmatpush1.bf16.msra.mxu0 0
      %1535 = vmatprep.subr.bf16.mxu0 0
      %1536 = vmatpush1.bf16.msra.mxu0 0
      %1537 = vmatprep.mubr.bf16.mxu0 0
      %1538 = vmatmul.mubr.bf16.gmra.mrb[0].mxu0 %v691
      %v1539 = vpop.f32.mrb[0].mxu0
      %v1540 = vadd.f32 %v1503, %v1539
      %v1541 = vpop.f32.mrb[0].mxu0
      %v1542 = vpop.f32.mrb[0].mxu0
      %v1543 = vpop.f32.mrb[0].mxu0
      %1544 = vdwg.mxu0
      %v1545 = vpack.c.bf16 %v1442, %v1442
      %v1546 = vpack.c.bf16 %v1491, %v1491
      %v1547 = vunpack.c.l.bf16 %v1545
      %v1548 = vunpack.c.l.bf16 %v1546
      %v1549 = vmul.f32 %v1547, %v1548
      %v1550 = vsel %vm738, %v1549, 0.0
      %1551 = vadd.xlane.f32.xlu0 %v1550
      %v1552 = vpop.xlane.xlu0 %1551
      %v1553 = vadd.f32 %v1552, %v551
      %v1554 = vsub.f32 %v1553, %v1553
      %v1555 = vmul.f32 %v1554, 1.442695
      %v1556 = vpow.pop %v1555
      %v1557 = vadd.f32 %v1556, 0.0
      %v1558 = vrcp.pop %v1557
      %v1559 = vpack.c.bf16 %v1556, %v1556
      %v1560 = vpack.c.bf16 %v1540, %v1540
      %v1562 = vsel %vm750, %v1559, 0
      %v1565 = vand.u32 %v1560, %v756
      %1567 = vmatprep.subr.bf16.mxu0 0
      %1568 = vmatpush1.bf16.msra.mxu0 %v1565
      %1569 = vmatprep.subr.bf16.mxu0 0
      %1570 = vmatpush1.bf16.msra.mxu0 0
      %1571 = vmatprep.subr.bf16.mxu0 0
      %1572 = vmatpush1.bf16.msra.mxu0 0
      %1573 = vmatprep.subr.bf16.mxu0 0
      %1574 = vmatpush1.bf16.msra.mxu0 0
      %1575 = vmatprep.subr.bf16.mxu0 0
      %1576 = vmatpush1.bf16.msra.mxu0 0
      %1577 = vmatprep.subr.bf16.mxu0 0
      %1578 = vmatpush1.bf16.msra.mxu0 0
      %1579 = vmatprep.subr.bf16.mxu0 0
      %1580 = vmatpush1.bf16.msra.mxu0 0
      %1581 = vmatprep.subr.bf16.mxu0 0
      %1582 = vmatpush1.bf16.msra.mxu0 0
      %1583 = vmatprep.subr.bf16.mxu0 0
      %1584 = vmatpush1.bf16.msra.mxu0 0
      %1585 = vmatprep.subr.bf16.mxu0 0
      %1586 = vmatpush1.bf16.msra.mxu0 0
      %1587 = vmatprep.subr.bf16.mxu0 0
      %1588 = vmatpush1.bf16.msra.mxu0 0
      %1589 = vmatprep.subr.bf16.mxu0 0
      %1590 = vmatpush1.bf16.msra.mxu0 0
      %1591 = vmatprep.subr.bf16.mxu0 0
      %1592 = vmatpush1.bf16.msra.mxu0 0
      %1593 = vmatprep.subr.bf16.mxu0 0
      %1594 = vmatpush1.bf16.msra.mxu0 0
      %1595 = vmatprep.subr.bf16.mxu0 0
      %1596 = vmatpush1.bf16.msra.mxu0 0
      %1597 = vmatprep.subr.bf16.mxu0 0
      %1598 = vmatpush1.bf16.msra.mxu0 0
      %1599 = vmatprep.mubr.bf16.mxu0 0
      %1600 = vmatmul.mubr.bf16.gmra.mrb[0].mxu0 %v1562
      %v1601 = vpop.f32.mrb[0].mxu0
      %v1602 = vadd.f32 0.0, %v1601
      %v1603 = vpop.f32.mrb[0].mxu0
      %v1604 = vpop.f32.mrb[0].mxu0
      %v1605 = vpop.f32.mrb[0].mxu0
      %1606 = vdwg.mxu0
      %1608 = vset.pattern.permute.xlu0 0
      %1609 = vperm.xlu0 %1608, %v1558
      %v1610 = vpop.permute.xlu0 %1609
      %v1612 = vmul.f32 %v1602, %v1610
      %v1613 = vpack.c.bf16 %v1612, %v1612
      %v1614 = vld [vmem:[%s11 + $0xc] sm:$0xf]
      %v1616 = vsel %vm1040, %v1613, 0
      %v1619 = vsel %vm1044, %v1614, 0
      %1621 = vmatprep.subr.bf16.mxu0 0
      %1622 = vmatpush1.bf16.msra.mxu0 %v1619
      %1623 = vmatprep.subr.bf16.mxu0 0
      %1624 = vmatpush1.bf16.msra.mxu0 0
      %1625 = vmatprep.subr.bf16.mxu0 0
      %1626 = vmatpush1.bf16.msra.mxu0 0
      %1627 = vmatprep.subr.bf16.mxu0 0
      %1628 = vmatpush1.bf16.msra.mxu0 0
      %1629 = vmatprep.subr.bf16.mxu0 0
      %1630 = vmatpush1.bf16.msra.mxu0 0
      %1631 = vmatprep.subr.bf16.mxu0 0
      %1632 = vmatpush1.bf16.msra.mxu0 0
      %1633 = vmatprep.subr.bf16.mxu0 0
      %1634 = vmatpush1.bf16.msra.mxu0 0
      %1635 = vmatprep.subr.bf16.mxu0 0
      %1636 = vmatpush1.bf16.msra.mxu0 0
      %1637 = vmatprep.subr.bf16.mxu0 0
      %1638 = vmatpush1.bf16.msra.mxu0 0
      %1639 = vmatprep.subr.bf16.mxu0 0
      %1640 = vmatpush1.bf16.msra.mxu0 0
      %1641 = vmatprep.subr.bf16.mxu0 0
      %1642 = vmatpush1.bf16.msra.mxu0 0
      %1643 = vmatprep.subr.bf16.mxu0 0
      %1644 = vmatpush1.bf16.msra.mxu0 0
      %1645 = vmatprep.subr.bf16.mxu0 0
      %1646 = vmatpush1.bf16.msra.mxu0 0
      %1647 = vmatprep.subr.bf16.mxu0 0
      %1648 = vmatpush1.bf16.msra.mxu0 0
      %1649 = vmatprep.subr.bf16.mxu0 0
      %1650 = vmatpush1.bf16.msra.mxu0 0
      %1651 = vmatprep.subr.bf16.mxu0 0
      %1652 = vmatpush1.bf16.msra.mxu0 0
      %1653 = vmatprep.mubr.bf16.mxu0 0
      %1654 = vmatmul.mubr.bf16.gmra.mrb[0].mxu0 %v1616
      %v1655 = vpop.f32.mrb[0].mxu0
      %v1656 = vadd.f32 0.0, %v1655
      %v1657 = vpop.f32.mrb[0].mxu0
      %v1658 = vpop.f32.mrb[0].mxu0
      %v1659 = vpop.f32.mrb[0].mxu0
      %1660 = vdwg.mxu0
      %v1661 = vadd.f32 %v1397, %v1656
      %v1662 = vadd.f32 %v542, %v1661
      %v1663 = vld [vmem:[%s12] sm:$0x1]
      %v1664 = vadd.f32 %v1662, %v1663
      %v1665 = vld [vmem:[%s13] sm:$0x1]
      %v1666 = vld [vmem:[%s14] sm:$0x1]
      %vm1667 = vcmask 253952
      %v1668 = vsel %vm1667, %v1664, 0.0
      %1669 = vadd.xlane.f32.xlu0 %v1668
      %v1670 = vpop.xlane.xlu0 %1669
      %v1671 = vrcp.pop 32.0
      %v1672 = vmul.f32 %v1670, %v1671
      %v1673 = vsub.f32 %v1664, %v1672
      %v1674 = vmul.f32 %v1673, %v1673
      %v1675 = vsel %vm1667, %v1674, 0.0
      %1676 = vadd.xlane.f32.xlu0 %v1675
      %v1677 = vpop.xlane.xlu0 %1676
      %v1678 = vmul.f32 %v1677, %v1671
      %v1679 = vadd.f32 %v1678, 1e-05
      %v1680 = vrsqrt.pop %v1679
      %v1681 = vmul.f32 %v1673, %v1680
      %v1682 = vmul.f32 %v1681, %v1665
      %v1683 = vadd.f32 %v1682, %v1666
      %1684 = vst.msk [vmem:[%s540] sm:$0x1] %vm1667, %v1683
      %p1685 = scmp.lt.s32.totalorder %s26, 1
      %s1686 = scalar_select %p1685, %s26, 1
      %s1687 = scalar_lea.vmem %s15, %s1686
      // Predicated region
      $region81: #{rise_forward.16} parent=79 // pred_check
        %p1688 = pneg %p384
      $region82: #{rise_forward.16} parent=79 // pred_check_branch
        %1690 = sbr.rel (%p1688) target = $region84
      $region83: #{rise_forward.16} parent=79 // pred_region
        _
      $region84: #{rise_forward.16} parent=79 // pred_fallthru
        _
    $region80: #{rise_forward.16} parent=5 // pred_fallthru
      _
    %p1691 = scmp.le.s32.totalorder 2, %s21
    // Predicated region
    $region85: #{rise_forward.16} parent=5 // pred_check
      %p1692 = pneg %p1691
    $region86: #{rise_forward.16} parent=5 // pred_check_branch
      %1694 = sbr.rel (%p1692) target = $region88
    $region87: #{rise_forward.16} parent=5 // pred_region
      %s1695 = ssub.s32 %s21, 2
      // Predicated region
      $region89: #{rise_forward.16} parent=87 // pred_check
        %p1696 = pneg %p390
      $region90: #{rise_forward.16} parent=87 // pred_check_branch
        %1698 = sbr.rel (%p1696) target = $region92
      $region91: #{rise_forward.16} parent=87 // pred_region
        %p1699 = scmp.lt.s32.totalorder %s27, 1
        %s1700 = scalar_select %p1699, %s27, 1
        %s1701 = scalar_lea.vmem %s15, %s1700
      $region92: #{rise_forward.16} parent=87 // pred_fallthru
        _
    $region88: #{rise_forward.16} parent=5 // pred_fallthru
      _
  $region6: #{rise_forward.16} parent=0 // loop_footer
    %s25 = sadd.s32 1, %s21
  $region7: #{rise_forward.16} parent=0 // loop_footer_branch
    %20 = sbr.rel target = $region3
  $region8: #{rise_forward.16} parent=0 // loop_exit
    _

// kernel: rise_forward.19
$region0: #{rise_forward.19}
  #allocation0 [shape = 'u32[]', space=smem, size = 0x4, offset = 0x4, fixed_abs, tag = 'smem constant byte address 0x4 - core index']
  #allocation1 [shape = 'u32[144,128]{1,0:T(1,128)}', space=vmem, size = 0x12000, scoped, tag = 'internal scratch']
  %s0 = inlined_call_operand.vmem [shape: f32[2,32], index: 0, kind: input, shape index: {}]
  %s1 = inlined_call_operand.vmem [shape: bf16[32,64], index: 1, kind: input, shape index: {}]
  %s2 = inlined_call_operand.vmem [shape: f32[1,64], index: 2, kind: input, shape index: {}]
  %s3 = inlined_call_operand.vmem [shape: bf16[64,64], index: 3, kind: input, shape index: {}]
  %s4 = inlined_call_operand.vmem [shape: f32[1,64], index: 4, kind: input, shape index: {}]
  %s5 = inlined_call_operand.vmem [shape: f32[2,64], index: 5, kind: output, shape index: {}]
  %s6 = sld [smem:[#allocation0]]
  $region30: #{rise_forward.19} parent=0
    _
  %s8 = ssub.s32 1, %s6
  %s9 = scalar_select 0, %s8, %s6
  // Predicated region
  $region2: #{rise_forward.19} parent=0 // pred_check
    _
  $region3: #{rise_forward.19} parent=0 // pred_check_branch
    %11 = sbr.rel (0) target = $region5
  $region4: #{rise_forward.19} parent=0 // pred_region
    _
  $region5: #{rise_forward.19} parent=0 // pred_fallthru
    _
  // Predicated region
  $region6: #{rise_forward.19} parent=0 // pred_check
    _
  $region7: #{rise_forward.19} parent=0 // pred_check_branch
    %13 = sbr.rel (0) target = $region9
  $region8: #{rise_forward.19} parent=0 // pred_region
    _
  $region9: #{rise_forward.19} parent=0 // pred_fallthru
    _
  // Predicated region
  $region10: #{rise_forward.19} parent=0 // pred_check
    _
  $region11: #{rise_forward.19} parent=0 // pred_check_branch
    %15 = sbr.rel (0) target = $region13
  $region12: #{rise_forward.19} parent=0 // pred_region
    _
  $region13: #{rise_forward.19} parent=0 // pred_fallthru
    _
  // Predicated region
  $region14: #{rise_forward.19} parent=0 // pred_check
    _
  $region15: #{rise_forward.19} parent=0 // pred_check_branch
    %17 = sbr.rel (0) target = $region17
  $region16: #{rise_forward.19} parent=0 // pred_region
    _
  $region17: #{rise_forward.19} parent=0 // pred_fallthru
    _
  // Predicated region
  $region18: #{rise_forward.19} parent=0 // pred_check
    _
  $region19: #{rise_forward.19} parent=0 // pred_check_branch
    %19 = sbr.rel (0) target = $region21
  $region20: #{rise_forward.19} parent=0 // pred_region
    _
  $region21: #{rise_forward.19} parent=0 // pred_fallthru
    _
  %v21 = vld [vmem:[%s0] sm:$0x3]
  %v22 = vpack.c.bf16 %v21, %v21
  %v23 = vld [vmem:[%s1] sm:$0xf]
  %v24 = vld [vmem:[%s1 + $0x4] sm:$0xf]
  %v25 = vld [vmem:[%s1 + $0x8] sm:$0xf]
  %v26 = vld [vmem:[%s1 + $0xc] sm:$0xf]
  %v27 = vld [vmem:[%s2] sm:$0x1]
  %v29 = vlaneseq
  %v30 = vshrl.u32 %v29, 7
  %v31 = vsub.s32 0, %v30
  %v32 = vrot.slane %v27, %v31
  %v38 = vunpack.c.l.b16 %v23
  %v39 = vunpack.c.l.b16 %v24
  %v40 = vunpack.c.l.b16 %v25
  %v41 = vunpack.c.l.b16 %v26
  %v42 = vpack.c.b16 %v39, %v38
  %v43 = vpack.c.b16 %v41, %v40
  %vm46 = vcmask 261120
  %v48 = vsel %vm46, %v22, 0
  %50 = vmatprep.subr.bf16.mxu0 0
  %51 = vmatpush1.bf16.msra.mxu0 %v42
  %52 = vmatprep.subr.bf16.mxu0 0
  %53 = vmatpush1.bf16.msra.mxu0 %v43
  %54 = vmatprep.subr.bf16.mxu0 0
  %55 = vmatpush1.bf16.msra.mxu0 0
  %56 = vmatprep.subr.bf16.mxu0 0
  %57 = vmatpush1.bf16.msra.mxu0 0
  %58 = vmatprep.subr.bf16.mxu0 0
  %59 = vmatpush1.bf16.msra.mxu0 0
  %60 = vmatprep.subr.bf16.mxu0 0
  %61 = vmatpush1.bf16.msra.mxu0 0
  %62 = vmatprep.subr.bf16.mxu0 0
  %63 = vmatpush1.bf16.msra.mxu0 0
  %64 = vmatprep.subr.bf16.mxu0 0
  %65 = vmatpush1.bf16.msra.mxu0 0
  %66 = vmatprep.subr.bf16.mxu0 0
  %67 = vmatpush1.bf16.msra.mxu0 0
  %68 = vmatprep.subr.bf16.mxu0 0
  %69 = vmatpush1.bf16.msra.mxu0 0
  %70 = vmatprep.subr.bf16.mxu0 0
  %71 = vmatpush1.bf16.msra.mxu0 0
  %72 = vmatprep.subr.bf16.mxu0 0
  %73 = vmatpush1.bf16.msra.mxu0 0
  %74 = vmatprep.subr.bf16.mxu0 0
  %75 = vmatpush1.bf16.msra.mxu0 0
  %76 = vmatprep.subr.bf16.mxu0 0
  %77 = vmatpush1.bf16.msra.mxu0 0
  %78 = vmatprep.subr.bf16.mxu0 0
  %79 = vmatpush1.bf16.msra.mxu0 0
  %80 = vmatprep.subr.bf16.mxu0 0
  %81 = vmatpush1.bf16.msra.mxu0 0
  %82 = vmatprep.mubr.bf16.mxu0 0
  %83 = vmatmul.mubr.bf16.gmra.mrb[0].mxu0 %v48
  %v84 = vpop.f32.mrb[0].mxu0
  %v85 = vadd.f32 %v32, %v84
  %v86 = vpop.f32.mrb[0].mxu0
  %v87 = vpop.f32.mrb[0].mxu0
  %v88 = vpop.f32.mrb[0].mxu0
  %89 = vdwg.mxu0
  %v90 = vmax.f32 %v85, 0.0
  %v91 = vpack.c.bf16 %v90, %v90
  %v92 = vld [vmem:[%s3] sm:$0xf]
  %v93 = vld [vmem:[%s3 + $0x4] sm:$0xf]
  %v94 = vld [vmem:[%s3 + $0x8] sm:$0xf]
  %v95 = vld [vmem:[%s3 + $0xc] sm:$0xf]
  %v96 = vld [vmem:[%s3 + $0x10] sm:$0xf]
  %v97 = vld [vmem:[%s3 + $0x14] sm:$0xf]
  %v98 = vld [vmem:[%s3 + $0x18] sm:$0xf]
  %v99 = vld [vmem:[%s3 + $0x1c] sm:$0xf]
  %v100 = vld [vmem:[%s4] sm:$0x1]
  %v102 = vlaneseq
  %v103 = vshrl.u32 %v102, 7
  %v104 = vsub.s32 0, %v103
  %v105 = vrot.slane %v100, %v104
  %v115 = vunpack.c.l.b16 %v92
  %v116 = vunpack.c.l.b16 %v93
  %v117 = vunpack.c.l.b16 %v94
  %v118 = vunpack.c.l.b16 %v95
  %v119 = vunpack.c.l.b16 %v96
  %v120 = vunpack.c.l.b16 %v97
  %v121 = vunpack.c.l.b16 %v98
  %v122 = vunpack.c.l.b16 %v99
  %v123 = vpack.c.b16 %v116, %v115
  %v124 = vpack.c.b16 %v118, %v117
  %v125 = vpack.c.b16 %v120, %v119
  %v126 = vpack.c.b16 %v122, %v121
  %vm131 = vcmask 523264
  %v133 = vsel %vm131, %v91, 0
  %135 = vmatprep.subr.bf16.mxu0 0
  %136 = vmatpush1.bf16.msra.mxu0 %v123
  %137 = vmatprep.subr.bf16.mxu0 0
  %138 = vmatpush1.bf16.msra.mxu0 %v124
  %139 = vmatprep.subr.bf16.mxu0 0
  %140 = vmatpush1.bf16.msra.mxu0 %v125
  %141 = vmatprep.subr.bf16.mxu0 0
  %142 = vmatpush1.bf16.msra.mxu0 %v126
  %143 = vmatprep.subr.bf16.mxu0 0
  %144 = vmatpush1.bf16.msra.mxu0 0
  %145 = vmatprep.subr.bf16.mxu0 0
  %146 = vmatpush1.bf16.msra.mxu0 0
  %147 = vmatprep.subr.bf16.mxu0 0
  %148 = vmatpush1.bf16.msra.mxu0 0
  %149 = vmatprep.subr.bf16.mxu0 0
  %150 = vmatpush1.bf16.msra.mxu0 0
  %151 = vmatprep.subr.bf16.mxu0 0
  %152 = vmatpush1.bf16.msra.mxu0 0
  %153 = vmatprep.subr.bf16.mxu0 0
  %154 = vmatpush1.bf16.msra.mxu0 0
  %155 = vmatprep.subr.bf16.mxu0 0
  %156 = vmatpush1.bf16.msra.mxu0 0
  %157 = vmatprep.subr.bf16.mxu0 0
  %158 = vmatpush1.bf16.msra.mxu0 0
  %159 = vmatprep.subr.bf16.mxu0 0
  %160 = vmatpush1.bf16.msra.mxu0 0
  %161 = vmatprep.subr.bf16.mxu0 0
  %162 = vmatpush1.bf16.msra.mxu0 0
  %163 = vmatprep.subr.bf16.mxu0 0
  %164 = vmatpush1.bf16.msra.mxu0 0
  %165 = vmatprep.subr.bf16.mxu0 0
  %166 = vmatpush1.bf16.msra.mxu0 0
  %167 = vmatprep.mubr.bf16.mxu0 0
  %168 = vmatmul.mubr.bf16.gmra.mrb[0].mxu0 %v133
  %v169 = vpop.f32.mrb[0].mxu0
  %v170 = vadd.f32 %v105, %v169
  %v171 = vpop.f32.mrb[0].mxu0
  %v172 = vpop.f32.mrb[0].mxu0
  %v173 = vpop.f32.mrb[0].mxu0
  %174 = vdwg.mxu0
  %vm175 = vcmask 517120
  %176 = vst.msk [vmem:[%s5] sm:$0x3] %vm175, %v170
  // Predicated region
  $region22: #{rise_forward.19} parent=0 // pred_check
    _
  $region23: #{rise_forward.19} parent=0 // pred_check_branch
    %178 = sbr.rel (0) target = $region25
  $region24: #{rise_forward.19} parent=0 // pred_region
    _
  $region25: #{rise_forward.19} parent=0 // pred_fallthru
    _
  // Predicated region
  $region26: #{rise_forward.19} parent=0 // pred_check
    _
  $region27: #{rise_forward.19} parent=0 // pred_check_branch
    %180 = sbr.rel (0) target = $region29
  $region28: #{rise_forward.19} parent=0 // pred_region
    _
  $region29: #{rise_forward.19} parent=0 // pred_fallthru
    _

// kernel: rise_forward.17
$region0: #{rise_forward.17}
  #allocation0 [shape = 'u32[]', space=smem, size = 0x4, offset = 0x4, fixed_abs, tag = 'smem constant byte address 0x4 - core index']
  #allocation1 [shape = 'u32[144,128]{1,0:T(1,128)}', space=vmem, size = 0x12000, scoped, tag = 'internal scratch']
  %s0 = inlined_call_operand.vmem [shape: f32[2,1,32], index: 0, kind: input, shape index: {}]
  %s1 = inlined_call_operand.vmem [shape: f32[2,1,32], index: 1, kind: input, shape index: {}]
  %s2 = inlined_call_operand.vmem [shape: f32[2,32,32], index: 2, kind: input, shape index: {}]
  %s3 = inlined_call_operand.vmem [shape: f32[2,32,32], index: 3, kind: input, shape index: {}]
  %s4 = inlined_call_operand.vmem [shape: f32[2,1,32], index: 4, kind: input, shape index: {}]
  %s5 = inlined_call_operand.vmem [shape: bf16[32,32], index: 5, kind: input, shape index: {}]
  %s6 = inlined_call_operand.vmem [shape: bf16[32,32], index: 6, kind: input, shape index: {}]
  %s7 = inlined_call_operand.vmem [shape: bf16[32,32], index: 7, kind: input, shape index: {}]
  %s8 = inlined_call_operand.vmem [shape: f32[1,32], index: 8, kind: input, shape index: {}]
  %s9 = inlined_call_operand.vmem [shape: f32[1,32], index: 9, kind: input, shape index: {}]
  %s10 = inlined_call_operand.vmem [shape: f32[1,32], index: 10, kind: input, shape index: {}]
  %s11 = inlined_call_operand.vmem [shape: bf16[32,32], index: 11, kind: input, shape index: {}]
  %s12 = inlined_call_operand.vmem [shape: f32[1,32], index: 12, kind: input, shape index: {}]
  %s13 = inlined_call_operand.vmem [shape: f32[1,32], index: 13, kind: input, shape index: {}]
  %s14 = inlined_call_operand.vmem [shape: f32[1,32], index: 14, kind: input, shape index: {}]
  %s15 = inlined_call_operand.vmem [shape: f32[2,1,32], index: 15, kind: output, shape index: {}]
  %s16 = sld [smem:[#allocation0]]
  $region93: #{rise_forward.17} parent=0
    _
  %s18 = ssub.s32 1, %s16
  %s19 = scalar_select 0, %s18, %s16
  loop: start=0, step=1, limit=4
  $region2: #{rise_forward.17} parent=0 // loop_pre_header
    _
  $region3: #{rise_forward.17} parent=0 // loop_header
    %s21 = sphi 0, %s25
    %p22 = scmp.ge.s32.totalorder %s21, 4
    %s31 = sphi 0, %s33
    %s34 = sphi 0, %s31
    %s35 = sphi 0, %s34
    %s51 = sphi 0, %s35
    %s57 = sphi 0, %s59
    %s60 = sphi 0, %s57
    %s61 = sphi 0, %s60
    %s77 = sphi 0, %s61
    %s83 = sphi 0, %s85
    %s86 = sphi 0, %s83
    %s87 = sphi 0, %s86
    %s103 = sphi 0, %s87
    %s109 = sphi 0, %s111
    %s112 = sphi 0, %s109
    %s113 = sphi 0, %s112
    %s129 = sphi 0, %s113
    %s135 = sphi 0, %s137
    %s138 = sphi 0, %s135
    %s139 = sphi 0, %s138
    %s155 = sphi 0, %s139
    %s159 = sphi 0, %s159
    %s161 = sphi 0, %s159
    %s162 = sphi 0, %s161
    %s176 = sphi 0, %s162
    %s180 = sphi 0, %s180
    %s182 = sphi 0, %s180
    %s183 = sphi 0, %s182
    %s197 = sphi 0, %s183
    %s201 = sphi 0, %s201
    %s203 = sphi 0, %s201
    %s204 = sphi 0, %s203
    %s218 = sphi 0, %s204
    %s222 = sphi 0, %s222
    %s224 = sphi 0, %s222
    %s225 = sphi 0, %s224
    %s239 = sphi 0, %s225
    %s243 = sphi 0, %s243
    %s245 = sphi 0, %s243
    %s246 = sphi 0, %s245
    %s260 = sphi 0, %s246
    %s264 = sphi 0, %s264
    %s266 = sphi 0, %s264
    %s267 = sphi 0, %s266
    %s281 = sphi 0, %s267
    %s285 = sphi 0, %s285
    %s287 = sphi 0, %s285
    %s288 = sphi 0, %s287
    %s302 = sphi 0, %s288
    %s306 = sphi 0, %s306
    %s308 = sphi 0, %s306
    %s309 = sphi 0, %s308
    %s323 = sphi 0, %s309
    %s327 = sphi 0, %s327
    %s329 = sphi 0, %s327
    %s330 = sphi 0, %s329
    %s344 = sphi 0, %s330
    %s348 = sphi 0, %s348
    %s350 = sphi 0, %s348
    %s351 = sphi 0, %s350
    %s365 = sphi 0, %s351
    %s371 = sphi 0, %s373
    %s374 = sphi 0, %s371
    %s375 = sphi 0, %s374
    %s391 = sphi 0, %s375
  $region4: #{rise_forward.17} parent=0 // loop_header_branch
    %24 = sbr.rel (%p22) target = $region8
  $region5: #{rise_forward.17} parent=0 // loop_body
    %s26 = ssub.s32 %s21, 1
    %s27 = ssub.s32 %s21, 2
    %s28 = sadd.s32 %s21, 1
    %s29 = ssub.s32 %s21, %s28
    %p30 = scmp.eq.s32.totalorder %s29, 0
    %s32 = sadd.s32 %s31, 1
    %s33 = scalar_select %p30, %s31, %s32
    %p36 = pneg %p30
    %p37 = scmp.eq.s32.totalorder %s21, 1
    %p38 = por %p36, %p37
    %p39 = scmp.ne.s32.totalorder %s31, %s34
    %p40 = scmp.eq.s32.totalorder %s21, 0
    %p41 = por %p39, %p40
    %p42 = scmp.ne.s32.totalorder %s31, %s34
    %p43 = scmp.eq.s32.totalorder %s26, 1
    %p44 = por %p42, %p43
    %p45 = scmp.ne.s32.totalorder %s34, %s35
    %p46 = scmp.eq.s32.totalorder %s26, 0
    %p47 = por %p45, %p46
    %p48 = scmp.ne.s32.totalorder %s34, %s35
    %p49 = scmp.eq.s32.totalorder %s27, 1
    %p50 = por %p48, %p49
    %p52 = scmp.ne.s32.totalorder %s35, %s51
    %p53 = scmp.eq.s32.totalorder %s27, 0
    %p54 = por %p52, %p53
    %s55 = ssub.s32 %s21, %s28
    %p56 = scmp.eq.s32.totalorder %s55, 0
    %s58 = sadd.s32 %s57, 1
    %s59 = scalar_select %p56, %s57, %s58
    %p62 = pneg %p56
    %p63 = scmp.eq.s32.totalorder %s21, 1
    %p64 = por %p62, %p63
    %p65 = scmp.ne.s32.totalorder %s57, %s60
    %p66 = scmp.eq.s32.totalorder %s21, 0
    %p67 = por %p65, %p66
    %p68 = scmp.ne.s32.totalorder %s57, %s60
    %p69 = scmp.eq.s32.totalorder %s26, 1
    %p70 = por %p68, %p69
    %p71 = scmp.ne.s32.totalorder %s60, %s61
    %p72 = scmp.eq.s32.totalorder %s26, 0
    %p73 = por %p71, %p72
    %p74 = scmp.ne.s32.totalorder %s60, %s61
    %p75 = scmp.eq.s32.totalorder %s27, 1
    %p76 = por %p74, %p75
    %p78 = scmp.ne.s32.totalorder %s61, %s77
    %p79 = scmp.eq.s32.totalorder %s27, 0
    %p80 = por %p78, %p79
    %s81 = ssub.s32 %s21, %s28
    %p82 = scmp.eq.s32.totalorder %s81, 0
    %s84 = sadd.s32 %s83, 1
    %s85 = scalar_select %p82, %s83, %s84
    %p88 = pneg %p82
    %p89 = scmp.eq.s32.totalorder %s21, 1
    %p90 = por %p88, %p89
    %p91 = scmp.ne.s32.totalorder %s83, %s86
    %p92 = scmp.eq.s32.totalorder %s21, 0
    %p93 = por %p91, %p92
    %p94 = scmp.ne.s32.totalorder %s83, %s86
    %p95 = scmp.eq.s32.totalorder %s26, 1
    %p96 = por %p94, %p95
    %p97 = scmp.ne.s32.totalorder %s86, %s87
    %p98 = scmp.eq.s32.totalorder %s26, 0
    %p99 = por %p97, %p98
    %p100 = scmp.ne.s32.totalorder %s86, %s87
    %p101 = scmp.eq.s32.totalorder %s27, 1
    %p102 = por %p100, %p101
    %p104 = scmp.ne.s32.totalorder %s87, %s103
    %p105 = scmp.eq.s32.totalorder %s27, 0
    %p106 = por %p104, %p105
    %s107 = ssub.s32 %s21, %s28
    %p108 = scmp.eq.s32.totalorder %s107, 0
    %s110 = sadd.s32 %s109, 1
    %s111 = scalar_select %p108, %s109, %s110
    %p114 = pneg %p108
    %p115 = scmp.eq.s32.totalorder %s21, 1
    %p116 = por %p114, %p115
    %p117 = scmp.ne.s32.totalorder %s109, %s112
    %p118 = scmp.eq.s32.totalorder %s21, 0
    %p119 = por %p117, %p118
    %p120 = scmp.ne.s32.totalorder %s109, %s112
    %p121 = scmp.eq.s32.totalorder %s26, 1
    %p122 = por %p120, %p121
    %p123 = scmp.ne.s32.totalorder %s112, %s113
    %p124 = scmp.eq.s32.totalorder %s26, 0
    %p125 = por %p123, %p124
    %p126 = scmp.ne.s32.totalorder %s112, %s113
    %p127 = scmp.eq.s32.totalorder %s27, 1
    %p128 = por %p126, %p127
    %p130 = scmp.ne.s32.totalorder %s113, %s129
    %p131 = scmp.eq.s32.totalorder %s27, 0
    %p132 = por %p130, %p131
    %s133 = ssub.s32 %s21, %s28
    %p134 = scmp.eq.s32.totalorder %s133, 0
    %s136 = sadd.s32 %s135, 1
    %s137 = scalar_select %p134, %s135, %s136
    %p140 = pneg %p134
    %p141 = scmp.eq.s32.totalorder %s21, 1
    %p142 = por %p140, %p141
    %p143 = scmp.ne.s32.totalorder %s135, %s138
    %p144 = scmp.eq.s32.totalorder %s21, 0
    %p145 = por %p143, %p144
    %p146 = scmp.ne.s32.totalorder %s135, %s138
    %p147 = scmp.eq.s32.totalorder %s26, 1
    %p148 = por %p146, %p147
    %p149 = scmp.ne.s32.totalorder %s138, %s139
    %p150 = scmp.eq.s32.totalorder %s26, 0
    %p151 = por %p149, %p150
    %p152 = scmp.ne.s32.totalorder %s138, %s139
    %p153 = scmp.eq.s32.totalorder %s27, 1
    %p154 = por %p152, %p153
    %p156 = scmp.ne.s32.totalorder %s139, %s155
    %p157 = scmp.eq.s32.totalorder %s27, 0
    %p158 = por %p156, %p157
    %s160 = sadd.s32 %s159, 1
    %p163 = scmp.eq.s32.totalorder %s21, 1
    %p164 = scmp.ne.s32.totalorder %s159, %s161
    %p165 = scmp.eq.s32.totalorder %s21, 0
    %p166 = por %p164, %p165
    %p167 = scmp.ne.s32.totalorder %s159, %s161
    %p168 = scmp.eq.s32.totalorder %s26, 1
    %p169 = por %p167, %p168
    %p170 = scmp.ne.s32.totalorder %s161, %s162
    %p171 = scmp.eq.s32.totalorder %s26, 0
    %p172 = por %p170, %p171
    %p173 = scmp.ne.s32.totalorder %s161, %s162
    %p174 = scmp.eq.s32.totalorder %s27, 1
    %p175 = por %p173, %p174
    %p177 = scmp.ne.s32.totalorder %s162, %s176
    %p178 = scmp.eq.s32.totalorder %s27, 0
    %p179 = por %p177, %p178
    %s181 = sadd.s32 %s180, 1
    %p184 = scmp.eq.s32.totalorder %s21, 1
    %p185 = scmp.ne.s32.totalorder %s180, %s182
    %p186 = scmp.eq.s32.totalorder %s21, 0
    %p187 = por %p185, %p186
    %p188 = scmp.ne.s32.totalorder %s180, %s182
    %p189 = scmp.eq.s32.totalorder %s26, 1
    %p190 = por %p188, %p189
    %p191 = scmp.ne.s32.totalorder %s182, %s183
    %p192 = scmp.eq.s32.totalorder %s26, 0
    %p193 = por %p191, %p192
    %p194 = scmp.ne.s32.totalorder %s182, %s183
    %p195 = scmp.eq.s32.totalorder %s27, 1
    %p196 = por %p194, %p195
    %p198 = scmp.ne.s32.totalorder %s183, %s197
    %p199 = scmp.eq.s32.totalorder %s27, 0
    %p200 = por %p198, %p199
    %s202 = sadd.s32 %s201, 1
    %p205 = scmp.eq.s32.totalorder %s21, 1
    %p206 = scmp.ne.s32.totalorder %s201, %s203
    %p207 = scmp.eq.s32.totalorder %s21, 0
    %p208 = por %p206, %p207
    %p209 = scmp.ne.s32.totalorder %s201, %s203
    %p210 = scmp.eq.s32.totalorder %s26, 1
    %p211 = por %p209, %p210
    %p212 = scmp.ne.s32.totalorder %s203, %s204
    %p213 = scmp.eq.s32.totalorder %s26, 0
    %p214 = por %p212, %p213
    %p215 = scmp.ne.s32.totalorder %s203, %s204
    %p216 = scmp.eq.s32.totalorder %s27, 1
    %p217 = por %p215, %p216
    %p219 = scmp.ne.s32.totalorder %s204, %s218
    %p220 = scmp.eq.s32.totalorder %s27, 0
    %p221 = por %p219, %p220
    %s223 = sadd.s32 %s222, 1
    %p226 = scmp.eq.s32.totalorder %s21, 1
    %p227 = scmp.ne.s32.totalorder %s222, %s224
    %p228 = scmp.eq.s32.totalorder %s21, 0
    %p229 = por %p227, %p228
    %p230 = scmp.ne.s32.totalorder %s222, %s224
    %p231 = scmp.eq.s32.totalorder %s26, 1
    %p232 = por %p230, %p231
    %p233 = scmp.ne.s32.totalorder %s224, %s225
    %p234 = scmp.eq.s32.totalorder %s26, 0
    %p235 = por %p233, %p234
    %p236 = scmp.ne.s32.totalorder %s224, %s225
    %p237 = scmp.eq.s32.totalorder %s27, 1
    %p238 = por %p236, %p237
    %p240 = scmp.ne.s32.totalorder %s225, %s239
    %p241 = scmp.eq.s32.totalorder %s27, 0
    %p242 = por %p240, %p241
    %s244 = sadd.s32 %s243, 1
    %p247 = scmp.eq.s32.totalorder %s21, 1
    %p248 = scmp.ne.s32.totalorder %s243, %s245
    %p249 = scmp.eq.s32.totalorder %s21, 0
    %p250 = por %p248, %p249
    %p251 = scmp.ne.s32.totalorder %s243, %s245
    %p252 = scmp.eq.s32.totalorder %s26, 1
    %p253 = por %p251, %p252
    %p254 = scmp.ne.s32.totalorder %s245, %s246
    %p255 = scmp.eq.s32.totalorder %s26, 0
    %p256 = por %p254, %p255
    %p257 = scmp.ne.s32.totalorder %s245, %s246
    %p258 = scmp.eq.s32.totalorder %s27, 1
    %p259 = por %p257, %p258
    %p261 = scmp.ne.s32.totalorder %s246, %s260
    %p262 = scmp.eq.s32.totalorder %s27, 0
    %p263 = por %p261, %p262
    %s265 = sadd.s32 %s264, 1
    %p268 = scmp.eq.s32.totalorder %s21, 1
    %p269 = scmp.ne.s32.totalorder %s264, %s266
    %p270 = scmp.eq.s32.totalorder %s21, 0
    %p271 = por %p269, %p270
    %p272 = scmp.ne.s32.totalorder %s264, %s266
    %p273 = scmp.eq.s32.totalorder %s26, 1
    %p274 = por %p272, %p273
    %p275 = scmp.ne.s32.totalorder %s266, %s267
    %p276 = scmp.eq.s32.totalorder %s26, 0
    %p277 = por %p275, %p276
    %p278 = scmp.ne.s32.totalorder %s266, %s267
    %p279 = scmp.eq.s32.totalorder %s27, 1
    %p280 = por %p278, %p279
    %p282 = scmp.ne.s32.totalorder %s267, %s281
    %p283 = scmp.eq.s32.totalorder %s27, 0
    %p284 = por %p282, %p283
    %s286 = sadd.s32 %s285, 1
    %p289 = scmp.eq.s32.totalorder %s21, 1
    %p290 = scmp.ne.s32.totalorder %s285, %s287
    %p291 = scmp.eq.s32.totalorder %s21, 0
    %p292 = por %p290, %p291
    %p293 = scmp.ne.s32.totalorder %s285, %s287
    %p294 = scmp.eq.s32.totalorder %s26, 1
    %p295 = por %p293, %p294
    %p296 = scmp.ne.s32.totalorder %s287, %s288
    %p297 = scmp.eq.s32.totalorder %s26, 0
    %p298 = por %p296, %p297
    %p299 = scmp.ne.s32.totalorder %s287, %s288
    %p300 = scmp.eq.s32.totalorder %s27, 1
    %p301 = por %p299, %p300
    %p303 = scmp.ne.s32.totalorder %s288, %s302
    %p304 = scmp.eq.s32.totalorder %s27, 0
    %p305 = por %p303, %p304
    %s307 = sadd.s32 %s306, 1
    %p310 = scmp.eq.s32.totalorder %s21, 1
    %p311 = scmp.ne.s32.totalorder %s306, %s308
    %p312 = scmp.eq.s32.totalorder %s21, 0
    %p313 = por %p311, %p312
    %p314 = scmp.ne.s32.totalorder %s306, %s308
    %p315 = scmp.eq.s32.totalorder %s26, 1
    %p316 = por %p314, %p315
    %p317 = scmp.ne.s32.totalorder %s308, %s309
    %p318 = scmp.eq.s32.totalorder %s26, 0
    %p319 = por %p317, %p318
    %p320 = scmp.ne.s32.totalorder %s308, %s309
    %p321 = scmp.eq.s32.totalorder %s27, 1
    %p322 = por %p320, %p321
    %p324 = scmp.ne.s32.totalorder %s309, %s323
    %p325 = scmp.eq.s32.totalorder %s27, 0
    %p326 = por %p324, %p325
    %s328 = sadd.s32 %s327, 1
    %p331 = scmp.eq.s32.totalorder %s21, 1
    %p332 = scmp.ne.s32.totalorder %s327, %s329
    %p333 = scmp.eq.s32.totalorder %s21, 0
    %p334 = por %p332, %p333
    %p335 = scmp.ne.s32.totalorder %s327, %s329
    %p336 = scmp.eq.s32.totalorder %s26, 1
    %p337 = por %p335, %p336
    %p338 = scmp.ne.s32.totalorder %s329, %s330
    %p339 = scmp.eq.s32.totalorder %s26, 0
    %p340 = por %p338, %p339
    %p341 = scmp.ne.s32.totalorder %s329, %s330
    %p342 = scmp.eq.s32.totalorder %s27, 1
    %p343 = por %p341, %p342
    %p345 = scmp.ne.s32.totalorder %s330, %s344
    %p346 = scmp.eq.s32.totalorder %s27, 0
    %p347 = por %p345, %p346
    %s349 = sadd.s32 %s348, 1
    %p352 = scmp.eq.s32.totalorder %s21, 1
    %p353 = scmp.ne.s32.totalorder %s348, %s350
    %p354 = scmp.eq.s32.totalorder %s21, 0
    %p355 = por %p353, %p354
    %p356 = scmp.ne.s32.totalorder %s348, %s350
    %p357 = scmp.eq.s32.totalorder %s26, 1
    %p358 = por %p356, %p357
    %p359 = scmp.ne.s32.totalorder %s350, %s351
    %p360 = scmp.eq.s32.totalorder %s26, 0
    %p361 = por %p359, %p360
    %p362 = scmp.ne.s32.totalorder %s350, %s351
    %p363 = scmp.eq.s32.totalorder %s27, 1
    %p364 = por %p362, %p363
    %p366 = scmp.ne.s32.totalorder %s351, %s365
    %p367 = scmp.eq.s32.totalorder %s27, 0
    %p368 = por %p366, %p367
    %s369 = ssub.s32 %s21, %s28
    %p370 = scmp.eq.s32.totalorder %s369, 0
    %s372 = sadd.s32 %s371, 1
    %s373 = scalar_select %p370, %s371, %s372
    %p376 = pneg %p370
    %p377 = scmp.eq.s32.totalorder %s21, 1
    %p378 = por %p376, %p377
    %p379 = scmp.ne.s32.totalorder %s371, %s374
    %p380 = scmp.eq.s32.totalorder %s21, 0
    %p381 = por %p379, %p380
    %p382 = scmp.ne.s32.totalorder %s371, %s374
    %p383 = scmp.eq.s32.totalorder %s26, 1
    %p384 = por %p382, %p383
    %p385 = scmp.ne.s32.totalorder %s374, %s375
    %p386 = scmp.eq.s32.totalorder %s26, 0
    %p387 = por %p385, %p386
    %p388 = scmp.ne.s32.totalorder %s374, %s375
    %p389 = scmp.eq.s32.totalorder %s27, 1
    %p390 = por %p388, %p389
    %p392 = scmp.ne.s32.totalorder %s375, %s391
    %p393 = scmp.eq.s32.totalorder %s27, 0
    %p394 = por %p392, %p393
    %p395 = scmp.le.s32.totalorder 1, %s21
    %p396 = scmp.lt.s32.totalorder %s21, 3
    %p397 = pnand %p395, %p396
    %p398 = pneg %p397
    // Predicated region
    $region9: #{rise_forward.17} parent=5 // pred_check
      _
    $region10: #{rise_forward.17} parent=5 // pred_check_branch
      %400 = sbr.rel (%p397) target = $region12
    $region11: #{rise_forward.17} parent=5 // pred_region
      %s401 = ssub.s32 %s21, 1
      // Predicated region
      $region13: #{rise_forward.17} parent=11 // pred_check
        %p402 = pneg %p172
      $region14: #{rise_forward.17} parent=11 // pred_check_branch
        %404 = sbr.rel (%p402) target = $region16
      $region15: #{rise_forward.17} parent=11 // pred_region
        _
      $region16: #{rise_forward.17} parent=11 // pred_fallthru
        _
      // Predicated region
      $region17: #{rise_forward.17} parent=11 // pred_check
        %p405 = pneg %p193
      $region18: #{rise_forward.17} parent=11 // pred_check_branch
        %407 = sbr.rel (%p405) target = $region20
      $region19: #{rise_forward.17} parent=11 // pred_region
        _
      $region20: #{rise_forward.17} parent=11 // pred_fallthru
        _
      // Predicated region
      $region21: #{rise_forward.17} parent=11 // pred_check
        %p408 = pneg %p214
      $region22: #{rise_forward.17} parent=11 // pred_check_branch
        %410 = sbr.rel (%p408) target = $region24
      $region23: #{rise_forward.17} parent=11 // pred_region
        _
      $region24: #{rise_forward.17} parent=11 // pred_fallthru
        _
      // Predicated region
      $region25: #{rise_forward.17} parent=11 // pred_check
        %p411 = pneg %p235
      $region26: #{rise_forward.17} parent=11 // pred_check_branch
        %413 = sbr.rel (%p411) target = $region28
      $region27: #{rise_forward.17} parent=11 // pred_region
        _
      $region28: #{rise_forward.17} parent=11 // pred_fallthru
        _
      // Predicated region
      $region29: #{rise_forward.17} parent=11 // pred_check
        %p414 = pneg %p256
      $region30: #{rise_forward.17} parent=11 // pred_check_branch
        %416 = sbr.rel (%p414) target = $region32
      $region31: #{rise_forward.17} parent=11 // pred_region
        _
      $region32: #{rise_forward.17} parent=11 // pred_fallthru
        _
      // Predicated region
      $region33: #{rise_forward.17} parent=11 // pred_check
        %p417 = pneg %p277
      $region34: #{rise_forward.17} parent=11 // pred_check_branch
        %419 = sbr.rel (%p417) target = $region36
      $region35: #{rise_forward.17} parent=11 // pred_region
        _
      $region36: #{rise_forward.17} parent=11 // pred_fallthru
        _
      // Predicated region
      $region37: #{rise_forward.17} parent=11 // pred_check
        %p420 = pneg %p298
      $region38: #{rise_forward.17} parent=11 // pred_check_branch
        %422 = sbr.rel (%p420) target = $region40
      $region39: #{rise_forward.17} parent=11 // pred_region
        _
      $region40: #{rise_forward.17} parent=11 // pred_fallthru
        _
      // Predicated region
      $region41: #{rise_forward.17} parent=11 // pred_check
        %p423 = pneg %p319
      $region42: #{rise_forward.17} parent=11 // pred_check_branch
        %425 = sbr.rel (%p423) target = $region44
      $region43: #{rise_forward.17} parent=11 // pred_region
        _
      $region44: #{rise_forward.17} parent=11 // pred_fallthru
        _
      // Predicated region
      $region45: #{rise_forward.17} parent=11 // pred_check
        %p426 = pneg %p340
      $region46: #{rise_forward.17} parent=11 // pred_check_branch
        %428 = sbr.rel (%p426) target = $region48
      $region47: #{rise_forward.17} parent=11 // pred_region
        _
      $region48: #{rise_forward.17} parent=11 // pred_fallthru
        _
      // Predicated region
      $region49: #{rise_forward.17} parent=11 // pred_check
        %p429 = pneg %p361
      $region50: #{rise_forward.17} parent=11 // pred_check_branch
        %431 = sbr.rel (%p429) target = $region52
      $region51: #{rise_forward.17} parent=11 // pred_region
        _
      $region52: #{rise_forward.17} parent=11 // pred_fallthru
        _
    $region12: #{rise_forward.17} parent=5 // pred_fallthru
      _
    %p432 = scmp.lt.s32.totalorder %s21, 2
    // Predicated region
    $region53: #{rise_forward.17} parent=5 // pred_check
      %p433 = pneg %p432
    $region54: #{rise_forward.17} parent=5 // pred_check_branch
      %435 = sbr.rel (%p433) target = $region56
    $region55: #{rise_forward.17} parent=5 // pred_region
      // Predicated region
      $region57: #{rise_forward.17} parent=55 // pred_check
        %p436 = pneg %p41
      $region58: #{rise_forward.17} parent=55 // pred_check_branch
        %438 = sbr.rel (%p436) target = $region60
      $region59: #{rise_forward.17} parent=55 // pred_region
        %p439 = scmp.lt.s32.totalorder %s21, 1
        %s440 = scalar_select %p439, %s21, 1
        %s441 = scalar_lea.vmem %s0, %s440
      $region60: #{rise_forward.17} parent=55 // pred_fallthru
        _
      // Predicated region
      $region61: #{rise_forward.17} parent=55 // pred_check
        %p442 = pneg %p67
      $region62: #{rise_forward.17} parent=55 // pred_check_branch
        %444 = sbr.rel (%p442) target = $region64
      $region63: #{rise_forward.17} parent=55 // pred_region
        %p445 = scmp.lt.s32.totalorder %s21, 1
        %s446 = scalar_select %p445, %s21, 1
        %s447 = scalar_lea.vmem %s1, %s446
      $region64: #{rise_forward.17} parent=55 // pred_fallthru
        _
      // Predicated region
      $region65: #{rise_forward.17} parent=55 // pred_check
        %p448 = pneg %p93
      $region66: #{rise_forward.17} parent=55 // pred_check_branch
        %450 = sbr.rel (%p448) target = $region68
      $region67: #{rise_forward.17} parent=55 // pred_region
        %p451 = scmp.lt.s32.totalorder %s21, 1
        %s452 = scalar_select %p451, %s21, 1
        %s453 = smul.addr %s452, 4
        %s454 = smul.addr %s453, 8
        %s455 = scalar_lea.vmem %s2, %s454
      $region68: #{rise_forward.17} parent=55 // pred_fallthru
        _
      // Predicated region
      $region69: #{rise_forward.17} parent=55 // pred_check
        %p456 = pneg %p119
      $region70: #{rise_forward.17} parent=55 // pred_check_branch
        %458 = sbr.rel (%p456) target = $region72
      $region71: #{rise_forward.17} parent=55 // pred_region
        %p459 = scmp.lt.s32.totalorder %s21, 1
        %s460 = scalar_select %p459, %s21, 1
        %s461 = smul.addr %s460, 4
        %s462 = smul.addr %s461, 8
        %s463 = scalar_lea.vmem %s3, %s462
      $region72: #{rise_forward.17} parent=55 // pred_fallthru
        _
      // Predicated region
      $region73: #{rise_forward.17} parent=55 // pred_check
        %p464 = pneg %p145
      $region74: #{rise_forward.17} parent=55 // pred_check_branch
        %466 = sbr.rel (%p464) target = $region76
      $region75: #{rise_forward.17} parent=55 // pred_region
        %p467 = scmp.lt.s32.totalorder %s21, 1
        %s468 = scalar_select %p467, %s21, 1
        %s469 = scalar_lea.vmem %s4, %s468
      $region76: #{rise_forward.17} parent=55 // pred_fallthru
        _
    $region56: #{rise_forward.17} parent=5 // pred_fallthru
      _
    %p470 = scmp.le.s32.totalorder 1, %s21
    %p471 = scmp.lt.s32.totalorder %s21, 3
    %p472 = pnand %p470, %p471
    %p473 = pneg %p472
    // Predicated region
    $region77: #{rise_forward.17} parent=5 // pred_check
      _
    $region78: #{rise_forward.17} parent=5 // pred_check_branch
      %475 = sbr.rel (%p472) target = $region80
    $region79: #{rise_forward.17} parent=5 // pred_region
      %s476 = ssub.s32 %s21, 1
      %p477 = scmp.lt.s32.totalorder %s26, 1
      %s478 = scalar_select %p477, %s26, 1
      %s479 = scalar_lea.vmem %s0, %s478
      %p480 = pneg %p47
      %p481 = pneg %p44
      %p482 = scmp.lt.s32.totalorder %s26, 1
      %s483 = scalar_select %p482, %s26, 1
      %s484 = scalar_lea.vmem %s1, %s483
      %p485 = pneg %p73
      %p486 = pneg %p70
      %p487 = scmp.lt.s32.totalorder %s26, 1
      %s488 = scalar_select %p487, %s26, 1
      %s489 = smul.addr %s488, 4
      %s490 = smul.addr %s489, 8
      %s491 = scalar_lea.vmem %s2, %s490
      %p492 = pneg %p99
      %p493 = pneg %p96
      %p494 = scmp.lt.s32.totalorder %s26, 1
      %s495 = scalar_select %p494, %s26, 1
      %s496 = smul.addr %s495, 4
      %s497 = smul.addr %s496, 8
      %s498 = scalar_lea.vmem %s3, %s497
      %p499 = pneg %p125
      %p500 = pneg %p122
      %p501 = scmp.lt.s32.totalorder %s26, 1
      %s502 = scalar_select %p501, %s26, 1
      %s503 = scalar_lea.vmem %s4, %s502
      %p504 = pneg %p151
      %p505 = pneg %p148
      %p506 = pneg %p172
      %p507 = pneg %p169
      %p508 = pneg %p193
      %p509 = pneg %p190
      %p510 = pneg %p214
      %p511 = pneg %p211
      %p512 = pneg %p235
      %p513 = pneg %p232
      %p514 = pneg %p256
      %p515 = pneg %p253
      %p516 = pneg %p277
      %p517 = pneg %p274
      %p518 = pneg %p298
      %p519 = pneg %p295
      %p520 = pneg %p319
      %p521 = pneg %p316
      %p522 = pneg %p340
      %p523 = pneg %p337
      %p524 = pneg %p361
      %p525 = pneg %p358
      %p526 = pneg %p387
      %p527 = pneg %p384
      %p528 = scmp.lt.s32.totalorder %s26, 1
      %s529 = scalar_select %p528, %s26, 1
      %s530 = scalar_lea.vmem %s15, %s529
      %p531 = scmp.lt.s32.totalorder %s26, 1
      %s532 = scalar_select %p531, %s26, 1
      %s533 = scalar_lea.vmem %s0, %s532
      %p534 = scmp.lt.s32.totalorder %s26, 1
      %s535 = scalar_select %p534, %s26, 1
      %s536 = scalar_lea.vmem %s1, %s535
      %p537 = scmp.lt.s32.totalorder %s26, 1
      %s538 = scalar_select %p537, %s26, 1
      %s539 = smul.addr %s538, 4
      %s540 = smul.addr %s539, 8
      %s541 = scalar_lea.vmem %s2, %s540
      %p542 = scmp.lt.s32.totalorder %s26, 1
      %s543 = scalar_select %p542, %s26, 1
      %s544 = smul.addr %s543, 4
      %s545 = smul.addr %s544, 8
      %s546 = scalar_lea.vmem %s3, %s545
      %p547 = scmp.lt.s32.totalorder %s26, 1
      %s548 = scalar_select %p547, %s26, 1
      %s549 = scalar_lea.vmem %s4, %s548
      %p550 = scmp.lt.s32.totalorder %s26, 1
      %s551 = scalar_select %p550, %s26, 1
      %s552 = scalar_lea.vmem %s15, %s551
      %v554 = vld [vmem:[%s533] sm:$0x1]
      %v555 = vld [vmem:[%s536] sm:$0x1]
      %v556 = vadd.f32 %v554, %v555
      %v557 = vpack.c.bf16 %v556, %v556
      %v558 = vld [vmem:[%s541] sm:$0xff]
      %v559 = vld [vmem:[%s541 + $0x8] sm:$0xff]
      %v560 = vld [vmem:[%s541 + $0x10] sm:$0xff]
      %v561 = vld [vmem:[%s541 + $0x18] sm:$0xff]
      %v562 = vld [vmem:[%s546] sm:$0xff]
      %v563 = vld [vmem:[%s546 + $0x8] sm:$0xff]
      %v564 = vld [vmem:[%s546 + $0x10] sm:$0xff]
      %v565 = vld [vmem:[%s546 + $0x18] sm:$0xff]
      %v566 = vadd.f32 %v558, %v562
      %v567 = vadd.f32 %v559, %v563
      %v568 = vadd.f32 %v560, %v564
      %v569 = vadd.f32 %v561, %v565
      %v570 = vpack.c.bf16 %v567, %v566
      %v571 = vpack.c.bf16 %v569, %v568
      %v572 = vpack.c.bf16 %v559, %v558
      %v573 = vpack.c.bf16 %v561, %v560
      %v574 = vld [vmem:[%s549] sm:$0x1]
      %v575 = vld [vmem:[%s5] sm:$0xf]
      %v576 = vld [vmem:[%s5 + $0x4] sm:$0xf]
      %v577 = vld [vmem:[%s5 + $0x8] sm:$0xf]
      %v578 = vld [vmem:[%s5 + $0xc] sm:$0xf]
      %v579 = vld [vmem:[%s8] sm:$0x1]
      %v584 = vunpack.c.l.b16 %v575
      %v585 = vunpack.c.l.b16 %v576
      %v586 = vunpack.c.l.b16 %v577
      %v587 = vunpack.c.l.b16 %v578
      %v588 = vpack.c.b16 %v585, %v584
      %v589 = vpack.c.b16 %v587, %v586
      %vm592 = vcmask 261120
      %v594 = vsel %vm592, %v557, 0
      %596 = vmatprep.subr.bf16.mxu0 0
      %597 = vmatpush1.bf16.msra.mxu0 %v588
      %598 = vmatprep.subr.bf16.mxu0 0
      %599 = vmatpush1.bf16.msra.mxu0 %v589
      %600 = vmatprep.subr.bf16.mxu0 0
      %601 = vmatpush1.bf16.msra.mxu0 0
      %602 = vmatprep.subr.bf16.mxu0 0
      %603 = vmatpush1.bf16.msra.mxu0 0
      %604 = vmatprep.subr.bf16.mxu0 0
      %605 = vmatpush1.bf16.msra.mxu0 0
      %606 = vmatprep.subr.bf16.mxu0 0
      %607 = vmatpush1.bf16.msra.mxu0 0
      %608 = vmatprep.subr.bf16.mxu0 0
      %609 = vmatpush1.bf16.msra.mxu0 0
      %610 = vmatprep.subr.bf16.mxu0 0
      %611 = vmatpush1.bf16.msra.mxu0 0
      %612 = vmatprep.subr.bf16.mxu0 0
      %613 = vmatpush1.bf16.msra.mxu0 0
      %614 = vmatprep.subr.bf16.mxu0 0
      %615 = vmatpush1.bf16.msra.mxu0 0
      %616 = vmatprep.subr.bf16.mxu0 0
      %617 = vmatpush1.bf16.msra.mxu0 0
      %618 = vmatprep.subr.bf16.mxu0 0
      %619 = vmatpush1.bf16.msra.mxu0 0
      %620 = vmatprep.subr.bf16.mxu0 0
      %621 = vmatpush1.bf16.msra.mxu0 0
      %622 = vmatprep.subr.bf16.mxu0 0
      %623 = vmatpush1.bf16.msra.mxu0 0
      %624 = vmatprep.subr.bf16.mxu0 0
      %625 = vmatpush1.bf16.msra.mxu0 0
      %626 = vmatprep.subr.bf16.mxu0 0
      %627 = vmatpush1.bf16.msra.mxu0 0
      %628 = vmatprep.mubr.bf16.mxu0 0
      %629 = vmatmul.mubr.bf16.gmra.mrb[0].mxu0 %v594
      %v630 = vpop.f32.mrb[0].mxu0
      %v631 = vadd.f32 %v579, %v630
      %v632 = vpop.f32.mrb[0].mxu0
      %v633 = vpop.f32.mrb[0].mxu0
      %v634 = vpop.f32.mrb[0].mxu0
      %635 = vdwg.mxu0
      %v636 = vld [vmem:[%s6] sm:$0xf]
      %v637 = vld [vmem:[%s6 + $0x4] sm:$0xf]
      %v638 = vld [vmem:[%s6 + $0x8] sm:$0xf]
      %v639 = vld [vmem:[%s6 + $0xc] sm:$0xf]
      %v640 = vld [vmem:[%s9] sm:$0x1]
      %v642 = vlaneseq
      %v643 = vshrl.u32 %v642, 7
      %v644 = vsub.s32 0, %v643
      %v645 = vrot.slane %v640, %v644
      %v651 = vunpack.c.l.b16 %v636
      %v652 = vunpack.c.l.b16 %v637
      %v653 = vunpack.c.l.b16 %v638
      %v654 = vunpack.c.l.b16 %v639
      %v655 = vpack.c.b16 %v652, %v651
      %v656 = vpack.c.b16 %v654, %v653
      %v660 = vsel %vm592, %v570, 0
      %v663 = vsel %vm592, %v571, 0
      %665 = vmatprep.subr.bf16.mxu0 0
      %666 = vmatpush1.bf16.msra.mxu0 %v655
      %667 = vmatprep.subr.bf16.mxu0 0
      %668 = vmatpush1.bf16.msra.mxu0 %v656
      %669 = vmatprep.subr.bf16.mxu0 0
      %670 = vmatpush1.bf16.msra.mxu0 0
      %671 = vmatprep.subr.bf16.mxu0 0
      %672 = vmatpush1.bf16.msra.mxu0 0
      %673 = vmatprep.subr.bf16.mxu0 0
      %674 = vmatpush1.bf16.msra.mxu0 0
      %675 = vmatprep.subr.bf16.mxu0 0
      %676 = vmatpush1.bf16.msra.mxu0 0
      %677 = vmatprep.subr.bf16.mxu0 0
      %678 = vmatpush1.bf16.msra.mxu0 0
      %679 = vmatprep.subr.bf16.mxu0 0
      %680 = vmatpush1.bf16.msra.mxu0 0
      %681 = vmatprep.subr.bf16.mxu0 0
      %682 = vmatpush1.bf16.msra.mxu0 0
      %683 = vmatprep.subr.bf16.mxu0 0
      %684 = vmatpush1.bf16.msra.mxu0 0
      %685 = vmatprep.subr.bf16.mxu0 0
      %686 = vmatpush1.bf16.msra.mxu0 0
      %687 = vmatprep.subr.bf16.mxu0 0
      %688 = vmatpush1.bf16.msra.mxu0 0
      %689 = vmatprep.subr.bf16.mxu0 0
      %690 = vmatpush1.bf16.msra.mxu0 0
      %691 = vmatprep.subr.bf16.mxu0 0
      %692 = vmatpush1.bf16.msra.mxu0 0
      %693 = vmatprep.subr.bf16.mxu0 0
      %694 = vmatpush1.bf16.msra.mxu0 0
      %695 = vmatprep.subr.bf16.mxu0 0
      %696 = vmatpush1.bf16.msra.mxu0 0
      %697 = vmatprep.mubr.bf16.mxu0 0
      %698 = vmatmul.mubr.bf16.gmra.mrb[0].mxu0 %v660
      %v699 = vpop.f32.mrb[0].mxu0
      %v700 = vadd.f32 %v645, %v699
      %v701 = vpop.f32.mrb[0].mxu0
      %v702 = vpop.f32.mrb[0].mxu0
      %v703 = vadd.f32 %v645, %v702
      %v704 = vpop.f32.mrb[0].mxu0
      %705 = vmatprep.mubr.bf16.mxu0 0
      %706 = vmatmul.mubr.bf16.gmra.mrb[0].mxu0 %v663
      %v707 = vpop.f32.mrb[0].mxu0
      %v708 = vadd.f32 %v645, %v707
      %v709 = vpop.f32.mrb[0].mxu0
      %v710 = vpop.f32.mrb[0].mxu0
      %v711 = vadd.f32 %v645, %v710
      %v712 = vpop.f32.mrb[0].mxu0
      %713 = vdwg.mxu0
      %v714 = vld [vmem:[%s7] sm:$0xf]
      %v715 = vld [vmem:[%s7 + $0x4] sm:$0xf]
      %v716 = vld [vmem:[%s7 + $0x8] sm:$0xf]
      %v717 = vld [vmem:[%s7 + $0xc] sm:$0xf]
      %v718 = vld [vmem:[%s10] sm:$0x1]
      %v720 = vlaneseq
      %v721 = vshrl.u32 %v720, 7
      %v722 = vsub.s32 0, %v721
      %v723 = vrot.slane %v718, %v722
      %v729 = vunpack.c.l.b16 %v714
      %v730 = vunpack.c.l.b16 %v715
      %v731 = vunpack.c.l.b16 %v716
      %v732 = vunpack.c.l.b16 %v717
      %v733 = vpack.c.b16 %v730, %v729
      %v734 = vpack.c.b16 %v732, %v731
      %v738 = vsel %vm592, %v572, 0
      %v741 = vsel %vm592, %v573, 0
      %743 = vmatprep.subr.bf16.mxu0 0
      %744 = vmatpush1.bf16.msra.mxu0 %v733
      %745 = vmatprep.subr.bf16.mxu0 0
      %746 = vmatpush1.bf16.msra.mxu0 %v734
      %747 = vmatprep.subr.bf16.mxu0 0
      %748 = vmatpush1.bf16.msra.mxu0 0
      %749 = vmatprep.subr.bf16.mxu0 0
      %750 = vmatpush1.bf16.msra.mxu0 0
      %751 = vmatprep.subr.bf16.mxu0 0
      %752 = vmatpush1.bf16.msra.mxu0 0
      %753 = vmatprep.subr.bf16.mxu0 0
      %754 = vmatpush1.bf16.msra.mxu0 0
      %755 = vmatprep.subr.bf16.mxu0 0
      %756 = vmatpush1.bf16.msra.mxu0 0
      %757 = vmatprep.subr.bf16.mxu0 0
      %758 = vmatpush1.bf16.msra.mxu0 0
      %759 = vmatprep.subr.bf16.mxu0 0
      %760 = vmatpush1.bf16.msra.mxu0 0
      %761 = vmatprep.subr.bf16.mxu0 0
      %762 = vmatpush1.bf16.msra.mxu0 0
      %763 = vmatprep.subr.bf16.mxu0 0
      %764 = vmatpush1.bf16.msra.mxu0 0
      %765 = vmatprep.subr.bf16.mxu0 0
      %766 = vmatpush1.bf16.msra.mxu0 0
      %767 = vmatprep.subr.bf16.mxu0 0
      %768 = vmatpush1.bf16.msra.mxu0 0
      %769 = vmatprep.subr.bf16.mxu0 0
      %770 = vmatpush1.bf16.msra.mxu0 0
      %771 = vmatprep.subr.bf16.mxu0 0
      %772 = vmatpush1.bf16.msra.mxu0 0
      %773 = vmatprep.subr.bf16.mxu0 0
      %774 = vmatpush1.bf16.msra.mxu0 0
      %775 = vmatprep.mubr.bf16.mxu0 0
      %776 = vmatmul.mubr.bf16.gmra.mrb[0].mxu0 %v738
      %v777 = vpop.f32.mrb[0].mxu0
      %v778 = vadd.f32 %v723, %v777
      %v779 = vpop.f32.mrb[0].mxu0
      %v780 = vpop.f32.mrb[0].mxu0
      %v781 = vadd.f32 %v723, %v780
      %v782 = vpop.f32.mrb[0].mxu0
      %783 = vmatprep.mubr.bf16.mxu0 0
      %784 = vmatmul.mubr.bf16.gmra.mrb[0].mxu0 %v741
      %v785 = vpop.f32.mrb[0].mxu0
      %v786 = vadd.f32 %v723, %v785
      %v787 = vpop.f32.mrb[0].mxu0
      %v788 = vpop.f32.mrb[0].mxu0
      %v789 = vadd.f32 %v723, %v788
      %v790 = vpop.f32.mrb[0].mxu0
      %791 = vdwg.mxu0
      %v792 = vpack.c.bf16 %v631, %v631
      %v793 = vpack.c.bf16 %v703, %v700
      %v794 = vpack.c.bf16 %v711, %v708
      %vm795 = vcmask 64512
      %v797 = vsel %vm795, %v792, 0
      %v800 = vsel %vm795, %v793, 0
      %v803 = vsel %vm795, %v794, 0
      %805 = vmatprep.subr.bf16.mxu0 0
      %806 = vmatpush1.bf16.xpose.msra.mxu0 %v800
      %807 = vmatprep.subr.bf16.mxu0 0
      %808 = vmatpush1.bf16.xpose.msra.mxu0 %v803
      %809 = vmatprep.subr.bf16.mxu0 0
      %810 = vmatpush1.bf16.xpose.msra.mxu0 0
      %811 = vmatprep.subr.bf16.mxu0 0
      %812 = vmatpush1.bf16.xpose.msra.mxu0 0
      %813 = vmatprep.subr.bf16.mxu0 0
      %814 = vmatpush1.bf16.xpose.msra.mxu0 0
      %815 = vmatprep.subr.bf16.mxu0 0
      %816 = vmatpush1.bf16.xpose.msra.mxu0 0
      %817 = vmatprep.subr.bf16.mxu0 0
      %818 = vmatpush1.bf16.xpose.msra.mxu0 0
      %819 = vmatprep.subr.bf16.mxu0 0
      %820 = vmatpush1.bf16.xpose.msra.mxu0 0
      %821 = vmatprep.subr.bf16.mxu0 0
      %822 = vmatpush1.bf16.xpose.msra.mxu0 0
      %823 = vmatprep.subr.bf16.mxu0 0
      %824 = vmatpush1.bf16.xpose.msra.mxu0 0
      %825 = vmatprep.subr.bf16.mxu0 0
      %826 = vmatpush1.bf16.xpose.msra.mxu0 0
      %827 = vmatprep.subr.bf16.mxu0 0
      %828 = vmatpush1.bf16.xpose.msra.mxu0 0
      %829 = vmatprep.subr.bf16.mxu0 0
      %830 = vmatpush1.bf16.xpose.msra.mxu0 0
      %831 = vmatprep.subr.bf16.mxu0 0
      %832 = vmatpush1.bf16.xpose.msra.mxu0 0
      %833 = vmatprep.subr.bf16.mxu0 0
      %834 = vmatpush1.bf16.xpose.msra.mxu0 0
      %835 = vmatprep.subr.bf16.mxu0 0
      %836 = vmatpush1.bf16.xpose.msra.mxu0 0
      %837 = vmatprep.mubr.bf16.mxu0 0
      %838 = vmatmul.mubr.bf16.gmra.mrb[0].mxu0 %v797
      %v839 = vpop.f32.mrb[0].mxu0
      %v840 = vadd.f32 %v574, %v839
      %v841 = vpop.f32.mrb[0].mxu0
      %v842 = vpop.f32.mrb[0].mxu0
      %v843 = vpop.f32.mrb[0].mxu0
      %844 = vdwg.mxu0
      %vm845 = vcmask 253952
      %v846 = vsel %vm845, %v840, -inf
      %847 = vmax.xlane.f32.xlu0 %v846
      %v848 = vpop.xlane.xlu0 %847
      %v849 = vsub.f32 %v840, %v848
      %v850 = vmul.f32 %v849, 1.442695
      %v851 = vpow.pop %v850
      %v852 = vsel %vm845, %v851, 0.0
      %853 = vadd.xlane.f32.xlu0 %v852
      %v854 = vpop.xlane.xlu0 %853
      %v855 = vrcp.pop %v854
      %v856 = vpack.c.bf16 %v851, %v851
      %v857 = vpack.c.bf16 %v781, %v778
      %v858 = vpack.c.bf16 %v789, %v786
      %v860 = vsel %vm592, %v856, 0
      %862 = vmatprep.subr.bf16.mxu0 0
      %863 = vmatpush1.bf16.msra.mxu0 %v857
      %864 = vmatprep.subr.bf16.mxu0 0
      %865 = vmatpush1.bf16.msra.mxu0 %v858
      %866 = vmatprep.subr.bf16.mxu0 0
      %867 = vmatpush1.bf16.msra.mxu0 0
      %868 = vmatprep.subr.bf16.mxu0 0
      %869 = vmatpush1.bf16.msra.mxu0 0
      %870 = vmatprep.subr.bf16.mxu0 0
      %871 = vmatpush1.bf16.msra.mxu0 0
      %872 = vmatprep.subr.bf16.mxu0 0
      %873 = vmatpush1.bf16.msra.mxu0 0
      %874 = vmatprep.subr.bf16.mxu0 0
      %875 = vmatpush1.bf16.msra.mxu0 0
      %876 = vmatprep.subr.bf16.mxu0 0
      %877 = vmatpush1.bf16.msra.mxu0 0
      %878 = vmatprep.subr.bf16.mxu0 0
      %879 = vmatpush1.bf16.msra.mxu0 0
      %880 = vmatprep.subr.bf16.mxu0 0
      %881 = vmatpush1.bf16.msra.mxu0 0
      %882 = vmatprep.subr.bf16.mxu0 0
      %883 = vmatpush1.bf16.msra.mxu0 0
      %884 = vmatprep.subr.bf16.mxu0 0
      %885 = vmatpush1.bf16.msra.mxu0 0
      %886 = vmatprep.subr.bf16.mxu0 0
      %887 = vmatpush1.bf16.msra.mxu0 0
      %888 = vmatprep.subr.bf16.mxu0 0
      %889 = vmatpush1.bf16.msra.mxu0 0
      %890 = vmatprep.subr.bf16.mxu0 0
      %891 = vmatpush1.bf16.msra.mxu0 0
      %892 = vmatprep.subr.bf16.mxu0 0
      %893 = vmatpush1.bf16.msra.mxu0 0
      %894 = vmatprep.mubr.bf16.mxu0 0
      %895 = vmatmul.mubr.bf16.gmra.mrb[0].mxu0 %v860
      %v896 = vpop.f32.mrb[0].mxu0
      %v897 = vadd.f32 0.0, %v896
      %v898 = vpop.f32.mrb[0].mxu0
      %v899 = vpop.f32.mrb[0].mxu0
      %v900 = vpop.f32.mrb[0].mxu0
      %901 = vdwg.mxu0
      %v902 = vmul.f32 %v897, %v855
      %v903 = vpack.c.bf16 %v902, %v902
      %v904 = vld [vmem:[%s11] sm:$0xf]
      %905 = vrot.lane.b32.xlu0 %v588, 120
      %v906 = vpop.permute.xlu0 %905
      %907 = vrot.lane.b32.xlu0 %v589, 120
      %v908 = vpop.permute.xlu0 %907
      %v912 = vlaneseq
      %v913 = vshrl.u32 %v912, 7
      %v914 = vsub.s32 0, %v913
      %v915 = vrot.slane %v579, %v914
      %916 = vrot.lane.b32.xlu0 %v915, 120
      %v917 = vpop.permute.xlu0 %916
      %919 = vmatprep.subr.bf16.mxu0 0
      %920 = vmatpush1.bf16.msra.mxu0 %v906
      %921 = vmatprep.subr.bf16.mxu0 0
      %922 = vmatpush1.bf16.msra.mxu0 %v908
      %923 = vmatprep.subr.bf16.mxu0 0
      %924 = vmatpush1.bf16.msra.mxu0 0
      %925 = vmatprep.subr.bf16.mxu0 0
      %926 = vmatpush1.bf16.msra.mxu0 0
      %927 = vmatprep.subr.bf16.mxu0 0
      %928 = vmatpush1.bf16.msra.mxu0 0
      %929 = vmatprep.subr.bf16.mxu0 0
      %930 = vmatpush1.bf16.msra.mxu0 0
      %931 = vmatprep.subr.bf16.mxu0 0
      %932 = vmatpush1.bf16.msra.mxu0 0
      %933 = vmatprep.subr.bf16.mxu0 0
      %934 = vmatpush1.bf16.msra.mxu0 0
      %935 = vmatprep.subr.bf16.mxu0 0
      %936 = vmatpush1.bf16.msra.mxu0 0
      %937 = vmatprep.subr.bf16.mxu0 0
      %938 = vmatpush1.bf16.msra.mxu0 0
      %939 = vmatprep.subr.bf16.mxu0 0
      %940 = vmatpush1.bf16.msra.mxu0 0
      %941 = vmatprep.subr.bf16.mxu0 0
      %942 = vmatpush1.bf16.msra.mxu0 0
      %943 = vmatprep.subr.bf16.mxu0 0
      %944 = vmatpush1.bf16.msra.mxu0 0
      %945 = vmatprep.subr.bf16.mxu0 0
      %946 = vmatpush1.bf16.msra.mxu0 0
      %947 = vmatprep.subr.bf16.mxu0 0
      %948 = vmatpush1.bf16.msra.mxu0 0
      %949 = vmatprep.subr.bf16.mxu0 0
      %950 = vmatpush1.bf16.msra.mxu0 0
      %951 = vmatprep.mubr.bf16.mxu0 0
      %952 = vmatmul.mubr.bf16.gmra.mrb[0].mxu0 %v594
      %v953 = vpop.f32.mrb[0].mxu0
      %v954 = vadd.f32 %v917, %v953
      %v955 = vpop.f32.mrb[0].mxu0
      %v956 = vpop.f32.mrb[0].mxu0
      %v957 = vpop.f32.mrb[0].mxu0
      %958 = vdwg.mxu0
      %959 = vrot.lane.b32.xlu0 %v655, 120
      %v960 = vpop.permute.xlu0 %959
      %961 = vrot.lane.b32.xlu0 %v656, 120
      %v962 = vpop.permute.xlu0 %961
      %965 = vrot.lane.b32.xlu0 %v645, 120
      %v966 = vpop.permute.xlu0 %965
      %968 = vmatprep.subr.bf16.mxu0 0
      %969 = vmatpush1.bf16.msra.mxu0 %v960
      %970 = vmatprep.subr.bf16.mxu0 0
      %971 = vmatpush1.bf16.msra.mxu0 %v962
      %972 = vmatprep.subr.bf16.mxu0 0
      %973 = vmatpush1.bf16.msra.mxu0 0
      %974 = vmatprep.subr.bf16.mxu0 0
      %975 = vmatpush1.bf16.msra.mxu0 0
      %976 = vmatprep.subr.bf16.mxu0 0
      %977 = vmatpush1.bf16.msra.mxu0 0
      %978 = vmatprep.subr.bf16.mxu0 0
      %979 = vmatpush1.bf16.msra.mxu0 0
      %980 = vmatprep.subr.bf16.mxu0 0
      %981 = vmatpush1.bf16.msra.mxu0 0
      %982 = vmatprep.subr.bf16.mxu0 0
      %983 = vmatpush1.bf16.msra.mxu0 0
      %984 = vmatprep.subr.bf16.mxu0 0
      %985 = vmatpush1.bf16.msra.mxu0 0
      %986 = vmatprep.subr.bf16.mxu0 0
      %987 = vmatpush1.bf16.msra.mxu0 0
      %988 = vmatprep.subr.bf16.mxu0 0
      %989 = vmatpush1.bf16.msra.mxu0 0
      %990 = vmatprep.subr.bf16.mxu0 0
      %991 = vmatpush1.bf16.msra.mxu0 0
      %992 = vmatprep.subr.bf16.mxu0 0
      %993 = vmatpush1.bf16.msra.mxu0 0
      %994 = vmatprep.subr.bf16.mxu0 0
      %995 = vmatpush1.bf16.msra.mxu0 0
      %996 = vmatprep.subr.bf16.mxu0 0
      %997 = vmatpush1.bf16.msra.mxu0 0
      %998 = vmatprep.subr.bf16.mxu0 0
      %999 = vmatpush1.bf16.msra.mxu0 0
      %1000 = vmatprep.mubr.bf16.mxu0 0
      %1001 = vmatmul.mubr.bf16.gmra.mrb[0].mxu0 %v660
      %v1002 = vpop.f32.mrb[0].mxu0
      %v1003 = vadd.f32 %v966, %v1002
      %v1004 = vpop.f32.mrb[0].mxu0
      %v1005 = vpop.f32.mrb[0].mxu0
      %v1006 = vadd.f32 %v966, %v1005
      %v1007 = vpop.f32.mrb[0].mxu0
      %1008 = vmatprep.mubr.bf16.mxu0 0
      %1009 = vmatmul.mubr.bf16.gmra.mrb[0].mxu0 %v663
      %v1010 = vpop.f32.mrb[0].mxu0
      %v1011 = vadd.f32 %v966, %v1010
      %v1012 = vpop.f32.mrb[0].mxu0
      %v1013 = vpop.f32.mrb[0].mxu0
      %v1014 = vadd.f32 %v966, %v1013
      %v1015 = vpop.f32.mrb[0].mxu0
      %1016 = vdwg.mxu0
      %1017 = vrot.lane.b32.xlu0 %v733, 120
      %v1018 = vpop.permute.xlu0 %1017
      %1019 = vrot.lane.b32.xlu0 %v734, 120
      %v1020 = vpop.permute.xlu0 %1019
      %1023 = vrot.lane.b32.xlu0 %v723, 120
      %v1024 = vpop.permute.xlu0 %1023
      %1026 = vmatprep.subr.bf16.mxu0 0
      %1027 = vmatpush1.bf16.msra.mxu0 %v1018
      %1028 = vmatprep.subr.bf16.mxu0 0
      %1029 = vmatpush1.bf16.msra.mxu0 %v1020
      %1030 = vmatprep.subr.bf16.mxu0 0
      %1031 = vmatpush1.bf16.msra.mxu0 0
      %1032 = vmatprep.subr.bf16.mxu0 0
      %1033 = vmatpush1.bf16.msra.mxu0 0
      %1034 = vmatprep.subr.bf16.mxu0 0
      %1035 = vmatpush1.bf16.msra.mxu0 0
      %1036 = vmatprep.subr.bf16.mxu0 0
      %1037 = vmatpush1.bf16.msra.mxu0 0
      %1038 = vmatprep.subr.bf16.mxu0 0
      %1039 = vmatpush1.bf16.msra.mxu0 0
      %1040 = vmatprep.subr.bf16.mxu0 0
      %1041 = vmatpush1.bf16.msra.mxu0 0
      %1042 = vmatprep.subr.bf16.mxu0 0
      %1043 = vmatpush1.bf16.msra.mxu0 0
      %1044 = vmatprep.subr.bf16.mxu0 0
      %1045 = vmatpush1.bf16.msra.mxu0 0
      %1046 = vmatprep.subr.bf16.mxu0 0
      %1047 = vmatpush1.bf16.msra.mxu0 0
      %1048 = vmatprep.subr.bf16.mxu0 0
      %1049 = vmatpush1.bf16.msra.mxu0 0
      %1050 = vmatprep.subr.bf16.mxu0 0
      %1051 = vmatpush1.bf16.msra.mxu0 0
      %1052 = vmatprep.subr.bf16.mxu0 0
      %1053 = vmatpush1.bf16.msra.mxu0 0
      %1054 = vmatprep.subr.bf16.mxu0 0
      %1055 = vmatpush1.bf16.msra.mxu0 0
      %1056 = vmatprep.subr.bf16.mxu0 0
      %1057 = vmatpush1.bf16.msra.mxu0 0
      %1058 = vmatprep.mubr.bf16.mxu0 0
      %1059 = vmatmul.mubr.bf16.gmra.mrb[0].mxu0 %v738
      %v1060 = vpop.f32.mrb[0].mxu0
      %v1061 = vadd.f32 %v1024, %v1060
      %v1062 = vpop.f32.mrb[0].mxu0
      %v1063 = vpop.f32.mrb[0].mxu0
      %v1064 = vadd.f32 %v1024, %v1063
      %v1065 = vpop.f32.mrb[0].mxu0
      %1066 = vmatprep.mubr.bf16.mxu0 0
      %1067 = vmatmul.mubr.bf16.gmra.mrb[0].mxu0 %v741
      %v1068 = vpop.f32.mrb[0].mxu0
      %v1069 = vadd.f32 %v1024, %v1068
      %v1070 = vpop.f32.mrb[0].mxu0
      %v1071 = vpop.f32.mrb[0].mxu0
      %v1072 = vadd.f32 %v1024, %v1071
      %v1073 = vpop.f32.mrb[0].mxu0
      %1074 = vdwg.mxu0
      %v1075 = vpack.c.bf16 %v954, %v954
      %v1076 = vpack.c.bf16 %v1006, %v1003
      %v1077 = vpack.c.bf16 %v1014, %v1011
      %v1079 = vsel %vm795, %v1075, 0
      %v1082 = vsel %vm795, %v1076, 0
      %v1085 = vsel %vm795, %v1077, 0
      %1087 = vmatprep.subr.bf16.mxu0 0
      %1088 = vmatpush1.bf16.xpose.msra.mxu0 %v1082
      %1089 = vmatprep.subr.bf16.mxu0 0
      %1090 = vmatpush1.bf16.xpose.msra.mxu0 %v1085
      %1091 = vmatprep.subr.bf16.mxu0 0
      %1092 = vmatpush1.bf16.xpose.msra.mxu0 0
      %1093 = vmatprep.subr.bf16.mxu0 0
      %1094 = vmatpush1.bf16.xpose.msra.mxu0 0
      %1095 = vmatprep.subr.bf16.mxu0 0
      %1096 = vmatpush1.bf16.xpose.msra.mxu0 0
      %1097 = vmatprep.subr.bf16.mxu0 0
      %1098 = vmatpush1.bf16.xpose.msra.mxu0 0
      %1099 = vmatprep.subr.bf16.mxu0 0
      %1100 = vmatpush1.bf16.xpose.msra.mxu0 0
      %1101 = vmatprep.subr.bf16.mxu0 0
      %1102 = vmatpush1.bf16.xpose.msra.mxu0 0
      %1103 = vmatprep.subr.bf16.mxu0 0
      %1104 = vmatpush1.bf16.xpose.msra.mxu0 0
      %1105 = vmatprep.subr.bf16.mxu0 0
      %1106 = vmatpush1.bf16.xpose.msra.mxu0 0
      %1107 = vmatprep.subr.bf16.mxu0 0
      %1108 = vmatpush1.bf16.xpose.msra.mxu0 0
      %1109 = vmatprep.subr.bf16.mxu0 0
      %1110 = vmatpush1.bf16.xpose.msra.mxu0 0
      %1111 = vmatprep.subr.bf16.mxu0 0
      %1112 = vmatpush1.bf16.xpose.msra.mxu0 0
      %1113 = vmatprep.subr.bf16.mxu0 0
      %1114 = vmatpush1.bf16.xpose.msra.mxu0 0
      %1115 = vmatprep.subr.bf16.mxu0 0
      %1116 = vmatpush1.bf16.xpose.msra.mxu0 0
      %1117 = vmatprep.subr.bf16.mxu0 0
      %1118 = vmatpush1.bf16.xpose.msra.mxu0 0
      %1119 = vmatprep.mubr.bf16.mxu0 0
      %1120 = vmatmul.mubr.bf16.gmra.mrb[0].mxu0 %v1079
      %v1121 = vpop.f32.mrb[0].mxu0
      %v1122 = vadd.f32 %v574, %v1121
      %v1123 = vpop.f32.mrb[0].mxu0
      %v1124 = vpop.f32.mrb[0].mxu0
      %v1125 = vpop.f32.mrb[0].mxu0
      %1126 = vdwg.mxu0
      %v1127 = vsel %vm845, %v1122, -inf
      %1128 = vmax.xlane.f32.xlu0 %v1127
      %v1129 = vpop.xlane.xlu0 %1128
      %v1130 = vsub.f32 %v1122, %v1129
      %v1131 = vmul.f32 %v1130, 1.442695
      %v1132 = vpow.pop %v1131
      %v1133 = vsel %vm845, %v1132, 0.0
      %1134 = vadd.xlane.f32.xlu0 %v1133
      %v1135 = vpop.xlane.xlu0 %1134
      %v1136 = vrcp.pop %v1135
      %v1137 = vpack.c.bf16 %v1132, %v1132
      %v1138 = vpack.c.bf16 %v1064, %v1061
      %v1139 = vpack.c.bf16 %v1072, %v1069
      %v1141 = vsel %vm592, %v1137, 0
      %1143 = vmatprep.subr.bf16.mxu0 0
      %1144 = vmatpush1.bf16.msra.mxu0 %v1138
      %1145 = vmatprep.subr.bf16.mxu0 0
      %1146 = vmatpush1.bf16.msra.mxu0 %v1139
      %1147 = vmatprep.subr.bf16.mxu0 0
      %1148 = vmatpush1.bf16.msra.mxu0 0
      %1149 = vmatprep.subr.bf16.mxu0 0
      %1150 = vmatpush1.bf16.msra.mxu0 0
      %1151 = vmatprep.subr.bf16.mxu0 0
      %1152 = vmatpush1.bf16.msra.mxu0 0
      %1153 = vmatprep.subr.bf16.mxu0 0
      %1154 = vmatpush1.bf16.msra.mxu0 0
      %1155 = vmatprep.subr.bf16.mxu0 0
      %1156 = vmatpush1.bf16.msra.mxu0 0
      %1157 = vmatprep.subr.bf16.mxu0 0
      %1158 = vmatpush1.bf16.msra.mxu0 0
      %1159 = vmatprep.subr.bf16.mxu0 0
      %1160 = vmatpush1.bf16.msra.mxu0 0
      %1161 = vmatprep.subr.bf16.mxu0 0
      %1162 = vmatpush1.bf16.msra.mxu0 0
      %1163 = vmatprep.subr.bf16.mxu0 0
      %1164 = vmatpush1.bf16.msra.mxu0 0
      %1165 = vmatprep.subr.bf16.mxu0 0
      %1166 = vmatpush1.bf16.msra.mxu0 0
      %1167 = vmatprep.subr.bf16.mxu0 0
      %1168 = vmatpush1.bf16.msra.mxu0 0
      %1169 = vmatprep.subr.bf16.mxu0 0
      %1170 = vmatpush1.bf16.msra.mxu0 0
      %1171 = vmatprep.subr.bf16.mxu0 0
      %1172 = vmatpush1.bf16.msra.mxu0 0
      %1173 = vmatprep.subr.bf16.mxu0 0
      %1174 = vmatpush1.bf16.msra.mxu0 0
      %1175 = vmatprep.mubr.bf16.mxu0 0
      %1176 = vmatmul.mubr.bf16.gmra.mrb[0].mxu0 %v1141
      %v1177 = vpop.f32.mrb[0].mxu0
      %v1178 = vadd.f32 0.0, %v1177
      %v1179 = vpop.f32.mrb[0].mxu0
      %v1180 = vpop.f32.mrb[0].mxu0
      %v1181 = vpop.f32.mrb[0].mxu0
      %1182 = vdwg.mxu0
      %v1183 = vmul.f32 %v1178, %v1136
      %v1184 = vpack.c.bf16 %v1183, %v1183
      %v1185 = vld [vmem:[%s11 + $0x4] sm:$0xf]
      %v1187 = vsel %vm795, %v1184, 0
      %vm1189 = vcmask 1043456
      %v1191 = vsel %vm1189, %v1185, 0
      %1193 = vmatprep.subr.bf16.mxu0 0
      %1194 = vmatpush1.bf16.msra.mxu0 %v1191
      %1195 = vmatprep.subr.bf16.mxu0 0
      %1196 = vmatpush1.bf16.msra.mxu0 0
      %1197 = vmatprep.subr.bf16.mxu0 0
      %1198 = vmatpush1.bf16.msra.mxu0 0
      %1199 = vmatprep.subr.bf16.mxu0 0
      %1200 = vmatpush1.bf16.msra.mxu0 0
      %1201 = vmatprep.subr.bf16.mxu0 0
      %1202 = vmatpush1.bf16.msra.mxu0 0
      %1203 = vmatprep.subr.bf16.mxu0 0
      %1204 = vmatpush1.bf16.msra.mxu0 0
      %1205 = vmatprep.subr.bf16.mxu0 0
      %1206 = vmatpush1.bf16.msra.mxu0 0
      %1207 = vmatprep.subr.bf16.mxu0 0
      %1208 = vmatpush1.bf16.msra.mxu0 0
      %1209 = vmatprep.subr.bf16.mxu0 0
      %1210 = vmatpush1.bf16.msra.mxu0 0
      %1211 = vmatprep.subr.bf16.mxu0 0
      %1212 = vmatpush1.bf16.msra.mxu0 0
      %1213 = vmatprep.subr.bf16.mxu0 0
      %1214 = vmatpush1.bf16.msra.mxu0 0
      %1215 = vmatprep.subr.bf16.mxu0 0
      %1216 = vmatpush1.bf16.msra.mxu0 0
      %1217 = vmatprep.subr.bf16.mxu0 0
      %1218 = vmatpush1.bf16.msra.mxu0 0
      %1219 = vmatprep.subr.bf16.mxu0 0
      %1220 = vmatpush1.bf16.msra.mxu0 0
      %1221 = vmatprep.subr.bf16.mxu0 0
      %1222 = vmatpush1.bf16.msra.mxu0 0
      %1223 = vmatprep.subr.bf16.mxu0 0
      %1224 = vmatpush1.bf16.msra.mxu0 0
      %1225 = vmatprep.mubr.bf16.mxu0 0
      %1226 = vmatmul.mubr.bf16.gmra.mrb[0].mxu0 %v1187
      %v1227 = vpop.f32.mrb[0].mxu0
      %v1228 = vadd.f32 0.0, %v1227
      %v1229 = vpop.f32.mrb[0].mxu0
      %v1230 = vpop.f32.mrb[0].mxu0
      %v1231 = vpop.f32.mrb[0].mxu0
      %1232 = vdwg.mxu0
      %v1234 = vsel %vm795, %v903, 0
      %v1237 = vsel %vm1189, %v904, 0
      %1239 = vmatprep.subr.bf16.mxu0 0
      %1240 = vmatpush1.bf16.msra.mxu0 %v1237
      %1241 = vmatprep.subr.bf16.mxu0 0
      %1242 = vmatpush1.bf16.msra.mxu0 0
      %1243 = vmatprep.subr.bf16.mxu0 0
      %1244 = vmatpush1.bf16.msra.mxu0 0
      %1245 = vmatprep.subr.bf16.mxu0 0
      %1246 = vmatpush1.bf16.msra.mxu0 0
      %1247 = vmatprep.subr.bf16.mxu0 0
      %1248 = vmatpush1.bf16.msra.mxu0 0
      %1249 = vmatprep.subr.bf16.mxu0 0
      %1250 = vmatpush1.bf16.msra.mxu0 0
      %1251 = vmatprep.subr.bf16.mxu0 0
      %1252 = vmatpush1.bf16.msra.mxu0 0
      %1253 = vmatprep.subr.bf16.mxu0 0
      %1254 = vmatpush1.bf16.msra.mxu0 0
      %1255 = vmatprep.subr.bf16.mxu0 0
      %1256 = vmatpush1.bf16.msra.mxu0 0
      %1257 = vmatprep.subr.bf16.mxu0 0
      %1258 = vmatpush1.bf16.msra.mxu0 0
      %1259 = vmatprep.subr.bf16.mxu0 0
      %1260 = vmatpush1.bf16.msra.mxu0 0
      %1261 = vmatprep.subr.bf16.mxu0 0
      %1262 = vmatpush1.bf16.msra.mxu0 0
      %1263 = vmatprep.subr.bf16.mxu0 0
      %1264 = vmatpush1.bf16.msra.mxu0 0
      %1265 = vmatprep.subr.bf16.mxu0 0
      %1266 = vmatpush1.bf16.msra.mxu0 0
      %1267 = vmatprep.subr.bf16.mxu0 0
      %1268 = vmatpush1.bf16.msra.mxu0 0
      %1269 = vmatprep.subr.bf16.mxu0 0
      %1270 = vmatpush1.bf16.msra.mxu0 0
      %1271 = vmatprep.mubr.bf16.mxu0 0
      %1272 = vmatmul.mubr.bf16.gmra.mrb[0].mxu0 %v1234
      %v1273 = vpop.f32.mrb[0].mxu0
      %v1274 = vadd.f32 %v1228, %v1273
      %v1275 = vpop.f32.mrb[0].mxu0
      %v1276 = vpop.f32.mrb[0].mxu0
      %v1277 = vpop.f32.mrb[0].mxu0
      %1278 = vdwg.mxu0
      %1279 = vrot.lane.b32.xlu0 %v588, 112
      %v1280 = vpop.permute.xlu0 %1279
      %1281 = vrot.lane.b32.xlu0 %v589, 112
      %v1282 = vpop.permute.xlu0 %1281
      %1285 = vrot.lane.b32.xlu0 %v915, 112
      %v1286 = vpop.permute.xlu0 %1285
      %1288 = vmatprep.subr.bf16.mxu0 0
      %1289 = vmatpush1.bf16.msra.mxu0 %v1280
      %1290 = vmatprep.subr.bf16.mxu0 0
      %1291 = vmatpush1.bf16.msra.mxu0 %v1282
      %1292 = vmatprep.subr.bf16.mxu0 0
      %1293 = vmatpush1.bf16.msra.mxu0 0
      %1294 = vmatprep.subr.bf16.mxu0 0
      %1295 = vmatpush1.bf16.msra.mxu0 0
      %1296 = vmatprep.subr.bf16.mxu0 0
      %1297 = vmatpush1.bf16.msra.mxu0 0
      %1298 = vmatprep.subr.bf16.mxu0 0
      %1299 = vmatpush1.bf16.msra.mxu0 0
      %1300 = vmatprep.subr.bf16.mxu0 0
      %1301 = vmatpush1.bf16.msra.mxu0 0
      %1302 = vmatprep.subr.bf16.mxu0 0
      %1303 = vmatpush1.bf16.msra.mxu0 0
      %1304 = vmatprep.subr.bf16.mxu0 0
      %1305 = vmatpush1.bf16.msra.mxu0 0
      %1306 = vmatprep.subr.bf16.mxu0 0
      %1307 = vmatpush1.bf16.msra.mxu0 0
      %1308 = vmatprep.subr.bf16.mxu0 0
      %1309 = vmatpush1.bf16.msra.mxu0 0
      %1310 = vmatprep.subr.bf16.mxu0 0
      %1311 = vmatpush1.bf16.msra.mxu0 0
      %1312 = vmatprep.subr.bf16.mxu0 0
      %1313 = vmatpush1.bf16.msra.mxu0 0
      %1314 = vmatprep.subr.bf16.mxu0 0
      %1315 = vmatpush1.bf16.msra.mxu0 0
      %1316 = vmatprep.subr.bf16.mxu0 0
      %1317 = vmatpush1.bf16.msra.mxu0 0
      %1318 = vmatprep.subr.bf16.mxu0 0
      %1319 = vmatpush1.bf16.msra.mxu0 0
      %1320 = vmatprep.mubr.bf16.mxu0 0
      %1321 = vmatmul.mubr.bf16.gmra.mrb[0].mxu0 %v594
      %v1322 = vpop.f32.mrb[0].mxu0
      %v1323 = vadd.f32 %v1286, %v1322
      %v1324 = vpop.f32.mrb[0].mxu0
      %v1325 = vpop.f32.mrb[0].mxu0
      %v1326 = vpop.f32.mrb[0].mxu0
      %1327 = vdwg.mxu0
      %1328 = vrot.lane.b32.xlu0 %v655, 112
      %v1329 = vpop.permute.xlu0 %1328
      %1330 = vrot.lane.b32.xlu0 %v656, 112
      %v1331 = vpop.permute.xlu0 %1330
      %1334 = vrot.lane.b32.xlu0 %v645, 112
      %v1335 = vpop.permute.xlu0 %1334
      %1337 = vmatprep.subr.bf16.mxu0 0
      %1338 = vmatpush1.bf16.msra.mxu0 %v1329
      %1339 = vmatprep.subr.bf16.mxu0 0
      %1340 = vmatpush1.bf16.msra.mxu0 %v1331
      %1341 = vmatprep.subr.bf16.mxu0 0
      %1342 = vmatpush1.bf16.msra.mxu0 0
      %1343 = vmatprep.subr.bf16.mxu0 0
      %1344 = vmatpush1.bf16.msra.mxu0 0
      %1345 = vmatprep.subr.bf16.mxu0 0
      %1346 = vmatpush1.bf16.msra.mxu0 0
      %1347 = vmatprep.subr.bf16.mxu0 0
      %1348 = vmatpush1.bf16.msra.mxu0 0
      %1349 = vmatprep.subr.bf16.mxu0 0
      %1350 = vmatpush1.bf16.msra.mxu0 0
      %1351 = vmatprep.subr.bf16.mxu0 0
      %1352 = vmatpush1.bf16.msra.mxu0 0
      %1353 = vmatprep.subr.bf16.mxu0 0
      %1354 = vmatpush1.bf16.msra.mxu0 0
      %1355 = vmatprep.subr.bf16.mxu0 0
      %1356 = vmatpush1.bf16.msra.mxu0 0
      %1357 = vmatprep.subr.bf16.mxu0 0
      %1358 = vmatpush1.bf16.msra.mxu0 0
      %1359 = vmatprep.subr.bf16.mxu0 0
      %1360 = vmatpush1.bf16.msra.mxu0 0
      %1361 = vmatprep.subr.bf16.mxu0 0
      %1362 = vmatpush1.bf16.msra.mxu0 0
      %1363 = vmatprep.subr.bf16.mxu0 0
      %1364 = vmatpush1.bf16.msra.mxu0 0
      %1365 = vmatprep.subr.bf16.mxu0 0
      %1366 = vmatpush1.bf16.msra.mxu0 0
      %1367 = vmatprep.subr.bf16.mxu0 0
      %1368 = vmatpush1.bf16.msra.mxu0 0
      %1369 = vmatprep.mubr.bf16.mxu0 0
      %1370 = vmatmul.mubr.bf16.gmra.mrb[0].mxu0 %v660
      %v1371 = vpop.f32.mrb[0].mxu0
      %v1372 = vadd.f32 %v1335, %v1371
      %v1373 = vpop.f32.mrb[0].mxu0
      %v1374 = vpop.f32.mrb[0].mxu0
      %v1375 = vadd.f32 %v1335, %v1374
      %v1376 = vpop.f32.mrb[0].mxu0
      %1377 = vmatprep.mubr.bf16.mxu0 0
      %1378 = vmatmul.mubr.bf16.gmra.mrb[0].mxu0 %v663
      %v1379 = vpop.f32.mrb[0].mxu0
      %v1380 = vadd.f32 %v1335, %v1379
      %v1381 = vpop.f32.mrb[0].mxu0
      %v1382 = vpop.f32.mrb[0].mxu0
      %v1383 = vadd.f32 %v1335, %v1382
      %v1384 = vpop.f32.mrb[0].mxu0
      %1385 = vdwg.mxu0
      %1386 = vrot.lane.b32.xlu0 %v733, 112
      %v1387 = vpop.permute.xlu0 %1386
      %1388 = vrot.lane.b32.xlu0 %v734, 112
      %v1389 = vpop.permute.xlu0 %1388
      %1392 = vrot.lane.b32.xlu0 %v723, 112
      %v1393 = vpop.permute.xlu0 %1392
      %1395 = vmatprep.subr.bf16.mxu0 0
      %1396 = vmatpush1.bf16.msra.mxu0 %v1387
      %1397 = vmatprep.subr.bf16.mxu0 0
      %1398 = vmatpush1.bf16.msra.mxu0 %v1389
      %1399 = vmatprep.subr.bf16.mxu0 0
      %1400 = vmatpush1.bf16.msra.mxu0 0
      %1401 = vmatprep.subr.bf16.mxu0 0
      %1402 = vmatpush1.bf16.msra.mxu0 0
      %1403 = vmatprep.subr.bf16.mxu0 0
      %1404 = vmatpush1.bf16.msra.mxu0 0
      %1405 = vmatprep.subr.bf16.mxu0 0
      %1406 = vmatpush1.bf16.msra.mxu0 0
      %1407 = vmatprep.subr.bf16.mxu0 0
      %1408 = vmatpush1.bf16.msra.mxu0 0
      %1409 = vmatprep.subr.bf16.mxu0 0
      %1410 = vmatpush1.bf16.msra.mxu0 0
      %1411 = vmatprep.subr.bf16.mxu0 0
      %1412 = vmatpush1.bf16.msra.mxu0 0
      %1413 = vmatprep.subr.bf16.mxu0 0
      %1414 = vmatpush1.bf16.msra.mxu0 0
      %1415 = vmatprep.subr.bf16.mxu0 0
      %1416 = vmatpush1.bf16.msra.mxu0 0
      %1417 = vmatprep.subr.bf16.mxu0 0
      %1418 = vmatpush1.bf16.msra.mxu0 0
      %1419 = vmatprep.subr.bf16.mxu0 0
      %1420 = vmatpush1.bf16.msra.mxu0 0
      %1421 = vmatprep.subr.bf16.mxu0 0
      %1422 = vmatpush1.bf16.msra.mxu0 0
      %1423 = vmatprep.subr.bf16.mxu0 0
      %1424 = vmatpush1.bf16.msra.mxu0 0
      %1425 = vmatprep.subr.bf16.mxu0 0
      %1426 = vmatpush1.bf16.msra.mxu0 0
      %1427 = vmatprep.mubr.bf16.mxu0 0
      %1428 = vmatmul.mubr.bf16.gmra.mrb[0].mxu0 %v738
      %v1429 = vpop.f32.mrb[0].mxu0
      %v1430 = vadd.f32 %v1393, %v1429
      %v1431 = vpop.f32.mrb[0].mxu0
      %v1432 = vpop.f32.mrb[0].mxu0
      %v1433 = vadd.f32 %v1393, %v1432
      %v1434 = vpop.f32.mrb[0].mxu0
      %1435 = vmatprep.mubr.bf16.mxu0 0
      %1436 = vmatmul.mubr.bf16.gmra.mrb[0].mxu0 %v741
      %v1437 = vpop.f32.mrb[0].mxu0
      %v1438 = vadd.f32 %v1393, %v1437
      %v1439 = vpop.f32.mrb[0].mxu0
      %v1440 = vpop.f32.mrb[0].mxu0
      %v1441 = vadd.f32 %v1393, %v1440
      %v1442 = vpop.f32.mrb[0].mxu0
      %1443 = vdwg.mxu0
      %v1444 = vpack.c.bf16 %v1323, %v1323
      %v1445 = vpack.c.bf16 %v1375, %v1372
      %v1446 = vpack.c.bf16 %v1383, %v1380
      %v1448 = vsel %vm795, %v1444, 0
      %v1451 = vsel %vm795, %v1445, 0
      %v1454 = vsel %vm795, %v1446, 0
      %1456 = vmatprep.subr.bf16.mxu0 0
      %1457 = vmatpush1.bf16.xpose.msra.mxu0 %v1451
      %1458 = vmatprep.subr.bf16.mxu0 0
      %1459 = vmatpush1.bf16.xpose.msra.mxu0 %v1454
      %1460 = vmatprep.subr.bf16.mxu0 0
      %1461 = vmatpush1.bf16.xpose.msra.mxu0 0
      %1462 = vmatprep.subr.bf16.mxu0 0
      %1463 = vmatpush1.bf16.xpose.msra.mxu0 0
      %1464 = vmatprep.subr.bf16.mxu0 0
      %1465 = vmatpush1.bf16.xpose.msra.mxu0 0
      %1466 = vmatprep.subr.bf16.mxu0 0
      %1467 = vmatpush1.bf16.xpose.msra.mxu0 0
      %1468 = vmatprep.subr.bf16.mxu0 0
      %1469 = vmatpush1.bf16.xpose.msra.mxu0 0
      %1470 = vmatprep.subr.bf16.mxu0 0
      %1471 = vmatpush1.bf16.xpose.msra.mxu0 0
      %1472 = vmatprep.subr.bf16.mxu0 0
      %1473 = vmatpush1.bf16.xpose.msra.mxu0 0
      %1474 = vmatprep.subr.bf16.mxu0 0
      %1475 = vmatpush1.bf16.xpose.msra.mxu0 0
      %1476 = vmatprep.subr.bf16.mxu0 0
      %1477 = vmatpush1.bf16.xpose.msra.mxu0 0
      %1478 = vmatprep.subr.bf16.mxu0 0
      %1479 = vmatpush1.bf16.xpose.msra.mxu0 0
      %1480 = vmatprep.subr.bf16.mxu0 0
      %1481 = vmatpush1.bf16.xpose.msra.mxu0 0
      %1482 = vmatprep.subr.bf16.mxu0 0
      %1483 = vmatpush1.bf16.xpose.msra.mxu0 0
      %1484 = vmatprep.subr.bf16.mxu0 0
      %1485 = vmatpush1.bf16.xpose.msra.mxu0 0
      %1486 = vmatprep.subr.bf16.mxu0 0
      %1487 = vmatpush1.bf16.xpose.msra.mxu0 0
      %1488 = vmatprep.mubr.bf16.mxu0 0
      %1489 = vmatmul.mubr.bf16.gmra.mrb[0].mxu0 %v1448
      %v1490 = vpop.f32.mrb[0].mxu0
      %v1491 = vadd.f32 %v574, %v1490
      %v1492 = vpop.f32.mrb[0].mxu0
      %v1493 = vpop.f32.mrb[0].mxu0
      %v1494 = vpop.f32.mrb[0].mxu0
      %1495 = vdwg.mxu0
      %v1496 = vsel %vm845, %v1491, -inf
      %1497 = vmax.xlane.f32.xlu0 %v1496
      %v1498 = vpop.xlane.xlu0 %1497
      %v1499 = vsub.f32 %v1491, %v1498
      %v1500 = vmul.f32 %v1499, 1.442695
      %v1501 = vpow.pop %v1500
      %v1502 = vsel %vm845, %v1501, 0.0
      %1503 = vadd.xlane.f32.xlu0 %v1502
      %v1504 = vpop.xlane.xlu0 %1503
      %v1505 = vrcp.pop %v1504
      %v1506 = vpack.c.bf16 %v1501, %v1501
      %v1507 = vpack.c.bf16 %v1433, %v1430
      %v1508 = vpack.c.bf16 %v1441, %v1438
      %v1510 = vsel %vm592, %v1506, 0
      %1512 = vmatprep.subr.bf16.mxu0 0
      %1513 = vmatpush1.bf16.msra.mxu0 %v1507
      %1514 = vmatprep.subr.bf16.mxu0 0
      %1515 = vmatpush1.bf16.msra.mxu0 %v1508
      %1516 = vmatprep.subr.bf16.mxu0 0
      %1517 = vmatpush1.bf16.msra.mxu0 0
      %1518 = vmatprep.subr.bf16.mxu0 0
      %1519 = vmatpush1.bf16.msra.mxu0 0
      %1520 = vmatprep.subr.bf16.mxu0 0
      %1521 = vmatpush1.bf16.msra.mxu0 0
      %1522 = vmatprep.subr.bf16.mxu0 0
      %1523 = vmatpush1.bf16.msra.mxu0 0
      %1524 = vmatprep.subr.bf16.mxu0 0
      %1525 = vmatpush1.bf16.msra.mxu0 0
      %1526 = vmatprep.subr.bf16.mxu0 0
      %1527 = vmatpush1.bf16.msra.mxu0 0
      %1528 = vmatprep.subr.bf16.mxu0 0
      %1529 = vmatpush1.bf16.msra.mxu0 0
      %1530 = vmatprep.subr.bf16.mxu0 0
      %1531 = vmatpush1.bf16.msra.mxu0 0
      %1532 = vmatprep.subr.bf16.mxu0 0
      %1533 = vmatpush1.bf16.msra.mxu0 0
      %1534 = vmatprep.subr.bf16.mxu0 0
      %1535 = vmatpush1.bf16.msra.mxu0 0
      %1536 = vmatprep.subr.bf16.mxu0 0
      %1537 = vmatpush1.bf16.msra.mxu0 0
      %1538 = vmatprep.subr.bf16.mxu0 0
      %1539 = vmatpush1.bf16.msra.mxu0 0
      %1540 = vmatprep.subr.bf16.mxu0 0
      %1541 = vmatpush1.bf16.msra.mxu0 0
      %1542 = vmatprep.subr.bf16.mxu0 0
      %1543 = vmatpush1.bf16.msra.mxu0 0
      %1544 = vmatprep.mubr.bf16.mxu0 0
      %1545 = vmatmul.mubr.bf16.gmra.mrb[0].mxu0 %v1510
      %v1546 = vpop.f32.mrb[0].mxu0
      %v1547 = vadd.f32 0.0, %v1546
      %v1548 = vpop.f32.mrb[0].mxu0
      %v1549 = vpop.f32.mrb[0].mxu0
      %v1550 = vpop.f32.mrb[0].mxu0
      %1551 = vdwg.mxu0
      %v1552 = vmul.f32 %v1547, %v1505
      %v1553 = vpack.c.bf16 %v1552, %v1552
      %v1554 = vld [vmem:[%s11 + $0x8] sm:$0xf]
      %v1556 = vsel %vm795, %v1553, 0
      %v1559 = vsel %vm1189, %v1554, 0
      %1561 = vmatprep.subr.bf16.mxu0 0
      %1562 = vmatpush1.bf16.msra.mxu0 %v1559
      %1563 = vmatprep.subr.bf16.mxu0 0
      %1564 = vmatpush1.bf16.msra.mxu0 0
      %1565 = vmatprep.subr.bf16.mxu0 0
      %1566 = vmatpush1.bf16.msra.mxu0 0
      %1567 = vmatprep.subr.bf16.mxu0 0
      %1568 = vmatpush1.bf16.msra.mxu0 0
      %1569 = vmatprep.subr.bf16.mxu0 0
      %1570 = vmatpush1.bf16.msra.mxu0 0
      %1571 = vmatprep.subr.bf16.mxu0 0
      %1572 = vmatpush1.bf16.msra.mxu0 0
      %1573 = vmatprep.subr.bf16.mxu0 0
      %1574 = vmatpush1.bf16.msra.mxu0 0
      %1575 = vmatprep.subr.bf16.mxu0 0
      %1576 = vmatpush1.bf16.msra.mxu0 0
      %1577 = vmatprep.subr.bf16.mxu0 0
      %1578 = vmatpush1.bf16.msra.mxu0 0
      %1579 = vmatprep.subr.bf16.mxu0 0
      %1580 = vmatpush1.bf16.msra.mxu0 0
      %1581 = vmatprep.subr.bf16.mxu0 0
      %1582 = vmatpush1.bf16.msra.mxu0 0
      %1583 = vmatprep.subr.bf16.mxu0 0
      %1584 = vmatpush1.bf16.msra.mxu0 0
      %1585 = vmatprep.subr.bf16.mxu0 0
      %1586 = vmatpush1.bf16.msra.mxu0 0
      %1587 = vmatprep.subr.bf16.mxu0 0
      %1588 = vmatpush1.bf16.msra.mxu0 0
      %1589 = vmatprep.subr.bf16.mxu0 0
      %1590 = vmatpush1.bf16.msra.mxu0 0
      %1591 = vmatprep.subr.bf16.mxu0 0
      %1592 = vmatpush1.bf16.msra.mxu0 0
      %1593 = vmatprep.mubr.bf16.mxu0 0
      %1594 = vmatmul.mubr.bf16.gmra.mrb[0].mxu0 %v1556
      %v1595 = vpop.f32.mrb[0].mxu0
      %v1596 = vadd.f32 0.0, %v1595
      %v1597 = vpop.f32.mrb[0].mxu0
      %v1598 = vpop.f32.mrb[0].mxu0
      %v1599 = vpop.f32.mrb[0].mxu0
      %1600 = vdwg.mxu0
      %v1601 = vadd.f32 %v1274, %v1596
      %1602 = vrot.lane.b32.xlu0 %v588, 104
      %v1603 = vpop.permute.xlu0 %1602
      %1604 = vrot.lane.b32.xlu0 %v589, 104
      %v1605 = vpop.permute.xlu0 %1604
      %1608 = vrot.lane.b32.xlu0 %v915, 104
      %v1609 = vpop.permute.xlu0 %1608
      %1611 = vmatprep.subr.bf16.mxu0 0
      %1612 = vmatpush1.bf16.msra.mxu0 %v1603
      %1613 = vmatprep.subr.bf16.mxu0 0
      %1614 = vmatpush1.bf16.msra.mxu0 %v1605
      %1615 = vmatprep.subr.bf16.mxu0 0
      %1616 = vmatpush1.bf16.msra.mxu0 0
      %1617 = vmatprep.subr.bf16.mxu0 0
      %1618 = vmatpush1.bf16.msra.mxu0 0
      %1619 = vmatprep.subr.bf16.mxu0 0
      %1620 = vmatpush1.bf16.msra.mxu0 0
      %1621 = vmatprep.subr.bf16.mxu0 0
      %1622 = vmatpush1.bf16.msra.mxu0 0
      %1623 = vmatprep.subr.bf16.mxu0 0
      %1624 = vmatpush1.bf16.msra.mxu0 0
      %1625 = vmatprep.subr.bf16.mxu0 0
      %1626 = vmatpush1.bf16.msra.mxu0 0
      %1627 = vmatprep.subr.bf16.mxu0 0
      %1628 = vmatpush1.bf16.msra.mxu0 0
      %1629 = vmatprep.subr.bf16.mxu0 0
      %1630 = vmatpush1.bf16.msra.mxu0 0
      %1631 = vmatprep.subr.bf16.mxu0 0
      %1632 = vmatpush1.bf16.msra.mxu0 0
      %1633 = vmatprep.subr.bf16.mxu0 0
      %1634 = vmatpush1.bf16.msra.mxu0 0
      %1635 = vmatprep.subr.bf16.mxu0 0
      %1636 = vmatpush1.bf16.msra.mxu0 0
      %1637 = vmatprep.subr.bf16.mxu0 0
      %1638 = vmatpush1.bf16.msra.mxu0 0
      %1639 = vmatprep.subr.bf16.mxu0 0
      %1640 = vmatpush1.bf16.msra.mxu0 0
      %1641 = vmatprep.subr.bf16.mxu0 0
      %1642 = vmatpush1.bf16.msra.mxu0 0
      %1643 = vmatprep.mubr.bf16.mxu0 0
      %1644 = vmatmul.mubr.bf16.gmra.mrb[0].mxu0 %v594
      %v1645 = vpop.f32.mrb[0].mxu0
      %v1646 = vadd.f32 %v1609, %v1645
      %v1647 = vpop.f32.mrb[0].mxu0
      %v1648 = vpop.f32.mrb[0].mxu0
      %v1649 = vpop.f32.mrb[0].mxu0
      %1650 = vdwg.mxu0
      %1651 = vrot.lane.b32.xlu0 %v655, 104
      %v1652 = vpop.permute.xlu0 %1651
      %1653 = vrot.lane.b32.xlu0 %v656, 104
      %v1654 = vpop.permute.xlu0 %1653
      %1657 = vrot.lane.b32.xlu0 %v645, 104
      %v1658 = vpop.permute.xlu0 %1657
      %1660 = vmatprep.subr.bf16.mxu0 0
      %1661 = vmatpush1.bf16.msra.mxu0 %v1652
      %1662 = vmatprep.subr.bf16.mxu0 0
      %1663 = vmatpush1.bf16.msra.mxu0 %v1654
      %1664 = vmatprep.subr.bf16.mxu0 0
      %1665 = vmatpush1.bf16.msra.mxu0 0
      %1666 = vmatprep.subr.bf16.mxu0 0
      %1667 = vmatpush1.bf16.msra.mxu0 0
      %1668 = vmatprep.subr.bf16.mxu0 0
      %1669 = vmatpush1.bf16.msra.mxu0 0
      %1670 = vmatprep.subr.bf16.mxu0 0
      %1671 = vmatpush1.bf16.msra.mxu0 0
      %1672 = vmatprep.subr.bf16.mxu0 0
      %1673 = vmatpush1.bf16.msra.mxu0 0
      %1674 = vmatprep.subr.bf16.mxu0 0
      %1675 = vmatpush1.bf16.msra.mxu0 0
      %1676 = vmatprep.subr.bf16.mxu0 0
      %1677 = vmatpush1.bf16.msra.mxu0 0
      %1678 = vmatprep.subr.bf16.mxu0 0
      %1679 = vmatpush1.bf16.msra.mxu0 0
      %1680 = vmatprep.subr.bf16.mxu0 0
      %1681 = vmatpush1.bf16.msra.mxu0 0
      %1682 = vmatprep.subr.bf16.mxu0 0
      %1683 = vmatpush1.bf16.msra.mxu0 0
      %1684 = vmatprep.subr.bf16.mxu0 0
      %1685 = vmatpush1.bf16.msra.mxu0 0
      %1686 = vmatprep.subr.bf16.mxu0 0
      %1687 = vmatpush1.bf16.msra.mxu0 0
      %1688 = vmatprep.subr.bf16.mxu0 0
      %1689 = vmatpush1.bf16.msra.mxu0 0
      %1690 = vmatprep.subr.bf16.mxu0 0
      %1691 = vmatpush1.bf16.msra.mxu0 0
      %1692 = vmatprep.mubr.bf16.mxu0 0
      %1693 = vmatmul.mubr.bf16.gmra.mrb[0].mxu0 %v660
      %v1694 = vpop.f32.mrb[0].mxu0
      %v1695 = vadd.f32 %v1658, %v1694
      %v1696 = vpop.f32.mrb[0].mxu0
      %v1697 = vpop.f32.mrb[0].mxu0
      %v1698 = vadd.f32 %v1658, %v1697
      %v1699 = vpop.f32.mrb[0].mxu0
      %1700 = vmatprep.mubr.bf16.mxu0 0
      %1701 = vmatmul.mubr.bf16.gmra.mrb[0].mxu0 %v663
      %v1702 = vpop.f32.mrb[0].mxu0
      %v1703 = vadd.f32 %v1658, %v1702
      %v1704 = vpop.f32.mrb[0].mxu0
      %v1705 = vpop.f32.mrb[0].mxu0
      %v1706 = vadd.f32 %v1658, %v1705
      %v1707 = vpop.f32.mrb[0].mxu0
      %1708 = vdwg.mxu0
      %1709 = vrot.lane.b32.xlu0 %v733, 104
      %v1710 = vpop.permute.xlu0 %1709
      %1711 = vrot.lane.b32.xlu0 %v734, 104
      %v1712 = vpop.permute.xlu0 %1711
      %1715 = vrot.lane.b32.xlu0 %v723, 104
      %v1716 = vpop.permute.xlu0 %1715
      %1718 = vmatprep.subr.bf16.mxu0 0
      %1719 = vmatpush1.bf16.msra.mxu0 %v1710
      %1720 = vmatprep.subr.bf16.mxu0 0
      %1721 = vmatpush1.bf16.msra.mxu0 %v1712
      %1722 = vmatprep.subr.bf16.mxu0 0
      %1723 = vmatpush1.bf16.msra.mxu0 0
      %1724 = vmatprep.subr.bf16.mxu0 0
      %1725 = vmatpush1.bf16.msra.mxu0 0
      %1726 = vmatprep.subr.bf16.mxu0 0
      %1727 = vmatpush1.bf16.msra.mxu0 0
      %1728 = vmatprep.subr.bf16.mxu0 0
      %1729 = vmatpush1.bf16.msra.mxu0 0
      %1730 = vmatprep.subr.bf16.mxu0 0
      %1731 = vmatpush1.bf16.msra.mxu0 0
      %1732 = vmatprep.subr.bf16.mxu0 0
      %1733 = vmatpush1.bf16.msra.mxu0 0
      %1734 = vmatprep.subr.bf16.mxu0 0
      %1735 = vmatpush1.bf16.msra.mxu0 0
      %1736 = vmatprep.subr.bf16.mxu0 0
      %1737 = vmatpush1.bf16.msra.mxu0 0
      %1738 = vmatprep.subr.bf16.mxu0 0
      %1739 = vmatpush1.bf16.msra.mxu0 0
      %1740 = vmatprep.subr.bf16.mxu0 0
      %1741 = vmatpush1.bf16.msra.mxu0 0
      %1742 = vmatprep.subr.bf16.mxu0 0
      %1743 = vmatpush1.bf16.msra.mxu0 0
      %1744 = vmatprep.subr.bf16.mxu0 0
      %1745 = vmatpush1.bf16.msra.mxu0 0
      %1746 = vmatprep.subr.bf16.mxu0 0
      %1747 = vmatpush1.bf16.msra.mxu0 0
      %1748 = vmatprep.subr.bf16.mxu0 0
      %1749 = vmatpush1.bf16.msra.mxu0 0
      %1750 = vmatprep.mubr.bf16.mxu0 0
      %1751 = vmatmul.mubr.bf16.gmra.mrb[0].mxu0 %v738
      %v1752 = vpop.f32.mrb[0].mxu0
      %v1753 = vadd.f32 %v1716, %v1752
      %v1754 = vpop.f32.mrb[0].mxu0
      %v1755 = vpop.f32.mrb[0].mxu0
      %v1756 = vadd.f32 %v1716, %v1755
      %v1757 = vpop.f32.mrb[0].mxu0
      %1758 = vmatprep.mubr.bf16.mxu0 0
      %1759 = vmatmul.mubr.bf16.gmra.mrb[0].mxu0 %v741
      %v1760 = vpop.f32.mrb[0].mxu0
      %v1761 = vadd.f32 %v1716, %v1760
      %v1762 = vpop.f32.mrb[0].mxu0
      %v1763 = vpop.f32.mrb[0].mxu0
      %v1764 = vadd.f32 %v1716, %v1763
      %v1765 = vpop.f32.mrb[0].mxu0
      %1766 = vdwg.mxu0
      %v1767 = vpack.c.bf16 %v1646, %v1646
      %v1768 = vpack.c.bf16 %v1698, %v1695
      %v1769 = vpack.c.bf16 %v1706, %v1703
      %v1771 = vsel %vm795, %v1767, 0
      %v1774 = vsel %vm795, %v1768, 0
      %v1777 = vsel %vm795, %v1769, 0
      %1779 = vmatprep.subr.bf16.mxu0 0
      %1780 = vmatpush1.bf16.xpose.msra.mxu0 %v1774
      %1781 = vmatprep.subr.bf16.mxu0 0
      %1782 = vmatpush1.bf16.xpose.msra.mxu0 %v1777
      %1783 = vmatprep.subr.bf16.mxu0 0
      %1784 = vmatpush1.bf16.xpose.msra.mxu0 0
      %1785 = vmatprep.subr.bf16.mxu0 0
      %1786 = vmatpush1.bf16.xpose.msra.mxu0 0
      %1787 = vmatprep.subr.bf16.mxu0 0
      %1788 = vmatpush1.bf16.xpose.msra.mxu0 0
      %1789 = vmatprep.subr.bf16.mxu0 0
      %1790 = vmatpush1.bf16.xpose.msra.mxu0 0
      %1791 = vmatprep.subr.bf16.mxu0 0
      %1792 = vmatpush1.bf16.xpose.msra.mxu0 0
      %1793 = vmatprep.subr.bf16.mxu0 0
      %1794 = vmatpush1.bf16.xpose.msra.mxu0 0
      %1795 = vmatprep.subr.bf16.mxu0 0
      %1796 = vmatpush1.bf16.xpose.msra.mxu0 0
      %1797 = vmatprep.subr.bf16.mxu0 0
      %1798 = vmatpush1.bf16.xpose.msra.mxu0 0
      %1799 = vmatprep.subr.bf16.mxu0 0
      %1800 = vmatpush1.bf16.xpose.msra.mxu0 0
      %1801 = vmatprep.subr.bf16.mxu0 0
      %1802 = vmatpush1.bf16.xpose.msra.mxu0 0
      %1803 = vmatprep.subr.bf16.mxu0 0
      %1804 = vmatpush1.bf16.xpose.msra.mxu0 0
      %1805 = vmatprep.subr.bf16.mxu0 0
      %1806 = vmatpush1.bf16.xpose.msra.mxu0 0
      %1807 = vmatprep.subr.bf16.mxu0 0
      %1808 = vmatpush1.bf16.xpose.msra.mxu0 0
      %1809 = vmatprep.subr.bf16.mxu0 0
      %1810 = vmatpush1.bf16.xpose.msra.mxu0 0
      %1811 = vmatprep.mubr.bf16.mxu0 0
      %1812 = vmatmul.mubr.bf16.gmra.mrb[0].mxu0 %v1771
      %v1813 = vpop.f32.mrb[0].mxu0
      %v1814 = vadd.f32 %v574, %v1813
      %v1815 = vpop.f32.mrb[0].mxu0
      %v1816 = vpop.f32.mrb[0].mxu0
      %v1817 = vpop.f32.mrb[0].mxu0
      %1818 = vdwg.mxu0
      %v1819 = vsel %vm845, %v1814, -inf
      %1820 = vmax.xlane.f32.xlu0 %v1819
      %v1821 = vpop.xlane.xlu0 %1820
      %v1822 = vsub.f32 %v1814, %v1821
      %v1823 = vmul.f32 %v1822, 1.442695
      %v1824 = vpow.pop %v1823
      %v1825 = vsel %vm845, %v1824, 0.0
      %1826 = vadd.xlane.f32.xlu0 %v1825
      %v1827 = vpop.xlane.xlu0 %1826
      %v1828 = vrcp.pop %v1827
      %v1829 = vpack.c.bf16 %v1824, %v1824
      %v1830 = vpack.c.bf16 %v1756, %v1753
      %v1831 = vpack.c.bf16 %v1764, %v1761
      %v1833 = vsel %vm592, %v1829, 0
      %1835 = vmatprep.subr.bf16.mxu0 0
      %1836 = vmatpush1.bf16.msra.mxu0 %v1830
      %1837 = vmatprep.subr.bf16.mxu0 0
      %1838 = vmatpush1.bf16.msra.mxu0 %v1831
      %1839 = vmatprep.subr.bf16.mxu0 0
      %1840 = vmatpush1.bf16.msra.mxu0 0
      %1841 = vmatprep.subr.bf16.mxu0 0
      %1842 = vmatpush1.bf16.msra.mxu0 0
      %1843 = vmatprep.subr.bf16.mxu0 0
      %1844 = vmatpush1.bf16.msra.mxu0 0
      %1845 = vmatprep.subr.bf16.mxu0 0
      %1846 = vmatpush1.bf16.msra.mxu0 0
      %1847 = vmatprep.subr.bf16.mxu0 0
      %1848 = vmatpush1.bf16.msra.mxu0 0
      %1849 = vmatprep.subr.bf16.mxu0 0
      %1850 = vmatpush1.bf16.msra.mxu0 0
      %1851 = vmatprep.subr.bf16.mxu0 0
      %1852 = vmatpush1.bf16.msra.mxu0 0
      %1853 = vmatprep.subr.bf16.mxu0 0
      %1854 = vmatpush1.bf16.msra.mxu0 0
      %1855 = vmatprep.subr.bf16.mxu0 0
      %1856 = vmatpush1.bf16.msra.mxu0 0
      %1857 = vmatprep.subr.bf16.mxu0 0
      %1858 = vmatpush1.bf16.msra.mxu0 0
      %1859 = vmatprep.subr.bf16.mxu0 0
      %1860 = vmatpush1.bf16.msra.mxu0 0
      %1861 = vmatprep.subr.bf16.mxu0 0
      %1862 = vmatpush1.bf16.msra.mxu0 0
      %1863 = vmatprep.subr.bf16.mxu0 0
      %1864 = vmatpush1.bf16.msra.mxu0 0
      %1865 = vmatprep.subr.bf16.mxu0 0
      %1866 = vmatpush1.bf16.msra.mxu0 0
      %1867 = vmatprep.mubr.bf16.mxu0 0
      %1868 = vmatmul.mubr.bf16.gmra.mrb[0].mxu0 %v1833
      %v1869 = vpop.f32.mrb[0].mxu0
      %v1870 = vadd.f32 0.0, %v1869
      %v1871 = vpop.f32.mrb[0].mxu0
      %v1872 = vpop.f32.mrb[0].mxu0
      %v1873 = vpop.f32.mrb[0].mxu0
      %1874 = vdwg.mxu0
      %v1875 = vmul.f32 %v1870, %v1828
      %v1876 = vpack.c.bf16 %v1875, %v1875
      %v1877 = vld [vmem:[%s11 + $0xc] sm:$0xf]
      %v1879 = vsel %vm795, %v1876, 0
      %v1882 = vsel %vm1189, %v1877, 0
      %1884 = vmatprep.subr.bf16.mxu0 0
      %1885 = vmatpush1.bf16.msra.mxu0 %v1882
      %1886 = vmatprep.subr.bf16.mxu0 0
      %1887 = vmatpush1.bf16.msra.mxu0 0
      %1888 = vmatprep.subr.bf16.mxu0 0
      %1889 = vmatpush1.bf16.msra.mxu0 0
      %1890 = vmatprep.subr.bf16.mxu0 0
      %1891 = vmatpush1.bf16.msra.mxu0 0
      %1892 = vmatprep.subr.bf16.mxu0 0
      %1893 = vmatpush1.bf16.msra.mxu0 0
      %1894 = vmatprep.subr.bf16.mxu0 0
      %1895 = vmatpush1.bf16.msra.mxu0 0
      %1896 = vmatprep.subr.bf16.mxu0 0
      %1897 = vmatpush1.bf16.msra.mxu0 0
      %1898 = vmatprep.subr.bf16.mxu0 0
      %1899 = vmatpush1.bf16.msra.mxu0 0
      %1900 = vmatprep.subr.bf16.mxu0 0
      %1901 = vmatpush1.bf16.msra.mxu0 0
      %1902 = vmatprep.subr.bf16.mxu0 0
      %1903 = vmatpush1.bf16.msra.mxu0 0
      %1904 = vmatprep.subr.bf16.mxu0 0
      %1905 = vmatpush1.bf16.msra.mxu0 0
      %1906 = vmatprep.subr.bf16.mxu0 0
      %1907 = vmatpush1.bf16.msra.mxu0 0
      %1908 = vmatprep.subr.bf16.mxu0 0
      %1909 = vmatpush1.bf16.msra.mxu0 0
      %1910 = vmatprep.subr.bf16.mxu0 0
      %1911 = vmatpush1.bf16.msra.mxu0 0
      %1912 = vmatprep.subr.bf16.mxu0 0
      %1913 = vmatpush1.bf16.msra.mxu0 0
      %1914 = vmatprep.subr.bf16.mxu0 0
      %1915 = vmatpush1.bf16.msra.mxu0 0
      %1916 = vmatprep.mubr.bf16.mxu0 0
      %1917 = vmatmul.mubr.bf16.gmra.mrb[0].mxu0 %v1879
      %v1918 = vpop.f32.mrb[0].mxu0
      %v1919 = vadd.f32 0.0, %v1918
      %v1920 = vpop.f32.mrb[0].mxu0
      %v1921 = vpop.f32.mrb[0].mxu0
      %v1922 = vpop.f32.mrb[0].mxu0
      %1923 = vdwg.mxu0
      %v1924 = vadd.f32 %v1601, %v1919
      %v1925 = vadd.f32 %v554, %v1924
      %v1926 = vld [vmem:[%s12] sm:$0x1]
      %v1927 = vadd.f32 %v1925, %v1926
      %v1928 = vld [vmem:[%s13] sm:$0x1]
      %v1929 = vld [vmem:[%s14] sm:$0x1]
      %v1930 = vsel %vm845, %v1927, 0.0
      %1931 = vadd.xlane.f32.xlu0 %v1930
      %v1932 = vpop.xlane.xlu0 %1931
      %v1933 = vrcp.pop 32.0
      %v1934 = vmul.f32 %v1932, %v1933
      %v1935 = vsub.f32 %v1927, %v1934
      %v1936 = vmul.f32 %v1935, %v1935
      %v1937 = vsel %vm845, %v1936, 0.0
      %1938 = vadd.xlane.f32.xlu0 %v1937
      %v1939 = vpop.xlane.xlu0 %1938
      %v1940 = vmul.f32 %v1939, %v1933
      %v1941 = vadd.f32 %v1940, 1e-05
      %v1942 = vrsqrt.pop %v1941
      %v1943 = vmul.f32 %v1935, %v1942
      %v1944 = vmul.f32 %v1943, %v1928
      %v1945 = vadd.f32 %v1944, %v1929
      %1946 = vst.msk [vmem:[%s552] sm:$0x1] %vm845, %v1945
      %p1947 = scmp.lt.s32.totalorder %s26, 1
      %s1948 = scalar_select %p1947, %s26, 1
      %s1949 = scalar_lea.vmem %s15, %s1948
      // Predicated region
      $region81: #{rise_forward.17} parent=79 // pred_check
        %p1950 = pneg %p384
      $region82: #{rise_forward.17} parent=79 // pred_check_branch
        %1952 = sbr.rel (%p1950) target = $region84
      $region83: #{rise_forward.17} parent=79 // pred_region
        _
      $region84: #{rise_forward.17} parent=79 // pred_fallthru
        _
    $region80: #{rise_forward.17} parent=5 // pred_fallthru
      _
    %p1953 = scmp.le.s32.totalorder 2, %s21
    // Predicated region
    $region85: #{rise_forward.17} parent=5 // pred_check
      %p1954 = pneg %p1953
    $region86: #{rise_forward.17} parent=5 // pred_check_branch
      %1956 = sbr.rel (%p1954) target = $region88
    $region87: #{rise_forward.17} parent=5 // pred_region
      %s1957 = ssub.s32 %s21, 2
      // Predicated region
      $region89: #{rise_forward.17} parent=87 // pred_check
        %p1958 = pneg %p390
      $region90: #{rise_forward.17} parent=87 // pred_check_branch
        %1960 = sbr.rel (%p1958) target = $region92
      $region91: #{rise_forward.17} parent=87 // pred_region
        %p1961 = scmp.lt.s32.totalorder %s27, 1
        %s1962 = scalar_select %p1961, %s27, 1
        %s1963 = scalar_lea.vmem %s15, %s1962
      $region92: #{rise_forward.17} parent=87 // pred_fallthru
        _
    $region88: #{rise_forward.17} parent=5 // pred_fallthru
      _
  $region6: #{rise_forward.17} parent=0 // loop_footer
    %s25 = sadd.s32 1, %s21
  $region7: #{rise_forward.17} parent=0 // loop_footer_branch
    %20 = sbr.rel target = $region3
  $region8: #{rise_forward.17} parent=0 // loop_exit
    _

</llo_original>
